<compile_context>
chip_gen: v5e
topology: v5e:2x2
jax: 0.10.0
libtpu: 0.0.40
codegen_flags: <defaults>
</compile_context>

<pallas_src>
import functools

import jax
import jax.numpy as jnp
from jax import lax
from jax.experimental import pallas as pl
from jax.experimental.pallas import tpu as pltpu

H = 50          # LSTM hidden size (fixed by nn.LSTM(dim_emb, 50, ...))
HP = 128        # each gate padded to its own 128-lane tile
GW = 4 * HP     # padded 4-gate block width (i, f, g, o) per direction
LANE = 128


def _round_up(x, m):
    return (x + m - 1) // m * m


def attention_bilstm_kernel(emb_ref, len_ref,
                            wih_ref, b_ref,
                            whh_f_ref, whh_b_ref,
                            awf_ref, awb_ref,
                            wlin_f_ref, wlin_b_ref, blin_ref,
                            logits_ref, scores_ref,
                            z_ref, hf_ref, hb_ref, ef_ref, eb_ref,
                            *, seq_len, batch_tile, score_pad):
    T, BT, SP = seq_len, batch_tile, score_pad
    f32 = jnp.float32
    bf16 = jnp.bfloat16

    # ---- fused input projection for BOTH directions: one wide bf16 matmul,
    #      bias folded in, result stored as bf16 scratch -----------------------
    emb = emb_ref[0]                                             # (T*BT, E) bf16
    z = jnp.dot(emb, wih_ref[...], preferred_element_type=f32) + b_ref[...]
    z_ref[...] = z.astype(bf16)

    awf = awf_ref[...]                                           # (1, HP) f32
    awb = awb_ref[...]

    def lstm_step(h, c, z_in, whh_ref):
        # PyTorch gate order i, f, g, o; each gate sits in its own 128-lane tile.
        zt = z_in.astype(f32) + jnp.dot(h.astype(bf16), whh_ref[...],
                                        preferred_element_type=f32)
        i = jax.nn.sigmoid(zt[:, 0 * HP:1 * HP])
        f = jax.nn.sigmoid(zt[:, 1 * HP:2 * HP])
        g = jnp.tanh(zt[:, 2 * HP:3 * HP])
        o = jax.nn.sigmoid(zt[:, 3 * HP:4 * HP])
        c_new = f * c + i * g
        h_new = o * jnp.tanh(c_new)
        return h_new, c_new

    def step(s, carry):
        h_f, c_f, h_b, c_b = carry
        tf = s
        tb = T - 1 - s
        off_f = tf * BT
        off_b = tb * BT
        if not isinstance(s, int):                 # dynamic (fori_loop) indices
            off_f = pl.multiple_of(off_f, BT)
            off_b = pl.multiple_of(off_b, BT)
        zf_t = z_ref[pl.ds(off_f, BT), 0:GW]       # lane-tile aligned slices
        zb_t = z_ref[pl.ds(off_b, BT), GW:2 * GW]
        h_f, c_f = lstm_step(h_f, c_f, zf_t, whh_f_ref)
        h_b, c_b = lstm_step(h_b, c_b, zb_t, whh_b_ref)
        hf_ref[tf] = h_f.astype(bf16)
        hb_ref[tb] = h_b.astype(bf16)
        # attention pre-logits reduced here: XLU slot is idle in the recurrence,
        # and this removes a second full pass over the state history.
        ef_ref[tf, :] = jnp.sum(h_f * awf, axis=-1)
        eb_ref[tb, :] = jnp.sum(h_b * awb, axis=-1)
        return (h_f, c_f, h_b, c_b)

    carry = (jnp.zeros((BT, HP), f32), jnp.zeros((BT, HP), f32),
             jnp.zeros((BT, HP), f32), jnp.zeros((BT, HP), f32))

    # ---- fused fwd/bwd recurrence ----
    if T <= 16:                                    # small static T: full unroll
        for s in range(T):
            carry = step(s, carry)
    else:                                          # larger T: cap vreg pressure
        carry = lax.fori_loop(0, T, step, carry, unroll=2)

    # ---- masked self-attention: tanh(h . w), softmax, mask, renormalize ----
    e = jnp.tanh(ef_ref[...] + eb_ref[...])                      # (T, BT)

    lens = len_ref[0]                                            # (1, BT)
    t_idx = lax.broadcasted_iota(jnp.int32, (T, BT), 0)
    mask = (t_idx < lens).astype(f32)

    # softmax over T then mask + renormalize == exp(e-m)*mask / sum(exp(e-m)*mask)
    m = jnp.max(e, axis=0, keepdims=True)
    p = jnp.exp(e - m) * mask
    denom = jnp.sum(p, axis=0, keepdims=True)
    scores_tb = p * pl.reciprocal(denom, approx=True)            # (T, BT)

    # lane-dense scores writeback (padded to SP lanes; wrapper slices [:T])
    scores_bt = scores_tb.T                                      # (BT, T)
    if SP > T:
        scores_bt = jnp.concatenate(
            [scores_bt, jnp.zeros((BT, SP - T), f32)], axis=-1)
    scores_ref[0] = scores_bt

    # ---- weighted sum of BiLSTM states + output projection (split halves) ----
    w3 = scores_tb[:, :, None]                                   # (T, BT, 1)
    rep_f = jnp.sum(hf_ref[...] * w3, axis=0)                    # (BT, HP) f32
    rep_b = jnp.sum(hb_ref[...] * w3, axis=0)

    logits_ref[0] = (jnp.dot(rep_f.astype(bf16), wlin_f_ref[...],
                             preferred_element_type=f32)
                     + jnp.dot(rep_b.astype(bf16), wlin_b_ref[...],
                               preferred_element_type=f32)
                     + blin_ref[...])


def _pad_gate_cols(w):
    """(rows, 4H) -> (rows, 4*HP): each gate moved into its own 128-lane tile."""
    rows = w.shape[0]
    out = jnp.zeros((rows, GW), jnp.float32)
    for g in range(4):
        out = out.at[:, g * HP:g * HP + H].set(
            w[:, g * H:(g + 1) * H].astype(jnp.float32))
    return out


def attention_bilstm(tokens, lengths, embedding_table, params, *, batch_tile=None):
    B, T = tokens.shape
    E = embedding_table.shape[1]
    O = params["w_lin"].shape[1]
    LP = _round_up(max(O, 1), LANE)   # lane-dense logits block width
    SP = _round_up(max(T, 1), LANE)   # lane-dense scores block width

    # Batch tile: default 64 (fits v7x 64 MiB VMEM and gives the ("parallel",)
    # axis >= 2 tiles at realistic batch sizes); pass batch_tile=128 on v5e/v6e.
    BT = batch_tile if batch_tile is not None else min(64, _round_up(B, 8))
    BT = _round_up(BT, 8)
    n_tiles = (B + BT - 1) // BT
    Bpad = n_tiles * BT

    # glue: embedding lookup, batch padding, per-tile time-major 2D layout (bf16)
    emb = jnp.take(embedding_table, tokens, axis=0).astype(jnp.float32)  # (B,T,E)
    emb = jnp.pad(emb, ((0, Bpad - B), (0, 0), (0, 0)))
    emb_tiles = (emb.reshape(n_tiles, BT, T, E)
                    .transpose(0, 2, 1, 3)
                    .reshape(n_tiles, T * BT, E)
                    .astype(jnp.bfloat16))                               # row = t*BT + b

    lens = jnp.pad(lengths.astype(jnp.int32), (0, Bpad - B), constant_values=T)
    len_tiles = lens.reshape(n_tiles, 1, BT)

    # lane-aligned (gate-padded) weights; matmul operands cast to bf16 so every
    # dot runs on the bf16 MXU and weight DMAs are half-size.
    wih_cat = jnp.concatenate([_pad_gate_cols(params["w_ih_f"]),
                               _pad_gate_cols(params["w_ih_b"])],
                              axis=1).astype(jnp.bfloat16)               # (E, 2*GW)
    b_cat = jnp.concatenate([_pad_gate_cols(params["b_f"]),
                             _pad_gate_cols(params["b_b"])], axis=1)     # (1, 2*GW)
    whh_f = jnp.pad(_pad_gate_cols(params["w_hh_f"]),
                    ((0, HP - H), (0, 0))).astype(jnp.bfloat16)          # (HP, GW)
    whh_b = jnp.pad(_pad_gate_cols(params["w_hh_b"]),
                    ((0, HP - H), (0, 0))).astype(jnp.bfloat16)
    awf = jnp.zeros((1, HP), jnp.float32).at[0, :H].set(params["att_w"][:H, 0])
    awb = jnp.zeros((1, HP), jnp.float32).at[0, :H].set(params["att_w"][H:, 0])
    wlin_f = (jnp.zeros((HP, LP), jnp.float32)
              .at[:H, :O].set(params["w_lin"][:H].astype(jnp.float32))
              .astype(jnp.bfloat16))
    wlin_b = (jnp.zeros((HP, LP), jnp.float32)
              .at[:H, :O].set(params["w_lin"][H:].astype(jnp.float32))
              .astype(jnp.bfloat16))
    blin = jnp.zeros((1, LP), jnp.float32).at[0, :O].set(
        params["b_lin"].astype(jnp.float32).reshape(-1))

    def full_spec(shape):
        n = len(shape)
        return pl.BlockSpec(shape, lambda i: (0,) * n)

    in_specs = [
        pl.BlockSpec((1, T * BT, E), lambda i: (i, 0, 0)),
        pl.BlockSpec((1, 1, BT), lambda i: (i, 0, 0)),
        full_spec(wih_cat.shape), full_spec(b_cat.shape),
        full_spec(whh_f.shape), full_spec(whh_b.shape),
        full_spec(awf.shape), full_spec(awb.shape),
        full_spec(wlin_f.shape), full_spec(wlin_b.shape), full_spec(blin.shape),
    ]
    out_specs = (pl.BlockSpec((1, BT, LP), lambda i: (i, 0, 0)),
                 pl.BlockSpec((1, BT, SP), lambda i: (i, 0, 0)))

    scratch_shapes = [
        pltpu.VMEM((T * BT, 2 * GW), jnp.bfloat16),   # z (both directions), bf16
        pltpu.VMEM((T, BT, HP), jnp.bfloat16),        # hf history, bf16
        pltpu.VMEM((T, BT, HP), jnp.bfloat16),        # hb history, bf16
        pltpu.VMEM((T, BT), jnp.float32),             # ef attention pre-logits
        pltpu.VMEM((T, BT), jnp.float32),             # eb attention pre-logits
    ]

    # explicit VMEM budget (scoped default is 16/32 MiB; v7x physical is 64 MiB)
    est = (2 * T * BT * E * 2                         # double-buffered emb tile
           + T * BT * 2 * GW * 2                      # z scratch (bf16)
           + 2 * T * BT * HP * 2                      # h history (bf16)
           + 2 * T * max(BT, LANE) * 4                # ef/eb
           + 2 * (BT * LP * 4 + BT * SP * 4)          # double-buffered outputs
           + (E * 2 * GW + 2 * HP * GW + 2 * HP * LP) * 2
           + (2 * GW + LP + 2 * HP) * 4)              # weights / biases
    vmem_limit = int(min(100 * 2**20, max(32 * 2**20, 2 * est)))

    kernel = functools.partial(attention_bilstm_kernel,
                               seq_len=T, batch_tile=BT, score_pad=SP)

    logits_t, scores_t = pl.pallas_call(
        kernel,
        grid=(n_tiles,),
        in_specs=in_specs,
        out_specs=out_specs,
        out_shape=(jax.ShapeDtypeStruct((n_tiles, BT, LP), jnp.float32),
                   jax.ShapeDtypeStruct((n_tiles, BT, SP), jnp.float32)),
        scratch_shapes=scratch_shapes,
        compiler_params=pltpu.CompilerParams(
            dimension_semantics=("parallel",),
            vmem_limit_bytes=vmem_limit),
    )(emb_tiles, len_tiles,
      wih_cat, b_cat, whh_f, whh_b, awf, awb, wlin_f, wlin_b, blin)

    logits = logits_t.reshape(Bpad, LP)[:B, :O]
    scores = scores_t.reshape(Bpad, SP)[:B, :T]
    return logits, scores


def reference(tokens, lengths, embedding_table, params):
    """Pure-JAX f32 reference of the PyTorch forward pass."""
    emb = embedding_table[tokens]                                   # (B, T, E)

    def run_dir(emb_bte, wih, whh, b):
        Bb, Tt, _ = emb_bte.shape

        def step(carry, x):
            h, c = carry
            z = x @ wih + h @ whh + b
            i = jax.nn.sigmoid(z[:, 0:H])
            f = jax.nn.sigmoid(z[:, H:2 * H])
            g = jnp.tanh(z[:, 2 * H:3 * H])
            o = jax.nn.sigmoid(z[:, 3 * H:4 * H])
            c = f * c + i * g
            h = o * jnp.tanh(c)
            return (h, c), h

        h0 = jnp.zeros((Bb, H), jnp.float32)
        c0 = jnp.zeros((Bb, H), jnp.float32)
        _, hs = lax.scan(step, (h0, c0), jnp.transpose(emb_bte, (1, 0, 2)))
        return jnp.transpose(hs, (1, 0, 2))                         # (B, T, H)

    hf = run_dir(emb, params["w_ih_f"], params["w_hh_f"], params["b_f"])
    hb = run_dir(emb[:, ::-1], params["w_ih_b"], params["w_hh_b"],
                 params["b_b"])[:, ::-1]
    hall = jnp.concatenate([hf, hb], axis=-1)                       # (B, T, 2H)
    e = jnp.tanh(hall @ params["att_w"][:, 0])                      # (B, T)
    s = jax.nn.softmax(e, axis=-1)
    mask = (jnp.arange(hall.shape[1])[None, :] < lengths[:, None]).astype(jnp.float32)
    ms = s * mask
    scores = ms / ms.sum(-1, keepdims=True)
    rep = (hall * scores[:, :, None]).sum(1)
    logits = rep @ params["w_lin"] + params["b_lin"]
    return logits, scores


if __name__ == "__main__":
    B, T, V, E, O = 2, 8, 20, 32, 4

    key = jax.random.PRNGKey(0)
    keys = jax.random.split(key, 12)

    tokens = jax.random.randint(keys[0], (B, T), 0, V, dtype=jnp.int32)
    lengths = jnp.array([T, 5], dtype=jnp.int32)
    # bows is unused by the PyTorch forward pass; kept for signature parity.
    bows = jnp.zeros((B, V), jnp.float32)

    embedding_table = jax.random.normal(keys[1], (V, E), jnp.float32)

    def init(k, shape, scale=0.1):
        return scale * jax.random.normal(k, shape, jnp.float32)

    params = {
        # transposed PyTorch weights: weight_ih_l0 is (4H, E) -> stored (E, 4H)
        "w_ih_f": init(keys[2], (E, 4 * H)),
        "w_hh_f": init(keys[3], (H, 4 * H)),
        "b_f":    init(keys[4], (1, 4 * H)),      # b_ih + b_hh combined
        "w_ih_b": init(keys[5], (E, 4 * H)),
        "w_hh_b": init(keys[6], (H, 4 * H)),
        "b_b":    init(keys[7], (1, 4 * H)),
        "att_w":  init(keys[8], (2 * H, 1)),
        "w_lin":  init(keys[9], (2 * H, O)),
        "b_lin":  init(keys[10], (1, O)),
    }

    logits, scores = attention_bilstm(tokens, lengths, embedding_table, params)
    jax.block_until_ready((logits, scores))

    ref_logits, ref_scores = reference(tokens, lengths, embedding_table, params)
    assert logits.shape == (B, O) and scores.shape == (B, T)
    # tolerance covers bf16 matmul operands + bf16 z/h scratch + approx
    # reciprocal vs. the pure-f32 reference
    assert jnp.allclose(logits, ref_logits, atol=2e-2, rtol=2e-2)
    assert jnp.allclose(scores, ref_scores, atol=2e-2, rtol=2e-2)

    print("KERNEL_OK")
</pallas_src>

<mosaic_0001>
module attributes {stable_mosaic.version = 11 : i64} {
  func.func @attention_bilstm_kernel(%arg0: i32, %arg1: memref<1x64x32xbf16, #tpu.memory_space<vmem>>, %arg2: memref<1x1x8xi32, #tpu.memory_space<vmem>>, %arg3: memref<32x1024xbf16, #tpu.memory_space<vmem>>, %arg4: memref<1x1024xf32, #tpu.memory_space<vmem>>, %arg5: memref<128x512xbf16, #tpu.memory_space<vmem>>, %arg6: memref<128x512xbf16, #tpu.memory_space<vmem>>, %arg7: memref<1x128xf32, #tpu.memory_space<vmem>>, %arg8: memref<1x128xf32, #tpu.memory_space<vmem>>, %arg9: memref<128x128xbf16, #tpu.memory_space<vmem>>, %arg10: memref<128x128xbf16, #tpu.memory_space<vmem>>, %arg11: memref<1x128xf32, #tpu.memory_space<vmem>>, %arg12: memref<1x8x128xf32, #tpu.memory_space<vmem>>, %arg13: memref<1x8x128xf32, #tpu.memory_space<vmem>>, %arg14: memref<64x1024xbf16, #tpu.memory_space<vmem>>, %arg15: memref<8x8x128xbf16, #tpu.memory_space<vmem>>, %arg16: memref<8x8x128xbf16, #tpu.memory_space<vmem>>, %arg17: memref<8x8xf32, #tpu.memory_space<vmem>>, %arg18: memref<8x8xf32, #tpu.memory_space<vmem>>) attributes {dimension_semantics = [#tpu.dimension_semantics<parallel>], iteration_bounds = array<i64: 1>, scalar_prefetch = 0 : i64, scratch_operands = 5 : i64, tpu.core_type = #tpu.core_type<tc>, window_params = [{transform_indices = @transform_0, window_bounds = array<i64: 1, 64, 32>}, {transform_indices = @transform_1, window_bounds = array<i64: 1, 1, 8>}, {pipeline_mode = #tpu.pipeline_mode<synchronous>, transform_indices = @transform_2, window_bounds = array<i64: 32, 1024>}, {pipeline_mode = #tpu.pipeline_mode<synchronous>, transform_indices = @transform_3, window_bounds = array<i64: 1, 1024>}, {pipeline_mode = #tpu.pipeline_mode<synchronous>, transform_indices = @transform_4, window_bounds = array<i64: 128, 512>}, {pipeline_mode = #tpu.pipeline_mode<synchronous>, transform_indices = @transform_5, window_bounds = array<i64: 128, 512>}, {pipeline_mode = #tpu.pipeline_mode<synchronous>, transform_indices = @transform_6, window_bounds = array<i64: 1, 128>}, {pipeline_mode = #tpu.pipeline_mode<synchronous>, transform_indices = @transform_7, window_bounds = array<i64: 1, 128>}, {pipeline_mode = #tpu.pipeline_mode<synchronous>, transform_indices = @transform_8, window_bounds = array<i64: 128, 128>}, {pipeline_mode = #tpu.pipeline_mode<synchronous>, transform_indices = @transform_9, window_bounds = array<i64: 128, 128>}, {pipeline_mode = #tpu.pipeline_mode<synchronous>, transform_indices = @transform_10, window_bounds = array<i64: 1, 128>}, {transform_indices = @transform_11, window_bounds = array<i64: 1, 8, 128>}, {transform_indices = @transform_12, window_bounds = array<i64: 1, 8, 128>}]} {
    %c0 = arith.constant 0 : index
    %c0_0 = arith.constant 0 : index
    %c0_1 = arith.constant 0 : index
    %0 = vector.load %arg1[%c0, %c0_0, %c0_1] : memref<1x64x32xbf16, #tpu.memory_space<vmem>>, vector<1x64x32xbf16>
    %1 = vector.shape_cast %0 : vector<1x64x32xbf16> to vector<64x32xbf16>
    %c0_2 = arith.constant 0 : index
    %c0_3 = arith.constant 0 : index
    %2 = vector.load %arg3[%c0_2, %c0_3] : memref<32x1024xbf16, #tpu.memory_space<vmem>>, vector<32x1024xbf16>
    %cst = arith.constant dense<0.000000e+00> : vector<64x1024xf32>
    %3 = tpu.matmul %1, %2, %cst {dimension_numbers = #tpu.dot_dimension_numbers<[1], [0], [0], [1], [0, 0, 1, 1], [], []>} : vector<64x32xbf16>, vector<32x1024xbf16>, vector<64x1024xf32> -> vector<64x1024xf32>
    %c0_4 = arith.constant 0 : index
    %c0_5 = arith.constant 0 : index
    %4 = vector.load %arg4[%c0_4, %c0_5] : memref<1x1024xf32, #tpu.memory_space<vmem>>, vector<1x1024xf32>
    %5 = vector.broadcast %4 : vector<1x1024xf32> to vector<64x1024xf32>
    %6 = arith.addf %3, %5 : vector<64x1024xf32>
    %7 = arith.truncf %6 : vector<64x1024xf32> to vector<64x1024xbf16>
    %c0_6 = arith.constant 0 : index
    %c0_7 = arith.constant 0 : index
    %8 = vector.load %arg14[%c0_6, %c0_7] : memref<64x1024xbf16, #tpu.memory_space<vmem>>, vector<64x1024xbf16>
    tpu.vector_store %arg14[%c0_6, %c0_7], %7 {strides = array<i32>} : memref<64x1024xbf16, #tpu.memory_space<vmem>>, vector<64x1024xbf16>,
    %c0_8 = arith.constant 0 : index
    %c0_9 = arith.constant 0 : index
    %9 = vector.load %arg7[%c0_8, %c0_9] : memref<1x128xf32, #tpu.memory_space<vmem>>, vector<1x128xf32>
    %c0_10 = arith.constant 0 : index
    %c0_11 = arith.constant 0 : index
    %10 = vector.load %arg8[%c0_10, %c0_11] : memref<1x128xf32, #tpu.memory_space<vmem>>, vector<1x128xf32>
    %cst_12 = arith.constant 0.000000e+00 : f32
    %11 = vector.broadcast %cst_12 : f32 to vector<8x128xf32>
    %cst_13 = arith.constant 0.000000e+00 : f32
    %12 = vector.broadcast %cst_13 : f32 to vector<8x128xf32>
    %cst_14 = arith.constant 0.000000e+00 : f32
    %13 = vector.broadcast %cst_14 : f32 to vector<8x128xf32>
    %cst_15 = arith.constant 0.000000e+00 : f32
    %14 = vector.broadcast %cst_15 : f32 to vector<8x128xf32>
    %c0_16 = arith.constant 0 : index
    %c0_17 = arith.constant 0 : index
    %15 = vector.load %arg14[%c0_16, %c0_17] : memref<64x1024xbf16, #tpu.memory_space<vmem>>, vector<8x512xbf16>
    %c56 = arith.constant 56 : index
    %c512 = arith.constant 512 : index
    %16 = vector.load %arg14[%c56, %c512] : memref<64x1024xbf16, #tpu.memory_space<vmem>>, vector<8x512xbf16>
    %17 = arith.extf %15 : vector<8x512xbf16> to vector<8x512xf32>
    %18 = arith.truncf %11 : vector<8x128xf32> to vector<8x128xbf16>
    %c0_18 = arith.constant 0 : index
    %c0_19 = arith.constant 0 : index
    %19 = vector.load %arg5[%c0_18, %c0_19] : memref<128x512xbf16, #tpu.memory_space<vmem>>, vector<128x512xbf16>
    %cst_20 = arith.constant dense<0.000000e+00> : vector<8x512xf32>
    %20 = tpu.matmul %18, %19, %cst_20 {dimension_numbers = #tpu.dot_dimension_numbers<[1], [0], [0], [1], [0, 0, 1, 1], [], []>} : vector<8x128xbf16>, vector<128x512xbf16>, vector<8x512xf32> -> vector<8x512xf32>
    %21 = arith.addf %17, %20 : vector<8x512xf32>
    %22 = vector.extract_strided_slice %21 {offsets = [0, 0], sizes = [8, 128], strides = [1, 1]} : vector<8x512xf32> to vector<8x128xf32>
    %23 = arith.negf %22 : vector<8x128xf32>
    %24 = math.exp %23 : vector<8x128xf32>
    %cst_21 = arith.constant 1.000000e+00 : f32
    %25 = vector.broadcast %cst_21 : f32 to vector<8x128xf32>
    %26 = arith.addf %25, %24 : vector<8x128xf32>
    %27 = arith.divf %25, %26 : vector<8x128xf32>
    %28 = vector.extract_strided_slice %21 {offsets = [0, 128], sizes = [8, 128], strides = [1, 1]} : vector<8x512xf32> to vector<8x128xf32>
    %29 = arith.negf %28 : vector<8x128xf32>
    %30 = math.exp %29 : vector<8x128xf32>
    %cst_22 = arith.constant 1.000000e+00 : f32
    %31 = vector.broadcast %cst_22 : f32 to vector<8x128xf32>
    %32 = arith.addf %31, %30 : vector<8x128xf32>
    %33 = arith.divf %31, %32 : vector<8x128xf32>
    %34 = vector.extract_strided_slice %21 {offsets = [0, 256], sizes = [8, 128], strides = [1, 1]} : vector<8x512xf32> to vector<8x128xf32>
    %35 = math.tanh %34 : vector<8x128xf32>
    %36 = vector.extract_strided_slice %21 {offsets = [0, 384], sizes = [8, 128], strides = [1, 1]} : vector<8x512xf32> to vector<8x128xf32>
    %37 = arith.negf %36 : vector<8x128xf32>
    %38 = math.exp %37 : vector<8x128xf32>
    %cst_23 = arith.constant 1.000000e+00 : f32
    %39 = vector.broadcast %cst_23 : f32 to vector<8x128xf32>
    %40 = arith.addf %39, %38 : vector<8x128xf32>
    %41 = arith.divf %39, %40 : vector<8x128xf32>
    %42 = arith.mulf %33, %12 : vector<8x128xf32>
    %43 = arith.mulf %27, %35 : vector<8x128xf32>
    %44 = arith.addf %42, %43 : vector<8x128xf32>
    %45 = math.tanh %44 : vector<8x128xf32>
    %46 = arith.mulf %41, %45 : vector<8x128xf32>
    %47 = arith.extf %16 : vector<8x512xbf16> to vector<8x512xf32>
    %48 = arith.truncf %13 : vector<8x128xf32> to vector<8x128xbf16>
    %c0_24 = arith.constant 0 : index
    %c0_25 = arith.constant 0 : index
    %49 = vector.load %arg6[%c0_24, %c0_25] : memref<128x512xbf16, #tpu.memory_space<vmem>>, vector<128x512xbf16>
    %cst_26 = arith.constant dense<0.000000e+00> : vector<8x512xf32>
    %50 = tpu.matmul %48, %49, %cst_26 {dimension_numbers = #tpu.dot_dimension_numbers<[1], [0], [0], [1], [0, 0, 1, 1], [], []>} : vector<8x128xbf16>, vector<128x512xbf16>, vector<8x512xf32> -> vector<8x512xf32>
    %51 = arith.addf %47, %50 : vector<8x512xf32>
    %52 = vector.extract_strided_slice %51 {offsets = [0, 0], sizes = [8, 128], strides = [1, 1]} : vector<8x512xf32> to vector<8x128xf32>
    %53 = arith.negf %52 : vector<8x128xf32>
    %54 = math.exp %53 : vector<8x128xf32>
    %cst_27 = arith.constant 1.000000e+00 : f32
    %55 = vector.broadcast %cst_27 : f32 to vector<8x128xf32>
    %56 = arith.addf %55, %54 : vector<8x128xf32>
    %57 = arith.divf %55, %56 : vector<8x128xf32>
    %58 = vector.extract_strided_slice %51 {offsets = [0, 128], sizes = [8, 128], strides = [1, 1]} : vector<8x512xf32> to vector<8x128xf32>
    %59 = arith.negf %58 : vector<8x128xf32>
    %60 = math.exp %59 : vector<8x128xf32>
    %cst_28 = arith.constant 1.000000e+00 : f32
    %61 = vector.broadcast %cst_28 : f32 to vector<8x128xf32>
    %62 = arith.addf %61, %60 : vector<8x128xf32>
    %63 = arith.divf %61, %62 : vector<8x128xf32>
    %64 = vector.extract_strided_slice %51 {offsets = [0, 256], sizes = [8, 128], strides = [1, 1]} : vector<8x512xf32> to vector<8x128xf32>
    %65 = math.tanh %64 : vector<8x128xf32>
    %66 = vector.extract_strided_slice %51 {offsets = [0, 384], sizes = [8, 128], strides = [1, 1]} : vector<8x512xf32> to vector<8x128xf32>
    %67 = arith.negf %66 : vector<8x128xf32>
    %68 = math.exp %67 : vector<8x128xf32>
    %cst_29 = arith.constant 1.000000e+00 : f32
    %69 = vector.broadcast %cst_29 : f32 to vector<8x128xf32>
    %70 = arith.addf %69, %68 : vector<8x128xf32>
    %71 = arith.divf %69, %70 : vector<8x128xf32>
    %72 = arith.mulf %63, %14 : vector<8x128xf32>
    %73 = arith.mulf %57, %65 : vector<8x128xf32>
    %74 = arith.addf %72, %73 : vector<8x128xf32>
    %75 = math.tanh %74 : vector<8x128xf32>
    %76 = arith.mulf %71, %75 : vector<8x128xf32>
    %77 = arith.truncf %46 : vector<8x128xf32> to vector<8x128xbf16>
    %c0_30 = arith.constant 0 : index
    %c0_31 = arith.constant 0 : index
    %c0_32 = arith.constant 0 : index
    %78 = vector.load %arg15[%c0_30, %c0_31, %c0_32] : memref<8x8x128xbf16, #tpu.memory_space<vmem>>, vector<1x8x128xbf16>
    %79 = vector.shape_cast %78 : vector<1x8x128xbf16> to vector<8x128xbf16>
    %80 = vector.shape_cast %77 : vector<8x128xbf16> to vector<1x8x128xbf16>
    tpu.vector_store %arg15[%c0_30, %c0_31, %c0_32], %80 {strides = array<i32>} : memref<8x8x128xbf16, #tpu.memory_space<vmem>>, vector<1x8x128xbf16>,
    %81 = arith.truncf %76 : vector<8x128xf32> to vector<8x128xbf16>
    %c7 = arith.constant 7 : index
    %c0_33 = arith.constant 0 : index
    %c0_34 = arith.constant 0 : index
    %82 = vector.load %arg16[%c7, %c0_33, %c0_34] : memref<8x8x128xbf16, #tpu.memory_space<vmem>>, vector<1x8x128xbf16>
    %83 = vector.shape_cast %82 : vector<1x8x128xbf16> to vector<8x128xbf16>
    %84 = vector.shape_cast %81 : vector<8x128xbf16> to vector<1x8x128xbf16>
    tpu.vector_store %arg16[%c7, %c0_33, %c0_34], %84 {strides = array<i32>} : memref<8x8x128xbf16, #tpu.memory_space<vmem>>, vector<1x8x128xbf16>,
    %85 = vector.broadcast %9 : vector<1x128xf32> to vector<8x128xf32>
    %86 = arith.mulf %46, %85 : vector<8x128xf32>
    %cst_35 = arith.constant dense<0.000000e+00> : vector<8xf32>
    %87 = vector.multi_reduction <add>, %86, %cst_35 [1] : vector<8x128xf32> to vector<8xf32>
    %c0_36 = arith.constant 0 : index
    %c0_37 = arith.constant 0 : index
    %88 = vector.load %arg17[%c0_36, %c0_37] : memref<8x8xf32, #tpu.memory_space<vmem>>, vector<1x8xf32>
    %89 = vector.shape_cast %88 : vector<1x8xf32> to vector<8xf32>
    %90 = vector.shape_cast %87 : vector<8xf32> to vector<1x8xf32>
    tpu.vector_store %arg17[%c0_36, %c0_37], %90 {strides = array<i32>} : memref<8x8xf32, #tpu.memory_space<vmem>>, vector<1x8xf32>,
    %91 = vector.broadcast %10 : vector<1x128xf32> to vector<8x128xf32>
    %92 = arith.mulf %76, %91 : vector<8x128xf32>
    %cst_38 = arith.constant dense<0.000000e+00> : vector<8xf32>
    %93 = vector.multi_reduction <add>, %92, %cst_38 [1] : vector<8x128xf32> to vector<8xf32>
    %c7_39 = arith.constant 7 : index
    %c0_40 = arith.constant 0 : index
    %94 = vector.load %arg18[%c7_39, %c0_40] : memref<8x8xf32, #tpu.memory_space<vmem>>, vector<1x8xf32>
    %95 = vector.shape_cast %94 : vector<1x8xf32> to vector<8xf32>
    %96 = vector.shape_cast %93 : vector<8xf32> to vector<1x8xf32>
    tpu.vector_store %arg18[%c7_39, %c0_40], %96 {strides = array<i32>} : memref<8x8xf32, #tpu.memory_space<vmem>>, vector<1x8xf32>,
    %c8 = arith.constant 8 : index
    %c0_41 = arith.constant 0 : index
    %97 = vector.load %arg14[%c8, %c0_41] : memref<64x1024xbf16, #tpu.memory_space<vmem>>, vector<8x512xbf16>
    %c48 = arith.constant 48 : index
    %c512_42 = arith.constant 512 : index
    %98 = vector.load %arg14[%c48, %c512_42] : memref<64x1024xbf16, #tpu.memory_space<vmem>>, vector<8x512xbf16>
    %99 = arith.extf %97 : vector<8x512xbf16> to vector<8x512xf32>
    %100 = arith.truncf %46 : vector<8x128xf32> to vector<8x128xbf16>
    %c0_43 = arith.constant 0 : index
    %c0_44 = arith.constant 0 : index
    %101 = vector.load %arg5[%c0_43, %c0_44] : memref<128x512xbf16, #tpu.memory_space<vmem>>, vector<128x512xbf16>
    %cst_45 = arith.constant dense<0.000000e+00> : vector<8x512xf32>
    %102 = tpu.matmul %100, %101, %cst_45 {dimension_numbers = #tpu.dot_dimension_numbers<[1], [0], [0], [1], [0, 0, 1, 1], [], []>} : vector<8x128xbf16>, vector<128x512xbf16>, vector<8x512xf32> -> vector<8x512xf32>
    %103 = arith.addf %99, %102 : vector<8x512xf32>
    %104 = vector.extract_strided_slice %103 {offsets = [0, 0], sizes = [8, 128], strides = [1, 1]} : vector<8x512xf32> to vector<8x128xf32>
    %105 = arith.negf %104 : vector<8x128xf32>
    %106 = math.exp %105 : vector<8x128xf32>
    %cst_46 = arith.constant 1.000000e+00 : f32
    %107 = vector.broadcast %cst_46 : f32 to vector<8x128xf32>
    %108 = arith.addf %107, %106 : vector<8x128xf32>
    %109 = arith.divf %107, %108 : vector<8x128xf32>
    %110 = vector.extract_strided_slice %103 {offsets = [0, 128], sizes = [8, 128], strides = [1, 1]} : vector<8x512xf32> to vector<8x128xf32>
    %111 = arith.negf %110 : vector<8x128xf32>
    %112 = math.exp %111 : vector<8x128xf32>
    %cst_47 = arith.constant 1.000000e+00 : f32
    %113 = vector.broadcast %cst_47 : f32 to vector<8x128xf32>
    %114 = arith.addf %113, %112 : vector<8x128xf32>
    %115 = arith.divf %113, %114 : vector<8x128xf32>
    %116 = vector.extract_strided_slice %103 {offsets = [0, 256], sizes = [8, 128], strides = [1, 1]} : vector<8x512xf32> to vector<8x128xf32>
    %117 = math.tanh %116 : vector<8x128xf32>
    %118 = vector.extract_strided_slice %103 {offsets = [0, 384], sizes = [8, 128], strides = [1, 1]} : vector<8x512xf32> to vector<8x128xf32>
    %119 = arith.negf %118 : vector<8x128xf32>
    %120 = math.exp %119 : vector<8x128xf32>
    %cst_48 = arith.constant 1.000000e+00 : f32
    %121 = vector.broadcast %cst_48 : f32 to vector<8x128xf32>
    %122 = arith.addf %121, %120 : vector<8x128xf32>
    %123 = arith.divf %121, %122 : vector<8x128xf32>
    %124 = arith.mulf %115, %44 : vector<8x128xf32>
    %125 = arith.mulf %109, %117 : vector<8x128xf32>
    %126 = arith.addf %124, %125 : vector<8x128xf32>
    %127 = math.tanh %126 : vector<8x128xf32>
    %128 = arith.mulf %123, %127 : vector<8x128xf32>
    %129 = arith.extf %98 : vector<8x512xbf16> to vector<8x512xf32>
    %130 = arith.truncf %76 : vector<8x128xf32> to vector<8x128xbf16>
    %c0_49 = arith.constant 0 : index
    %c0_50 = arith.constant 0 : index
    %131 = vector.load %arg6[%c0_49, %c0_50] : memref<128x512xbf16, #tpu.memory_space<vmem>>, vector<128x512xbf16>
    %cst_51 = arith.constant dense<0.000000e+00> : vector<8x512xf32>
    %132 = tpu.matmul %130, %131, %cst_51 {dimension_numbers = #tpu.dot_dimension_numbers<[1], [0], [0], [1], [0, 0, 1, 1], [], []>} : vector<8x128xbf16>, vector<128x512xbf16>, vector<8x512xf32> -> vector<8x512xf32>
    %133 = arith.addf %129, %132 : vector<8x512xf32>
    %134 = vector.extract_strided_slice %133 {offsets = [0, 0], sizes = [8, 128], strides = [1, 1]} : vector<8x512xf32> to vector<8x128xf32>
    %135 = arith.negf %134 : vector<8x128xf32>
    %136 = math.exp %135 : vector<8x128xf32>
    %cst_52 = arith.constant 1.000000e+00 : f32
    %137 = vector.broadcast %cst_52 : f32 to vector<8x128xf32>
    %138 = arith.addf %137, %136 : vector<8x128xf32>
    %139 = arith.divf %137, %138 : vector<8x128xf32>
    %140 = vector.extract_strided_slice %133 {offsets = [0, 128], sizes = [8, 128], strides = [1, 1]} : vector<8x512xf32> to vector<8x128xf32>
    %141 = arith.negf %140 : vector<8x128xf32>
    %142 = math.exp %141 : vector<8x128xf32>
    %cst_53 = arith.constant 1.000000e+00 : f32
    %143 = vector.broadcast %cst_53 : f32 to vector<8x128xf32>
    %144 = arith.addf %143, %142 : vector<8x128xf32>
    %145 = arith.divf %143, %144 : vector<8x128xf32>
    %146 = vector.extract_strided_slice %133 {offsets = [0, 256], sizes = [8, 128], strides = [1, 1]} : vector<8x512xf32> to vector<8x128xf32>
    %147 = math.tanh %146 : vector<8x128xf32>
    %148 = vector.extract_strided_slice %133 {offsets = [0, 384], sizes = [8, 128], strides = [1, 1]} : vector<8x512xf32> to vector<8x128xf32>
    %149 = arith.negf %148 : vector<8x128xf32>
    %150 = math.exp %149 : vector<8x128xf32>
    %cst_54 = arith.constant 1.000000e+00 : f32
    %151 = vector.broadcast %cst_54 : f32 to vector<8x128xf32>
    %152 = arith.addf %151, %150 : vector<8x128xf32>
    %153 = arith.divf %151, %152 : vector<8x128xf32>
    %154 = arith.mulf %145, %74 : vector<8x128xf32>
    %155 = arith.mulf %139, %147 : vector<8x128xf32>
    %156 = arith.addf %154, %155 : vector<8x128xf32>
    %157 = math.tanh %156 : vector<8x128xf32>
    %158 = arith.mulf %153, %157 : vector<8x128xf32>
    %159 = arith.truncf %128 : vector<8x128xf32> to vector<8x128xbf16>
    %c1 = arith.constant 1 : index
    %c0_55 = arith.constant 0 : index
    %c0_56 = arith.constant 0 : index
    %160 = vector.load %arg15[%c1, %c0_55, %c0_56] : memref<8x8x128xbf16, #tpu.memory_space<vmem>>, vector<1x8x128xbf16>
    %161 = vector.shape_cast %160 : vector<1x8x128xbf16> to vector<8x128xbf16>
    %162 = vector.shape_cast %159 : vector<8x128xbf16> to vector<1x8x128xbf16>
    tpu.vector_store %arg15[%c1, %c0_55, %c0_56], %162 {strides = array<i32>} : memref<8x8x128xbf16, #tpu.memory_space<vmem>>, vector<1x8x128xbf16>,
    %163 = arith.truncf %158 : vector<8x128xf32> to vector<8x128xbf16>
    %c6 = arith.constant 6 : index
    %c0_57 = arith.constant 0 : index
    %c0_58 = arith.constant 0 : index
    %164 = vector.load %arg16[%c6, %c0_57, %c0_58] : memref<8x8x128xbf16, #tpu.memory_space<vmem>>, vector<1x8x128xbf16>
    %165 = vector.shape_cast %164 : vector<1x8x128xbf16> to vector<8x128xbf16>
    %166 = vector.shape_cast %163 : vector<8x128xbf16> to vector<1x8x128xbf16>
    tpu.vector_store %arg16[%c6, %c0_57, %c0_58], %166 {strides = array<i32>} : memref<8x8x128xbf16, #tpu.memory_space<vmem>>, vector<1x8x128xbf16>,
    %167 = vector.broadcast %9 : vector<1x128xf32> to vector<8x128xf32>
    %168 = arith.mulf %128, %167 : vector<8x128xf32>
    %cst_59 = arith.constant dense<0.000000e+00> : vector<8xf32>
    %169 = vector.multi_reduction <add>, %168, %cst_59 [1] : vector<8x128xf32> to vector<8xf32>
    %c1_60 = arith.constant 1 : index
    %c0_61 = arith.constant 0 : index
    %170 = vector.load %arg17[%c1_60, %c0_61] : memref<8x8xf32, #tpu.memory_space<vmem>>, vector<1x8xf32>
    %171 = vector.shape_cast %170 : vector<1x8xf32> to vector<8xf32>
    %172 = vector.shape_cast %169 : vector<8xf32> to vector<1x8xf32>
    tpu.vector_store %arg17[%c1_60, %c0_61], %172 {strides = array<i32>} : memref<8x8xf32, #tpu.memory_space<vmem>>, vector<1x8xf32>,
    %173 = vector.broadcast %10 : vector<1x128xf32> to vector<8x128xf32>
    %174 = arith.mulf %158, %173 : vector<8x128xf32>
    %cst_62 = arith.constant dense<0.000000e+00> : vector<8xf32>
    %175 = vector.multi_reduction <add>, %174, %cst_62 [1] : vector<8x128xf32> to vector<8xf32>
    %c6_63 = arith.constant 6 : index
    %c0_64 = arith.constant 0 : index
    %176 = vector.load %arg18[%c6_63, %c0_64] : memref<8x8xf32, #tpu.memory_space<vmem>>, vector<1x8xf32>
    %177 = vector.shape_cast %176 : vector<1x8xf32> to vector<8xf32>
    %178 = vector.shape_cast %175 : vector<8xf32> to vector<1x8xf32>
    tpu.vector_store %arg18[%c6_63, %c0_64], %178 {strides = array<i32>} : memref<8x8xf32, #tpu.memory_space<vmem>>, vector<1x8xf32>,
    %c16 = arith.constant 16 : index
    %c0_65 = arith.constant 0 : index
    %179 = vector.load %arg14[%c16, %c0_65] : memref<64x1024xbf16, #tpu.memory_space<vmem>>, vector<8x512xbf16>
    %c40 = arith.constant 40 : index
    %c512_66 = arith.constant 512 : index
    %180 = vector.load %arg14[%c40, %c512_66] : memref<64x1024xbf16, #tpu.memory_space<vmem>>, vector<8x512xbf16>
    %181 = arith.extf %179 : vector<8x512xbf16> to vector<8x512xf32>
    %182 = arith.truncf %128 : vector<8x128xf32> to vector<8x128xbf16>
    %c0_67 = arith.constant 0 : index
    %c0_68 = arith.constant 0 : index
    %183 = vector.load %arg5[%c0_67, %c0_68] : memref<128x512xbf16, #tpu.memory_space<vmem>>, vector<128x512xbf16>
    %cst_69 = arith.constant dense<0.000000e+00> : vector<8x512xf32>
    %184 = tpu.matmul %182, %183, %cst_69 {dimension_numbers = #tpu.dot_dimension_numbers<[1], [0], [0], [1], [0, 0, 1, 1], [], []>} : vector<8x128xbf16>, vector<128x512xbf16>, vector<8x512xf32> -> vector<8x512xf32>
    %185 = arith.addf %181, %184 : vector<8x512xf32>
    %186 = vector.extract_strided_slice %185 {offsets = [0, 0], sizes = [8, 128], strides = [1, 1]} : vector<8x512xf32> to vector<8x128xf32>
    %187 = arith.negf %186 : vector<8x128xf32>
    %188 = math.exp %187 : vector<8x128xf32>
    %cst_70 = arith.constant 1.000000e+00 : f32
    %189 = vector.broadcast %cst_70 : f32 to vector<8x128xf32>
    %190 = arith.addf %189, %188 : vector<8x128xf32>
    %191 = arith.divf %189, %190 : vector<8x128xf32>
    %192 = vector.extract_strided_slice %185 {offsets = [0, 128], sizes = [8, 128], strides = [1, 1]} : vector<8x512xf32> to vector<8x128xf32>
    %193 = arith.negf %192 : vector<8x128xf32>
    %194 = math.exp %193 : vector<8x128xf32>
    %cst_71 = arith.constant 1.000000e+00 : f32
    %195 = vector.broadcast %cst_71 : f32 to vector<8x128xf32>
    %196 = arith.addf %195, %194 : vector<8x128xf32>
    %197 = arith.divf %195, %196 : vector<8x128xf32>
    %198 = vector.extract_strided_slice %185 {offsets = [0, 256], sizes = [8, 128], strides = [1, 1]} : vector<8x512xf32> to vector<8x128xf32>
    %199 = math.tanh %198 : vector<8x128xf32>
    %200 = vector.extract_strided_slice %185 {offsets = [0, 384], sizes = [8, 128], strides = [1, 1]} : vector<8x512xf32> to vector<8x128xf32>
    %201 = arith.negf %200 : vector<8x128xf32>
    %202 = math.exp %201 : vector<8x128xf32>
    %cst_72 = arith.constant 1.000000e+00 : f32
    %203 = vector.broadcast %cst_72 : f32 to vector<8x128xf32>
    %204 = arith.addf %203, %202 : vector<8x128xf32>
    %205 = arith.divf %203, %204 : vector<8x128xf32>
    %206 = arith.mulf %197, %126 : vector<8x128xf32>
    %207 = arith.mulf %191, %199 : vector<8x128xf32>
    %208 = arith.addf %206, %207 : vector<8x128xf32>
    %209 = math.tanh %208 : vector<8x128xf32>
    %210 = arith.mulf %205, %209 : vector<8x128xf32>
    %211 = arith.extf %180 : vector<8x512xbf16> to vector<8x512xf32>
    %212 = arith.truncf %158 : vector<8x128xf32> to vector<8x128xbf16>
    %c0_73 = arith.constant 0 : index
    %c0_74 = arith.constant 0 : index
    %213 = vector.load %arg6[%c0_73, %c0_74] : memref<128x512xbf16, #tpu.memory_space<vmem>>, vector<128x512xbf16>
    %cst_75 = arith.constant dense<0.000000e+00> : vector<8x512xf32>
    %214 = tpu.matmul %212, %213, %cst_75 {dimension_numbers = #tpu.dot_dimension_numbers<[1], [0], [0], [1], [0, 0, 1, 1], [], []>} : vector<8x128xbf16>, vector<128x512xbf16>, vector<8x512xf32> -> vector<8x512xf32>
    %215 = arith.addf %211, %214 : vector<8x512xf32>
    %216 = vector.extract_strided_slice %215 {offsets = [0, 0], sizes = [8, 128], strides = [1, 1]} : vector<8x512xf32> to vector<8x128xf32>
    %217 = arith.negf %216 : vector<8x128xf32>
    %218 = math.exp %217 : vector<8x128xf32>
    %cst_76 = arith.constant 1.000000e+00 : f32
    %219 = vector.broadcast %cst_76 : f32 to vector<8x128xf32>
    %220 = arith.addf %219, %218 : vector<8x128xf32>
    %221 = arith.divf %219, %220 : vector<8x128xf32>
    %222 = vector.extract_strided_slice %215 {offsets = [0, 128], sizes = [8, 128], strides = [1, 1]} : vector<8x512xf32> to vector<8x128xf32>
    %223 = arith.negf %222 : vector<8x128xf32>
    %224 = math.exp %223 : vector<8x128xf32>
    %cst_77 = arith.constant 1.000000e+00 : f32
    %225 = vector.broadcast %cst_77 : f32 to vector<8x128xf32>
    %226 = arith.addf %225, %224 : vector<8x128xf32>
    %227 = arith.divf %225, %226 : vector<8x128xf32>
    %228 = vector.extract_strided_slice %215 {offsets = [0, 256], sizes = [8, 128], strides = [1, 1]} : vector<8x512xf32> to vector<8x128xf32>
    %229 = math.tanh %228 : vector<8x128xf32>
    %230 = vector.extract_strided_slice %215 {offsets = [0, 384], sizes = [8, 128], strides = [1, 1]} : vector<8x512xf32> to vector<8x128xf32>
    %231 = arith.negf %230 : vector<8x128xf32>
    %232 = math.exp %231 : vector<8x128xf32>
    %cst_78 = arith.constant 1.000000e+00 : f32
    %233 = vector.broadcast %cst_78 : f32 to vector<8x128xf32>
    %234 = arith.addf %233, %232 : vector<8x128xf32>
    %235 = arith.divf %233, %234 : vector<8x128xf32>
    %236 = arith.mulf %227, %156 : vector<8x128xf32>
    %237 = arith.mulf %221, %229 : vector<8x128xf32>
    %238 = arith.addf %236, %237 : vector<8x128xf32>
    %239 = math.tanh %238 : vector<8x128xf32>
    %240 = arith.mulf %235, %239 : vector<8x128xf32>
    %241 = arith.truncf %210 : vector<8x128xf32> to vector<8x128xbf16>
    %c2 = arith.constant 2 : index
    %c0_79 = arith.constant 0 : index
    %c0_80 = arith.constant 0 : index
    %242 = vector.load %arg15[%c2, %c0_79, %c0_80] : memref<8x8x128xbf16, #tpu.memory_space<vmem>>, vector<1x8x128xbf16>
    %243 = vector.shape_cast %242 : vector<1x8x128xbf16> to vector<8x128xbf16>
    %244 = vector.shape_cast %241 : vector<8x128xbf16> to vector<1x8x128xbf16>
    tpu.vector_store %arg15[%c2, %c0_79, %c0_80], %244 {strides = array<i32>} : memref<8x8x128xbf16, #tpu.memory_space<vmem>>, vector<1x8x128xbf16>,
    %245 = arith.truncf %240 : vector<8x128xf32> to vector<8x128xbf16>
    %c5 = arith.constant 5 : index
    %c0_81 = arith.constant 0 : index
    %c0_82 = arith.constant 0 : index
    %246 = vector.load %arg16[%c5, %c0_81, %c0_82] : memref<8x8x128xbf16, #tpu.memory_space<vmem>>, vector<1x8x128xbf16>
    %247 = vector.shape_cast %246 : vector<1x8x128xbf16> to vector<8x128xbf16>
    %248 = vector.shape_cast %245 : vector<8x128xbf16> to vector<1x8x128xbf16>
    tpu.vector_store %arg16[%c5, %c0_81, %c0_82], %248 {strides = array<i32>} : memref<8x8x128xbf16, #tpu.memory_space<vmem>>, vector<1x8x128xbf16>,
    %249 = vector.broadcast %9 : vector<1x128xf32> to vector<8x128xf32>
    %250 = arith.mulf %210, %249 : vector<8x128xf32>
    %cst_83 = arith.constant dense<0.000000e+00> : vector<8xf32>
    %251 = vector.multi_reduction <add>, %250, %cst_83 [1] : vector<8x128xf32> to vector<8xf32>
    %c2_84 = arith.constant 2 : index
    %c0_85 = arith.constant 0 : index
    %252 = vector.load %arg17[%c2_84, %c0_85] : memref<8x8xf32, #tpu.memory_space<vmem>>, vector<1x8xf32>
    %253 = vector.shape_cast %252 : vector<1x8xf32> to vector<8xf32>
    %254 = vector.shape_cast %251 : vector<8xf32> to vector<1x8xf32>
    tpu.vector_store %arg17[%c2_84, %c0_85], %254 {strides = array<i32>} : memref<8x8xf32, #tpu.memory_space<vmem>>, vector<1x8xf32>,
    %255 = vector.broadcast %10 : vector<1x128xf32> to vector<8x128xf32>
    %256 = arith.mulf %240, %255 : vector<8x128xf32>
    %cst_86 = arith.constant dense<0.000000e+00> : vector<8xf32>
    %257 = vector.multi_reduction <add>, %256, %cst_86 [1] : vector<8x128xf32> to vector<8xf32>
    %c5_87 = arith.constant 5 : index
    %c0_88 = arith.constant 0 : index
    %258 = vector.load %arg18[%c5_87, %c0_88] : memref<8x8xf32, #tpu.memory_space<vmem>>, vector<1x8xf32>
    %259 = vector.shape_cast %258 : vector<1x8xf32> to vector<8xf32>
    %260 = vector.shape_cast %257 : vector<8xf32> to vector<1x8xf32>
    tpu.vector_store %arg18[%c5_87, %c0_88], %260 {strides = array<i32>} : memref<8x8xf32, #tpu.memory_space<vmem>>, vector<1x8xf32>,
    %c24 = arith.constant 24 : index
    %c0_89 = arith.constant 0 : index
    %261 = vector.load %arg14[%c24, %c0_89] : memref<64x1024xbf16, #tpu.memory_space<vmem>>, vector<8x512xbf16>
    %c32 = arith.constant 32 : index
    %c512_90 = arith.constant 512 : index
    %262 = vector.load %arg14[%c32, %c512_90] : memref<64x1024xbf16, #tpu.memory_space<vmem>>, vector<8x512xbf16>
    %263 = arith.extf %261 : vector<8x512xbf16> to vector<8x512xf32>
    %264 = arith.truncf %210 : vector<8x128xf32> to vector<8x128xbf16>
    %c0_91 = arith.constant 0 : index
    %c0_92 = arith.constant 0 : index
    %265 = vector.load %arg5[%c0_91, %c0_92] : memref<128x512xbf16, #tpu.memory_space<vmem>>, vector<128x512xbf16>
    %cst_93 = arith.constant dense<0.000000e+00> : vector<8x512xf32>
    %266 = tpu.matmul %264, %265, %cst_93 {dimension_numbers = #tpu.dot_dimension_numbers<[1], [0], [0], [1], [0, 0, 1, 1], [], []>} : vector<8x128xbf16>, vector<128x512xbf16>, vector<8x512xf32> -> vector<8x512xf32>
    %267 = arith.addf %263, %266 : vector<8x512xf32>
    %268 = vector.extract_strided_slice %267 {offsets = [0, 0], sizes = [8, 128], strides = [1, 1]} : vector<8x512xf32> to vector<8x128xf32>
    %269 = arith.negf %268 : vector<8x128xf32>
    %270 = math.exp %269 : vector<8x128xf32>
    %cst_94 = arith.constant 1.000000e+00 : f32
    %271 = vector.broadcast %cst_94 : f32 to vector<8x128xf32>
    %272 = arith.addf %271, %270 : vector<8x128xf32>
    %273 = arith.divf %271, %272 : vector<8x128xf32>
    %274 = vector.extract_strided_slice %267 {offsets = [0, 128], sizes = [8, 128], strides = [1, 1]} : vector<8x512xf32> to vector<8x128xf32>
    %275 = arith.negf %274 : vector<8x128xf32>
    %276 = math.exp %275 : vector<8x128xf32>
    %cst_95 = arith.constant 1.000000e+00 : f32
    %277 = vector.broadcast %cst_95 : f32 to vector<8x128xf32>
    %278 = arith.addf %277, %276 : vector<8x128xf32>
    %279 = arith.divf %277, %278 : vector<8x128xf32>
    %280 = vector.extract_strided_slice %267 {offsets = [0, 256], sizes = [8, 128], strides = [1, 1]} : vector<8x512xf32> to vector<8x128xf32>
    %281 = math.tanh %280 : vector<8x128xf32>
    %282 = vector.extract_strided_slice %267 {offsets = [0, 384], sizes = [8, 128], strides = [1, 1]} : vector<8x512xf32> to vector<8x128xf32>
    %283 = arith.negf %282 : vector<8x128xf32>
    %284 = math.exp %283 : vector<8x128xf32>
    %cst_96 = arith.constant 1.000000e+00 : f32
    %285 = vector.broadcast %cst_96 : f32 to vector<8x128xf32>
    %286 = arith.addf %285, %284 : vector<8x128xf32>
    %287 = arith.divf %285, %286 : vector<8x128xf32>
    %288 = arith.mulf %279, %208 : vector<8x128xf32>
    %289 = arith.mulf %273, %281 : vector<8x128xf32>
    %290 = arith.addf %288, %289 : vector<8x128xf32>
    %291 = math.tanh %290 : vector<8x128xf32>
    %292 = arith.mulf %287, %291 : vector<8x128xf32>
    %293 = arith.extf %262 : vector<8x512xbf16> to vector<8x512xf32>
    %294 = arith.truncf %240 : vector<8x128xf32> to vector<8x128xbf16>
    %c0_97 = arith.constant 0 : index
    %c0_98 = arith.constant 0 : index
    %295 = vector.load %arg6[%c0_97, %c0_98] : memref<128x512xbf16, #tpu.memory_space<vmem>>, vector<128x512xbf16>
    %cst_99 = arith.constant dense<0.000000e+00> : vector<8x512xf32>
    %296 = tpu.matmul %294, %295, %cst_99 {dimension_numbers = #tpu.dot_dimension_numbers<[1], [0], [0], [1], [0, 0, 1, 1], [], []>} : vector<8x128xbf16>, vector<128x512xbf16>, vector<8x512xf32> -> vector<8x512xf32>
    %297 = arith.addf %293, %296 : vector<8x512xf32>
    %298 = vector.extract_strided_slice %297 {offsets = [0, 0], sizes = [8, 128], strides = [1, 1]} : vector<8x512xf32> to vector<8x128xf32>
    %299 = arith.negf %298 : vector<8x128xf32>
    %300 = math.exp %299 : vector<8x128xf32>
    %cst_100 = arith.constant 1.000000e+00 : f32
    %301 = vector.broadcast %cst_100 : f32 to vector<8x128xf32>
    %302 = arith.addf %301, %300 : vector<8x128xf32>
    %303 = arith.divf %301, %302 : vector<8x128xf32>
    %304 = vector.extract_strided_slice %297 {offsets = [0, 128], sizes = [8, 128], strides = [1, 1]} : vector<8x512xf32> to vector<8x128xf32>
    %305 = arith.negf %304 : vector<8x128xf32>
    %306 = math.exp %305 : vector<8x128xf32>
    %cst_101 = arith.constant 1.000000e+00 : f32
    %307 = vector.broadcast %cst_101 : f32 to vector<8x128xf32>
    %308 = arith.addf %307, %306 : vector<8x128xf32>
    %309 = arith.divf %307, %308 : vector<8x128xf32>
    %310 = vector.extract_strided_slice %297 {offsets = [0, 256], sizes = [8, 128], strides = [1, 1]} : vector<8x512xf32> to vector<8x128xf32>
    %311 = math.tanh %310 : vector<8x128xf32>
    %312 = vector.extract_strided_slice %297 {offsets = [0, 384], sizes = [8, 128], strides = [1, 1]} : vector<8x512xf32> to vector<8x128xf32>
    %313 = arith.negf %312 : vector<8x128xf32>
    %314 = math.exp %313 : vector<8x128xf32>
    %cst_102 = arith.constant 1.000000e+00 : f32
    %315 = vector.broadcast %cst_102 : f32 to vector<8x128xf32>
    %316 = arith.addf %315, %314 : vector<8x128xf32>
    %317 = arith.divf %315, %316 : vector<8x128xf32>
    %318 = arith.mulf %309, %238 : vector<8x128xf32>
    %319 = arith.mulf %303, %311 : vector<8x128xf32>
    %320 = arith.addf %318, %319 : vector<8x128xf32>
    %321 = math.tanh %320 : vector<8x128xf32>
    %322 = arith.mulf %317, %321 : vector<8x128xf32>
    %323 = arith.truncf %292 : vector<8x128xf32> to vector<8x128xbf16>
    %c3 = arith.constant 3 : index
    %c0_103 = arith.constant 0 : index
    %c0_104 = arith.constant 0 : index
    %324 = vector.load %arg15[%c3, %c0_103, %c0_104] : memref<8x8x128xbf16, #tpu.memory_space<vmem>>, vector<1x8x128xbf16>
    %325 = vector.shape_cast %324 : vector<1x8x128xbf16> to vector<8x128xbf16>
    %326 = vector.shape_cast %323 : vector<8x128xbf16> to vector<1x8x128xbf16>
    tpu.vector_store %arg15[%c3, %c0_103, %c0_104], %326 {strides = array<i32>} : memref<8x8x128xbf16, #tpu.memory_space<vmem>>, vector<1x8x128xbf16>,
    %327 = arith.truncf %322 : vector<8x128xf32> to vector<8x128xbf16>
    %c4 = arith.constant 4 : index
    %c0_105 = arith.constant 0 : index
    %c0_106 = arith.constant 0 : index
    %328 = vector.load %arg16[%c4, %c0_105, %c0_106] : memref<8x8x128xbf16, #tpu.memory_space<vmem>>, vector<1x8x128xbf16>
    %329 = vector.shape_cast %328 : vector<1x8x128xbf16> to vector<8x128xbf16>
    %330 = vector.shape_cast %327 : vector<8x128xbf16> to vector<1x8x128xbf16>
    tpu.vector_store %arg16[%c4, %c0_105, %c0_106], %330 {strides = array<i32>} : memref<8x8x128xbf16, #tpu.memory_space<vmem>>, vector<1x8x128xbf16>,
    %331 = vector.broadcast %9 : vector<1x128xf32> to vector<8x128xf32>
    %332 = arith.mulf %292, %331 : vector<8x128xf32>
    %cst_107 = arith.constant dense<0.000000e+00> : vector<8xf32>
    %333 = vector.multi_reduction <add>, %332, %cst_107 [1] : vector<8x128xf32> to vector<8xf32>
    %c3_108 = arith.constant 3 : index
    %c0_109 = arith.constant 0 : index
    %334 = vector.load %arg17[%c3_108, %c0_109] : memref<8x8xf32, #tpu.memory_space<vmem>>, vector<1x8xf32>
    %335 = vector.shape_cast %334 : vector<1x8xf32> to vector<8xf32>
    %336 = vector.shape_cast %333 : vector<8xf32> to vector<1x8xf32>
    tpu.vector_store %arg17[%c3_108, %c0_109], %336 {strides = array<i32>} : memref<8x8xf32, #tpu.memory_space<vmem>>, vector<1x8xf32>,
    %337 = vector.broadcast %10 : vector<1x128xf32> to vector<8x128xf32>
    %338 = arith.mulf %322, %337 : vector<8x128xf32>
    %cst_110 = arith.constant dense<0.000000e+00> : vector<8xf32>
    %339 = vector.multi_reduction <add>, %338, %cst_110 [1] : vector<8x128xf32> to vector<8xf32>
    %c4_111 = arith.constant 4 : index
    %c0_112 = arith.constant 0 : index
    %340 = vector.load %arg18[%c4_111, %c0_112] : memref<8x8xf32, #tpu.memory_space<vmem>>, vector<1x8xf32>
    %341 = vector.shape_cast %340 : vector<1x8xf32> to vector<8xf32>
    %342 = vector.shape_cast %339 : vector<8xf32> to vector<1x8xf32>
    tpu.vector_store %arg18[%c4_111, %c0_112], %342 {strides = array<i32>} : memref<8x8xf32, #tpu.memory_space<vmem>>, vector<1x8xf32>,
    %c32_113 = arith.constant 32 : index
    %c0_114 = arith.constant 0 : index
    %343 = vector.load %arg14[%c32_113, %c0_114] : memref<64x1024xbf16, #tpu.memory_space<vmem>>, vector<8x512xbf16>
    %c24_115 = arith.constant 24 : index
    %c512_116 = arith.constant 512 : index
    %344 = vector.load %arg14[%c24_115, %c512_116] : memref<64x1024xbf16, #tpu.memory_space<vmem>>, vector<8x512xbf16>
    %345 = arith.extf %343 : vector<8x512xbf16> to vector<8x512xf32>
    %346 = arith.truncf %292 : vector<8x128xf32> to vector<8x128xbf16>
    %c0_117 = arith.constant 0 : index
    %c0_118 = arith.constant 0 : index
    %347 = vector.load %arg5[%c0_117, %c0_118] : memref<128x512xbf16, #tpu.memory_space<vmem>>, vector<128x512xbf16>
    %cst_119 = arith.constant dense<0.000000e+00> : vector<8x512xf32>
    %348 = tpu.matmul %346, %347, %cst_119 {dimension_numbers = #tpu.dot_dimension_numbers<[1], [0], [0], [1], [0, 0, 1, 1], [], []>} : vector<8x128xbf16>, vector<128x512xbf16>, vector<8x512xf32> -> vector<8x512xf32>
    %349 = arith.addf %345, %348 : vector<8x512xf32>
    %350 = vector.extract_strided_slice %349 {offsets = [0, 0], sizes = [8, 128], strides = [1, 1]} : vector<8x512xf32> to vector<8x128xf32>
    %351 = arith.negf %350 : vector<8x128xf32>
    %352 = math.exp %351 : vector<8x128xf32>
    %cst_120 = arith.constant 1.000000e+00 : f32
    %353 = vector.broadcast %cst_120 : f32 to vector<8x128xf32>
    %354 = arith.addf %353, %352 : vector<8x128xf32>
    %355 = arith.divf %353, %354 : vector<8x128xf32>
    %356 = vector.extract_strided_slice %349 {offsets = [0, 128], sizes = [8, 128], strides = [1, 1]} : vector<8x512xf32> to vector<8x128xf32>
    %357 = arith.negf %356 : vector<8x128xf32>
    %358 = math.exp %357 : vector<8x128xf32>
    %cst_121 = arith.constant 1.000000e+00 : f32
    %359 = vector.broadcast %cst_121 : f32 to vector<8x128xf32>
    %360 = arith.addf %359, %358 : vector<8x128xf32>
    %361 = arith.divf %359, %360 : vector<8x128xf32>
    %362 = vector.extract_strided_slice %349 {offsets = [0, 256], sizes = [8, 128], strides = [1, 1]} : vector<8x512xf32> to vector<8x128xf32>
    %363 = math.tanh %362 : vector<8x128xf32>
    %364 = vector.extract_strided_slice %349 {offsets = [0, 384], sizes = [8, 128], strides = [1, 1]} : vector<8x512xf32> to vector<8x128xf32>
    %365 = arith.negf %364 : vector<8x128xf32>
    %366 = math.exp %365 : vector<8x128xf32>
    %cst_122 = arith.constant 1.000000e+00 : f32
    %367 = vector.broadcast %cst_122 : f32 to vector<8x128xf32>
    %368 = arith.addf %367, %366 : vector<8x128xf32>
    %369 = arith.divf %367, %368 : vector<8x128xf32>
    %370 = arith.mulf %361, %290 : vector<8x128xf32>
    %371 = arith.mulf %355, %363 : vector<8x128xf32>
    %372 = arith.addf %370, %371 : vector<8x128xf32>
    %373 = math.tanh %372 : vector<8x128xf32>
    %374 = arith.mulf %369, %373 : vector<8x128xf32>
    %375 = arith.extf %344 : vector<8x512xbf16> to vector<8x512xf32>
    %376 = arith.truncf %322 : vector<8x128xf32> to vector<8x128xbf16>
    %c0_123 = arith.constant 0 : index
    %c0_124 = arith.constant 0 : index
    %377 = vector.load %arg6[%c0_123, %c0_124] : memref<128x512xbf16, #tpu.memory_space<vmem>>, vector<128x512xbf16>
    %cst_125 = arith.constant dense<0.000000e+00> : vector<8x512xf32>
    %378 = tpu.matmul %376, %377, %cst_125 {dimension_numbers = #tpu.dot_dimension_numbers<[1], [0], [0], [1], [0, 0, 1, 1], [], []>} : vector<8x128xbf16>, vector<128x512xbf16>, vector<8x512xf32> -> vector<8x512xf32>
    %379 = arith.addf %375, %378 : vector<8x512xf32>
    %380 = vector.extract_strided_slice %379 {offsets = [0, 0], sizes = [8, 128], strides = [1, 1]} : vector<8x512xf32> to vector<8x128xf32>
    %381 = arith.negf %380 : vector<8x128xf32>
    %382 = math.exp %381 : vector<8x128xf32>
    %cst_126 = arith.constant 1.000000e+00 : f32
    %383 = vector.broadcast %cst_126 : f32 to vector<8x128xf32>
    %384 = arith.addf %383, %382 : vector<8x128xf32>
    %385 = arith.divf %383, %384 : vector<8x128xf32>
    %386 = vector.extract_strided_slice %379 {offsets = [0, 128], sizes = [8, 128], strides = [1, 1]} : vector<8x512xf32> to vector<8x128xf32>
    %387 = arith.negf %386 : vector<8x128xf32>
    %388 = math.exp %387 : vector<8x128xf32>
    %cst_127 = arith.constant 1.000000e+00 : f32
    %389 = vector.broadcast %cst_127 : f32 to vector<8x128xf32>
    %390 = arith.addf %389, %388 : vector<8x128xf32>
    %391 = arith.divf %389, %390 : vector<8x128xf32>
    %392 = vector.extract_strided_slice %379 {offsets = [0, 256], sizes = [8, 128], strides = [1, 1]} : vector<8x512xf32> to vector<8x128xf32>
    %393 = math.tanh %392 : vector<8x128xf32>
    %394 = vector.extract_strided_slice %379 {offsets = [0, 384], sizes = [8, 128], strides = [1, 1]} : vector<8x512xf32> to vector<8x128xf32>
    %395 = arith.negf %394 : vector<8x128xf32>
    %396 = math.exp %395 : vector<8x128xf32>
    %cst_128 = arith.constant 1.000000e+00 : f32
    %397 = vector.broadcast %cst_128 : f32 to vector<8x128xf32>
    %398 = arith.addf %397, %396 : vector<8x128xf32>
    %399 = arith.divf %397, %398 : vector<8x128xf32>
    %400 = arith.mulf %391, %320 : vector<8x128xf32>
    %401 = arith.mulf %385, %393 : vector<8x128xf32>
    %402 = arith.addf %400, %401 : vector<8x128xf32>
    %403 = math.tanh %402 : vector<8x128xf32>
    %404 = arith.mulf %399, %403 : vector<8x128xf32>
    %405 = arith.truncf %374 : vector<8x128xf32> to vector<8x128xbf16>
    %c4_129 = arith.constant 4 : index
    %c0_130 = arith.constant 0 : index
    %c0_131 = arith.constant 0 : index
    %406 = vector.load %arg15[%c4_129, %c0_130, %c0_131] : memref<8x8x128xbf16, #tpu.memory_space<vmem>>, vector<1x8x128xbf16>
    %407 = vector.shape_cast %406 : vector<1x8x128xbf16> to vector<8x128xbf16>
    %408 = vector.shape_cast %405 : vector<8x128xbf16> to vector<1x8x128xbf16>
    tpu.vector_store %arg15[%c4_129, %c0_130, %c0_131], %408 {strides = array<i32>} : memref<8x8x128xbf16, #tpu.memory_space<vmem>>, vector<1x8x128xbf16>,
    %409 = arith.truncf %404 : vector<8x128xf32> to vector<8x128xbf16>
    %c3_132 = arith.constant 3 : index
    %c0_133 = arith.constant 0 : index
    %c0_134 = arith.constant 0 : index
    %410 = vector.load %arg16[%c3_132, %c0_133, %c0_134] : memref<8x8x128xbf16, #tpu.memory_space<vmem>>, vector<1x8x128xbf16>
    %411 = vector.shape_cast %410 : vector<1x8x128xbf16> to vector<8x128xbf16>
    %412 = vector.shape_cast %409 : vector<8x128xbf16> to vector<1x8x128xbf16>
    tpu.vector_store %arg16[%c3_132, %c0_133, %c0_134], %412 {strides = array<i32>} : memref<8x8x128xbf16, #tpu.memory_space<vmem>>, vector<1x8x128xbf16>,
    %413 = vector.broadcast %9 : vector<1x128xf32> to vector<8x128xf32>
    %414 = arith.mulf %374, %413 : vector<8x128xf32>
    %cst_135 = arith.constant dense<0.000000e+00> : vector<8xf32>
    %415 = vector.multi_reduction <add>, %414, %cst_135 [1] : vector<8x128xf32> to vector<8xf32>
    %c4_136 = arith.constant 4 : index
    %c0_137 = arith.constant 0 : index
    %416 = vector.load %arg17[%c4_136, %c0_137] : memref<8x8xf32, #tpu.memory_space<vmem>>, vector<1x8xf32>
    %417 = vector.shape_cast %416 : vector<1x8xf32> to vector<8xf32>
    %418 = vector.shape_cast %415 : vector<8xf32> to vector<1x8xf32>
    tpu.vector_store %arg17[%c4_136, %c0_137], %418 {strides = array<i32>} : memref<8x8xf32, #tpu.memory_space<vmem>>, vector<1x8xf32>,
    %419 = vector.broadcast %10 : vector<1x128xf32> to vector<8x128xf32>
    %420 = arith.mulf %404, %419 : vector<8x128xf32>
    %cst_138 = arith.constant dense<0.000000e+00> : vector<8xf32>
    %421 = vector.multi_reduction <add>, %420, %cst_138 [1] : vector<8x128xf32> to vector<8xf32>
    %c3_139 = arith.constant 3 : index
    %c0_140 = arith.constant 0 : index
    %422 = vector.load %arg18[%c3_139, %c0_140] : memref<8x8xf32, #tpu.memory_space<vmem>>, vector<1x8xf32>
    %423 = vector.shape_cast %422 : vector<1x8xf32> to vector<8xf32>
    %424 = vector.shape_cast %421 : vector<8xf32> to vector<1x8xf32>
    tpu.vector_store %arg18[%c3_139, %c0_140], %424 {strides = array<i32>} : memref<8x8xf32, #tpu.memory_space<vmem>>, vector<1x8xf32>,
    %c40_141 = arith.constant 40 : index
    %c0_142 = arith.constant 0 : index
    %425 = vector.load %arg14[%c40_141, %c0_142] : memref<64x1024xbf16, #tpu.memory_space<vmem>>, vector<8x512xbf16>
    %c16_143 = arith.constant 16 : index
    %c512_144 = arith.constant 512 : index
    %426 = vector.load %arg14[%c16_143, %c512_144] : memref<64x1024xbf16, #tpu.memory_space<vmem>>, vector<8x512xbf16>
    %427 = arith.extf %425 : vector<8x512xbf16> to vector<8x512xf32>
    %428 = arith.truncf %374 : vector<8x128xf32> to vector<8x128xbf16>
    %c0_145 = arith.constant 0 : index
    %c0_146 = arith.constant 0 : index
    %429 = vector.load %arg5[%c0_145, %c0_146] : memref<128x512xbf16, #tpu.memory_space<vmem>>, vector<128x512xbf16>
    %cst_147 = arith.constant dense<0.000000e+00> : vector<8x512xf32>
    %430 = tpu.matmul %428, %429, %cst_147 {dimension_numbers = #tpu.dot_dimension_numbers<[1], [0], [0], [1], [0, 0, 1, 1], [], []>} : vector<8x128xbf16>, vector<128x512xbf16>, vector<8x512xf32> -> vector<8x512xf32>
    %431 = arith.addf %427, %430 : vector<8x512xf32>
    %432 = vector.extract_strided_slice %431 {offsets = [0, 0], sizes = [8, 128], strides = [1, 1]} : vector<8x512xf32> to vector<8x128xf32>
    %433 = arith.negf %432 : vector<8x128xf32>
    %434 = math.exp %433 : vector<8x128xf32>
    %cst_148 = arith.constant 1.000000e+00 : f32
    %435 = vector.broadcast %cst_148 : f32 to vector<8x128xf32>
    %436 = arith.addf %435, %434 : vector<8x128xf32>
    %437 = arith.divf %435, %436 : vector<8x128xf32>
    %438 = vector.extract_strided_slice %431 {offsets = [0, 128], sizes = [8, 128], strides = [1, 1]} : vector<8x512xf32> to vector<8x128xf32>
    %439 = arith.negf %438 : vector<8x128xf32>
    %440 = math.exp %439 : vector<8x128xf32>
    %cst_149 = arith.constant 1.000000e+00 : f32
    %441 = vector.broadcast %cst_149 : f32 to vector<8x128xf32>
    %442 = arith.addf %441, %440 : vector<8x128xf32>
    %443 = arith.divf %441, %442 : vector<8x128xf32>
    %444 = vector.extract_strided_slice %431 {offsets = [0, 256], sizes = [8, 128], strides = [1, 1]} : vector<8x512xf32> to vector<8x128xf32>
    %445 = math.tanh %444 : vector<8x128xf32>
    %446 = vector.extract_strided_slice %431 {offsets = [0, 384], sizes = [8, 128], strides = [1, 1]} : vector<8x512xf32> to vector<8x128xf32>
    %447 = arith.negf %446 : vector<8x128xf32>
    %448 = math.exp %447 : vector<8x128xf32>
    %cst_150 = arith.constant 1.000000e+00 : f32
    %449 = vector.broadcast %cst_150 : f32 to vector<8x128xf32>
    %450 = arith.addf %449, %448 : vector<8x128xf32>
    %451 = arith.divf %449, %450 : vector<8x128xf32>
    %452 = arith.mulf %443, %372 : vector<8x128xf32>
    %453 = arith.mulf %437, %445 : vector<8x128xf32>
    %454 = arith.addf %452, %453 : vector<8x128xf32>
    %455 = math.tanh %454 : vector<8x128xf32>
    %456 = arith.mulf %451, %455 : vector<8x128xf32>
    %457 = arith.extf %426 : vector<8x512xbf16> to vector<8x512xf32>
    %458 = arith.truncf %404 : vector<8x128xf32> to vector<8x128xbf16>
    %c0_151 = arith.constant 0 : index
    %c0_152 = arith.constant 0 : index
    %459 = vector.load %arg6[%c0_151, %c0_152] : memref<128x512xbf16, #tpu.memory_space<vmem>>, vector<128x512xbf16>
    %cst_153 = arith.constant dense<0.000000e+00> : vector<8x512xf32>
    %460 = tpu.matmul %458, %459, %cst_153 {dimension_numbers = #tpu.dot_dimension_numbers<[1], [0], [0], [1], [0, 0, 1, 1], [], []>} : vector<8x128xbf16>, vector<128x512xbf16>, vector<8x512xf32> -> vector<8x512xf32>
    %461 = arith.addf %457, %460 : vector<8x512xf32>
    %462 = vector.extract_strided_slice %461 {offsets = [0, 0], sizes = [8, 128], strides = [1, 1]} : vector<8x512xf32> to vector<8x128xf32>
    %463 = arith.negf %462 : vector<8x128xf32>
    %464 = math.exp %463 : vector<8x128xf32>
    %cst_154 = arith.constant 1.000000e+00 : f32
    %465 = vector.broadcast %cst_154 : f32 to vector<8x128xf32>
    %466 = arith.addf %465, %464 : vector<8x128xf32>
    %467 = arith.divf %465, %466 : vector<8x128xf32>
    %468 = vector.extract_strided_slice %461 {offsets = [0, 128], sizes = [8, 128], strides = [1, 1]} : vector<8x512xf32> to vector<8x128xf32>
    %469 = arith.negf %468 : vector<8x128xf32>
    %470 = math.exp %469 : vector<8x128xf32>
    %cst_155 = arith.constant 1.000000e+00 : f32
    %471 = vector.broadcast %cst_155 : f32 to vector<8x128xf32>
    %472 = arith.addf %471, %470 : vector<8x128xf32>
    %473 = arith.divf %471, %472 : vector<8x128xf32>
    %474 = vector.extract_strided_slice %461 {offsets = [0, 256], sizes = [8, 128], strides = [1, 1]} : vector<8x512xf32> to vector<8x128xf32>
    %475 = math.tanh %474 : vector<8x128xf32>
    %476 = vector.extract_strided_slice %461 {offsets = [0, 384], sizes = [8, 128], strides = [1, 1]} : vector<8x512xf32> to vector<8x128xf32>
    %477 = arith.negf %476 : vector<8x128xf32>
    %478 = math.exp %477 : vector<8x128xf32>
    %cst_156 = arith.constant 1.000000e+00 : f32
    %479 = vector.broadcast %cst_156 : f32 to vector<8x128xf32>
    %480 = arith.addf %479, %478 : vector<8x128xf32>
    %481 = arith.divf %479, %480 : vector<8x128xf32>
    %482 = arith.mulf %473, %402 : vector<8x128xf32>
    %483 = arith.mulf %467, %475 : vector<8x128xf32>
    %484 = arith.addf %482, %483 : vector<8x128xf32>
    %485 = math.tanh %484 : vector<8x128xf32>
    %486 = arith.mulf %481, %485 : vector<8x128xf32>
    %487 = arith.truncf %456 : vector<8x128xf32> to vector<8x128xbf16>
    %c5_157 = arith.constant 5 : index
    %c0_158 = arith.constant 0 : index
    %c0_159 = arith.constant 0 : index
    %488 = vector.load %arg15[%c5_157, %c0_158, %c0_159] : memref<8x8x128xbf16, #tpu.memory_space<vmem>>, vector<1x8x128xbf16>
    %489 = vector.shape_cast %488 : vector<1x8x128xbf16> to vector<8x128xbf16>
    %490 = vector.shape_cast %487 : vector<8x128xbf16> to vector<1x8x128xbf16>
    tpu.vector_store %arg15[%c5_157, %c0_158, %c0_159], %490 {strides = array<i32>} : memref<8x8x128xbf16, #tpu.memory_space<vmem>>, vector<1x8x128xbf16>,
    %491 = arith.truncf %486 : vector<8x128xf32> to vector<8x128xbf16>
    %c2_160 = arith.constant 2 : index
    %c0_161 = arith.constant 0 : index
    %c0_162 = arith.constant 0 : index
    %492 = vector.load %arg16[%c2_160, %c0_161, %c0_162] : memref<8x8x128xbf16, #tpu.memory_space<vmem>>, vector<1x8x128xbf16>
    %493 = vector.shape_cast %492 : vector<1x8x128xbf16> to vector<8x128xbf16>
    %494 = vector.shape_cast %491 : vector<8x128xbf16> to vector<1x8x128xbf16>
    tpu.vector_store %arg16[%c2_160, %c0_161, %c0_162], %494 {strides = array<i32>} : memref<8x8x128xbf16, #tpu.memory_space<vmem>>, vector<1x8x128xbf16>,
    %495 = vector.broadcast %9 : vector<1x128xf32> to vector<8x128xf32>
    %496 = arith.mulf %456, %495 : vector<8x128xf32>
    %cst_163 = arith.constant dense<0.000000e+00> : vector<8xf32>
    %497 = vector.multi_reduction <add>, %496, %cst_163 [1] : vector<8x128xf32> to vector<8xf32>
    %c5_164 = arith.constant 5 : index
    %c0_165 = arith.constant 0 : index
    %498 = vector.load %arg17[%c5_164, %c0_165] : memref<8x8xf32, #tpu.memory_space<vmem>>, vector<1x8xf32>
    %499 = vector.shape_cast %498 : vector<1x8xf32> to vector<8xf32>
    %500 = vector.shape_cast %497 : vector<8xf32> to vector<1x8xf32>
    tpu.vector_store %arg17[%c5_164, %c0_165], %500 {strides = array<i32>} : memref<8x8xf32, #tpu.memory_space<vmem>>, vector<1x8xf32>,
    %501 = vector.broadcast %10 : vector<1x128xf32> to vector<8x128xf32>
    %502 = arith.mulf %486, %501 : vector<8x128xf32>
    %cst_166 = arith.constant dense<0.000000e+00> : vector<8xf32>
    %503 = vector.multi_reduction <add>, %502, %cst_166 [1] : vector<8x128xf32> to vector<8xf32>
    %c2_167 = arith.constant 2 : index
    %c0_168 = arith.constant 0 : index
    %504 = vector.load %arg18[%c2_167, %c0_168] : memref<8x8xf32, #tpu.memory_space<vmem>>, vector<1x8xf32>
    %505 = vector.shape_cast %504 : vector<1x8xf32> to vector<8xf32>
    %506 = vector.shape_cast %503 : vector<8xf32> to vector<1x8xf32>
    tpu.vector_store %arg18[%c2_167, %c0_168], %506 {strides = array<i32>} : memref<8x8xf32, #tpu.memory_space<vmem>>, vector<1x8xf32>,
    %c48_169 = arith.constant 48 : index
    %c0_170 = arith.constant 0 : index
    %507 = vector.load %arg14[%c48_169, %c0_170] : memref<64x1024xbf16, #tpu.memory_space<vmem>>, vector<8x512xbf16>
    %c8_171 = arith.constant 8 : index
    %c512_172 = arith.constant 512 : index
    %508 = vector.load %arg14[%c8_171, %c512_172] : memref<64x1024xbf16, #tpu.memory_space<vmem>>, vector<8x512xbf16>
    %509 = arith.extf %507 : vector<8x512xbf16> to vector<8x512xf32>
    %510 = arith.truncf %456 : vector<8x128xf32> to vector<8x128xbf16>
    %c0_173 = arith.constant 0 : index
    %c0_174 = arith.constant 0 : index
    %511 = vector.load %arg5[%c0_173, %c0_174] : memref<128x512xbf16, #tpu.memory_space<vmem>>, vector<128x512xbf16>
    %cst_175 = arith.constant dense<0.000000e+00> : vector<8x512xf32>
    %512 = tpu.matmul %510, %511, %cst_175 {dimension_numbers = #tpu.dot_dimension_numbers<[1], [0], [0], [1], [0, 0, 1, 1], [], []>} : vector<8x128xbf16>, vector<128x512xbf16>, vector<8x512xf32> -> vector<8x512xf32>
    %513 = arith.addf %509, %512 : vector<8x512xf32>
    %514 = vector.extract_strided_slice %513 {offsets = [0, 0], sizes = [8, 128], strides = [1, 1]} : vector<8x512xf32> to vector<8x128xf32>
    %515 = arith.negf %514 : vector<8x128xf32>
    %516 = math.exp %515 : vector<8x128xf32>
    %cst_176 = arith.constant 1.000000e+00 : f32
    %517 = vector.broadcast %cst_176 : f32 to vector<8x128xf32>
    %518 = arith.addf %517, %516 : vector<8x128xf32>
    %519 = arith.divf %517, %518 : vector<8x128xf32>
    %520 = vector.extract_strided_slice %513 {offsets = [0, 128], sizes = [8, 128], strides = [1, 1]} : vector<8x512xf32> to vector<8x128xf32>
    %521 = arith.negf %520 : vector<8x128xf32>
    %522 = math.exp %521 : vector<8x128xf32>
    %cst_177 = arith.constant 1.000000e+00 : f32
    %523 = vector.broadcast %cst_177 : f32 to vector<8x128xf32>
    %524 = arith.addf %523, %522 : vector<8x128xf32>
    %525 = arith.divf %523, %524 : vector<8x128xf32>
    %526 = vector.extract_strided_slice %513 {offsets = [0, 256], sizes = [8, 128], strides = [1, 1]} : vector<8x512xf32> to vector<8x128xf32>
    %527 = math.tanh %526 : vector<8x128xf32>
    %528 = vector.extract_strided_slice %513 {offsets = [0, 384], sizes = [8, 128], strides = [1, 1]} : vector<8x512xf32> to vector<8x128xf32>
    %529 = arith.negf %528 : vector<8x128xf32>
    %530 = math.exp %529 : vector<8x128xf32>
    %cst_178 = arith.constant 1.000000e+00 : f32
    %531 = vector.broadcast %cst_178 : f32 to vector<8x128xf32>
    %532 = arith.addf %531, %530 : vector<8x128xf32>
    %533 = arith.divf %531, %532 : vector<8x128xf32>
    %534 = arith.mulf %525, %454 : vector<8x128xf32>
    %535 = arith.mulf %519, %527 : vector<8x128xf32>
    %536 = arith.addf %534, %535 : vector<8x128xf32>
    %537 = math.tanh %536 : vector<8x128xf32>
    %538 = arith.mulf %533, %537 : vector<8x128xf32>
    %539 = arith.extf %508 : vector<8x512xbf16> to vector<8x512xf32>
    %540 = arith.truncf %486 : vector<8x128xf32> to vector<8x128xbf16>
    %c0_179 = arith.constant 0 : index
    %c0_180 = arith.constant 0 : index
    %541 = vector.load %arg6[%c0_179, %c0_180] : memref<128x512xbf16, #tpu.memory_space<vmem>>, vector<128x512xbf16>
    %cst_181 = arith.constant dense<0.000000e+00> : vector<8x512xf32>
    %542 = tpu.matmul %540, %541, %cst_181 {dimension_numbers = #tpu.dot_dimension_numbers<[1], [0], [0], [1], [0, 0, 1, 1], [], []>} : vector<8x128xbf16>, vector<128x512xbf16>, vector<8x512xf32> -> vector<8x512xf32>
    %543 = arith.addf %539, %542 : vector<8x512xf32>
    %544 = vector.extract_strided_slice %543 {offsets = [0, 0], sizes = [8, 128], strides = [1, 1]} : vector<8x512xf32> to vector<8x128xf32>
    %545 = arith.negf %544 : vector<8x128xf32>
    %546 = math.exp %545 : vector<8x128xf32>
    %cst_182 = arith.constant 1.000000e+00 : f32
    %547 = vector.broadcast %cst_182 : f32 to vector<8x128xf32>
    %548 = arith.addf %547, %546 : vector<8x128xf32>
    %549 = arith.divf %547, %548 : vector<8x128xf32>
    %550 = vector.extract_strided_slice %543 {offsets = [0, 128], sizes = [8, 128], strides = [1, 1]} : vector<8x512xf32> to vector<8x128xf32>
    %551 = arith.negf %550 : vector<8x128xf32>
    %552 = math.exp %551 : vector<8x128xf32>
    %cst_183 = arith.constant 1.000000e+00 : f32
    %553 = vector.broadcast %cst_183 : f32 to vector<8x128xf32>
    %554 = arith.addf %553, %552 : vector<8x128xf32>
    %555 = arith.divf %553, %554 : vector<8x128xf32>
    %556 = vector.extract_strided_slice %543 {offsets = [0, 256], sizes = [8, 128], strides = [1, 1]} : vector<8x512xf32> to vector<8x128xf32>
    %557 = math.tanh %556 : vector<8x128xf32>
    %558 = vector.extract_strided_slice %543 {offsets = [0, 384], sizes = [8, 128], strides = [1, 1]} : vector<8x512xf32> to vector<8x128xf32>
    %559 = arith.negf %558 : vector<8x128xf32>
    %560 = math.exp %559 : vector<8x128xf32>
    %cst_184 = arith.constant 1.000000e+00 : f32
    %561 = vector.broadcast %cst_184 : f32 to vector<8x128xf32>
    %562 = arith.addf %561, %560 : vector<8x128xf32>
    %563 = arith.divf %561, %562 : vector<8x128xf32>
    %564 = arith.mulf %555, %484 : vector<8x128xf32>
    %565 = arith.mulf %549, %557 : vector<8x128xf32>
    %566 = arith.addf %564, %565 : vector<8x128xf32>
    %567 = math.tanh %566 : vector<8x128xf32>
    %568 = arith.mulf %563, %567 : vector<8x128xf32>
    %569 = arith.truncf %538 : vector<8x128xf32> to vector<8x128xbf16>
    %c6_185 = arith.constant 6 : index
    %c0_186 = arith.constant 0 : index
    %c0_187 = arith.constant 0 : index
    %570 = vector.load %arg15[%c6_185, %c0_186, %c0_187] : memref<8x8x128xbf16, #tpu.memory_space<vmem>>, vector<1x8x128xbf16>
    %571 = vector.shape_cast %570 : vector<1x8x128xbf16> to vector<8x128xbf16>
    %572 = vector.shape_cast %569 : vector<8x128xbf16> to vector<1x8x128xbf16>
    tpu.vector_store %arg15[%c6_185, %c0_186, %c0_187], %572 {strides = array<i32>} : memref<8x8x128xbf16, #tpu.memory_space<vmem>>, vector<1x8x128xbf16>,
    %573 = arith.truncf %568 : vector<8x128xf32> to vector<8x128xbf16>
    %c1_188 = arith.constant 1 : index
    %c0_189 = arith.constant 0 : index
    %c0_190 = arith.constant 0 : index
    %574 = vector.load %arg16[%c1_188, %c0_189, %c0_190] : memref<8x8x128xbf16, #tpu.memory_space<vmem>>, vector<1x8x128xbf16>
    %575 = vector.shape_cast %574 : vector<1x8x128xbf16> to vector<8x128xbf16>
    %576 = vector.shape_cast %573 : vector<8x128xbf16> to vector<1x8x128xbf16>
    tpu.vector_store %arg16[%c1_188, %c0_189, %c0_190], %576 {strides = array<i32>} : memref<8x8x128xbf16, #tpu.memory_space<vmem>>, vector<1x8x128xbf16>,
    %577 = vector.broadcast %9 : vector<1x128xf32> to vector<8x128xf32>
    %578 = arith.mulf %538, %577 : vector<8x128xf32>
    %cst_191 = arith.constant dense<0.000000e+00> : vector<8xf32>
    %579 = vector.multi_reduction <add>, %578, %cst_191 [1] : vector<8x128xf32> to vector<8xf32>
    %c6_192 = arith.constant 6 : index
    %c0_193 = arith.constant 0 : index
    %580 = vector.load %arg17[%c6_192, %c0_193] : memref<8x8xf32, #tpu.memory_space<vmem>>, vector<1x8xf32>
    %581 = vector.shape_cast %580 : vector<1x8xf32> to vector<8xf32>
    %582 = vector.shape_cast %579 : vector<8xf32> to vector<1x8xf32>
    tpu.vector_store %arg17[%c6_192, %c0_193], %582 {strides = array<i32>} : memref<8x8xf32, #tpu.memory_space<vmem>>, vector<1x8xf32>,
    %583 = vector.broadcast %10 : vector<1x128xf32> to vector<8x128xf32>
    %584 = arith.mulf %568, %583 : vector<8x128xf32>
    %cst_194 = arith.constant dense<0.000000e+00> : vector<8xf32>
    %585 = vector.multi_reduction <add>, %584, %cst_194 [1] : vector<8x128xf32> to vector<8xf32>
    %c1_195 = arith.constant 1 : index
    %c0_196 = arith.constant 0 : index
    %586 = vector.load %arg18[%c1_195, %c0_196] : memref<8x8xf32, #tpu.memory_space<vmem>>, vector<1x8xf32>
    %587 = vector.shape_cast %586 : vector<1x8xf32> to vector<8xf32>
    %588 = vector.shape_cast %585 : vector<8xf32> to vector<1x8xf32>
    tpu.vector_store %arg18[%c1_195, %c0_196], %588 {strides = array<i32>} : memref<8x8xf32, #tpu.memory_space<vmem>>, vector<1x8xf32>,
    %c56_197 = arith.constant 56 : index
    %c0_198 = arith.constant 0 : index
    %589 = vector.load %arg14[%c56_197, %c0_198] : memref<64x1024xbf16, #tpu.memory_space<vmem>>, vector<8x512xbf16>
    %c0_199 = arith.constant 0 : index
    %c512_200 = arith.constant 512 : index
    %590 = vector.load %arg14[%c0_199, %c512_200] : memref<64x1024xbf16, #tpu.memory_space<vmem>>, vector<8x512xbf16>
    %591 = arith.extf %589 : vector<8x512xbf16> to vector<8x512xf32>
    %592 = arith.truncf %538 : vector<8x128xf32> to vector<8x128xbf16>
    %c0_201 = arith.constant 0 : index
    %c0_202 = arith.constant 0 : index
    %593 = vector.load %arg5[%c0_201, %c0_202] : memref<128x512xbf16, #tpu.memory_space<vmem>>, vector<128x512xbf16>
    %cst_203 = arith.constant dense<0.000000e+00> : vector<8x512xf32>
    %594 = tpu.matmul %592, %593, %cst_203 {dimension_numbers = #tpu.dot_dimension_numbers<[1], [0], [0], [1], [0, 0, 1, 1], [], []>} : vector<8x128xbf16>, vector<128x512xbf16>, vector<8x512xf32> -> vector<8x512xf32>
    %595 = arith.addf %591, %594 : vector<8x512xf32>
    %596 = vector.extract_strided_slice %595 {offsets = [0, 0], sizes = [8, 128], strides = [1, 1]} : vector<8x512xf32> to vector<8x128xf32>
    %597 = arith.negf %596 : vector<8x128xf32>
    %598 = math.exp %597 : vector<8x128xf32>
    %cst_204 = arith.constant 1.000000e+00 : f32
    %599 = vector.broadcast %cst_204 : f32 to vector<8x128xf32>
    %600 = arith.addf %599, %598 : vector<8x128xf32>
    %601 = arith.divf %599, %600 : vector<8x128xf32>
    %602 = vector.extract_strided_slice %595 {offsets = [0, 128], sizes = [8, 128], strides = [1, 1]} : vector<8x512xf32> to vector<8x128xf32>
    %603 = arith.negf %602 : vector<8x128xf32>
    %604 = math.exp %603 : vector<8x128xf32>
    %cst_205 = arith.constant 1.000000e+00 : f32
    %605 = vector.broadcast %cst_205 : f32 to vector<8x128xf32>
    %606 = arith.addf %605, %604 : vector<8x128xf32>
    %607 = arith.divf %605, %606 : vector<8x128xf32>
    %608 = vector.extract_strided_slice %595 {offsets = [0, 256], sizes = [8, 128], strides = [1, 1]} : vector<8x512xf32> to vector<8x128xf32>
    %609 = math.tanh %608 : vector<8x128xf32>
    %610 = vector.extract_strided_slice %595 {offsets = [0, 384], sizes = [8, 128], strides = [1, 1]} : vector<8x512xf32> to vector<8x128xf32>
    %611 = arith.negf %610 : vector<8x128xf32>
    %612 = math.exp %611 : vector<8x128xf32>
    %cst_206 = arith.constant 1.000000e+00 : f32
    %613 = vector.broadcast %cst_206 : f32 to vector<8x128xf32>
    %614 = arith.addf %613, %612 : vector<8x128xf32>
    %615 = arith.divf %613, %614 : vector<8x128xf32>
    %616 = arith.mulf %607, %536 : vector<8x128xf32>
    %617 = arith.mulf %601, %609 : vector<8x128xf32>
    %618 = arith.addf %616, %617 : vector<8x128xf32>
    %619 = math.tanh %618 : vector<8x128xf32>
    %620 = arith.mulf %615, %619 : vector<8x128xf32>
    %621 = arith.extf %590 : vector<8x512xbf16> to vector<8x512xf32>
    %622 = arith.truncf %568 : vector<8x128xf32> to vector<8x128xbf16>
    %c0_207 = arith.constant 0 : index
    %c0_208 = arith.constant 0 : index
    %623 = vector.load %arg6[%c0_207, %c0_208] : memref<128x512xbf16, #tpu.memory_space<vmem>>, vector<128x512xbf16>
    %cst_209 = arith.constant dense<0.000000e+00> : vector<8x512xf32>
    %624 = tpu.matmul %622, %623, %cst_209 {dimension_numbers = #tpu.dot_dimension_numbers<[1], [0], [0], [1], [0, 0, 1, 1], [], []>} : vector<8x128xbf16>, vector<128x512xbf16>, vector<8x512xf32> -> vector<8x512xf32>
    %625 = arith.addf %621, %624 : vector<8x512xf32>
    %626 = vector.extract_strided_slice %625 {offsets = [0, 0], sizes = [8, 128], strides = [1, 1]} : vector<8x512xf32> to vector<8x128xf32>
    %627 = arith.negf %626 : vector<8x128xf32>
    %628 = math.exp %627 : vector<8x128xf32>
    %cst_210 = arith.constant 1.000000e+00 : f32
    %629 = vector.broadcast %cst_210 : f32 to vector<8x128xf32>
    %630 = arith.addf %629, %628 : vector<8x128xf32>
    %631 = arith.divf %629, %630 : vector<8x128xf32>
    %632 = vector.extract_strided_slice %625 {offsets = [0, 128], sizes = [8, 128], strides = [1, 1]} : vector<8x512xf32> to vector<8x128xf32>
    %633 = arith.negf %632 : vector<8x128xf32>
    %634 = math.exp %633 : vector<8x128xf32>
    %cst_211 = arith.constant 1.000000e+00 : f32
    %635 = vector.broadcast %cst_211 : f32 to vector<8x128xf32>
    %636 = arith.addf %635, %634 : vector<8x128xf32>
    %637 = arith.divf %635, %636 : vector<8x128xf32>
    %638 = vector.extract_strided_slice %625 {offsets = [0, 256], sizes = [8, 128], strides = [1, 1]} : vector<8x512xf32> to vector<8x128xf32>
    %639 = math.tanh %638 : vector<8x128xf32>
    %640 = vector.extract_strided_slice %625 {offsets = [0, 384], sizes = [8, 128], strides = [1, 1]} : vector<8x512xf32> to vector<8x128xf32>
    %641 = arith.negf %640 : vector<8x128xf32>
    %642 = math.exp %641 : vector<8x128xf32>
    %cst_212 = arith.constant 1.000000e+00 : f32
    %643 = vector.broadcast %cst_212 : f32 to vector<8x128xf32>
    %644 = arith.addf %643, %642 : vector<8x128xf32>
    %645 = arith.divf %643, %644 : vector<8x128xf32>
    %646 = arith.mulf %637, %566 : vector<8x128xf32>
    %647 = arith.mulf %631, %639 : vector<8x128xf32>
    %648 = arith.addf %646, %647 : vector<8x128xf32>
    %649 = math.tanh %648 : vector<8x128xf32>
    %650 = arith.mulf %645, %649 : vector<8x128xf32>
    %651 = arith.truncf %620 : vector<8x128xf32> to vector<8x128xbf16>
    %c7_213 = arith.constant 7 : index
    %c0_214 = arith.constant 0 : index
    %c0_215 = arith.constant 0 : index
    %652 = vector.load %arg15[%c7_213, %c0_214, %c0_215] : memref<8x8x128xbf16, #tpu.memory_space<vmem>>, vector<1x8x128xbf16>
    %653 = vector.shape_cast %652 : vector<1x8x128xbf16> to vector<8x128xbf16>
    %654 = vector.shape_cast %651 : vector<8x128xbf16> to vector<1x8x128xbf16>
    tpu.vector_store %arg15[%c7_213, %c0_214, %c0_215], %654 {strides = array<i32>} : memref<8x8x128xbf16, #tpu.memory_space<vmem>>, vector<1x8x128xbf16>,
    %655 = arith.truncf %650 : vector<8x128xf32> to vector<8x128xbf16>
    %c0_216 = arith.constant 0 : index
    %c0_217 = arith.constant 0 : index
    %c0_218 = arith.constant 0 : index
    %656 = vector.load %arg16[%c0_216, %c0_217, %c0_218] : memref<8x8x128xbf16, #tpu.memory_space<vmem>>, vector<1x8x128xbf16>
    %657 = vector.shape_cast %656 : vector<1x8x128xbf16> to vector<8x128xbf16>
    %658 = vector.shape_cast %655 : vector<8x128xbf16> to vector<1x8x128xbf16>
    tpu.vector_store %arg16[%c0_216, %c0_217, %c0_218], %658 {strides = array<i32>} : memref<8x8x128xbf16, #tpu.memory_space<vmem>>, vector<1x8x128xbf16>,
    %659 = vector.broadcast %9 : vector<1x128xf32> to vector<8x128xf32>
    %660 = arith.mulf %620, %659 : vector<8x128xf32>
    %cst_219 = arith.constant dense<0.000000e+00> : vector<8xf32>
    %661 = vector.multi_reduction <add>, %660, %cst_219 [1] : vector<8x128xf32> to vector<8xf32>
    %c7_220 = arith.constant 7 : index
    %c0_221 = arith.constant 0 : index
    %662 = vector.load %arg17[%c7_220, %c0_221] : memref<8x8xf32, #tpu.memory_space<vmem>>, vector<1x8xf32>
    %663 = vector.shape_cast %662 : vector<1x8xf32> to vector<8xf32>
    %664 = vector.shape_cast %661 : vector<8xf32> to vector<1x8xf32>
    tpu.vector_store %arg17[%c7_220, %c0_221], %664 {strides = array<i32>} : memref<8x8xf32, #tpu.memory_space<vmem>>, vector<1x8xf32>,
    %665 = vector.broadcast %10 : vector<1x128xf32> to vector<8x128xf32>
    %666 = arith.mulf %650, %665 : vector<8x128xf32>
    %cst_222 = arith.constant dense<0.000000e+00> : vector<8xf32>
    %667 = vector.multi_reduction <add>, %666, %cst_222 [1] : vector<8x128xf32> to vector<8xf32>
    %c0_223 = arith.constant 0 : index
    %c0_224 = arith.constant 0 : index
    %668 = vector.load %arg18[%c0_223, %c0_224] : memref<8x8xf32, #tpu.memory_space<vmem>>, vector<1x8xf32>
    %669 = vector.shape_cast %668 : vector<1x8xf32> to vector<8xf32>
    %670 = vector.shape_cast %667 : vector<8xf32> to vector<1x8xf32>
    tpu.vector_store %arg18[%c0_223, %c0_224], %670 {strides = array<i32>} : memref<8x8xf32, #tpu.memory_space<vmem>>, vector<1x8xf32>,
    %c0_225 = arith.constant 0 : index
    %c0_226 = arith.constant 0 : index
    %671 = vector.load %arg17[%c0_225, %c0_226] : memref<8x8xf32, #tpu.memory_space<vmem>>, vector<8x8xf32>
    %c0_227 = arith.constant 0 : index
    %c0_228 = arith.constant 0 : index
    %672 = vector.load %arg18[%c0_227, %c0_228] : memref<8x8xf32, #tpu.memory_space<vmem>>, vector<8x8xf32>
    %673 = arith.addf %671, %672 : vector<8x8xf32>
    %674 = math.tanh %673 : vector<8x8xf32>
    %c0_229 = arith.constant 0 : index
    %c0_230 = arith.constant 0 : index
    %c0_231 = arith.constant 0 : index
    %675 = vector.load %arg2[%c0_229, %c0_230, %c0_231] : memref<1x1x8xi32, #tpu.memory_space<vmem>>, vector<1x1x8xi32>
    %676 = vector.shape_cast %675 : vector<1x1x8xi32> to vector<1x8xi32>
    %677 = tpu.iota {dimensions = array<i32: 0>} : vector<8x8xi32>
    %678 = vector.broadcast %676 : vector<1x8xi32> to vector<8x8xi32>
    %679 = arith.cmpi slt, %677, %678 : vector<8x8xi32>
    %680 = arith.extui %679 : vector<8x8xi1> to vector<8x8xi32>
    %681 = arith.sitofp %680 : vector<8x8xi32> to vector<8x8xf32>
    %cst_232 = arith.constant dense<0xFF800000> : vector<8xf32>
    %682 = vector.multi_reduction <maximumf>, %674, %cst_232 [0] : vector<8x8xf32> to vector<8xf32>
    %683 = vector.shape_cast %682 : vector<8xf32> to vector<1x8xf32>
    %684 = vector.broadcast %683 : vector<1x8xf32> to vector<8x8xf32>
    %685 = arith.subf %674, %684 : vector<8x8xf32>
    %686 = math.exp %685 : vector<8x8xf32>
    %687 = arith.mulf %686, %681 : vector<8x8xf32>
    %cst_233 = arith.constant dense<0.000000e+00> : vector<8xf32>
    %688 = vector.multi_reduction <add>, %687, %cst_233 [0] : vector<8x8xf32> to vector<8xf32>
    %689 = vector.shape_cast %688 : vector<8xf32> to vector<1x8xf32>
    %690 = tpu.reciprocal %689 {approx = true} : vector<1x8xf32> -> vector<1x8xf32>
    %691 = vector.broadcast %690 : vector<1x8xf32> to vector<8x8xf32>
    %692 = arith.mulf %687, %691 : vector<8x8xf32>
    %693 = tpu.transpose %692, [1, 0] : vector<8x8xf32> -> vector<8x8xf32>
    %cst_234 = arith.constant 0.000000e+00 : f32
    %694 = vector.broadcast %cst_234 : f32 to vector<8x120xf32>
    %695 = tpu.concatenate %693, %694 in 1 : vector<8x8xf32>, vector<8x120xf32> -> vector<8x128xf32>
    %c0_235 = arith.constant 0 : index
    %c0_236 = arith.constant 0 : index
    %c0_237 = arith.constant 0 : index
    %696 = vector.load %arg13[%c0_235, %c0_236, %c0_237] : memref<1x8x128xf32, #tpu.memory_space<vmem>>, vector<1x8x128xf32>
    %697 = vector.shape_cast %696 : vector<1x8x128xf32> to vector<8x128xf32>
    %698 = vector.shape_cast %695 : vector<8x128xf32> to vector<1x8x128xf32>
    tpu.vector_store %arg13[%c0_235, %c0_236, %c0_237], %698 {strides = array<i32>} : memref<1x8x128xf32, #tpu.memory_space<vmem>>, vector<1x8x128xf32>,
    %699 = vector.shape_cast %692 : vector<8x8xf32> to vector<8x8x1xf32>
    %c0_238 = arith.constant 0 : index
    %c0_239 = arith.constant 0 : index
    %c0_240 = arith.constant 0 : index
    %700 = vector.load %arg15[%c0_238, %c0_239, %c0_240] : memref<8x8x128xbf16, #tpu.memory_space<vmem>>, vector<8x8x128xbf16>
    %701 = arith.extf %700 : vector<8x8x128xbf16> to vector<8x8x128xf32>
    %702 = vector.broadcast %699 : vector<8x8x1xf32> to vector<8x8x128xf32>
    %703 = arith.mulf %701, %702 : vector<8x8x128xf32>
    %cst_241 = arith.constant dense<0.000000e+00> : vector<8x128xf32>
    %704 = vector.multi_reduction <add>, %703, %cst_241 [0] : vector<8x8x128xf32> to vector<8x128xf32>
    %c0_242 = arith.constant 0 : index
    %c0_243 = arith.constant 0 : index
    %c0_244 = arith.constant 0 : index
    %705 = vector.load %arg16[%c0_242, %c0_243, %c0_244] : memref<8x8x128xbf16, #tpu.memory_space<vmem>>, vector<8x8x128xbf16>
    %706 = arith.extf %705 : vector<8x8x128xbf16> to vector<8x8x128xf32>
    %707 = vector.broadcast %699 : vector<8x8x1xf32> to vector<8x8x128xf32>
    %708 = arith.mulf %706, %707 : vector<8x8x128xf32>
    %cst_245 = arith.constant dense<0.000000e+00> : vector<8x128xf32>
    %709 = vector.multi_reduction <add>, %708, %cst_245 [0] : vector<8x8x128xf32> to vector<8x128xf32>
    %710 = arith.truncf %704 : vector<8x128xf32> to vector<8x128xbf16>
    %c0_246 = arith.constant 0 : index
    %c0_247 = arith.constant 0 : index
    %711 = vector.load %arg9[%c0_246, %c0_247] : memref<128x128xbf16, #tpu.memory_space<vmem>>, vector<128x128xbf16>
    %cst_248 = arith.constant dense<0.000000e+00> : vector<8x128xf32>
    %712 = tpu.matmul %710, %711, %cst_248 {dimension_numbers = #tpu.dot_dimension_numbers<[1], [0], [0], [1], [0, 0, 1, 1], [], []>} : vector<8x128xbf16>, vector<128x128xbf16>, vector<8x128xf32> -> vector<8x128xf32>
    %713 = arith.truncf %709 : vector<8x128xf32> to vector<8x128xbf16>
    %c0_249 = arith.constant 0 : index
    %c0_250 = arith.constant 0 : index
    %714 = vector.load %arg10[%c0_249, %c0_250] : memref<128x128xbf16, #tpu.memory_space<vmem>>, vector<128x128xbf16>
    %cst_251 = arith.constant dense<0.000000e+00> : vector<8x128xf32>
    %715 = tpu.matmul %713, %714, %cst_251 {dimension_numbers = #tpu.dot_dimension_numbers<[1], [0], [0], [1], [0, 0, 1, 1], [], []>} : vector<8x128xbf16>, vector<128x128xbf16>, vector<8x128xf32> -> vector<8x128xf32>
    %716 = arith.addf %712, %715 : vector<8x128xf32>
    %c0_252 = arith.constant 0 : index
    %c0_253 = arith.constant 0 : index
    %717 = vector.load %arg11[%c0_252, %c0_253] : memref<1x128xf32, #tpu.memory_space<vmem>>, vector<1x128xf32>
    %718 = vector.broadcast %717 : vector<1x128xf32> to vector<8x128xf32>
    %719 = arith.addf %716, %718 : vector<8x128xf32>
    %c0_254 = arith.constant 0 : index
    %c0_255 = arith.constant 0 : index
    %c0_256 = arith.constant 0 : index
    %720 = vector.load %arg12[%c0_254, %c0_255, %c0_256] : memref<1x8x128xf32, #tpu.memory_space<vmem>>, vector<1x8x128xf32>
    %721 = vector.shape_cast %720 : vector<1x8x128xf32> to vector<8x128xf32>
    %722 = vector.shape_cast %719 : vector<8x128xf32> to vector<1x8x128xf32>
    tpu.vector_store %arg12[%c0_254, %c0_255, %c0_256], %722 {strides = array<i32>} : memref<1x8x128xf32, #tpu.memory_space<vmem>>, vector<1x8x128xf32>,
    return
  }
  func.func @transform_0(%arg0: i32) -> (i32, i32, i32) {
    %c0_i32 = arith.constant 0 : i32
    %c0_i32_0 = arith.constant 0 : i32
    %c0_i32_1 = arith.constant 0 : i32
    return %arg0, %c0_i32, %c0_i32_0 : i32, i32, i32
  }
  func.func @transform_1(%arg0: i32) -> (i32, i32, i32) {
    %c0_i32 = arith.constant 0 : i32
    %c0_i32_0 = arith.constant 0 : i32
    %c0_i32_1 = arith.constant 0 : i32
    return %arg0, %c0_i32, %c0_i32_0 : i32, i32, i32
  }
  func.func @transform_2(%arg0: i32) -> (i32, i32) {
    %c0_i32 = arith.constant 0 : i32
    %c0_i32_0 = arith.constant 0 : i32
    %c0_i32_1 = arith.constant 0 : i32
    return %c0_i32, %c0_i32_0 : i32, i32
  }
  func.func @transform_3(%arg0: i32) -> (i32, i32) {
    %c0_i32 = arith.constant 0 : i32
    %c0_i32_0 = arith.constant 0 : i32
    %c0_i32_1 = arith.constant 0 : i32
    return %c0_i32, %c0_i32_0 : i32, i32
  }
  func.func @transform_4(%arg0: i32) -> (i32, i32) {
    %c0_i32 = arith.constant 0 : i32
    %c0_i32_0 = arith.constant 0 : i32
    %c0_i32_1 = arith.constant 0 : i32
    return %c0_i32, %c0_i32_0 : i32, i32
  }
  func.func @transform_5(%arg0: i32) -> (i32, i32) {
    %c0_i32 = arith.constant 0 : i32
    %c0_i32_0 = arith.constant 0 : i32
    %c0_i32_1 = arith.constant 0 : i32
    return %c0_i32, %c0_i32_0 : i32, i32
  }
  func.func @transform_6(%arg0: i32) -> (i32, i32) {
    %c0_i32 = arith.constant 0 : i32
    %c0_i32_0 = arith.constant 0 : i32
    %c0_i32_1 = arith.constant 0 : i32
    return %c0_i32, %c0_i32_0 : i32, i32
  }
  func.func @transform_7(%arg0: i32) -> (i32, i32) {
    %c0_i32 = arith.constant 0 : i32
    %c0_i32_0 = arith.constant 0 : i32
    %c0_i32_1 = arith.constant 0 : i32
    return %c0_i32, %c0_i32_0 : i32, i32
  }
  func.func @transform_8(%arg0: i32) -> (i32, i32) {
    %c0_i32 = arith.constant 0 : i32
    %c0_i32_0 = arith.constant 0 : i32
    %c0_i32_1 = arith.constant 0 : i32
    return %c0_i32, %c0_i32_0 : i32, i32
  }
  func.func @transform_9(%arg0: i32) -> (i32, i32) {
    %c0_i32 = arith.constant 0 : i32
    %c0_i32_0 = arith.constant 0 : i32
    %c0_i32_1 = arith.constant 0 : i32
    return %c0_i32, %c0_i32_0 : i32, i32
  }
  func.func @transform_10(%arg0: i32) -> (i32, i32) {
    %c0_i32 = arith.constant 0 : i32
    %c0_i32_0 = arith.constant 0 : i32
    %c0_i32_1 = arith.constant 0 : i32
    return %c0_i32, %c0_i32_0 : i32, i32
  }
  func.func @transform_11(%arg0: i32) -> (i32, i32, i32) {
    %c0_i32 = arith.constant 0 : i32
    %c0_i32_0 = arith.constant 0 : i32
    %c0_i32_1 = arith.constant 0 : i32
    return %arg0, %c0_i32, %c0_i32_0 : i32, i32, i32
  }
  func.func @transform_12(%arg0: i32) -> (i32, i32, i32) {
    %c0_i32 = arith.constant 0 : i32
    %c0_i32_0 = arith.constant 0 : i32
    %c0_i32_1 = arith.constant 0 : i32
    return %arg0, %c0_i32, %c0_i32_0 : i32, i32, i32
  }
}

</mosaic_0001>

<llo_original>
// kernel: tpu_custom_call.1
$region0: #{tpu_custom_call.1}
  #allocation0 [shape = 'u32[]', space=smem, size = 0x4, offset = 0x4, fixed_abs, tag = 'smem constant byte address 0x4 - core index']
  #allocation1 [shape = 'u32[72,128]{1,0:T(1,128)}', space=vmem, size = 0x9000, scoped, tag = 'internal scratch']
  #allocation2 [shape = 'bf16[64,1024]{1,0:T(8,128)(2,1)}', space=vmem, size = 0x20000, scoped, tag = 'scratch operand']
  #allocation3 [shape = 'bf16[8,8,128]{2,1,0:T(8,128)(2,1)}', space=vmem, size = 0x4000, scoped, tag = 'scratch operand']
  #allocation4 [shape = 'bf16[8,8,128]{2,1,0:T(8,128)(2,1)}', space=vmem, size = 0x4000, scoped, tag = 'scratch operand']
  #allocation5 [shape = 'f32[8,8]{1,0:T(8,128)}', space=vmem, size = 0x1000, scoped, tag = 'scratch operand']
  #allocation6 [shape = 'f32[8,8]{1,0:T(8,128)}', space=vmem, size = 0x1000, scoped, tag = 'scratch operand']
  %s0 = inlined_call_operand.vmem [shape: bf16[1,64,32], index: 0, kind: input, shape index: {}]
  %s1 = inlined_call_operand.vmem [shape: s32[1,1,8], index: 1, kind: input, shape index: {}]
  %s2 = inlined_call_operand.hbm [shape: bf16[32,1024], index: 2, kind: input, shape index: {}]
  %s3 = inlined_call_operand.vmem [shape: f32[1,1024], index: 3, kind: input, shape index: {}]
  %s4 = inlined_call_operand.hbm [shape: bf16[128,512], index: 4, kind: input, shape index: {}]
  %s5 = inlined_call_operand.hbm [shape: bf16[128,512], index: 5, kind: input, shape index: {}]
  %s6 = inlined_call_operand.vmem [shape: f32[1,128], index: 6, kind: input, shape index: {}]
  %s7 = inlined_call_operand.vmem [shape: f32[1,128], index: 7, kind: input, shape index: {}]
  %s8 = inlined_call_operand.hbm [shape: bf16[128,128], index: 8, kind: input, shape index: {}]
  %s9 = inlined_call_operand.hbm [shape: bf16[128,128], index: 9, kind: input, shape index: {}]
  %s10 = inlined_call_operand.vmem [shape: f32[1,128], index: 10, kind: input, shape index: {}]
  %s11 = inlined_call_operand.hbm [shape: f32[1,8,128], index: 11, kind: output, shape index: {0}]
  %s12 = inlined_call_operand.hbm [shape: f32[1,8,128], index: 12, kind: output, shape index: {1}]
  %13 = xla_tuple %s11, %s12
  %s14 = sld [smem:[#allocation0]]
  $region82: #{tpu_custom_call.1} parent=0
    _
  %s16 = ssub.s32 1, %s14
  %s17 = scalar_select 0, %s16, %s14
  $region1: #{tpu_custom_call.1} parent=0
    #allocation7 [shape = 'u8[65536]{0}', space=vmem, size = 0x10000, scoped, tag = 'input window, operand 2, single buffered']
    #allocation8 [shape = 's32[1]{0}', space=sflag, size = 0x4, scoped, tag = 'scoped memory for tpu_custom_call.1']
    #allocation9 [shape = 's32[1]{0}', space=sflag, size = 0x4, scoped, tag = 'scoped memory for tpu_custom_call.1']
    #allocation10 [shape = 'u8[131072]{0}', space=vmem, size = 0x20000, scoped, tag = 'input window, operand 4, single buffered']
    #allocation11 [shape = 's32[1]{0}', space=sflag, size = 0x4, scoped, tag = 'scoped memory for tpu_custom_call.1']
    #allocation12 [shape = 'u8[131072]{0}', space=vmem, size = 0x20000, scoped, tag = 'input window, operand 5, single buffered']
    #allocation13 [shape = 'u8[32768]{0}', space=vmem, size = 0x8000, scoped, tag = 'input window, operand 8, single buffered']
    #allocation14 [shape = 's32[1]{0}', space=sflag, size = 0x4, scoped, tag = 'scoped memory for tpu_custom_call.1']
    #allocation15 [shape = 'u8[32768]{0}', space=vmem, size = 0x8000, scoped, tag = 'input window, operand 9, single buffered']
    #allocation16 [shape = 'u8[4096]{0}', space=vmem, size = 0x1000, scoped, tag = 'output window, operand 0, single buffered']
    #allocation17 [shape = 'u8[4096]{0}', space=vmem, size = 0x1000, scoped, tag = 'output window, operand 1, single buffered']
    #allocation18 [shape = 's32[1]{0}', space=sflag, size = 0x4, scoped, tag = 'scoped memory for tpu_custom_call.1']
    %18 = vsyncpa [#allocation8], 0
    %19 = vsyncpa [#allocation11], 0
    %20 = vsyncpa [#allocation14], 0
    %21 = vsyncpa [#allocation9], 0
    %22 = vsyncpa [#allocation18], 0
    // Predicated region
    $region2: #{tpu_custom_call.1} parent=1 // pred_check
      _
    $region3: #{tpu_custom_call.1} parent=1 // pred_check_branch
      %24 = sbr.rel (0) target = $region5
    $region4: #{tpu_custom_call.1} parent=1 // pred_region
      _
    $region5: #{tpu_custom_call.1} parent=1 // pred_fallthru
      _
    // Predicated region
    $region6: #{tpu_custom_call.1} parent=1 // pred_check
      _
    $region7: #{tpu_custom_call.1} parent=1 // pred_check_branch
      %26 = sbr.rel (0) target = $region9
    $region8: #{tpu_custom_call.1} parent=1 // pred_region
      _
    $region9: #{tpu_custom_call.1} parent=1 // pred_fallthru
      _
    // Predicated region
    $region10: #{tpu_custom_call.1} parent=1 // pred_check
      _
    $region11: #{tpu_custom_call.1} parent=1 // pred_check_branch
      %28 = sbr.rel (0) target = $region13
    $region12: #{tpu_custom_call.1} parent=1 // pred_region
      %30 = vsyncadd [#allocation8], 0
      %s31 = sshll.u32 %s2, 4
      %s32 = int_to_ptr.hbm [resolvable:$true] %s31
      %s33 = sshll.u32 [#allocation7], 4
      %s34 = int_to_ptr.vmem [resolvable:$true] %s33
      %39 = dma.hbm_to_vmem [thread:$0]  %s32, 2048, %s34, [#allocation8], 512, 512, 32
    $region13: #{tpu_custom_call.1} parent=1 // pred_fallthru
      _
    // Predicated region
    $region14: #{tpu_custom_call.1} parent=1 // pred_check
      _
    $region15: #{tpu_custom_call.1} parent=1 // pred_check_branch
      %41 = sbr.rel (0) target = $region17
    $region16: #{tpu_custom_call.1} parent=1 // pred_region
      _
    $region17: #{tpu_custom_call.1} parent=1 // pred_fallthru
      _
    // Predicated region
    $region18: #{tpu_custom_call.1} parent=1 // pred_check
      _
    $region19: #{tpu_custom_call.1} parent=1 // pred_check_branch
      %43 = sbr.rel (0) target = $region21
    $region20: #{tpu_custom_call.1} parent=1 // pred_region
      %45 = vsyncadd [#allocation11], 0
      %s46 = sshll.u32 %s4, 4
      %s47 = int_to_ptr.hbm [resolvable:$true] %s46
      %s48 = sshll.u32 [#allocation10], 4
      %s49 = int_to_ptr.vmem [resolvable:$true] %s48
      %54 = dma.hbm_to_vmem [thread:$0]  %s47, 4096, %s49, [#allocation11], 256, 256, 16
    $region21: #{tpu_custom_call.1} parent=1 // pred_fallthru
      _
    // Predicated region
    $region22: #{tpu_custom_call.1} parent=1 // pred_check
      _
    $region23: #{tpu_custom_call.1} parent=1 // pred_check_branch
      %56 = sbr.rel (0) target = $region25
    $region24: #{tpu_custom_call.1} parent=1 // pred_region
      %58 = vsyncadd [#allocation11], 0
      %s59 = sshll.u32 %s5, 4
      %s60 = int_to_ptr.hbm [resolvable:$true] %s59
      %s61 = sshll.u32 [#allocation12], 4
      %s62 = int_to_ptr.vmem [resolvable:$true] %s61
      %67 = dma.hbm_to_vmem [thread:$0]  %s60, 4096, %s62, [#allocation11], 256, 256, 16
    $region25: #{tpu_custom_call.1} parent=1 // pred_fallthru
      _
    // Predicated region
    $region26: #{tpu_custom_call.1} parent=1 // pred_check
      _
    $region27: #{tpu_custom_call.1} parent=1 // pred_check_branch
      %69 = sbr.rel (0) target = $region29
    $region28: #{tpu_custom_call.1} parent=1 // pred_region
      _
    $region29: #{tpu_custom_call.1} parent=1 // pred_fallthru
      _
    // Predicated region
    $region30: #{tpu_custom_call.1} parent=1 // pred_check
      _
    $region31: #{tpu_custom_call.1} parent=1 // pred_check_branch
      %71 = sbr.rel (0) target = $region33
    $region32: #{tpu_custom_call.1} parent=1 // pred_region
      _
    $region33: #{tpu_custom_call.1} parent=1 // pred_fallthru
      _
    // Predicated region
    $region34: #{tpu_custom_call.1} parent=1 // pred_check
      _
    $region35: #{tpu_custom_call.1} parent=1 // pred_check_branch
      %73 = sbr.rel (0) target = $region37
    $region36: #{tpu_custom_call.1} parent=1 // pred_region
      %75 = vsyncadd [#allocation14], 0
      %s76 = sshll.u32 %s8, 4
      %s77 = int_to_ptr.hbm [resolvable:$true] %s76
      %s78 = sshll.u32 [#allocation13], 4
      %s79 = int_to_ptr.vmem [resolvable:$true] %s78
      %84 = dma.hbm_to_vmem [thread:$0]  %s77, 1024, %s79, [#allocation14], 64, 64, 4
    $region37: #{tpu_custom_call.1} parent=1 // pred_fallthru
      _
    // Predicated region
    $region38: #{tpu_custom_call.1} parent=1 // pred_check
      _
    $region39: #{tpu_custom_call.1} parent=1 // pred_check_branch
      %86 = sbr.rel (0) target = $region41
    $region40: #{tpu_custom_call.1} parent=1 // pred_region
      %88 = vsyncadd [#allocation14], 0
      %s89 = sshll.u32 %s9, 4
      %s90 = int_to_ptr.hbm [resolvable:$true] %s89
      %s91 = sshll.u32 [#allocation15], 4
      %s92 = int_to_ptr.vmem [resolvable:$true] %s91
      %97 = dma.hbm_to_vmem [thread:$0]  %s90, 1024, %s92, [#allocation14], 64, 64, 4
    $region41: #{tpu_custom_call.1} parent=1 // pred_fallthru
      _
    // Predicated region
    $region42: #{tpu_custom_call.1} parent=1 // pred_check
      _
    $region43: #{tpu_custom_call.1} parent=1 // pred_check_branch
      %99 = sbr.rel (0) target = $region45
    $region44: #{tpu_custom_call.1} parent=1 // pred_region
      _
    $region45: #{tpu_custom_call.1} parent=1 // pred_fallthru
      _
    // Predicated region
    $region46: #{tpu_custom_call.1} parent=1 // pred_check
      _
    $region47: #{tpu_custom_call.1} parent=1 // pred_check_branch
      %101 = sbr.rel (0) target = $region49
    $region48: #{tpu_custom_call.1} parent=1 // pred_region
      %103 = dma.done [#allocation8], 2048
    $region49: #{tpu_custom_call.1} parent=1 // pred_fallthru
      _
    // Predicated region
    $region50: #{tpu_custom_call.1} parent=1 // pred_check
      _
    $region51: #{tpu_custom_call.1} parent=1 // pred_check_branch
      %105 = sbr.rel (0) target = $region53
    $region52: #{tpu_custom_call.1} parent=1 // pred_region
      %107 = dma.done [#allocation11], 4096
    $region53: #{tpu_custom_call.1} parent=1 // pred_fallthru
      _
    // Predicated region
    $region54: #{tpu_custom_call.1} parent=1 // pred_check
      _
    $region55: #{tpu_custom_call.1} parent=1 // pred_check_branch
      %109 = sbr.rel (0) target = $region57
    $region56: #{tpu_custom_call.1} parent=1 // pred_region
      %111 = dma.done [#allocation11], 4096
    $region57: #{tpu_custom_call.1} parent=1 // pred_fallthru
      _
    // Predicated region
    $region58: #{tpu_custom_call.1} parent=1 // pred_check
      _
    $region59: #{tpu_custom_call.1} parent=1 // pred_check_branch
      %113 = sbr.rel (0) target = $region61
    $region60: #{tpu_custom_call.1} parent=1 // pred_region
      %115 = dma.done [#allocation14], 1024
    $region61: #{tpu_custom_call.1} parent=1 // pred_fallthru
      _
    // Predicated region
    $region62: #{tpu_custom_call.1} parent=1 // pred_check
      _
    $region63: #{tpu_custom_call.1} parent=1 // pred_check_branch
      %117 = sbr.rel (0) target = $region65
    $region64: #{tpu_custom_call.1} parent=1 // pred_region
      %119 = dma.done [#allocation14], 1024
    $region65: #{tpu_custom_call.1} parent=1 // pred_fallthru
      _
    %v121 = vld [vmem:[%s0] sm:$0xf]
    %v122 = vld [vmem:[%s0 + $0x4] sm:$0xf]
    %v123 = vld [vmem:[%s0 + $0x8] sm:$0xf]
    %v124 = vld [vmem:[%s0 + $0xc] sm:$0xf]
    %v125 = vld [vmem:[%s0 + $0x10] sm:$0xf]
    %v126 = vld [vmem:[%s0 + $0x14] sm:$0xf]
    %v127 = vld [vmem:[%s0 + $0x18] sm:$0xf]
    %v128 = vld [vmem:[%s0 + $0x1c] sm:$0xf]
    %v129 = vld [vmem:[#allocation7] sm:$0xff]
    %v130 = vld [vmem:[#allocation7 + $0x8] sm:$0xff]
    %v131 = vld [vmem:[#allocation7 + $0x10] sm:$0xff]
    %v132 = vld [vmem:[#allocation7 + $0x18] sm:$0xff]
    %v133 = vld [vmem:[#allocation7 + $0x20] sm:$0xff]
    %v134 = vld [vmem:[#allocation7 + $0x28] sm:$0xff]
    %v135 = vld [vmem:[#allocation7 + $0x30] sm:$0xff]
    %v136 = vld [vmem:[#allocation7 + $0x38] sm:$0xff]
    %v137 = vld [vmem:[#allocation7 + $0x40] sm:$0xff]
    %v138 = vld [vmem:[#allocation7 + $0x48] sm:$0xff]
    %v139 = vld [vmem:[#allocation7 + $0x50] sm:$0xff]
    %v140 = vld [vmem:[#allocation7 + $0x58] sm:$0xff]
    %v141 = vld [vmem:[#allocation7 + $0x60] sm:$0xff]
    %v142 = vld [vmem:[#allocation7 + $0x68] sm:$0xff]
    %v143 = vld [vmem:[#allocation7 + $0x70] sm:$0xff]
    %v144 = vld [vmem:[#allocation7 + $0x78] sm:$0xff]
    %v145 = vld [vmem:[%s3] sm:$0xff]
    %v147 = vperm.slane %v145, 0
    %v148 = vperm.slane %v145, 1
    %v149 = vperm.slane %v145, 2
    %v150 = vperm.slane %v145, 3
    %v151 = vperm.slane %v145, 4
    %v152 = vperm.slane %v145, 5
    %v153 = vperm.slane %v145, 6
    %v154 = vperm.slane %v145, 7
    %v171 = vunpack.c.l.b16 %v121
    %v172 = vunpack.c.l.b16 %v122
    %v173 = vunpack.c.l.b16 %v123
    %v174 = vunpack.c.l.b16 %v124
    %v175 = vunpack.c.l.b16 %v125
    %v176 = vunpack.c.l.b16 %v126
    %v177 = vunpack.c.l.b16 %v127
    %v178 = vunpack.c.l.b16 %v128
    %v179 = vpack.c.b16 %v172, %v171
    %v180 = vpack.c.b16 %v174, %v173
    %v181 = vpack.c.b16 %v176, %v175
    %v182 = vpack.c.b16 %v178, %v177
    %v199 = vunpack.c.l.b16 %v129
    %v200 = vunpack.c.h.b16 %v129
    %v201 = vunpack.c.l.b16 %v130
    %v202 = vunpack.c.h.b16 %v130
    %v203 = vunpack.c.l.b16 %v131
    %v204 = vunpack.c.h.b16 %v131
    %v205 = vunpack.c.l.b16 %v132
    %v206 = vunpack.c.h.b16 %v132
    %v207 = vunpack.c.l.b16 %v133
    %v208 = vunpack.c.h.b16 %v133
    %v209 = vunpack.c.l.b16 %v134
    %v210 = vunpack.c.h.b16 %v134
    %v211 = vunpack.c.l.b16 %v135
    %v212 = vunpack.c.h.b16 %v135
    %v213 = vunpack.c.l.b16 %v136
    %v214 = vunpack.c.h.b16 %v136
    %v215 = vunpack.c.l.b16 %v137
    %v216 = vunpack.c.h.b16 %v137
    %v217 = vunpack.c.l.b16 %v138
    %v218 = vunpack.c.h.b16 %v138
    %v219 = vunpack.c.l.b16 %v139
    %v220 = vunpack.c.h.b16 %v139
    %v221 = vunpack.c.l.b16 %v140
    %v222 = vunpack.c.h.b16 %v140
    %v223 = vunpack.c.l.b16 %v141
    %v224 = vunpack.c.h.b16 %v141
    %v225 = vunpack.c.l.b16 %v142
    %v226 = vunpack.c.h.b16 %v142
    %v227 = vunpack.c.l.b16 %v143
    %v228 = vunpack.c.h.b16 %v143
    %v229 = vunpack.c.l.b16 %v144
    %v230 = vunpack.c.h.b16 %v144
    %v231 = vpack.c.b16 %v207, %v199
    %v232 = vpack.c.b16 %v208, %v200
    %v233 = vpack.c.b16 %v209, %v201
    %v234 = vpack.c.b16 %v210, %v202
    %v235 = vpack.c.b16 %v211, %v203
    %v236 = vpack.c.b16 %v212, %v204
    %v237 = vpack.c.b16 %v213, %v205
    %v238 = vpack.c.b16 %v214, %v206
    %v239 = vpack.c.b16 %v223, %v215
    %v240 = vpack.c.b16 %v224, %v216
    %v241 = vpack.c.b16 %v225, %v217
    %v242 = vpack.c.b16 %v226, %v218
    %v243 = vpack.c.b16 %v227, %v219
    %v244 = vpack.c.b16 %v228, %v220
    %v245 = vpack.c.b16 %v229, %v221
    %v246 = vpack.c.b16 %v230, %v222
    %vm263 = vcmask 261120
    %v265 = vsel %vm263, %v179, 0
    %v268 = vsel %vm263, %v180, 0
    %v271 = vsel %vm263, %v181, 0
    %v274 = vsel %vm263, %v182, 0
    %276 = vmatpush.bf16.msra.mxu0 0
    %277 = vmatpush.bf16.msra.mxu0 0
    %278 = vmatpush.bf16.msra.mxu0 0
    %279 = vmatpush.bf16.msra.mxu0 0
    %280 = vmatpush.bf16.msra.mxu0 0
    %281 = vmatpush.bf16.msra.mxu0 0
    %282 = vmatpush.bf16.msra.mxu0 %v239
    %283 = vmatpush.bf16.msra.mxu0 %v231
    %284 = vmatmul.bf16.gmra.mxu0 %v265
    %v285 = vpop.f32.mrf.mxu0
    %v286 = vadd.f32 %v147, %v285
    %v287 = vpop.f32.mrf.mxu0
    %v288 = vadd.f32 %v147, %v287
    %289 = vmatmul.bf16.gmra.mxu0 %v268
    %v290 = vpop.f32.mrf.mxu0
    %v291 = vadd.f32 %v147, %v290
    %v292 = vpop.f32.mrf.mxu0
    %v293 = vadd.f32 %v147, %v292
    %294 = vmatmul.bf16.gmra.mxu0 %v271
    %v295 = vpop.f32.mrf.mxu0
    %v296 = vadd.f32 %v147, %v295
    %v297 = vpop.f32.mrf.mxu0
    %v298 = vadd.f32 %v147, %v297
    %299 = vmatmul.bf16.gmra.mxu0 %v274
    %v300 = vpop.f32.mrf.mxu0
    %v301 = vadd.f32 %v147, %v300
    %v302 = vpop.f32.mrf.mxu0
    %v303 = vadd.f32 %v147, %v302
    %304 = vdwg.mxu0
    %305 = vmatpush.bf16.msra.mxu0 0
    %306 = vmatpush.bf16.msra.mxu0 0
    %307 = vmatpush.bf16.msra.mxu0 0
    %308 = vmatpush.bf16.msra.mxu0 0
    %309 = vmatpush.bf16.msra.mxu0 0
    %310 = vmatpush.bf16.msra.mxu0 0
    %311 = vmatpush.bf16.msra.mxu0 %v240
    %312 = vmatpush.bf16.msra.mxu0 %v232
    %313 = vmatmul.bf16.gmra.mxu0 %v265
    %v314 = vpop.f32.mrf.mxu0
    %v315 = vadd.f32 %v148, %v314
    %v316 = vpop.f32.mrf.mxu0
    %v317 = vadd.f32 %v148, %v316
    %318 = vmatmul.bf16.gmra.mxu0 %v268
    %v319 = vpop.f32.mrf.mxu0
    %v320 = vadd.f32 %v148, %v319
    %v321 = vpop.f32.mrf.mxu0
    %v322 = vadd.f32 %v148, %v321
    %323 = vmatmul.bf16.gmra.mxu0 %v271
    %v324 = vpop.f32.mrf.mxu0
    %v325 = vadd.f32 %v148, %v324
    %v326 = vpop.f32.mrf.mxu0
    %v327 = vadd.f32 %v148, %v326
    %328 = vmatmul.bf16.gmra.mxu0 %v274
    %v329 = vpop.f32.mrf.mxu0
    %v330 = vadd.f32 %v148, %v329
    %v331 = vpop.f32.mrf.mxu0
    %v332 = vadd.f32 %v148, %v331
    %333 = vdwg.mxu0
    %334 = vmatpush.bf16.msra.mxu0 0
    %335 = vmatpush.bf16.msra.mxu0 0
    %336 = vmatpush.bf16.msra.mxu0 0
    %337 = vmatpush.bf16.msra.mxu0 0
    %338 = vmatpush.bf16.msra.mxu0 0
    %339 = vmatpush.bf16.msra.mxu0 0
    %340 = vmatpush.bf16.msra.mxu0 %v241
    %341 = vmatpush.bf16.msra.mxu0 %v233
    %342 = vmatmul.bf16.gmra.mxu0 %v265
    %v343 = vpop.f32.mrf.mxu0
    %v344 = vadd.f32 %v149, %v343
    %v345 = vpop.f32.mrf.mxu0
    %v346 = vadd.f32 %v149, %v345
    %347 = vmatmul.bf16.gmra.mxu0 %v268
    %v348 = vpop.f32.mrf.mxu0
    %v349 = vadd.f32 %v149, %v348
    %v350 = vpop.f32.mrf.mxu0
    %v351 = vadd.f32 %v149, %v350
    %352 = vmatmul.bf16.gmra.mxu0 %v271
    %v353 = vpop.f32.mrf.mxu0
    %v354 = vadd.f32 %v149, %v353
    %v355 = vpop.f32.mrf.mxu0
    %v356 = vadd.f32 %v149, %v355
    %357 = vmatmul.bf16.gmra.mxu0 %v274
    %v358 = vpop.f32.mrf.mxu0
    %v359 = vadd.f32 %v149, %v358
    %v360 = vpop.f32.mrf.mxu0
    %v361 = vadd.f32 %v149, %v360
    %362 = vdwg.mxu0
    %363 = vmatpush.bf16.msra.mxu0 0
    %364 = vmatpush.bf16.msra.mxu0 0
    %365 = vmatpush.bf16.msra.mxu0 0
    %366 = vmatpush.bf16.msra.mxu0 0
    %367 = vmatpush.bf16.msra.mxu0 0
    %368 = vmatpush.bf16.msra.mxu0 0
    %369 = vmatpush.bf16.msra.mxu0 %v242
    %370 = vmatpush.bf16.msra.mxu0 %v234
    %371 = vmatmul.bf16.gmra.mxu0 %v265
    %v372 = vpop.f32.mrf.mxu0
    %v373 = vadd.f32 %v150, %v372
    %v374 = vpop.f32.mrf.mxu0
    %v375 = vadd.f32 %v150, %v374
    %376 = vmatmul.bf16.gmra.mxu0 %v268
    %v377 = vpop.f32.mrf.mxu0
    %v378 = vadd.f32 %v150, %v377
    %v379 = vpop.f32.mrf.mxu0
    %v380 = vadd.f32 %v150, %v379
    %381 = vmatmul.bf16.gmra.mxu0 %v271
    %v382 = vpop.f32.mrf.mxu0
    %v383 = vadd.f32 %v150, %v382
    %v384 = vpop.f32.mrf.mxu0
    %v385 = vadd.f32 %v150, %v384
    %386 = vmatmul.bf16.gmra.mxu0 %v274
    %v387 = vpop.f32.mrf.mxu0
    %v388 = vadd.f32 %v150, %v387
    %v389 = vpop.f32.mrf.mxu0
    %v390 = vadd.f32 %v150, %v389
    %391 = vdwg.mxu0
    %392 = vmatpush.bf16.msra.mxu0 0
    %393 = vmatpush.bf16.msra.mxu0 0
    %394 = vmatpush.bf16.msra.mxu0 0
    %395 = vmatpush.bf16.msra.mxu0 0
    %396 = vmatpush.bf16.msra.mxu0 0
    %397 = vmatpush.bf16.msra.mxu0 0
    %398 = vmatpush.bf16.msra.mxu0 %v243
    %399 = vmatpush.bf16.msra.mxu0 %v235
    %400 = vmatmul.bf16.gmra.mxu0 %v265
    %v401 = vpop.f32.mrf.mxu0
    %v402 = vadd.f32 %v151, %v401
    %v403 = vpop.f32.mrf.mxu0
    %v404 = vadd.f32 %v151, %v403
    %405 = vmatmul.bf16.gmra.mxu0 %v268
    %v406 = vpop.f32.mrf.mxu0
    %v407 = vadd.f32 %v151, %v406
    %v408 = vpop.f32.mrf.mxu0
    %v409 = vadd.f32 %v151, %v408
    %410 = vmatmul.bf16.gmra.mxu0 %v271
    %v411 = vpop.f32.mrf.mxu0
    %v412 = vadd.f32 %v151, %v411
    %v413 = vpop.f32.mrf.mxu0
    %v414 = vadd.f32 %v151, %v413
    %415 = vmatmul.bf16.gmra.mxu0 %v274
    %v416 = vpop.f32.mrf.mxu0
    %v417 = vadd.f32 %v151, %v416
    %v418 = vpop.f32.mrf.mxu0
    %v419 = vadd.f32 %v151, %v418
    %420 = vdwg.mxu0
    %421 = vmatpush.bf16.msra.mxu0 0
    %422 = vmatpush.bf16.msra.mxu0 0
    %423 = vmatpush.bf16.msra.mxu0 0
    %424 = vmatpush.bf16.msra.mxu0 0
    %425 = vmatpush.bf16.msra.mxu0 0
    %426 = vmatpush.bf16.msra.mxu0 0
    %427 = vmatpush.bf16.msra.mxu0 %v244
    %428 = vmatpush.bf16.msra.mxu0 %v236
    %429 = vmatmul.bf16.gmra.mxu0 %v265
    %v430 = vpop.f32.mrf.mxu0
    %v431 = vadd.f32 %v152, %v430
    %v432 = vpop.f32.mrf.mxu0
    %v433 = vadd.f32 %v152, %v432
    %434 = vmatmul.bf16.gmra.mxu0 %v268
    %v435 = vpop.f32.mrf.mxu0
    %v436 = vadd.f32 %v152, %v435
    %v437 = vpop.f32.mrf.mxu0
    %v438 = vadd.f32 %v152, %v437
    %439 = vmatmul.bf16.gmra.mxu0 %v271
    %v440 = vpop.f32.mrf.mxu0
    %v441 = vadd.f32 %v152, %v440
    %v442 = vpop.f32.mrf.mxu0
    %v443 = vadd.f32 %v152, %v442
    %444 = vmatmul.bf16.gmra.mxu0 %v274
    %v445 = vpop.f32.mrf.mxu0
    %v446 = vadd.f32 %v152, %v445
    %v447 = vpop.f32.mrf.mxu0
    %v448 = vadd.f32 %v152, %v447
    %449 = vdwg.mxu0
    %450 = vmatpush.bf16.msra.mxu0 0
    %451 = vmatpush.bf16.msra.mxu0 0
    %452 = vmatpush.bf16.msra.mxu0 0
    %453 = vmatpush.bf16.msra.mxu0 0
    %454 = vmatpush.bf16.msra.mxu0 0
    %455 = vmatpush.bf16.msra.mxu0 0
    %456 = vmatpush.bf16.msra.mxu0 %v245
    %457 = vmatpush.bf16.msra.mxu0 %v237
    %458 = vmatmul.bf16.gmra.mxu0 %v265
    %v459 = vpop.f32.mrf.mxu0
    %v460 = vadd.f32 %v153, %v459
    %v461 = vpop.f32.mrf.mxu0
    %v462 = vadd.f32 %v153, %v461
    %463 = vmatmul.bf16.gmra.mxu0 %v268
    %v464 = vpop.f32.mrf.mxu0
    %v465 = vadd.f32 %v153, %v464
    %v466 = vpop.f32.mrf.mxu0
    %v467 = vadd.f32 %v153, %v466
    %468 = vmatmul.bf16.gmra.mxu0 %v271
    %v469 = vpop.f32.mrf.mxu0
    %v470 = vadd.f32 %v153, %v469
    %v471 = vpop.f32.mrf.mxu0
    %v472 = vadd.f32 %v153, %v471
    %473 = vmatmul.bf16.gmra.mxu0 %v274
    %v474 = vpop.f32.mrf.mxu0
    %v475 = vadd.f32 %v153, %v474
    %v476 = vpop.f32.mrf.mxu0
    %v477 = vadd.f32 %v153, %v476
    %478 = vdwg.mxu0
    %479 = vmatpush.bf16.msra.mxu0 0
    %480 = vmatpush.bf16.msra.mxu0 0
    %481 = vmatpush.bf16.msra.mxu0 0
    %482 = vmatpush.bf16.msra.mxu0 0
    %483 = vmatpush.bf16.msra.mxu0 0
    %484 = vmatpush.bf16.msra.mxu0 0
    %485 = vmatpush.bf16.msra.mxu0 %v246
    %486 = vmatpush.bf16.msra.mxu0 %v238
    %487 = vmatmul.bf16.gmra.mxu0 %v265
    %v488 = vpop.f32.mrf.mxu0
    %v489 = vadd.f32 %v154, %v488
    %v490 = vpop.f32.mrf.mxu0
    %v491 = vadd.f32 %v154, %v490
    %492 = vmatmul.bf16.gmra.mxu0 %v268
    %v493 = vpop.f32.mrf.mxu0
    %v494 = vadd.f32 %v154, %v493
    %v495 = vpop.f32.mrf.mxu0
    %v496 = vadd.f32 %v154, %v495
    %497 = vmatmul.bf16.gmra.mxu0 %v271
    %v498 = vpop.f32.mrf.mxu0
    %v499 = vadd.f32 %v154, %v498
    %v500 = vpop.f32.mrf.mxu0
    %v501 = vadd.f32 %v154, %v500
    %502 = vmatmul.bf16.gmra.mxu0 %v274
    %v503 = vpop.f32.mrf.mxu0
    %v504 = vadd.f32 %v154, %v503
    %v505 = vpop.f32.mrf.mxu0
    %v506 = vadd.f32 %v154, %v505
    %507 = vdwg.mxu0
    %v508 = vpack.c.bf16 %v315, %v286
    %v509 = vpack.c.bf16 %v373, %v344
    %v510 = vpack.c.bf16 %v431, %v402
    %v511 = vpack.c.bf16 %v489, %v460
    %v512 = vpack.c.bf16 %v317, %v288
    %v513 = vpack.c.bf16 %v375, %v346
    %v514 = vpack.c.bf16 %v433, %v404
    %v515 = vpack.c.bf16 %v491, %v462
    %v516 = vpack.c.bf16 %v320, %v291
    %v517 = vpack.c.bf16 %v378, %v349
    %v518 = vpack.c.bf16 %v436, %v407
    %v519 = vpack.c.bf16 %v494, %v465
    %v520 = vpack.c.bf16 %v322, %v293
    %v521 = vpack.c.bf16 %v380, %v351
    %v522 = vpack.c.bf16 %v438, %v409
    %v523 = vpack.c.bf16 %v496, %v467
    %v524 = vpack.c.bf16 %v325, %v296
    %v525 = vpack.c.bf16 %v383, %v354
    %v526 = vpack.c.bf16 %v441, %v412
    %v527 = vpack.c.bf16 %v499, %v470
    %v528 = vpack.c.bf16 %v327, %v298
    %v529 = vpack.c.bf16 %v385, %v356
    %v530 = vpack.c.bf16 %v443, %v414
    %v531 = vpack.c.bf16 %v501, %v472
    %v532 = vpack.c.bf16 %v330, %v301
    %v533 = vpack.c.bf16 %v388, %v359
    %v534 = vpack.c.bf16 %v446, %v417
    %v535 = vpack.c.bf16 %v504, %v475
    %v536 = vpack.c.bf16 %v332, %v303
    %v537 = vpack.c.bf16 %v390, %v361
    %v538 = vpack.c.bf16 %v448, %v419
    %v539 = vpack.c.bf16 %v506, %v477
    %540 = vst [vmem:[#allocation2] sm:$0xff] %v508
    %541 = vst [vmem:[#allocation2 + $0x8] sm:$0xff] %v509
    %542 = vst [vmem:[#allocation2 + $0x10] sm:$0xff] %v510
    %543 = vst [vmem:[#allocation2 + $0x18] sm:$0xff] %v511
    %544 = vst [vmem:[#allocation2 + $0x20] sm:$0xff] %v512
    %545 = vst [vmem:[#allocation2 + $0x28] sm:$0xff] %v513
    %546 = vst [vmem:[#allocation2 + $0x30] sm:$0xff] %v514
    %547 = vst [vmem:[#allocation2 + $0x38] sm:$0xff] %v515
    %548 = vst [vmem:[#allocation2 + $0x40] sm:$0xff] %v516
    %549 = vst [vmem:[#allocation2 + $0x48] sm:$0xff] %v517
    %550 = vst [vmem:[#allocation2 + $0x50] sm:$0xff] %v518
    %551 = vst [vmem:[#allocation2 + $0x58] sm:$0xff] %v519
    %552 = vst [vmem:[#allocation2 + $0x60] sm:$0xff] %v520
    %553 = vst [vmem:[#allocation2 + $0x68] sm:$0xff] %v521
    %554 = vst [vmem:[#allocation2 + $0x70] sm:$0xff] %v522
    %555 = vst [vmem:[#allocation2 + $0x78] sm:$0xff] %v523
    %556 = vst [vmem:[#allocation2 + $0x80] sm:$0xff] %v524
    %557 = vst [vmem:[#allocation2 + $0x88] sm:$0xff] %v525
    %558 = vst [vmem:[#allocation2 + $0x90] sm:$0xff] %v526
    %559 = vst [vmem:[#allocation2 + $0x98] sm:$0xff] %v527
    %560 = vst [vmem:[#allocation2 + $0xa0] sm:$0xff] %v528
    %561 = vst [vmem:[#allocation2 + $0xa8] sm:$0xff] %v529
    %562 = vst [vmem:[#allocation2 + $0xb0] sm:$0xff] %v530
    %563 = vst [vmem:[#allocation2 + $0xb8] sm:$0xff] %v531
    %564 = vst [vmem:[#allocation2 + $0xc0] sm:$0xff] %v532
    %565 = vst [vmem:[#allocation2 + $0xc8] sm:$0xff] %v533
    %566 = vst [vmem:[#allocation2 + $0xd0] sm:$0xff] %v534
    %567 = vst [vmem:[#allocation2 + $0xd8] sm:$0xff] %v535
    %568 = vst [vmem:[#allocation2 + $0xe0] sm:$0xff] %v536
    %569 = vst [vmem:[#allocation2 + $0xe8] sm:$0xff] %v537
    %570 = vst [vmem:[#allocation2 + $0xf0] sm:$0xff] %v538
    %571 = vst [vmem:[#allocation2 + $0xf8] sm:$0xff] %v539
    %v572 = vld [vmem:[%s6] sm:$0x1]
    %v573 = vld [vmem:[%s7] sm:$0x1]
    %v574 = vld [vmem:[#allocation2] sm:$0xff]
    %v575 = vld [vmem:[#allocation2 + $0x8] sm:$0xff]
    %v576 = vld [vmem:[#allocation2 + $0xf0] sm:$0xff]
    %v577 = vld [vmem:[#allocation2 + $0xf8] sm:$0xff]
    %v578 = vunpack.c.l.bf16 %v574
    %v579 = vunpack.c.h.bf16 %v574
    %v580 = vunpack.c.l.bf16 %v575
    %v581 = vunpack.c.h.bf16 %v575
    %v582 = vld [vmem:[#allocation10] sm:$0xff]
    %v583 = vld [vmem:[#allocation10 + $0x8] sm:$0xff]
    %v584 = vld [vmem:[#allocation10 + $0x10] sm:$0xff]
    %v585 = vld [vmem:[#allocation10 + $0x18] sm:$0xff]
    %v586 = vld [vmem:[#allocation10 + $0x20] sm:$0xff]
    %v587 = vld [vmem:[#allocation10 + $0x28] sm:$0xff]
    %v588 = vld [vmem:[#allocation10 + $0x30] sm:$0xff]
    %v589 = vld [vmem:[#allocation10 + $0x38] sm:$0xff]
    %v590 = vld [vmem:[#allocation10 + $0x40] sm:$0xff]
    %v591 = vld [vmem:[#allocation10 + $0x48] sm:$0xff]
    %v592 = vld [vmem:[#allocation10 + $0x50] sm:$0xff]
    %v593 = vld [vmem:[#allocation10 + $0x58] sm:$0xff]
    %v594 = vld [vmem:[#allocation10 + $0x60] sm:$0xff]
    %v595 = vld [vmem:[#allocation10 + $0x68] sm:$0xff]
    %v596 = vld [vmem:[#allocation10 + $0x70] sm:$0xff]
    %v597 = vld [vmem:[#allocation10 + $0x78] sm:$0xff]
    %v598 = vld [vmem:[#allocation10 + $0x80] sm:$0xff]
    %v599 = vld [vmem:[#allocation10 + $0x88] sm:$0xff]
    %v600 = vld [vmem:[#allocation10 + $0x90] sm:$0xff]
    %v601 = vld [vmem:[#allocation10 + $0x98] sm:$0xff]
    %v602 = vld [vmem:[#allocation10 + $0xa0] sm:$0xff]
    %v603 = vld [vmem:[#allocation10 + $0xa8] sm:$0xff]
    %v604 = vld [vmem:[#allocation10 + $0xb0] sm:$0xff]
    %v605 = vld [vmem:[#allocation10 + $0xb8] sm:$0xff]
    %v606 = vld [vmem:[#allocation10 + $0xc0] sm:$0xff]
    %v607 = vld [vmem:[#allocation10 + $0xc8] sm:$0xff]
    %v608 = vld [vmem:[#allocation10 + $0xd0] sm:$0xff]
    %v609 = vld [vmem:[#allocation10 + $0xd8] sm:$0xff]
    %v610 = vld [vmem:[#allocation10 + $0xe0] sm:$0xff]
    %v611 = vld [vmem:[#allocation10 + $0xe8] sm:$0xff]
    %v612 = vld [vmem:[#allocation10 + $0xf0] sm:$0xff]
    %v613 = vld [vmem:[#allocation10 + $0xf8] sm:$0xff]
    %v646 = vunpack.c.l.b16 %v582
    %v647 = vunpack.c.h.b16 %v582
    %v648 = vunpack.c.l.b16 %v583
    %v649 = vunpack.c.h.b16 %v583
    %v650 = vunpack.c.l.b16 %v584
    %v651 = vunpack.c.h.b16 %v584
    %v652 = vunpack.c.l.b16 %v585
    %v653 = vunpack.c.h.b16 %v585
    %v654 = vunpack.c.l.b16 %v586
    %v655 = vunpack.c.h.b16 %v586
    %v656 = vunpack.c.l.b16 %v587
    %v657 = vunpack.c.h.b16 %v587
    %v658 = vunpack.c.l.b16 %v588
    %v659 = vunpack.c.h.b16 %v588
    %v660 = vunpack.c.l.b16 %v589
    %v661 = vunpack.c.h.b16 %v589
    %v662 = vunpack.c.l.b16 %v590
    %v663 = vunpack.c.h.b16 %v590
    %v664 = vunpack.c.l.b16 %v591
    %v665 = vunpack.c.h.b16 %v591
    %v666 = vunpack.c.l.b16 %v592
    %v667 = vunpack.c.h.b16 %v592
    %v668 = vunpack.c.l.b16 %v593
    %v669 = vunpack.c.h.b16 %v593
    %v670 = vunpack.c.l.b16 %v594
    %v671 = vunpack.c.h.b16 %v594
    %v672 = vunpack.c.l.b16 %v595
    %v673 = vunpack.c.h.b16 %v595
    %v674 = vunpack.c.l.b16 %v596
    %v675 = vunpack.c.h.b16 %v596
    %v676 = vunpack.c.l.b16 %v597
    %v677 = vunpack.c.h.b16 %v597
    %v678 = vunpack.c.l.b16 %v598
    %v679 = vunpack.c.h.b16 %v598
    %v680 = vunpack.c.l.b16 %v599
    %v681 = vunpack.c.h.b16 %v599
    %v682 = vunpack.c.l.b16 %v600
    %v683 = vunpack.c.h.b16 %v600
    %v684 = vunpack.c.l.b16 %v601
    %v685 = vunpack.c.h.b16 %v601
    %v686 = vunpack.c.l.b16 %v602
    %v687 = vunpack.c.h.b16 %v602
    %v688 = vunpack.c.l.b16 %v603
    %v689 = vunpack.c.h.b16 %v603
    %v690 = vunpack.c.l.b16 %v604
    %v691 = vunpack.c.h.b16 %v604
    %v692 = vunpack.c.l.b16 %v605
    %v693 = vunpack.c.h.b16 %v605
    %v694 = vunpack.c.l.b16 %v606
    %v695 = vunpack.c.h.b16 %v606
    %v696 = vunpack.c.l.b16 %v607
    %v697 = vunpack.c.h.b16 %v607
    %v698 = vunpack.c.l.b16 %v608
    %v699 = vunpack.c.h.b16 %v608
    %v700 = vunpack.c.l.b16 %v609
    %v701 = vunpack.c.h.b16 %v609
    %v702 = vunpack.c.l.b16 %v610
    %v703 = vunpack.c.h.b16 %v610
    %v704 = vunpack.c.l.b16 %v611
    %v705 = vunpack.c.h.b16 %v611
    %v706 = vunpack.c.l.b16 %v612
    %v707 = vunpack.c.h.b16 %v612
    %v708 = vunpack.c.l.b16 %v613
    %v709 = vunpack.c.h.b16 %v613
    %v710 = vpack.c.b16 %v650, %v646
    %v711 = vpack.c.b16 %v651, %v647
    %v712 = vpack.c.b16 %v652, %v648
    %v713 = vpack.c.b16 %v653, %v649
    %v714 = vpack.c.b16 %v658, %v654
    %v715 = vpack.c.b16 %v659, %v655
    %v716 = vpack.c.b16 %v660, %v656
    %v717 = vpack.c.b16 %v661, %v657
    %v718 = vpack.c.b16 %v666, %v662
    %v719 = vpack.c.b16 %v667, %v663
    %v720 = vpack.c.b16 %v668, %v664
    %v721 = vpack.c.b16 %v669, %v665
    %v722 = vpack.c.b16 %v674, %v670
    %v723 = vpack.c.b16 %v675, %v671
    %v724 = vpack.c.b16 %v676, %v672
    %v725 = vpack.c.b16 %v677, %v673
    %v726 = vpack.c.b16 %v682, %v678
    %v727 = vpack.c.b16 %v683, %v679
    %v728 = vpack.c.b16 %v684, %v680
    %v729 = vpack.c.b16 %v685, %v681
    %v730 = vpack.c.b16 %v690, %v686
    %v731 = vpack.c.b16 %v691, %v687
    %v732 = vpack.c.b16 %v692, %v688
    %v733 = vpack.c.b16 %v693, %v689
    %v734 = vpack.c.b16 %v698, %v694
    %v735 = vpack.c.b16 %v699, %v695
    %v736 = vpack.c.b16 %v700, %v696
    %v737 = vpack.c.b16 %v701, %v697
    %v738 = vpack.c.b16 %v706, %v702
    %v739 = vpack.c.b16 %v707, %v703
    %v740 = vpack.c.b16 %v708, %v704
    %v741 = vpack.c.b16 %v709, %v705
    %774 = vmatpush.bf16.msra.mxu0 %v738
    %775 = vmatpush.bf16.msra.mxu0 %v734
    %776 = vmatpush.bf16.msra.mxu0 %v730
    %777 = vmatpush.bf16.msra.mxu0 %v726
    %778 = vmatpush.bf16.msra.mxu0 %v722
    %779 = vmatpush.bf16.msra.mxu0 %v718
    %780 = vmatpush.bf16.msra.mxu0 %v714
    %781 = vmatpush.bf16.msra.mxu0 %v710
    %782 = vmatmul.bf16.gmra.mxu0 0
    %v783 = vpop.f32.mrf.mxu0
    %v784 = vadd.f32 0.0, %v783
    %v785 = vpop.f32.mrf.mxu0
    %786 = vdwg.mxu0
    %787 = vmatpush.bf16.msra.mxu0 %v739
    %788 = vmatpush.bf16.msra.mxu0 %v735
    %789 = vmatpush.bf16.msra.mxu0 %v731
    %790 = vmatpush.bf16.msra.mxu0 %v727
    %791 = vmatpush.bf16.msra.mxu0 %v723
    %792 = vmatpush.bf16.msra.mxu0 %v719
    %793 = vmatpush.bf16.msra.mxu0 %v715
    %794 = vmatpush.bf16.msra.mxu0 %v711
    %795 = vmatmul.bf16.gmra.mxu0 0
    %v796 = vpop.f32.mrf.mxu0
    %v797 = vadd.f32 0.0, %v796
    %v798 = vpop.f32.mrf.mxu0
    %799 = vdwg.mxu0
    %800 = vmatpush.bf16.msra.mxu0 %v740
    %801 = vmatpush.bf16.msra.mxu0 %v736
    %802 = vmatpush.bf16.msra.mxu0 %v732
    %803 = vmatpush.bf16.msra.mxu0 %v728
    %804 = vmatpush.bf16.msra.mxu0 %v724
    %805 = vmatpush.bf16.msra.mxu0 %v720
    %806 = vmatpush.bf16.msra.mxu0 %v716
    %807 = vmatpush.bf16.msra.mxu0 %v712
    %808 = vmatmul.bf16.gmra.mxu0 0
    %v809 = vpop.f32.mrf.mxu0
    %v810 = vadd.f32 0.0, %v809
    %v811 = vpop.f32.mrf.mxu0
    %812 = vdwg.mxu0
    %813 = vmatpush.bf16.msra.mxu0 %v741
    %814 = vmatpush.bf16.msra.mxu0 %v737
    %815 = vmatpush.bf16.msra.mxu0 %v733
    %816 = vmatpush.bf16.msra.mxu0 %v729
    %817 = vmatpush.bf16.msra.mxu0 %v725
    %818 = vmatpush.bf16.msra.mxu0 %v721
    %819 = vmatpush.bf16.msra.mxu0 %v717
    %820 = vmatpush.bf16.msra.mxu0 %v713
    %821 = vmatmul.bf16.gmra.mxu0 0
    %v822 = vpop.f32.mrf.mxu0
    %v823 = vadd.f32 0.0, %v822
    %v824 = vpop.f32.mrf.mxu0
    %825 = vdwg.mxu0
    %v826 = vadd.f32 %v578, %v784
    %v827 = vadd.f32 %v579, %v797
    %v828 = vadd.f32 %v580, %v810
    %v829 = vadd.f32 %v581, %v823
    %v830 = vxor.u32 %v826, 2147483648
    %v831 = vmul.f32 %v830, 1.442695
    %v832 = vpow.pop %v831
    %v833 = vadd.f32 %v832, 1.0
    %v834 = vrcp.pop %v833
    %v835 = vmul.f32 %v833, %v834
    %v836 = vsub.f32 1.0, %v835
    %v837 = vmul.f32 %v834, %v836
    %v838 = vadd.f32 %v834, %v837
    %vm839 = vweird.f32 %v833
    %vm840 = vweird.f32 %v834
    %vm841 = vmor %vm839, %vm840
    %v842 = vsel %vm841, %v834, %v838
    %v843 = vand.u32 2147483647, %v833
    %vm844 = vcmp.eq.f32.partialorder %v843, 8.507059e+37
    %v845 = vand.u32 %v833, 2147483648
    %v846 = vor.u32 1.1754944e-38, %v845
    %v847 = vsel %vm844, %v846, %v842
    %v848 = vmul.f32 1.0, %v847
    %v849 = vxor.u32 %v827, 2147483648
    %v850 = vmul.f32 %v849, 1.442695
    %v851 = vpow.pop %v850
    %v852 = vadd.f32 %v851, 1.0
    %v853 = vrcp.pop %v852
    %v854 = vmul.f32 %v852, %v853
    %v855 = vsub.f32 1.0, %v854
    %v856 = vmul.f32 %v853, %v855
    %v857 = vadd.f32 %v853, %v856
    %vm858 = vweird.f32 %v852
    %vm859 = vweird.f32 %v853
    %vm860 = vmor %vm858, %vm859
    %v861 = vsel %vm860, %v853, %v857
    %v862 = vand.u32 2147483647, %v852
    %vm863 = vcmp.eq.f32.partialorder %v862, 8.507059e+37
    %v864 = vand.u32 %v852, 2147483648
    %v865 = vor.u32 1.1754944e-38, %v864
    %v866 = vsel %vm863, %v865, %v861
    %v867 = vmul.f32 1.0, %v866
    %v868 = vtanh.pop %v828
    %v869 = vxor.u32 %v829, 2147483648
    %v870 = vmul.f32 %v869, 1.442695
    %v871 = vpow.pop %v870
    %v872 = vadd.f32 %v871, 1.0
    %v873 = vrcp.pop %v872
    %v874 = vmul.f32 %v872, %v873
    %v875 = vsub.f32 1.0, %v874
    %v876 = vmul.f32 %v873, %v875
    %v877 = vadd.f32 %v873, %v876
    %vm878 = vweird.f32 %v872
    %vm879 = vweird.f32 %v873
    %vm880 = vmor %vm878, %vm879
    %v881 = vsel %vm880, %v873, %v877
    %v882 = vand.u32 2147483647, %v872
    %vm883 = vcmp.eq.f32.partialorder %v882, 8.507059e+37
    %v884 = vand.u32 %v872, 2147483648
    %v885 = vor.u32 1.1754944e-38, %v884
    %v886 = vsel %vm883, %v885, %v881
    %v887 = vmul.f32 1.0, %v886
    %v888 = vmul.f32 %v867, 0.0
    %v889 = vmul.f32 %v848, %v868
    %v890 = vadd.f32 %v888, %v889
    %v891 = vtanh.pop %v890
    %v892 = vmul.f32 %v887, %v891
    %v893 = vunpack.c.l.bf16 %v576
    %v894 = vunpack.c.h.bf16 %v576
    %v895 = vunpack.c.l.bf16 %v577
    %v896 = vunpack.c.h.bf16 %v577
    %v897 = vld [vmem:[#allocation12] sm:$0xff]
    %v898 = vld [vmem:[#allocation12 + $0x8] sm:$0xff]
    %v899 = vld [vmem:[#allocation12 + $0x10] sm:$0xff]
    %v900 = vld [vmem:[#allocation12 + $0x18] sm:$0xff]
    %v901 = vld [vmem:[#allocation12 + $0x20] sm:$0xff]
    %v902 = vld [vmem:[#allocation12 + $0x28] sm:$0xff]
    %v903 = vld [vmem:[#allocation12 + $0x30] sm:$0xff]
    %v904 = vld [vmem:[#allocation12 + $0x38] sm:$0xff]
    %v905 = vld [vmem:[#allocation12 + $0x40] sm:$0xff]
    %v906 = vld [vmem:[#allocation12 + $0x48] sm:$0xff]
    %v907 = vld [vmem:[#allocation12 + $0x50] sm:$0xff]
    %v908 = vld [vmem:[#allocation12 + $0x58] sm:$0xff]
    %v909 = vld [vmem:[#allocation12 + $0x60] sm:$0xff]
    %v910 = vld [vmem:[#allocation12 + $0x68] sm:$0xff]
    %v911 = vld [vmem:[#allocation12 + $0x70] sm:$0xff]
    %v912 = vld [vmem:[#allocation12 + $0x78] sm:$0xff]
    %v913 = vld [vmem:[#allocation12 + $0x80] sm:$0xff]
    %v914 = vld [vmem:[#allocation12 + $0x88] sm:$0xff]
    %v915 = vld [vmem:[#allocation12 + $0x90] sm:$0xff]
    %v916 = vld [vmem:[#allocation12 + $0x98] sm:$0xff]
    %v917 = vld [vmem:[#allocation12 + $0xa0] sm:$0xff]
    %v918 = vld [vmem:[#allocation12 + $0xa8] sm:$0xff]
    %v919 = vld [vmem:[#allocation12 + $0xb0] sm:$0xff]
    %v920 = vld [vmem:[#allocation12 + $0xb8] sm:$0xff]
    %v921 = vld [vmem:[#allocation12 + $0xc0] sm:$0xff]
    %v922 = vld [vmem:[#allocation12 + $0xc8] sm:$0xff]
    %v923 = vld [vmem:[#allocation12 + $0xd0] sm:$0xff]
    %v924 = vld [vmem:[#allocation12 + $0xd8] sm:$0xff]
    %v925 = vld [vmem:[#allocation12 + $0xe0] sm:$0xff]
    %v926 = vld [vmem:[#allocation12 + $0xe8] sm:$0xff]
    %v927 = vld [vmem:[#allocation12 + $0xf0] sm:$0xff]
    %v928 = vld [vmem:[#allocation12 + $0xf8] sm:$0xff]
    %v961 = vunpack.c.l.b16 %v897
    %v962 = vunpack.c.h.b16 %v897
    %v963 = vunpack.c.l.b16 %v898
    %v964 = vunpack.c.h.b16 %v898
    %v965 = vunpack.c.l.b16 %v899
    %v966 = vunpack.c.h.b16 %v899
    %v967 = vunpack.c.l.b16 %v900
    %v968 = vunpack.c.h.b16 %v900
    %v969 = vunpack.c.l.b16 %v901
    %v970 = vunpack.c.h.b16 %v901
    %v971 = vunpack.c.l.b16 %v902
    %v972 = vunpack.c.h.b16 %v902
    %v973 = vunpack.c.l.b16 %v903
    %v974 = vunpack.c.h.b16 %v903
    %v975 = vunpack.c.l.b16 %v904
    %v976 = vunpack.c.h.b16 %v904
    %v977 = vunpack.c.l.b16 %v905
    %v978 = vunpack.c.h.b16 %v905
    %v979 = vunpack.c.l.b16 %v906
    %v980 = vunpack.c.h.b16 %v906
    %v981 = vunpack.c.l.b16 %v907
    %v982 = vunpack.c.h.b16 %v907
    %v983 = vunpack.c.l.b16 %v908
    %v984 = vunpack.c.h.b16 %v908
    %v985 = vunpack.c.l.b16 %v909
    %v986 = vunpack.c.h.b16 %v909
    %v987 = vunpack.c.l.b16 %v910
    %v988 = vunpack.c.h.b16 %v910
    %v989 = vunpack.c.l.b16 %v911
    %v990 = vunpack.c.h.b16 %v911
    %v991 = vunpack.c.l.b16 %v912
    %v992 = vunpack.c.h.b16 %v912
    %v993 = vunpack.c.l.b16 %v913
    %v994 = vunpack.c.h.b16 %v913
    %v995 = vunpack.c.l.b16 %v914
    %v996 = vunpack.c.h.b16 %v914
    %v997 = vunpack.c.l.b16 %v915
    %v998 = vunpack.c.h.b16 %v915
    %v999 = vunpack.c.l.b16 %v916
    %v1000 = vunpack.c.h.b16 %v916
    %v1001 = vunpack.c.l.b16 %v917
    %v1002 = vunpack.c.h.b16 %v917
    %v1003 = vunpack.c.l.b16 %v918
    %v1004 = vunpack.c.h.b16 %v918
    %v1005 = vunpack.c.l.b16 %v919
    %v1006 = vunpack.c.h.b16 %v919
    %v1007 = vunpack.c.l.b16 %v920
    %v1008 = vunpack.c.h.b16 %v920
    %v1009 = vunpack.c.l.b16 %v921
    %v1010 = vunpack.c.h.b16 %v921
    %v1011 = vunpack.c.l.b16 %v922
    %v1012 = vunpack.c.h.b16 %v922
    %v1013 = vunpack.c.l.b16 %v923
    %v1014 = vunpack.c.h.b16 %v923
    %v1015 = vunpack.c.l.b16 %v924
    %v1016 = vunpack.c.h.b16 %v924
    %v1017 = vunpack.c.l.b16 %v925
    %v1018 = vunpack.c.h.b16 %v925
    %v1019 = vunpack.c.l.b16 %v926
    %v1020 = vunpack.c.h.b16 %v926
    %v1021 = vunpack.c.l.b16 %v927
    %v1022 = vunpack.c.h.b16 %v927
    %v1023 = vunpack.c.l.b16 %v928
    %v1024 = vunpack.c.h.b16 %v928
    %v1025 = vpack.c.b16 %v965, %v961
    %v1026 = vpack.c.b16 %v966, %v962
    %v1027 = vpack.c.b16 %v967, %v963
    %v1028 = vpack.c.b16 %v968, %v964
    %v1029 = vpack.c.b16 %v973, %v969
    %v1030 = vpack.c.b16 %v974, %v970
    %v1031 = vpack.c.b16 %v975, %v971
    %v1032 = vpack.c.b16 %v976, %v972
    %v1033 = vpack.c.b16 %v981, %v977
    %v1034 = vpack.c.b16 %v982, %v978
    %v1035 = vpack.c.b16 %v983, %v979
    %v1036 = vpack.c.b16 %v984, %v980
    %v1037 = vpack.c.b16 %v989, %v985
    %v1038 = vpack.c.b16 %v990, %v986
    %v1039 = vpack.c.b16 %v991, %v987
    %v1040 = vpack.c.b16 %v992, %v988
    %v1041 = vpack.c.b16 %v997, %v993
    %v1042 = vpack.c.b16 %v998, %v994
    %v1043 = vpack.c.b16 %v999, %v995
    %v1044 = vpack.c.b16 %v1000, %v996
    %v1045 = vpack.c.b16 %v1005, %v1001
    %v1046 = vpack.c.b16 %v1006, %v1002
    %v1047 = vpack.c.b16 %v1007, %v1003
    %v1048 = vpack.c.b16 %v1008, %v1004
    %v1049 = vpack.c.b16 %v1013, %v1009
    %v1050 = vpack.c.b16 %v1014, %v1010
    %v1051 = vpack.c.b16 %v1015, %v1011
    %v1052 = vpack.c.b16 %v1016, %v1012
    %v1053 = vpack.c.b16 %v1021, %v1017
    %v1054 = vpack.c.b16 %v1022, %v1018
    %v1055 = vpack.c.b16 %v1023, %v1019
    %v1056 = vpack.c.b16 %v1024, %v1020
    %1089 = vmatpush.bf16.msra.mxu0 %v1053
    %1090 = vmatpush.bf16.msra.mxu0 %v1049
    %1091 = vmatpush.bf16.msra.mxu0 %v1045
    %1092 = vmatpush.bf16.msra.mxu0 %v1041
    %1093 = vmatpush.bf16.msra.mxu0 %v1037
    %1094 = vmatpush.bf16.msra.mxu0 %v1033
    %1095 = vmatpush.bf16.msra.mxu0 %v1029
    %1096 = vmatpush.bf16.msra.mxu0 %v1025
    %1097 = vmatmul.bf16.gmra.mxu0 0
    %v1098 = vpop.f32.mrf.mxu0
    %v1099 = vadd.f32 0.0, %v1098
    %v1100 = vpop.f32.mrf.mxu0
    %1101 = vdwg.mxu0
    %1102 = vmatpush.bf16.msra.mxu0 %v1054
    %1103 = vmatpush.bf16.msra.mxu0 %v1050
    %1104 = vmatpush.bf16.msra.mxu0 %v1046
    %1105 = vmatpush.bf16.msra.mxu0 %v1042
    %1106 = vmatpush.bf16.msra.mxu0 %v1038
    %1107 = vmatpush.bf16.msra.mxu0 %v1034
    %1108 = vmatpush.bf16.msra.mxu0 %v1030
    %1109 = vmatpush.bf16.msra.mxu0 %v1026
    %1110 = vmatmul.bf16.gmra.mxu0 0
    %v1111 = vpop.f32.mrf.mxu0
    %v1112 = vadd.f32 0.0, %v1111
    %v1113 = vpop.f32.mrf.mxu0
    %1114 = vdwg.mxu0
    %1115 = vmatpush.bf16.msra.mxu0 %v1055
    %1116 = vmatpush.bf16.msra.mxu0 %v1051
    %1117 = vmatpush.bf16.msra.mxu0 %v1047
    %1118 = vmatpush.bf16.msra.mxu0 %v1043
    %1119 = vmatpush.bf16.msra.mxu0 %v1039
    %1120 = vmatpush.bf16.msra.mxu0 %v1035
    %1121 = vmatpush.bf16.msra.mxu0 %v1031
    %1122 = vmatpush.bf16.msra.mxu0 %v1027
    %1123 = vmatmul.bf16.gmra.mxu0 0
    %v1124 = vpop.f32.mrf.mxu0
    %v1125 = vadd.f32 0.0, %v1124
    %v1126 = vpop.f32.mrf.mxu0
    %1127 = vdwg.mxu0
    %1128 = vmatpush.bf16.msra.mxu0 %v1056
    %1129 = vmatpush.bf16.msra.mxu0 %v1052
    %1130 = vmatpush.bf16.msra.mxu0 %v1048
    %1131 = vmatpush.bf16.msra.mxu0 %v1044
    %1132 = vmatpush.bf16.msra.mxu0 %v1040
    %1133 = vmatpush.bf16.msra.mxu0 %v1036
    %1134 = vmatpush.bf16.msra.mxu0 %v1032
    %1135 = vmatpush.bf16.msra.mxu0 %v1028
    %1136 = vmatmul.bf16.gmra.mxu0 0
    %v1137 = vpop.f32.mrf.mxu0
    %v1138 = vadd.f32 0.0, %v1137
    %v1139 = vpop.f32.mrf.mxu0
    %1140 = vdwg.mxu0
    %v1141 = vadd.f32 %v893, %v1099
    %v1142 = vadd.f32 %v894, %v1112
    %v1143 = vadd.f32 %v895, %v1125
    %v1144 = vadd.f32 %v896, %v1138
    %v1145 = vxor.u32 %v1141, 2147483648
    %v1146 = vmul.f32 %v1145, 1.442695
    %v1147 = vpow.pop %v1146
    %v1148 = vadd.f32 %v1147, 1.0
    %v1149 = vrcp.pop %v1148
    %v1150 = vmul.f32 %v1148, %v1149
    %v1151 = vsub.f32 1.0, %v1150
    %v1152 = vmul.f32 %v1149, %v1151
    %v1153 = vadd.f32 %v1149, %v1152
    %vm1154 = vweird.f32 %v1148
    %vm1155 = vweird.f32 %v1149
    %vm1156 = vmor %vm1154, %vm1155
    %v1157 = vsel %vm1156, %v1149, %v1153
    %v1158 = vand.u32 2147483647, %v1148
    %vm1159 = vcmp.eq.f32.partialorder %v1158, 8.507059e+37
    %v1160 = vand.u32 %v1148, 2147483648
    %v1161 = vor.u32 1.1754944e-38, %v1160
    %v1162 = vsel %vm1159, %v1161, %v1157
    %v1163 = vmul.f32 1.0, %v1162
    %v1164 = vxor.u32 %v1142, 2147483648
    %v1165 = vmul.f32 %v1164, 1.442695
    %v1166 = vpow.pop %v1165
    %v1167 = vadd.f32 %v1166, 1.0
    %v1168 = vrcp.pop %v1167
    %v1169 = vmul.f32 %v1167, %v1168
    %v1170 = vsub.f32 1.0, %v1169
    %v1171 = vmul.f32 %v1168, %v1170
    %v1172 = vadd.f32 %v1168, %v1171
    %vm1173 = vweird.f32 %v1167
    %vm1174 = vweird.f32 %v1168
    %vm1175 = vmor %vm1173, %vm1174
    %v1176 = vsel %vm1175, %v1168, %v1172
    %v1177 = vand.u32 2147483647, %v1167
    %vm1178 = vcmp.eq.f32.partialorder %v1177, 8.507059e+37
    %v1179 = vand.u32 %v1167, 2147483648
    %v1180 = vor.u32 1.1754944e-38, %v1179
    %v1181 = vsel %vm1178, %v1180, %v1176
    %v1182 = vmul.f32 1.0, %v1181
    %v1183 = vtanh.pop %v1143
    %v1184 = vxor.u32 %v1144, 2147483648
    %v1185 = vmul.f32 %v1184, 1.442695
    %v1186 = vpow.pop %v1185
    %v1187 = vadd.f32 %v1186, 1.0
    %v1188 = vrcp.pop %v1187
    %v1189 = vmul.f32 %v1187, %v1188
    %v1190 = vsub.f32 1.0, %v1189
    %v1191 = vmul.f32 %v1188, %v1190
    %v1192 = vadd.f32 %v1188, %v1191
    %vm1193 = vweird.f32 %v1187
    %vm1194 = vweird.f32 %v1188
    %vm1195 = vmor %vm1193, %vm1194
    %v1196 = vsel %vm1195, %v1188, %v1192
    %v1197 = vand.u32 2147483647, %v1187
    %vm1198 = vcmp.eq.f32.partialorder %v1197, 8.507059e+37
    %v1199 = vand.u32 %v1187, 2147483648
    %v1200 = vor.u32 1.1754944e-38, %v1199
    %v1201 = vsel %vm1198, %v1200, %v1196
    %v1202 = vmul.f32 1.0, %v1201
    %v1203 = vmul.f32 %v1182, 0.0
    %v1204 = vmul.f32 %v1163, %v1183
    %v1205 = vadd.f32 %v1203, %v1204
    %v1206 = vtanh.pop %v1205
    %v1207 = vmul.f32 %v1202, %v1206
    %v1208 = vpack.c.bf16 %v892, %v892
    %1209 = vst [vmem:[#allocation3] sm:$0xf] %v1208
    %v1210 = vpack.c.bf16 %v1207, %v1207
    %s1211 = scalar_lea.vmem [#allocation4], 28
    %1212 = vst [vmem:[%s1211] sm:$0xf] %v1210
    %v1214 = vperm.slane %v572, 0
    %v1216 = vmul.f32 %v892, %v1214
    %1217 = vadd.xlane.f32.xlu0 %v1216
    %v1218 = vpop.xlane.xlu0 %1217
    %v1220 = vlaneseq
    %v1221 = vand.u32 %v1220, 127
    %v1222 = vperm.slane %v1218, %v1221
    %vm1224 = vcmask 57344
    %1225 = vst.msk [vmem:[#allocation5] sm:$0x1] %vm1224, %v1222
    %v1227 = vperm.slane %v573, 0
    %v1229 = vmul.f32 %v1207, %v1227
    %1230 = vadd.xlane.f32.xlu0 %v1229
    %v1231 = vpop.xlane.xlu0 %1230
    %v1233 = vperm.slane %v1231, %v1221
    %1235 = vst.msk [vmem:[#allocation6 + $0x7] sm:$0x1] %vm1224, %v1233
    %v1236 = vld [vmem:[#allocation2 + $0x20] sm:$0xff]
    %v1237 = vld [vmem:[#allocation2 + $0x28] sm:$0xff]
    %v1238 = vld [vmem:[#allocation2 + $0xd0] sm:$0xff]
    %v1239 = vld [vmem:[#allocation2 + $0xd8] sm:$0xff]
    %v1240 = vunpack.c.l.bf16 %v1236
    %v1241 = vunpack.c.h.bf16 %v1236
    %v1242 = vunpack.c.l.bf16 %v1237
    %v1243 = vunpack.c.h.bf16 %v1237
    %v1244 = vld [vmem:[#allocation10] sm:$0xff]
    %v1245 = vld [vmem:[#allocation10 + $0x8] sm:$0xff]
    %v1246 = vld [vmem:[#allocation10 + $0x10] sm:$0xff]
    %v1247 = vld [vmem:[#allocation10 + $0x18] sm:$0xff]
    %v1248 = vld [vmem:[#allocation10 + $0x20] sm:$0xff]
    %v1249 = vld [vmem:[#allocation10 + $0x28] sm:$0xff]
    %v1250 = vld [vmem:[#allocation10 + $0x30] sm:$0xff]
    %v1251 = vld [vmem:[#allocation10 + $0x38] sm:$0xff]
    %v1252 = vld [vmem:[#allocation10 + $0x40] sm:$0xff]
    %v1253 = vld [vmem:[#allocation10 + $0x48] sm:$0xff]
    %v1254 = vld [vmem:[#allocation10 + $0x50] sm:$0xff]
    %v1255 = vld [vmem:[#allocation10 + $0x58] sm:$0xff]
    %v1256 = vld [vmem:[#allocation10 + $0x60] sm:$0xff]
    %v1257 = vld [vmem:[#allocation10 + $0x68] sm:$0xff]
    %v1258 = vld [vmem:[#allocation10 + $0x70] sm:$0xff]
    %v1259 = vld [vmem:[#allocation10 + $0x78] sm:$0xff]
    %v1260 = vld [vmem:[#allocation10 + $0x80] sm:$0xff]
    %v1261 = vld [vmem:[#allocation10 + $0x88] sm:$0xff]
    %v1262 = vld [vmem:[#allocation10 + $0x90] sm:$0xff]
    %v1263 = vld [vmem:[#allocation10 + $0x98] sm:$0xff]
    %v1264 = vld [vmem:[#allocation10 + $0xa0] sm:$0xff]
    %v1265 = vld [vmem:[#allocation10 + $0xa8] sm:$0xff]
    %v1266 = vld [vmem:[#allocation10 + $0xb0] sm:$0xff]
    %v1267 = vld [vmem:[#allocation10 + $0xb8] sm:$0xff]
    %v1268 = vld [vmem:[#allocation10 + $0xc0] sm:$0xff]
    %v1269 = vld [vmem:[#allocation10 + $0xc8] sm:$0xff]
    %v1270 = vld [vmem:[#allocation10 + $0xd0] sm:$0xff]
    %v1271 = vld [vmem:[#allocation10 + $0xd8] sm:$0xff]
    %v1272 = vld [vmem:[#allocation10 + $0xe0] sm:$0xff]
    %v1273 = vld [vmem:[#allocation10 + $0xe8] sm:$0xff]
    %v1274 = vld [vmem:[#allocation10 + $0xf0] sm:$0xff]
    %v1275 = vld [vmem:[#allocation10 + $0xf8] sm:$0xff]
    %v1308 = vunpack.c.l.b16 %v1244
    %v1309 = vunpack.c.h.b16 %v1244
    %v1310 = vunpack.c.l.b16 %v1245
    %v1311 = vunpack.c.h.b16 %v1245
    %v1312 = vunpack.c.l.b16 %v1246
    %v1313 = vunpack.c.h.b16 %v1246
    %v1314 = vunpack.c.l.b16 %v1247
    %v1315 = vunpack.c.h.b16 %v1247
    %v1316 = vunpack.c.l.b16 %v1248
    %v1317 = vunpack.c.h.b16 %v1248
    %v1318 = vunpack.c.l.b16 %v1249
    %v1319 = vunpack.c.h.b16 %v1249
    %v1320 = vunpack.c.l.b16 %v1250
    %v1321 = vunpack.c.h.b16 %v1250
    %v1322 = vunpack.c.l.b16 %v1251
    %v1323 = vunpack.c.h.b16 %v1251
    %v1324 = vunpack.c.l.b16 %v1252
    %v1325 = vunpack.c.h.b16 %v1252
    %v1326 = vunpack.c.l.b16 %v1253
    %v1327 = vunpack.c.h.b16 %v1253
    %v1328 = vunpack.c.l.b16 %v1254
    %v1329 = vunpack.c.h.b16 %v1254
    %v1330 = vunpack.c.l.b16 %v1255
    %v1331 = vunpack.c.h.b16 %v1255
    %v1332 = vunpack.c.l.b16 %v1256
    %v1333 = vunpack.c.h.b16 %v1256
    %v1334 = vunpack.c.l.b16 %v1257
    %v1335 = vunpack.c.h.b16 %v1257
    %v1336 = vunpack.c.l.b16 %v1258
    %v1337 = vunpack.c.h.b16 %v1258
    %v1338 = vunpack.c.l.b16 %v1259
    %v1339 = vunpack.c.h.b16 %v1259
    %v1340 = vunpack.c.l.b16 %v1260
    %v1341 = vunpack.c.h.b16 %v1260
    %v1342 = vunpack.c.l.b16 %v1261
    %v1343 = vunpack.c.h.b16 %v1261
    %v1344 = vunpack.c.l.b16 %v1262
    %v1345 = vunpack.c.h.b16 %v1262
    %v1346 = vunpack.c.l.b16 %v1263
    %v1347 = vunpack.c.h.b16 %v1263
    %v1348 = vunpack.c.l.b16 %v1264
    %v1349 = vunpack.c.h.b16 %v1264
    %v1350 = vunpack.c.l.b16 %v1265
    %v1351 = vunpack.c.h.b16 %v1265
    %v1352 = vunpack.c.l.b16 %v1266
    %v1353 = vunpack.c.h.b16 %v1266
    %v1354 = vunpack.c.l.b16 %v1267
    %v1355 = vunpack.c.h.b16 %v1267
    %v1356 = vunpack.c.l.b16 %v1268
    %v1357 = vunpack.c.h.b16 %v1268
    %v1358 = vunpack.c.l.b16 %v1269
    %v1359 = vunpack.c.h.b16 %v1269
    %v1360 = vunpack.c.l.b16 %v1270
    %v1361 = vunpack.c.h.b16 %v1270
    %v1362 = vunpack.c.l.b16 %v1271
    %v1363 = vunpack.c.h.b16 %v1271
    %v1364 = vunpack.c.l.b16 %v1272
    %v1365 = vunpack.c.h.b16 %v1272
    %v1366 = vunpack.c.l.b16 %v1273
    %v1367 = vunpack.c.h.b16 %v1273
    %v1368 = vunpack.c.l.b16 %v1274
    %v1369 = vunpack.c.h.b16 %v1274
    %v1370 = vunpack.c.l.b16 %v1275
    %v1371 = vunpack.c.h.b16 %v1275
    %v1372 = vpack.c.b16 %v1312, %v1308
    %v1373 = vpack.c.b16 %v1313, %v1309
    %v1374 = vpack.c.b16 %v1314, %v1310
    %v1375 = vpack.c.b16 %v1315, %v1311
    %v1376 = vpack.c.b16 %v1320, %v1316
    %v1377 = vpack.c.b16 %v1321, %v1317
    %v1378 = vpack.c.b16 %v1322, %v1318
    %v1379 = vpack.c.b16 %v1323, %v1319
    %v1380 = vpack.c.b16 %v1328, %v1324
    %v1381 = vpack.c.b16 %v1329, %v1325
    %v1382 = vpack.c.b16 %v1330, %v1326
    %v1383 = vpack.c.b16 %v1331, %v1327
    %v1384 = vpack.c.b16 %v1336, %v1332
    %v1385 = vpack.c.b16 %v1337, %v1333
    %v1386 = vpack.c.b16 %v1338, %v1334
    %v1387 = vpack.c.b16 %v1339, %v1335
    %v1388 = vpack.c.b16 %v1344, %v1340
    %v1389 = vpack.c.b16 %v1345, %v1341
    %v1390 = vpack.c.b16 %v1346, %v1342
    %v1391 = vpack.c.b16 %v1347, %v1343
    %v1392 = vpack.c.b16 %v1352, %v1348
    %v1393 = vpack.c.b16 %v1353, %v1349
    %v1394 = vpack.c.b16 %v1354, %v1350
    %v1395 = vpack.c.b16 %v1355, %v1351
    %v1396 = vpack.c.b16 %v1360, %v1356
    %v1397 = vpack.c.b16 %v1361, %v1357
    %v1398 = vpack.c.b16 %v1362, %v1358
    %v1399 = vpack.c.b16 %v1363, %v1359
    %v1400 = vpack.c.b16 %v1368, %v1364
    %v1401 = vpack.c.b16 %v1369, %v1365
    %v1402 = vpack.c.b16 %v1370, %v1366
    %v1403 = vpack.c.b16 %v1371, %v1367
    %1436 = vmatpush.bf16.msra.mxu0 %v1400
    %1437 = vmatpush.bf16.msra.mxu0 %v1396
    %1438 = vmatpush.bf16.msra.mxu0 %v1392
    %1439 = vmatpush.bf16.msra.mxu0 %v1388
    %1440 = vmatpush.bf16.msra.mxu0 %v1384
    %1441 = vmatpush.bf16.msra.mxu0 %v1380
    %1442 = vmatpush.bf16.msra.mxu0 %v1376
    %1443 = vmatpush.bf16.msra.mxu0 %v1372
    %1444 = vmatmul.bf16.gmra.mxu0 %v1208
    %v1445 = vpop.f32.mrf.mxu0
    %v1446 = vadd.f32 0.0, %v1445
    %v1447 = vpop.f32.mrf.mxu0
    %1448 = vdwg.mxu0
    %1449 = vmatpush.bf16.msra.mxu0 %v1401
    %1450 = vmatpush.bf16.msra.mxu0 %v1397
    %1451 = vmatpush.bf16.msra.mxu0 %v1393
    %1452 = vmatpush.bf16.msra.mxu0 %v1389
    %1453 = vmatpush.bf16.msra.mxu0 %v1385
    %1454 = vmatpush.bf16.msra.mxu0 %v1381
    %1455 = vmatpush.bf16.msra.mxu0 %v1377
    %1456 = vmatpush.bf16.msra.mxu0 %v1373
    %1457 = vmatmul.bf16.gmra.mxu0 %v1208
    %v1458 = vpop.f32.mrf.mxu0
    %v1459 = vadd.f32 0.0, %v1458
    %v1460 = vpop.f32.mrf.mxu0
    %1461 = vdwg.mxu0
    %1462 = vmatpush.bf16.msra.mxu0 %v1402
    %1463 = vmatpush.bf16.msra.mxu0 %v1398
    %1464 = vmatpush.bf16.msra.mxu0 %v1394
    %1465 = vmatpush.bf16.msra.mxu0 %v1390
    %1466 = vmatpush.bf16.msra.mxu0 %v1386
    %1467 = vmatpush.bf16.msra.mxu0 %v1382
    %1468 = vmatpush.bf16.msra.mxu0 %v1378
    %1469 = vmatpush.bf16.msra.mxu0 %v1374
    %1470 = vmatmul.bf16.gmra.mxu0 %v1208
    %v1471 = vpop.f32.mrf.mxu0
    %v1472 = vadd.f32 0.0, %v1471
    %v1473 = vpop.f32.mrf.mxu0
    %1474 = vdwg.mxu0
    %1475 = vmatpush.bf16.msra.mxu0 %v1403
    %1476 = vmatpush.bf16.msra.mxu0 %v1399
    %1477 = vmatpush.bf16.msra.mxu0 %v1395
    %1478 = vmatpush.bf16.msra.mxu0 %v1391
    %1479 = vmatpush.bf16.msra.mxu0 %v1387
    %1480 = vmatpush.bf16.msra.mxu0 %v1383
    %1481 = vmatpush.bf16.msra.mxu0 %v1379
    %1482 = vmatpush.bf16.msra.mxu0 %v1375
    %1483 = vmatmul.bf16.gmra.mxu0 %v1208
    %v1484 = vpop.f32.mrf.mxu0
    %v1485 = vadd.f32 0.0, %v1484
    %v1486 = vpop.f32.mrf.mxu0
    %1487 = vdwg.mxu0
    %v1488 = vadd.f32 %v1240, %v1446
    %v1489 = vadd.f32 %v1241, %v1459
    %v1490 = vadd.f32 %v1242, %v1472
    %v1491 = vadd.f32 %v1243, %v1485
    %v1492 = vxor.u32 %v1488, 2147483648
    %v1493 = vmul.f32 %v1492, 1.442695
    %v1494 = vpow.pop %v1493
    %v1495 = vadd.f32 %v1494, 1.0
    %v1496 = vrcp.pop %v1495
    %v1497 = vmul.f32 %v1495, %v1496
    %v1498 = vsub.f32 1.0, %v1497
    %v1499 = vmul.f32 %v1496, %v1498
    %v1500 = vadd.f32 %v1496, %v1499
    %vm1501 = vweird.f32 %v1495
    %vm1502 = vweird.f32 %v1496
    %vm1503 = vmor %vm1501, %vm1502
    %v1504 = vsel %vm1503, %v1496, %v1500
    %v1505 = vand.u32 2147483647, %v1495
    %vm1506 = vcmp.eq.f32.partialorder %v1505, 8.507059e+37
    %v1507 = vand.u32 %v1495, 2147483648
    %v1508 = vor.u32 1.1754944e-38, %v1507
    %v1509 = vsel %vm1506, %v1508, %v1504
    %v1510 = vmul.f32 1.0, %v1509
    %v1511 = vxor.u32 %v1489, 2147483648
    %v1512 = vmul.f32 %v1511, 1.442695
    %v1513 = vpow.pop %v1512
    %v1514 = vadd.f32 %v1513, 1.0
    %v1515 = vrcp.pop %v1514
    %v1516 = vmul.f32 %v1514, %v1515
    %v1517 = vsub.f32 1.0, %v1516
    %v1518 = vmul.f32 %v1515, %v1517
    %v1519 = vadd.f32 %v1515, %v1518
    %vm1520 = vweird.f32 %v1514
    %vm1521 = vweird.f32 %v1515
    %vm1522 = vmor %vm1520, %vm1521
    %v1523 = vsel %vm1522, %v1515, %v1519
    %v1524 = vand.u32 2147483647, %v1514
    %vm1525 = vcmp.eq.f32.partialorder %v1524, 8.507059e+37
    %v1526 = vand.u32 %v1514, 2147483648
    %v1527 = vor.u32 1.1754944e-38, %v1526
    %v1528 = vsel %vm1525, %v1527, %v1523
    %v1529 = vmul.f32 1.0, %v1528
    %v1530 = vtanh.pop %v1490
    %v1531 = vxor.u32 %v1491, 2147483648
    %v1532 = vmul.f32 %v1531, 1.442695
    %v1533 = vpow.pop %v1532
    %v1534 = vadd.f32 %v1533, 1.0
    %v1535 = vrcp.pop %v1534
    %v1536 = vmul.f32 %v1534, %v1535
    %v1537 = vsub.f32 1.0, %v1536
    %v1538 = vmul.f32 %v1535, %v1537
    %v1539 = vadd.f32 %v1535, %v1538
    %vm1540 = vweird.f32 %v1534
    %vm1541 = vweird.f32 %v1535
    %vm1542 = vmor %vm1540, %vm1541
    %v1543 = vsel %vm1542, %v1535, %v1539
    %v1544 = vand.u32 2147483647, %v1534
    %vm1545 = vcmp.eq.f32.partialorder %v1544, 8.507059e+37
    %v1546 = vand.u32 %v1534, 2147483648
    %v1547 = vor.u32 1.1754944e-38, %v1546
    %v1548 = vsel %vm1545, %v1547, %v1543
    %v1549 = vmul.f32 1.0, %v1548
    %v1550 = vmul.f32 %v1529, %v890
    %v1551 = vmul.f32 %v1510, %v1530
    %v1552 = vadd.f32 %v1550, %v1551
    %v1553 = vtanh.pop %v1552
    %v1554 = vmul.f32 %v1549, %v1553
    %v1555 = vunpack.c.l.bf16 %v1238
    %v1556 = vunpack.c.h.bf16 %v1238
    %v1557 = vunpack.c.l.bf16 %v1239
    %v1558 = vunpack.c.h.bf16 %v1239
    %v1559 = vld [vmem:[#allocation12] sm:$0xff]
    %v1560 = vld [vmem:[#allocation12 + $0x8] sm:$0xff]
    %v1561 = vld [vmem:[#allocation12 + $0x10] sm:$0xff]
    %v1562 = vld [vmem:[#allocation12 + $0x18] sm:$0xff]
    %v1563 = vld [vmem:[#allocation12 + $0x20] sm:$0xff]
    %v1564 = vld [vmem:[#allocation12 + $0x28] sm:$0xff]
    %v1565 = vld [vmem:[#allocation12 + $0x30] sm:$0xff]
    %v1566 = vld [vmem:[#allocation12 + $0x38] sm:$0xff]
    %v1567 = vld [vmem:[#allocation12 + $0x40] sm:$0xff]
    %v1568 = vld [vmem:[#allocation12 + $0x48] sm:$0xff]
    %v1569 = vld [vmem:[#allocation12 + $0x50] sm:$0xff]
    %v1570 = vld [vmem:[#allocation12 + $0x58] sm:$0xff]
    %v1571 = vld [vmem:[#allocation12 + $0x60] sm:$0xff]
    %v1572 = vld [vmem:[#allocation12 + $0x68] sm:$0xff]
    %v1573 = vld [vmem:[#allocation12 + $0x70] sm:$0xff]
    %v1574 = vld [vmem:[#allocation12 + $0x78] sm:$0xff]
    %v1575 = vld [vmem:[#allocation12 + $0x80] sm:$0xff]
    %v1576 = vld [vmem:[#allocation12 + $0x88] sm:$0xff]
    %v1577 = vld [vmem:[#allocation12 + $0x90] sm:$0xff]
    %v1578 = vld [vmem:[#allocation12 + $0x98] sm:$0xff]
    %v1579 = vld [vmem:[#allocation12 + $0xa0] sm:$0xff]
    %v1580 = vld [vmem:[#allocation12 + $0xa8] sm:$0xff]
    %v1581 = vld [vmem:[#allocation12 + $0xb0] sm:$0xff]
    %v1582 = vld [vmem:[#allocation12 + $0xb8] sm:$0xff]
    %v1583 = vld [vmem:[#allocation12 + $0xc0] sm:$0xff]
    %v1584 = vld [vmem:[#allocation12 + $0xc8] sm:$0xff]
    %v1585 = vld [vmem:[#allocation12 + $0xd0] sm:$0xff]
    %v1586 = vld [vmem:[#allocation12 + $0xd8] sm:$0xff]
    %v1587 = vld [vmem:[#allocation12 + $0xe0] sm:$0xff]
    %v1588 = vld [vmem:[#allocation12 + $0xe8] sm:$0xff]
    %v1589 = vld [vmem:[#allocation12 + $0xf0] sm:$0xff]
    %v1590 = vld [vmem:[#allocation12 + $0xf8] sm:$0xff]
    %v1623 = vunpack.c.l.b16 %v1559
    %v1624 = vunpack.c.h.b16 %v1559
    %v1625 = vunpack.c.l.b16 %v1560
    %v1626 = vunpack.c.h.b16 %v1560
    %v1627 = vunpack.c.l.b16 %v1561
    %v1628 = vunpack.c.h.b16 %v1561
    %v1629 = vunpack.c.l.b16 %v1562
    %v1630 = vunpack.c.h.b16 %v1562
    %v1631 = vunpack.c.l.b16 %v1563
    %v1632 = vunpack.c.h.b16 %v1563
    %v1633 = vunpack.c.l.b16 %v1564
    %v1634 = vunpack.c.h.b16 %v1564
    %v1635 = vunpack.c.l.b16 %v1565
    %v1636 = vunpack.c.h.b16 %v1565
    %v1637 = vunpack.c.l.b16 %v1566
    %v1638 = vunpack.c.h.b16 %v1566
    %v1639 = vunpack.c.l.b16 %v1567
    %v1640 = vunpack.c.h.b16 %v1567
    %v1641 = vunpack.c.l.b16 %v1568
    %v1642 = vunpack.c.h.b16 %v1568
    %v1643 = vunpack.c.l.b16 %v1569
    %v1644 = vunpack.c.h.b16 %v1569
    %v1645 = vunpack.c.l.b16 %v1570
    %v1646 = vunpack.c.h.b16 %v1570
    %v1647 = vunpack.c.l.b16 %v1571
    %v1648 = vunpack.c.h.b16 %v1571
    %v1649 = vunpack.c.l.b16 %v1572
    %v1650 = vunpack.c.h.b16 %v1572
    %v1651 = vunpack.c.l.b16 %v1573
    %v1652 = vunpack.c.h.b16 %v1573
    %v1653 = vunpack.c.l.b16 %v1574
    %v1654 = vunpack.c.h.b16 %v1574
    %v1655 = vunpack.c.l.b16 %v1575
    %v1656 = vunpack.c.h.b16 %v1575
    %v1657 = vunpack.c.l.b16 %v1576
    %v1658 = vunpack.c.h.b16 %v1576
    %v1659 = vunpack.c.l.b16 %v1577
    %v1660 = vunpack.c.h.b16 %v1577
    %v1661 = vunpack.c.l.b16 %v1578
    %v1662 = vunpack.c.h.b16 %v1578
    %v1663 = vunpack.c.l.b16 %v1579
    %v1664 = vunpack.c.h.b16 %v1579
    %v1665 = vunpack.c.l.b16 %v1580
    %v1666 = vunpack.c.h.b16 %v1580
    %v1667 = vunpack.c.l.b16 %v1581
    %v1668 = vunpack.c.h.b16 %v1581
    %v1669 = vunpack.c.l.b16 %v1582
    %v1670 = vunpack.c.h.b16 %v1582
    %v1671 = vunpack.c.l.b16 %v1583
    %v1672 = vunpack.c.h.b16 %v1583
    %v1673 = vunpack.c.l.b16 %v1584
    %v1674 = vunpack.c.h.b16 %v1584
    %v1675 = vunpack.c.l.b16 %v1585
    %v1676 = vunpack.c.h.b16 %v1585
    %v1677 = vunpack.c.l.b16 %v1586
    %v1678 = vunpack.c.h.b16 %v1586
    %v1679 = vunpack.c.l.b16 %v1587
    %v1680 = vunpack.c.h.b16 %v1587
    %v1681 = vunpack.c.l.b16 %v1588
    %v1682 = vunpack.c.h.b16 %v1588
    %v1683 = vunpack.c.l.b16 %v1589
    %v1684 = vunpack.c.h.b16 %v1589
    %v1685 = vunpack.c.l.b16 %v1590
    %v1686 = vunpack.c.h.b16 %v1590
    %v1687 = vpack.c.b16 %v1627, %v1623
    %v1688 = vpack.c.b16 %v1628, %v1624
    %v1689 = vpack.c.b16 %v1629, %v1625
    %v1690 = vpack.c.b16 %v1630, %v1626
    %v1691 = vpack.c.b16 %v1635, %v1631
    %v1692 = vpack.c.b16 %v1636, %v1632
    %v1693 = vpack.c.b16 %v1637, %v1633
    %v1694 = vpack.c.b16 %v1638, %v1634
    %v1695 = vpack.c.b16 %v1643, %v1639
    %v1696 = vpack.c.b16 %v1644, %v1640
    %v1697 = vpack.c.b16 %v1645, %v1641
    %v1698 = vpack.c.b16 %v1646, %v1642
    %v1699 = vpack.c.b16 %v1651, %v1647
    %v1700 = vpack.c.b16 %v1652, %v1648
    %v1701 = vpack.c.b16 %v1653, %v1649
    %v1702 = vpack.c.b16 %v1654, %v1650
    %v1703 = vpack.c.b16 %v1659, %v1655
    %v1704 = vpack.c.b16 %v1660, %v1656
    %v1705 = vpack.c.b16 %v1661, %v1657
    %v1706 = vpack.c.b16 %v1662, %v1658
    %v1707 = vpack.c.b16 %v1667, %v1663
    %v1708 = vpack.c.b16 %v1668, %v1664
    %v1709 = vpack.c.b16 %v1669, %v1665
    %v1710 = vpack.c.b16 %v1670, %v1666
    %v1711 = vpack.c.b16 %v1675, %v1671
    %v1712 = vpack.c.b16 %v1676, %v1672
    %v1713 = vpack.c.b16 %v1677, %v1673
    %v1714 = vpack.c.b16 %v1678, %v1674
    %v1715 = vpack.c.b16 %v1683, %v1679
    %v1716 = vpack.c.b16 %v1684, %v1680
    %v1717 = vpack.c.b16 %v1685, %v1681
    %v1718 = vpack.c.b16 %v1686, %v1682
    %1751 = vmatpush.bf16.msra.mxu0 %v1715
    %1752 = vmatpush.bf16.msra.mxu0 %v1711
    %1753 = vmatpush.bf16.msra.mxu0 %v1707
    %1754 = vmatpush.bf16.msra.mxu0 %v1703
    %1755 = vmatpush.bf16.msra.mxu0 %v1699
    %1756 = vmatpush.bf16.msra.mxu0 %v1695
    %1757 = vmatpush.bf16.msra.mxu0 %v1691
    %1758 = vmatpush.bf16.msra.mxu0 %v1687
    %1759 = vmatmul.bf16.gmra.mxu0 %v1210
    %v1760 = vpop.f32.mrf.mxu0
    %v1761 = vadd.f32 0.0, %v1760
    %v1762 = vpop.f32.mrf.mxu0
    %1763 = vdwg.mxu0
    %1764 = vmatpush.bf16.msra.mxu0 %v1716
    %1765 = vmatpush.bf16.msra.mxu0 %v1712
    %1766 = vmatpush.bf16.msra.mxu0 %v1708
    %1767 = vmatpush.bf16.msra.mxu0 %v1704
    %1768 = vmatpush.bf16.msra.mxu0 %v1700
    %1769 = vmatpush.bf16.msra.mxu0 %v1696
    %1770 = vmatpush.bf16.msra.mxu0 %v1692
    %1771 = vmatpush.bf16.msra.mxu0 %v1688
    %1772 = vmatmul.bf16.gmra.mxu0 %v1210
    %v1773 = vpop.f32.mrf.mxu0
    %v1774 = vadd.f32 0.0, %v1773
    %v1775 = vpop.f32.mrf.mxu0
    %1776 = vdwg.mxu0
    %1777 = vmatpush.bf16.msra.mxu0 %v1717
    %1778 = vmatpush.bf16.msra.mxu0 %v1713
    %1779 = vmatpush.bf16.msra.mxu0 %v1709
    %1780 = vmatpush.bf16.msra.mxu0 %v1705
    %1781 = vmatpush.bf16.msra.mxu0 %v1701
    %1782 = vmatpush.bf16.msra.mxu0 %v1697
    %1783 = vmatpush.bf16.msra.mxu0 %v1693
    %1784 = vmatpush.bf16.msra.mxu0 %v1689
    %1785 = vmatmul.bf16.gmra.mxu0 %v1210
    %v1786 = vpop.f32.mrf.mxu0
    %v1787 = vadd.f32 0.0, %v1786
    %v1788 = vpop.f32.mrf.mxu0
    %1789 = vdwg.mxu0
    %1790 = vmatpush.bf16.msra.mxu0 %v1718
    %1791 = vmatpush.bf16.msra.mxu0 %v1714
    %1792 = vmatpush.bf16.msra.mxu0 %v1710
    %1793 = vmatpush.bf16.msra.mxu0 %v1706
    %1794 = vmatpush.bf16.msra.mxu0 %v1702
    %1795 = vmatpush.bf16.msra.mxu0 %v1698
    %1796 = vmatpush.bf16.msra.mxu0 %v1694
    %1797 = vmatpush.bf16.msra.mxu0 %v1690
    %1798 = vmatmul.bf16.gmra.mxu0 %v1210
    %v1799 = vpop.f32.mrf.mxu0
    %v1800 = vadd.f32 0.0, %v1799
    %v1801 = vpop.f32.mrf.mxu0
    %1802 = vdwg.mxu0
    %v1803 = vadd.f32 %v1555, %v1761
    %v1804 = vadd.f32 %v1556, %v1774
    %v1805 = vadd.f32 %v1557, %v1787
    %v1806 = vadd.f32 %v1558, %v1800
    %v1807 = vxor.u32 %v1803, 2147483648
    %v1808 = vmul.f32 %v1807, 1.442695
    %v1809 = vpow.pop %v1808
    %v1810 = vadd.f32 %v1809, 1.0
    %v1811 = vrcp.pop %v1810
    %v1812 = vmul.f32 %v1810, %v1811
    %v1813 = vsub.f32 1.0, %v1812
    %v1814 = vmul.f32 %v1811, %v1813
    %v1815 = vadd.f32 %v1811, %v1814
    %vm1816 = vweird.f32 %v1810
    %vm1817 = vweird.f32 %v1811
    %vm1818 = vmor %vm1816, %vm1817
    %v1819 = vsel %vm1818, %v1811, %v1815
    %v1820 = vand.u32 2147483647, %v1810
    %vm1821 = vcmp.eq.f32.partialorder %v1820, 8.507059e+37
    %v1822 = vand.u32 %v1810, 2147483648
    %v1823 = vor.u32 1.1754944e-38, %v1822
    %v1824 = vsel %vm1821, %v1823, %v1819
    %v1825 = vmul.f32 1.0, %v1824
    %v1826 = vxor.u32 %v1804, 2147483648
    %v1827 = vmul.f32 %v1826, 1.442695
    %v1828 = vpow.pop %v1827
    %v1829 = vadd.f32 %v1828, 1.0
    %v1830 = vrcp.pop %v1829
    %v1831 = vmul.f32 %v1829, %v1830
    %v1832 = vsub.f32 1.0, %v1831
    %v1833 = vmul.f32 %v1830, %v1832
    %v1834 = vadd.f32 %v1830, %v1833
    %vm1835 = vweird.f32 %v1829
    %vm1836 = vweird.f32 %v1830
    %vm1837 = vmor %vm1835, %vm1836
    %v1838 = vsel %vm1837, %v1830, %v1834
    %v1839 = vand.u32 2147483647, %v1829
    %vm1840 = vcmp.eq.f32.partialorder %v1839, 8.507059e+37
    %v1841 = vand.u32 %v1829, 2147483648
    %v1842 = vor.u32 1.1754944e-38, %v1841
    %v1843 = vsel %vm1840, %v1842, %v1838
    %v1844 = vmul.f32 1.0, %v1843
    %v1845 = vtanh.pop %v1805
    %v1846 = vxor.u32 %v1806, 2147483648
    %v1847 = vmul.f32 %v1846, 1.442695
    %v1848 = vpow.pop %v1847
    %v1849 = vadd.f32 %v1848, 1.0
    %v1850 = vrcp.pop %v1849
    %v1851 = vmul.f32 %v1849, %v1850
    %v1852 = vsub.f32 1.0, %v1851
    %v1853 = vmul.f32 %v1850, %v1852
    %v1854 = vadd.f32 %v1850, %v1853
    %vm1855 = vweird.f32 %v1849
    %vm1856 = vweird.f32 %v1850
    %vm1857 = vmor %vm1855, %vm1856
    %v1858 = vsel %vm1857, %v1850, %v1854
    %v1859 = vand.u32 2147483647, %v1849
    %vm1860 = vcmp.eq.f32.partialorder %v1859, 8.507059e+37
    %v1861 = vand.u32 %v1849, 2147483648
    %v1862 = vor.u32 1.1754944e-38, %v1861
    %v1863 = vsel %vm1860, %v1862, %v1858
    %v1864 = vmul.f32 1.0, %v1863
    %v1865 = vmul.f32 %v1844, %v1205
    %v1866 = vmul.f32 %v1825, %v1845
    %v1867 = vadd.f32 %v1865, %v1866
    %v1868 = vtanh.pop %v1867
    %v1869 = vmul.f32 %v1864, %v1868
    %v1870 = vpack.c.bf16 %v1554, %v1554
    %s1871 = scalar_lea.vmem [#allocation3], 4
    %1872 = vst [vmem:[%s1871] sm:$0xf] %v1870
    %v1873 = vpack.c.bf16 %v1869, %v1869
    %s1874 = scalar_lea.vmem [#allocation4], 24
    %1875 = vst [vmem:[%s1874] sm:$0xf] %v1873
    %v1876 = vmul.f32 %v1554, %v1214
    %1877 = vadd.xlane.f32.xlu0 %v1876
    %v1878 = vpop.xlane.xlu0 %1877
    %v1880 = vperm.slane %v1878, %v1221
    %1882 = vst.msk [vmem:[#allocation5 + $0x1] sm:$0x1] %vm1224, %v1880
    %v1883 = vmul.f32 %v1869, %v1227
    %1884 = vadd.xlane.f32.xlu0 %v1883
    %v1885 = vpop.xlane.xlu0 %1884
    %v1887 = vperm.slane %v1885, %v1221
    %1889 = vst.msk [vmem:[#allocation6 + $0x6] sm:$0x1] %vm1224, %v1887
    %v1890 = vld [vmem:[#allocation2 + $0x40] sm:$0xff]
    %v1891 = vld [vmem:[#allocation2 + $0x48] sm:$0xff]
    %v1892 = vld [vmem:[#allocation2 + $0xb0] sm:$0xff]
    %v1893 = vld [vmem:[#allocation2 + $0xb8] sm:$0xff]
    %v1894 = vunpack.c.l.bf16 %v1890
    %v1895 = vunpack.c.h.bf16 %v1890
    %v1896 = vunpack.c.l.bf16 %v1891
    %v1897 = vunpack.c.h.bf16 %v1891
    %v1898 = vld [vmem:[#allocation10] sm:$0xff]
    %v1899 = vld [vmem:[#allocation10 + $0x8] sm:$0xff]
    %v1900 = vld [vmem:[#allocation10 + $0x10] sm:$0xff]
    %v1901 = vld [vmem:[#allocation10 + $0x18] sm:$0xff]
    %v1902 = vld [vmem:[#allocation10 + $0x20] sm:$0xff]
    %v1903 = vld [vmem:[#allocation10 + $0x28] sm:$0xff]
    %v1904 = vld [vmem:[#allocation10 + $0x30] sm:$0xff]
    %v1905 = vld [vmem:[#allocation10 + $0x38] sm:$0xff]
    %v1906 = vld [vmem:[#allocation10 + $0x40] sm:$0xff]
    %v1907 = vld [vmem:[#allocation10 + $0x48] sm:$0xff]
    %v1908 = vld [vmem:[#allocation10 + $0x50] sm:$0xff]
    %v1909 = vld [vmem:[#allocation10 + $0x58] sm:$0xff]
    %v1910 = vld [vmem:[#allocation10 + $0x60] sm:$0xff]
    %v1911 = vld [vmem:[#allocation10 + $0x68] sm:$0xff]
    %v1912 = vld [vmem:[#allocation10 + $0x70] sm:$0xff]
    %v1913 = vld [vmem:[#allocation10 + $0x78] sm:$0xff]
    %v1914 = vld [vmem:[#allocation10 + $0x80] sm:$0xff]
    %v1915 = vld [vmem:[#allocation10 + $0x88] sm:$0xff]
    %v1916 = vld [vmem:[#allocation10 + $0x90] sm:$0xff]
    %v1917 = vld [vmem:[#allocation10 + $0x98] sm:$0xff]
    %v1918 = vld [vmem:[#allocation10 + $0xa0] sm:$0xff]
    %v1919 = vld [vmem:[#allocation10 + $0xa8] sm:$0xff]
    %v1920 = vld [vmem:[#allocation10 + $0xb0] sm:$0xff]
    %v1921 = vld [vmem:[#allocation10 + $0xb8] sm:$0xff]
    %v1922 = vld [vmem:[#allocation10 + $0xc0] sm:$0xff]
    %v1923 = vld [vmem:[#allocation10 + $0xc8] sm:$0xff]
    %v1924 = vld [vmem:[#allocation10 + $0xd0] sm:$0xff]
    %v1925 = vld [vmem:[#allocation10 + $0xd8] sm:$0xff]
    %v1926 = vld [vmem:[#allocation10 + $0xe0] sm:$0xff]
    %v1927 = vld [vmem:[#allocation10 + $0xe8] sm:$0xff]
    %v1928 = vld [vmem:[#allocation10 + $0xf0] sm:$0xff]
    %v1929 = vld [vmem:[#allocation10 + $0xf8] sm:$0xff]
    %v1962 = vunpack.c.l.b16 %v1898
    %v1963 = vunpack.c.h.b16 %v1898
    %v1964 = vunpack.c.l.b16 %v1899
    %v1965 = vunpack.c.h.b16 %v1899
    %v1966 = vunpack.c.l.b16 %v1900
    %v1967 = vunpack.c.h.b16 %v1900
    %v1968 = vunpack.c.l.b16 %v1901
    %v1969 = vunpack.c.h.b16 %v1901
    %v1970 = vunpack.c.l.b16 %v1902
    %v1971 = vunpack.c.h.b16 %v1902
    %v1972 = vunpack.c.l.b16 %v1903
    %v1973 = vunpack.c.h.b16 %v1903
    %v1974 = vunpack.c.l.b16 %v1904
    %v1975 = vunpack.c.h.b16 %v1904
    %v1976 = vunpack.c.l.b16 %v1905
    %v1977 = vunpack.c.h.b16 %v1905
    %v1978 = vunpack.c.l.b16 %v1906
    %v1979 = vunpack.c.h.b16 %v1906
    %v1980 = vunpack.c.l.b16 %v1907
    %v1981 = vunpack.c.h.b16 %v1907
    %v1982 = vunpack.c.l.b16 %v1908
    %v1983 = vunpack.c.h.b16 %v1908
    %v1984 = vunpack.c.l.b16 %v1909
    %v1985 = vunpack.c.h.b16 %v1909
    %v1986 = vunpack.c.l.b16 %v1910
    %v1987 = vunpack.c.h.b16 %v1910
    %v1988 = vunpack.c.l.b16 %v1911
    %v1989 = vunpack.c.h.b16 %v1911
    %v1990 = vunpack.c.l.b16 %v1912
    %v1991 = vunpack.c.h.b16 %v1912
    %v1992 = vunpack.c.l.b16 %v1913
    %v1993 = vunpack.c.h.b16 %v1913
    %v1994 = vunpack.c.l.b16 %v1914
    %v1995 = vunpack.c.h.b16 %v1914
    %v1996 = vunpack.c.l.b16 %v1915
    %v1997 = vunpack.c.h.b16 %v1915
    %v1998 = vunpack.c.l.b16 %v1916
    %v1999 = vunpack.c.h.b16 %v1916
    %v2000 = vunpack.c.l.b16 %v1917
    %v2001 = vunpack.c.h.b16 %v1917
    %v2002 = vunpack.c.l.b16 %v1918
    %v2003 = vunpack.c.h.b16 %v1918
    %v2004 = vunpack.c.l.b16 %v1919
    %v2005 = vunpack.c.h.b16 %v1919
    %v2006 = vunpack.c.l.b16 %v1920
    %v2007 = vunpack.c.h.b16 %v1920
    %v2008 = vunpack.c.l.b16 %v1921
    %v2009 = vunpack.c.h.b16 %v1921
    %v2010 = vunpack.c.l.b16 %v1922
    %v2011 = vunpack.c.h.b16 %v1922
    %v2012 = vunpack.c.l.b16 %v1923
    %v2013 = vunpack.c.h.b16 %v1923
    %v2014 = vunpack.c.l.b16 %v1924
    %v2015 = vunpack.c.h.b16 %v1924
    %v2016 = vunpack.c.l.b16 %v1925
    %v2017 = vunpack.c.h.b16 %v1925
    %v2018 = vunpack.c.l.b16 %v1926
    %v2019 = vunpack.c.h.b16 %v1926
    %v2020 = vunpack.c.l.b16 %v1927
    %v2021 = vunpack.c.h.b16 %v1927
    %v2022 = vunpack.c.l.b16 %v1928
    %v2023 = vunpack.c.h.b16 %v1928
    %v2024 = vunpack.c.l.b16 %v1929
    %v2025 = vunpack.c.h.b16 %v1929
    %v2026 = vpack.c.b16 %v1966, %v1962
    %v2027 = vpack.c.b16 %v1967, %v1963
    %v2028 = vpack.c.b16 %v1968, %v1964
    %v2029 = vpack.c.b16 %v1969, %v1965
    %v2030 = vpack.c.b16 %v1974, %v1970
    %v2031 = vpack.c.b16 %v1975, %v1971
    %v2032 = vpack.c.b16 %v1976, %v1972
    %v2033 = vpack.c.b16 %v1977, %v1973
    %v2034 = vpack.c.b16 %v1982, %v1978
    %v2035 = vpack.c.b16 %v1983, %v1979
    %v2036 = vpack.c.b16 %v1984, %v1980
    %v2037 = vpack.c.b16 %v1985, %v1981
    %v2038 = vpack.c.b16 %v1990, %v1986
    %v2039 = vpack.c.b16 %v1991, %v1987
    %v2040 = vpack.c.b16 %v1992, %v1988
    %v2041 = vpack.c.b16 %v1993, %v1989
    %v2042 = vpack.c.b16 %v1998, %v1994
    %v2043 = vpack.c.b16 %v1999, %v1995
    %v2044 = vpack.c.b16 %v2000, %v1996
    %v2045 = vpack.c.b16 %v2001, %v1997
    %v2046 = vpack.c.b16 %v2006, %v2002
    %v2047 = vpack.c.b16 %v2007, %v2003
    %v2048 = vpack.c.b16 %v2008, %v2004
    %v2049 = vpack.c.b16 %v2009, %v2005
    %v2050 = vpack.c.b16 %v2014, %v2010
    %v2051 = vpack.c.b16 %v2015, %v2011
    %v2052 = vpack.c.b16 %v2016, %v2012
    %v2053 = vpack.c.b16 %v2017, %v2013
    %v2054 = vpack.c.b16 %v2022, %v2018
    %v2055 = vpack.c.b16 %v2023, %v2019
    %v2056 = vpack.c.b16 %v2024, %v2020
    %v2057 = vpack.c.b16 %v2025, %v2021
    %2090 = vmatpush.bf16.msra.mxu0 %v2054
    %2091 = vmatpush.bf16.msra.mxu0 %v2050
    %2092 = vmatpush.bf16.msra.mxu0 %v2046
    %2093 = vmatpush.bf16.msra.mxu0 %v2042
    %2094 = vmatpush.bf16.msra.mxu0 %v2038
    %2095 = vmatpush.bf16.msra.mxu0 %v2034
    %2096 = vmatpush.bf16.msra.mxu0 %v2030
    %2097 = vmatpush.bf16.msra.mxu0 %v2026
    %2098 = vmatmul.bf16.gmra.mxu0 %v1870
    %v2099 = vpop.f32.mrf.mxu0
    %v2100 = vadd.f32 0.0, %v2099
    %v2101 = vpop.f32.mrf.mxu0
    %2102 = vdwg.mxu0
    %2103 = vmatpush.bf16.msra.mxu0 %v2055
    %2104 = vmatpush.bf16.msra.mxu0 %v2051
    %2105 = vmatpush.bf16.msra.mxu0 %v2047
    %2106 = vmatpush.bf16.msra.mxu0 %v2043
    %2107 = vmatpush.bf16.msra.mxu0 %v2039
    %2108 = vmatpush.bf16.msra.mxu0 %v2035
    %2109 = vmatpush.bf16.msra.mxu0 %v2031
    %2110 = vmatpush.bf16.msra.mxu0 %v2027
    %2111 = vmatmul.bf16.gmra.mxu0 %v1870
    %v2112 = vpop.f32.mrf.mxu0
    %v2113 = vadd.f32 0.0, %v2112
    %v2114 = vpop.f32.mrf.mxu0
    %2115 = vdwg.mxu0
    %2116 = vmatpush.bf16.msra.mxu0 %v2056
    %2117 = vmatpush.bf16.msra.mxu0 %v2052
    %2118 = vmatpush.bf16.msra.mxu0 %v2048
    %2119 = vmatpush.bf16.msra.mxu0 %v2044
    %2120 = vmatpush.bf16.msra.mxu0 %v2040
    %2121 = vmatpush.bf16.msra.mxu0 %v2036
    %2122 = vmatpush.bf16.msra.mxu0 %v2032
    %2123 = vmatpush.bf16.msra.mxu0 %v2028
    %2124 = vmatmul.bf16.gmra.mxu0 %v1870
    %v2125 = vpop.f32.mrf.mxu0
    %v2126 = vadd.f32 0.0, %v2125
    %v2127 = vpop.f32.mrf.mxu0
    %2128 = vdwg.mxu0
    %2129 = vmatpush.bf16.msra.mxu0 %v2057
    %2130 = vmatpush.bf16.msra.mxu0 %v2053
    %2131 = vmatpush.bf16.msra.mxu0 %v2049
    %2132 = vmatpush.bf16.msra.mxu0 %v2045
    %2133 = vmatpush.bf16.msra.mxu0 %v2041
    %2134 = vmatpush.bf16.msra.mxu0 %v2037
    %2135 = vmatpush.bf16.msra.mxu0 %v2033
    %2136 = vmatpush.bf16.msra.mxu0 %v2029
    %2137 = vmatmul.bf16.gmra.mxu0 %v1870
    %v2138 = vpop.f32.mrf.mxu0
    %v2139 = vadd.f32 0.0, %v2138
    %v2140 = vpop.f32.mrf.mxu0
    %2141 = vdwg.mxu0
    %v2142 = vadd.f32 %v1894, %v2100
    %v2143 = vadd.f32 %v1895, %v2113
    %v2144 = vadd.f32 %v1896, %v2126
    %v2145 = vadd.f32 %v1897, %v2139
    %v2146 = vxor.u32 %v2142, 2147483648
    %v2147 = vmul.f32 %v2146, 1.442695
    %v2148 = vpow.pop %v2147
    %v2149 = vadd.f32 %v2148, 1.0
    %v2150 = vrcp.pop %v2149
    %v2151 = vmul.f32 %v2149, %v2150
    %v2152 = vsub.f32 1.0, %v2151
    %v2153 = vmul.f32 %v2150, %v2152
    %v2154 = vadd.f32 %v2150, %v2153
    %vm2155 = vweird.f32 %v2149
    %vm2156 = vweird.f32 %v2150
    %vm2157 = vmor %vm2155, %vm2156
    %v2158 = vsel %vm2157, %v2150, %v2154
    %v2159 = vand.u32 2147483647, %v2149
    %vm2160 = vcmp.eq.f32.partialorder %v2159, 8.507059e+37
    %v2161 = vand.u32 %v2149, 2147483648
    %v2162 = vor.u32 1.1754944e-38, %v2161
    %v2163 = vsel %vm2160, %v2162, %v2158
    %v2164 = vmul.f32 1.0, %v2163
    %v2165 = vxor.u32 %v2143, 2147483648
    %v2166 = vmul.f32 %v2165, 1.442695
    %v2167 = vpow.pop %v2166
    %v2168 = vadd.f32 %v2167, 1.0
    %v2169 = vrcp.pop %v2168
    %v2170 = vmul.f32 %v2168, %v2169
    %v2171 = vsub.f32 1.0, %v2170
    %v2172 = vmul.f32 %v2169, %v2171
    %v2173 = vadd.f32 %v2169, %v2172
    %vm2174 = vweird.f32 %v2168
    %vm2175 = vweird.f32 %v2169
    %vm2176 = vmor %vm2174, %vm2175
    %v2177 = vsel %vm2176, %v2169, %v2173
    %v2178 = vand.u32 2147483647, %v2168
    %vm2179 = vcmp.eq.f32.partialorder %v2178, 8.507059e+37
    %v2180 = vand.u32 %v2168, 2147483648
    %v2181 = vor.u32 1.1754944e-38, %v2180
    %v2182 = vsel %vm2179, %v2181, %v2177
    %v2183 = vmul.f32 1.0, %v2182
    %v2184 = vtanh.pop %v2144
    %v2185 = vxor.u32 %v2145, 2147483648
    %v2186 = vmul.f32 %v2185, 1.442695
    %v2187 = vpow.pop %v2186
    %v2188 = vadd.f32 %v2187, 1.0
    %v2189 = vrcp.pop %v2188
    %v2190 = vmul.f32 %v2188, %v2189
    %v2191 = vsub.f32 1.0, %v2190
    %v2192 = vmul.f32 %v2189, %v2191
    %v2193 = vadd.f32 %v2189, %v2192
    %vm2194 = vweird.f32 %v2188
    %vm2195 = vweird.f32 %v2189
    %vm2196 = vmor %vm2194, %vm2195
    %v2197 = vsel %vm2196, %v2189, %v2193
    %v2198 = vand.u32 2147483647, %v2188
    %vm2199 = vcmp.eq.f32.partialorder %v2198, 8.507059e+37
    %v2200 = vand.u32 %v2188, 2147483648
    %v2201 = vor.u32 1.1754944e-38, %v2200
    %v2202 = vsel %vm2199, %v2201, %v2197
    %v2203 = vmul.f32 1.0, %v2202
    %v2204 = vmul.f32 %v2183, %v1552
    %v2205 = vmul.f32 %v2164, %v2184
    %v2206 = vadd.f32 %v2204, %v2205
    %v2207 = vtanh.pop %v2206
    %v2208 = vmul.f32 %v2203, %v2207
    %v2209 = vunpack.c.l.bf16 %v1892
    %v2210 = vunpack.c.h.bf16 %v1892
    %v2211 = vunpack.c.l.bf16 %v1893
    %v2212 = vunpack.c.h.bf16 %v1893
    %v2213 = vld [vmem:[#allocation12] sm:$0xff]
    %v2214 = vld [vmem:[#allocation12 + $0x8] sm:$0xff]
    %v2215 = vld [vmem:[#allocation12 + $0x10] sm:$0xff]
    %v2216 = vld [vmem:[#allocation12 + $0x18] sm:$0xff]
    %v2217 = vld [vmem:[#allocation12 + $0x20] sm:$0xff]
    %v2218 = vld [vmem:[#allocation12 + $0x28] sm:$0xff]
    %v2219 = vld [vmem:[#allocation12 + $0x30] sm:$0xff]
    %v2220 = vld [vmem:[#allocation12 + $0x38] sm:$0xff]
    %v2221 = vld [vmem:[#allocation12 + $0x40] sm:$0xff]
    %v2222 = vld [vmem:[#allocation12 + $0x48] sm:$0xff]
    %v2223 = vld [vmem:[#allocation12 + $0x50] sm:$0xff]
    %v2224 = vld [vmem:[#allocation12 + $0x58] sm:$0xff]
    %v2225 = vld [vmem:[#allocation12 + $0x60] sm:$0xff]
    %v2226 = vld [vmem:[#allocation12 + $0x68] sm:$0xff]
    %v2227 = vld [vmem:[#allocation12 + $0x70] sm:$0xff]
    %v2228 = vld [vmem:[#allocation12 + $0x78] sm:$0xff]
    %v2229 = vld [vmem:[#allocation12 + $0x80] sm:$0xff]
    %v2230 = vld [vmem:[#allocation12 + $0x88] sm:$0xff]
    %v2231 = vld [vmem:[#allocation12 + $0x90] sm:$0xff]
    %v2232 = vld [vmem:[#allocation12 + $0x98] sm:$0xff]
    %v2233 = vld [vmem:[#allocation12 + $0xa0] sm:$0xff]
    %v2234 = vld [vmem:[#allocation12 + $0xa8] sm:$0xff]
    %v2235 = vld [vmem:[#allocation12 + $0xb0] sm:$0xff]
    %v2236 = vld [vmem:[#allocation12 + $0xb8] sm:$0xff]
    %v2237 = vld [vmem:[#allocation12 + $0xc0] sm:$0xff]
    %v2238 = vld [vmem:[#allocation12 + $0xc8] sm:$0xff]
    %v2239 = vld [vmem:[#allocation12 + $0xd0] sm:$0xff]
    %v2240 = vld [vmem:[#allocation12 + $0xd8] sm:$0xff]
    %v2241 = vld [vmem:[#allocation12 + $0xe0] sm:$0xff]
    %v2242 = vld [vmem:[#allocation12 + $0xe8] sm:$0xff]
    %v2243 = vld [vmem:[#allocation12 + $0xf0] sm:$0xff]
    %v2244 = vld [vmem:[#allocation12 + $0xf8] sm:$0xff]
    %v2277 = vunpack.c.l.b16 %v2213
    %v2278 = vunpack.c.h.b16 %v2213
    %v2279 = vunpack.c.l.b16 %v2214
    %v2280 = vunpack.c.h.b16 %v2214
    %v2281 = vunpack.c.l.b16 %v2215
    %v2282 = vunpack.c.h.b16 %v2215
    %v2283 = vunpack.c.l.b16 %v2216
    %v2284 = vunpack.c.h.b16 %v2216
    %v2285 = vunpack.c.l.b16 %v2217
    %v2286 = vunpack.c.h.b16 %v2217
    %v2287 = vunpack.c.l.b16 %v2218
    %v2288 = vunpack.c.h.b16 %v2218
    %v2289 = vunpack.c.l.b16 %v2219
    %v2290 = vunpack.c.h.b16 %v2219
    %v2291 = vunpack.c.l.b16 %v2220
    %v2292 = vunpack.c.h.b16 %v2220
    %v2293 = vunpack.c.l.b16 %v2221
    %v2294 = vunpack.c.h.b16 %v2221
    %v2295 = vunpack.c.l.b16 %v2222
    %v2296 = vunpack.c.h.b16 %v2222
    %v2297 = vunpack.c.l.b16 %v2223
    %v2298 = vunpack.c.h.b16 %v2223
    %v2299 = vunpack.c.l.b16 %v2224
    %v2300 = vunpack.c.h.b16 %v2224
    %v2301 = vunpack.c.l.b16 %v2225
    %v2302 = vunpack.c.h.b16 %v2225
    %v2303 = vunpack.c.l.b16 %v2226
    %v2304 = vunpack.c.h.b16 %v2226
    %v2305 = vunpack.c.l.b16 %v2227
    %v2306 = vunpack.c.h.b16 %v2227
    %v2307 = vunpack.c.l.b16 %v2228
    %v2308 = vunpack.c.h.b16 %v2228
    %v2309 = vunpack.c.l.b16 %v2229
    %v2310 = vunpack.c.h.b16 %v2229
    %v2311 = vunpack.c.l.b16 %v2230
    %v2312 = vunpack.c.h.b16 %v2230
    %v2313 = vunpack.c.l.b16 %v2231
    %v2314 = vunpack.c.h.b16 %v2231
    %v2315 = vunpack.c.l.b16 %v2232
    %v2316 = vunpack.c.h.b16 %v2232
    %v2317 = vunpack.c.l.b16 %v2233
    %v2318 = vunpack.c.h.b16 %v2233
    %v2319 = vunpack.c.l.b16 %v2234
    %v2320 = vunpack.c.h.b16 %v2234
    %v2321 = vunpack.c.l.b16 %v2235
    %v2322 = vunpack.c.h.b16 %v2235
    %v2323 = vunpack.c.l.b16 %v2236
    %v2324 = vunpack.c.h.b16 %v2236
    %v2325 = vunpack.c.l.b16 %v2237
    %v2326 = vunpack.c.h.b16 %v2237
    %v2327 = vunpack.c.l.b16 %v2238
    %v2328 = vunpack.c.h.b16 %v2238
    %v2329 = vunpack.c.l.b16 %v2239
    %v2330 = vunpack.c.h.b16 %v2239
    %v2331 = vunpack.c.l.b16 %v2240
    %v2332 = vunpack.c.h.b16 %v2240
    %v2333 = vunpack.c.l.b16 %v2241
    %v2334 = vunpack.c.h.b16 %v2241
    %v2335 = vunpack.c.l.b16 %v2242
    %v2336 = vunpack.c.h.b16 %v2242
    %v2337 = vunpack.c.l.b16 %v2243
    %v2338 = vunpack.c.h.b16 %v2243
    %v2339 = vunpack.c.l.b16 %v2244
    %v2340 = vunpack.c.h.b16 %v2244
    %v2341 = vpack.c.b16 %v2281, %v2277
    %v2342 = vpack.c.b16 %v2282, %v2278
    %v2343 = vpack.c.b16 %v2283, %v2279
    %v2344 = vpack.c.b16 %v2284, %v2280
    %v2345 = vpack.c.b16 %v2289, %v2285
    %v2346 = vpack.c.b16 %v2290, %v2286
    %v2347 = vpack.c.b16 %v2291, %v2287
    %v2348 = vpack.c.b16 %v2292, %v2288
    %v2349 = vpack.c.b16 %v2297, %v2293
    %v2350 = vpack.c.b16 %v2298, %v2294
    %v2351 = vpack.c.b16 %v2299, %v2295
    %v2352 = vpack.c.b16 %v2300, %v2296
    %v2353 = vpack.c.b16 %v2305, %v2301
    %v2354 = vpack.c.b16 %v2306, %v2302
    %v2355 = vpack.c.b16 %v2307, %v2303
    %v2356 = vpack.c.b16 %v2308, %v2304
    %v2357 = vpack.c.b16 %v2313, %v2309
    %v2358 = vpack.c.b16 %v2314, %v2310
    %v2359 = vpack.c.b16 %v2315, %v2311
    %v2360 = vpack.c.b16 %v2316, %v2312
    %v2361 = vpack.c.b16 %v2321, %v2317
    %v2362 = vpack.c.b16 %v2322, %v2318
    %v2363 = vpack.c.b16 %v2323, %v2319
    %v2364 = vpack.c.b16 %v2324, %v2320
    %v2365 = vpack.c.b16 %v2329, %v2325
    %v2366 = vpack.c.b16 %v2330, %v2326
    %v2367 = vpack.c.b16 %v2331, %v2327
    %v2368 = vpack.c.b16 %v2332, %v2328
    %v2369 = vpack.c.b16 %v2337, %v2333
    %v2370 = vpack.c.b16 %v2338, %v2334
    %v2371 = vpack.c.b16 %v2339, %v2335
    %v2372 = vpack.c.b16 %v2340, %v2336
    %2405 = vmatpush.bf16.msra.mxu0 %v2369
    %2406 = vmatpush.bf16.msra.mxu0 %v2365
    %2407 = vmatpush.bf16.msra.mxu0 %v2361
    %2408 = vmatpush.bf16.msra.mxu0 %v2357
    %2409 = vmatpush.bf16.msra.mxu0 %v2353
    %2410 = vmatpush.bf16.msra.mxu0 %v2349
    %2411 = vmatpush.bf16.msra.mxu0 %v2345
    %2412 = vmatpush.bf16.msra.mxu0 %v2341
    %2413 = vmatmul.bf16.gmra.mxu0 %v1873
    %v2414 = vpop.f32.mrf.mxu0
    %v2415 = vadd.f32 0.0, %v2414
    %v2416 = vpop.f32.mrf.mxu0
    %2417 = vdwg.mxu0
    %2418 = vmatpush.bf16.msra.mxu0 %v2370
    %2419 = vmatpush.bf16.msra.mxu0 %v2366
    %2420 = vmatpush.bf16.msra.mxu0 %v2362
    %2421 = vmatpush.bf16.msra.mxu0 %v2358
    %2422 = vmatpush.bf16.msra.mxu0 %v2354
    %2423 = vmatpush.bf16.msra.mxu0 %v2350
    %2424 = vmatpush.bf16.msra.mxu0 %v2346
    %2425 = vmatpush.bf16.msra.mxu0 %v2342
    %2426 = vmatmul.bf16.gmra.mxu0 %v1873
    %v2427 = vpop.f32.mrf.mxu0
    %v2428 = vadd.f32 0.0, %v2427
    %v2429 = vpop.f32.mrf.mxu0
    %2430 = vdwg.mxu0
    %2431 = vmatpush.bf16.msra.mxu0 %v2371
    %2432 = vmatpush.bf16.msra.mxu0 %v2367
    %2433 = vmatpush.bf16.msra.mxu0 %v2363
    %2434 = vmatpush.bf16.msra.mxu0 %v2359
    %2435 = vmatpush.bf16.msra.mxu0 %v2355
    %2436 = vmatpush.bf16.msra.mxu0 %v2351
    %2437 = vmatpush.bf16.msra.mxu0 %v2347
    %2438 = vmatpush.bf16.msra.mxu0 %v2343
    %2439 = vmatmul.bf16.gmra.mxu0 %v1873
    %v2440 = vpop.f32.mrf.mxu0
    %v2441 = vadd.f32 0.0, %v2440
    %v2442 = vpop.f32.mrf.mxu0
    %2443 = vdwg.mxu0
    %2444 = vmatpush.bf16.msra.mxu0 %v2372
    %2445 = vmatpush.bf16.msra.mxu0 %v2368
    %2446 = vmatpush.bf16.msra.mxu0 %v2364
    %2447 = vmatpush.bf16.msra.mxu0 %v2360
    %2448 = vmatpush.bf16.msra.mxu0 %v2356
    %2449 = vmatpush.bf16.msra.mxu0 %v2352
    %2450 = vmatpush.bf16.msra.mxu0 %v2348
    %2451 = vmatpush.bf16.msra.mxu0 %v2344
    %2452 = vmatmul.bf16.gmra.mxu0 %v1873
    %v2453 = vpop.f32.mrf.mxu0
    %v2454 = vadd.f32 0.0, %v2453
    %v2455 = vpop.f32.mrf.mxu0
    %2456 = vdwg.mxu0
    %v2457 = vadd.f32 %v2209, %v2415
    %v2458 = vadd.f32 %v2210, %v2428
    %v2459 = vadd.f32 %v2211, %v2441
    %v2460 = vadd.f32 %v2212, %v2454
    %v2461 = vxor.u32 %v2457, 2147483648
    %v2462 = vmul.f32 %v2461, 1.442695
    %v2463 = vpow.pop %v2462
    %v2464 = vadd.f32 %v2463, 1.0
    %v2465 = vrcp.pop %v2464
    %v2466 = vmul.f32 %v2464, %v2465
    %v2467 = vsub.f32 1.0, %v2466
    %v2468 = vmul.f32 %v2465, %v2467
    %v2469 = vadd.f32 %v2465, %v2468
    %vm2470 = vweird.f32 %v2464
    %vm2471 = vweird.f32 %v2465
    %vm2472 = vmor %vm2470, %vm2471
    %v2473 = vsel %vm2472, %v2465, %v2469
    %v2474 = vand.u32 2147483647, %v2464
    %vm2475 = vcmp.eq.f32.partialorder %v2474, 8.507059e+37
    %v2476 = vand.u32 %v2464, 2147483648
    %v2477 = vor.u32 1.1754944e-38, %v2476
    %v2478 = vsel %vm2475, %v2477, %v2473
    %v2479 = vmul.f32 1.0, %v2478
    %v2480 = vxor.u32 %v2458, 2147483648
    %v2481 = vmul.f32 %v2480, 1.442695
    %v2482 = vpow.pop %v2481
    %v2483 = vadd.f32 %v2482, 1.0
    %v2484 = vrcp.pop %v2483
    %v2485 = vmul.f32 %v2483, %v2484
    %v2486 = vsub.f32 1.0, %v2485
    %v2487 = vmul.f32 %v2484, %v2486
    %v2488 = vadd.f32 %v2484, %v2487
    %vm2489 = vweird.f32 %v2483
    %vm2490 = vweird.f32 %v2484
    %vm2491 = vmor %vm2489, %vm2490
    %v2492 = vsel %vm2491, %v2484, %v2488
    %v2493 = vand.u32 2147483647, %v2483
    %vm2494 = vcmp.eq.f32.partialorder %v2493, 8.507059e+37
    %v2495 = vand.u32 %v2483, 2147483648
    %v2496 = vor.u32 1.1754944e-38, %v2495
    %v2497 = vsel %vm2494, %v2496, %v2492
    %v2498 = vmul.f32 1.0, %v2497
    %v2499 = vtanh.pop %v2459
    %v2500 = vxor.u32 %v2460, 2147483648
    %v2501 = vmul.f32 %v2500, 1.442695
    %v2502 = vpow.pop %v2501
    %v2503 = vadd.f32 %v2502, 1.0
    %v2504 = vrcp.pop %v2503
    %v2505 = vmul.f32 %v2503, %v2504
    %v2506 = vsub.f32 1.0, %v2505
    %v2507 = vmul.f32 %v2504, %v2506
    %v2508 = vadd.f32 %v2504, %v2507
    %vm2509 = vweird.f32 %v2503
    %vm2510 = vweird.f32 %v2504
    %vm2511 = vmor %vm2509, %vm2510
    %v2512 = vsel %vm2511, %v2504, %v2508
    %v2513 = vand.u32 2147483647, %v2503
    %vm2514 = vcmp.eq.f32.partialorder %v2513, 8.507059e+37
    %v2515 = vand.u32 %v2503, 2147483648
    %v2516 = vor.u32 1.1754944e-38, %v2515
    %v2517 = vsel %vm2514, %v2516, %v2512
    %v2518 = vmul.f32 1.0, %v2517
    %v2519 = vmul.f32 %v2498, %v1867
    %v2520 = vmul.f32 %v2479, %v2499
    %v2521 = vadd.f32 %v2519, %v2520
    %v2522 = vtanh.pop %v2521
    %v2523 = vmul.f32 %v2518, %v2522
    %v2524 = vpack.c.bf16 %v2208, %v2208
    %s2525 = scalar_lea.vmem [#allocation3], 8
    %2526 = vst [vmem:[%s2525] sm:$0xf] %v2524
    %v2527 = vpack.c.bf16 %v2523, %v2523
    %s2528 = scalar_lea.vmem [#allocation4], 20
    %2529 = vst [vmem:[%s2528] sm:$0xf] %v2527
    %v2530 = vmul.f32 %v2208, %v1214
    %2531 = vadd.xlane.f32.xlu0 %v2530
    %v2532 = vpop.xlane.xlu0 %2531
    %v2534 = vperm.slane %v2532, %v1221
    %2536 = vst.msk [vmem:[#allocation5 + $0x2] sm:$0x1] %vm1224, %v2534
    %v2537 = vmul.f32 %v2523, %v1227
    %2538 = vadd.xlane.f32.xlu0 %v2537
    %v2539 = vpop.xlane.xlu0 %2538
    %v2541 = vperm.slane %v2539, %v1221
    %2543 = vst.msk [vmem:[#allocation6 + $0x5] sm:$0x1] %vm1224, %v2541
    %v2544 = vld [vmem:[#allocation2 + $0x60] sm:$0xff]
    %v2545 = vld [vmem:[#allocation2 + $0x68] sm:$0xff]
    %v2546 = vld [vmem:[#allocation2 + $0x90] sm:$0xff]
    %v2547 = vld [vmem:[#allocation2 + $0x98] sm:$0xff]
    %v2548 = vunpack.c.l.bf16 %v2544
    %v2549 = vunpack.c.h.bf16 %v2544
    %v2550 = vunpack.c.l.bf16 %v2545
    %v2551 = vunpack.c.h.bf16 %v2545
    %v2552 = vld [vmem:[#allocation10] sm:$0xff]
    %v2553 = vld [vmem:[#allocation10 + $0x8] sm:$0xff]
    %v2554 = vld [vmem:[#allocation10 + $0x10] sm:$0xff]
    %v2555 = vld [vmem:[#allocation10 + $0x18] sm:$0xff]
    %v2556 = vld [vmem:[#allocation10 + $0x20] sm:$0xff]
    %v2557 = vld [vmem:[#allocation10 + $0x28] sm:$0xff]
    %v2558 = vld [vmem:[#allocation10 + $0x30] sm:$0xff]
    %v2559 = vld [vmem:[#allocation10 + $0x38] sm:$0xff]
    %v2560 = vld [vmem:[#allocation10 + $0x40] sm:$0xff]
    %v2561 = vld [vmem:[#allocation10 + $0x48] sm:$0xff]
    %v2562 = vld [vmem:[#allocation10 + $0x50] sm:$0xff]
    %v2563 = vld [vmem:[#allocation10 + $0x58] sm:$0xff]
    %v2564 = vld [vmem:[#allocation10 + $0x60] sm:$0xff]
    %v2565 = vld [vmem:[#allocation10 + $0x68] sm:$0xff]
    %v2566 = vld [vmem:[#allocation10 + $0x70] sm:$0xff]
    %v2567 = vld [vmem:[#allocation10 + $0x78] sm:$0xff]
    %v2568 = vld [vmem:[#allocation10 + $0x80] sm:$0xff]
    %v2569 = vld [vmem:[#allocation10 + $0x88] sm:$0xff]
    %v2570 = vld [vmem:[#allocation10 + $0x90] sm:$0xff]
    %v2571 = vld [vmem:[#allocation10 + $0x98] sm:$0xff]
    %v2572 = vld [vmem:[#allocation10 + $0xa0] sm:$0xff]
    %v2573 = vld [vmem:[#allocation10 + $0xa8] sm:$0xff]
    %v2574 = vld [vmem:[#allocation10 + $0xb0] sm:$0xff]
    %v2575 = vld [vmem:[#allocation10 + $0xb8] sm:$0xff]
    %v2576 = vld [vmem:[#allocation10 + $0xc0] sm:$0xff]
    %v2577 = vld [vmem:[#allocation10 + $0xc8] sm:$0xff]
    %v2578 = vld [vmem:[#allocation10 + $0xd0] sm:$0xff]
    %v2579 = vld [vmem:[#allocation10 + $0xd8] sm:$0xff]
    %v2580 = vld [vmem:[#allocation10 + $0xe0] sm:$0xff]
    %v2581 = vld [vmem:[#allocation10 + $0xe8] sm:$0xff]
    %v2582 = vld [vmem:[#allocation10 + $0xf0] sm:$0xff]
    %v2583 = vld [vmem:[#allocation10 + $0xf8] sm:$0xff]
    %v2616 = vunpack.c.l.b16 %v2552
    %v2617 = vunpack.c.h.b16 %v2552
    %v2618 = vunpack.c.l.b16 %v2553
    %v2619 = vunpack.c.h.b16 %v2553
    %v2620 = vunpack.c.l.b16 %v2554
    %v2621 = vunpack.c.h.b16 %v2554
    %v2622 = vunpack.c.l.b16 %v2555
    %v2623 = vunpack.c.h.b16 %v2555
    %v2624 = vunpack.c.l.b16 %v2556
    %v2625 = vunpack.c.h.b16 %v2556
    %v2626 = vunpack.c.l.b16 %v2557
    %v2627 = vunpack.c.h.b16 %v2557
    %v2628 = vunpack.c.l.b16 %v2558
    %v2629 = vunpack.c.h.b16 %v2558
    %v2630 = vunpack.c.l.b16 %v2559
    %v2631 = vunpack.c.h.b16 %v2559
    %v2632 = vunpack.c.l.b16 %v2560
    %v2633 = vunpack.c.h.b16 %v2560
    %v2634 = vunpack.c.l.b16 %v2561
    %v2635 = vunpack.c.h.b16 %v2561
    %v2636 = vunpack.c.l.b16 %v2562
    %v2637 = vunpack.c.h.b16 %v2562
    %v2638 = vunpack.c.l.b16 %v2563
    %v2639 = vunpack.c.h.b16 %v2563
    %v2640 = vunpack.c.l.b16 %v2564
    %v2641 = vunpack.c.h.b16 %v2564
    %v2642 = vunpack.c.l.b16 %v2565
    %v2643 = vunpack.c.h.b16 %v2565
    %v2644 = vunpack.c.l.b16 %v2566
    %v2645 = vunpack.c.h.b16 %v2566
    %v2646 = vunpack.c.l.b16 %v2567
    %v2647 = vunpack.c.h.b16 %v2567
    %v2648 = vunpack.c.l.b16 %v2568
    %v2649 = vunpack.c.h.b16 %v2568
    %v2650 = vunpack.c.l.b16 %v2569
    %v2651 = vunpack.c.h.b16 %v2569
    %v2652 = vunpack.c.l.b16 %v2570
    %v2653 = vunpack.c.h.b16 %v2570
    %v2654 = vunpack.c.l.b16 %v2571
    %v2655 = vunpack.c.h.b16 %v2571
    %v2656 = vunpack.c.l.b16 %v2572
    %v2657 = vunpack.c.h.b16 %v2572
    %v2658 = vunpack.c.l.b16 %v2573
    %v2659 = vunpack.c.h.b16 %v2573
    %v2660 = vunpack.c.l.b16 %v2574
    %v2661 = vunpack.c.h.b16 %v2574
    %v2662 = vunpack.c.l.b16 %v2575
    %v2663 = vunpack.c.h.b16 %v2575
    %v2664 = vunpack.c.l.b16 %v2576
    %v2665 = vunpack.c.h.b16 %v2576
    %v2666 = vunpack.c.l.b16 %v2577
    %v2667 = vunpack.c.h.b16 %v2577
    %v2668 = vunpack.c.l.b16 %v2578
    %v2669 = vunpack.c.h.b16 %v2578
    %v2670 = vunpack.c.l.b16 %v2579
    %v2671 = vunpack.c.h.b16 %v2579
    %v2672 = vunpack.c.l.b16 %v2580
    %v2673 = vunpack.c.h.b16 %v2580
    %v2674 = vunpack.c.l.b16 %v2581
    %v2675 = vunpack.c.h.b16 %v2581
    %v2676 = vunpack.c.l.b16 %v2582
    %v2677 = vunpack.c.h.b16 %v2582
    %v2678 = vunpack.c.l.b16 %v2583
    %v2679 = vunpack.c.h.b16 %v2583
    %v2680 = vpack.c.b16 %v2620, %v2616
    %v2681 = vpack.c.b16 %v2621, %v2617
    %v2682 = vpack.c.b16 %v2622, %v2618
    %v2683 = vpack.c.b16 %v2623, %v2619
    %v2684 = vpack.c.b16 %v2628, %v2624
    %v2685 = vpack.c.b16 %v2629, %v2625
    %v2686 = vpack.c.b16 %v2630, %v2626
    %v2687 = vpack.c.b16 %v2631, %v2627
    %v2688 = vpack.c.b16 %v2636, %v2632
    %v2689 = vpack.c.b16 %v2637, %v2633
    %v2690 = vpack.c.b16 %v2638, %v2634
    %v2691 = vpack.c.b16 %v2639, %v2635
    %v2692 = vpack.c.b16 %v2644, %v2640
    %v2693 = vpack.c.b16 %v2645, %v2641
    %v2694 = vpack.c.b16 %v2646, %v2642
    %v2695 = vpack.c.b16 %v2647, %v2643
    %v2696 = vpack.c.b16 %v2652, %v2648
    %v2697 = vpack.c.b16 %v2653, %v2649
    %v2698 = vpack.c.b16 %v2654, %v2650
    %v2699 = vpack.c.b16 %v2655, %v2651
    %v2700 = vpack.c.b16 %v2660, %v2656
    %v2701 = vpack.c.b16 %v2661, %v2657
    %v2702 = vpack.c.b16 %v2662, %v2658
    %v2703 = vpack.c.b16 %v2663, %v2659
    %v2704 = vpack.c.b16 %v2668, %v2664
    %v2705 = vpack.c.b16 %v2669, %v2665
    %v2706 = vpack.c.b16 %v2670, %v2666
    %v2707 = vpack.c.b16 %v2671, %v2667
    %v2708 = vpack.c.b16 %v2676, %v2672
    %v2709 = vpack.c.b16 %v2677, %v2673
    %v2710 = vpack.c.b16 %v2678, %v2674
    %v2711 = vpack.c.b16 %v2679, %v2675
    %2744 = vmatpush.bf16.msra.mxu0 %v2708
    %2745 = vmatpush.bf16.msra.mxu0 %v2704
    %2746 = vmatpush.bf16.msra.mxu0 %v2700
    %2747 = vmatpush.bf16.msra.mxu0 %v2696
    %2748 = vmatpush.bf16.msra.mxu0 %v2692
    %2749 = vmatpush.bf16.msra.mxu0 %v2688
    %2750 = vmatpush.bf16.msra.mxu0 %v2684
    %2751 = vmatpush.bf16.msra.mxu0 %v2680
    %2752 = vmatmul.bf16.gmra.mxu0 %v2524
    %v2753 = vpop.f32.mrf.mxu0
    %v2754 = vadd.f32 0.0, %v2753
    %v2755 = vpop.f32.mrf.mxu0
    %2756 = vdwg.mxu0
    %2757 = vmatpush.bf16.msra.mxu0 %v2709
    %2758 = vmatpush.bf16.msra.mxu0 %v2705
    %2759 = vmatpush.bf16.msra.mxu0 %v2701
    %2760 = vmatpush.bf16.msra.mxu0 %v2697
    %2761 = vmatpush.bf16.msra.mxu0 %v2693
    %2762 = vmatpush.bf16.msra.mxu0 %v2689
    %2763 = vmatpush.bf16.msra.mxu0 %v2685
    %2764 = vmatpush.bf16.msra.mxu0 %v2681
    %2765 = vmatmul.bf16.gmra.mxu0 %v2524
    %v2766 = vpop.f32.mrf.mxu0
    %v2767 = vadd.f32 0.0, %v2766
    %v2768 = vpop.f32.mrf.mxu0
    %2769 = vdwg.mxu0
    %2770 = vmatpush.bf16.msra.mxu0 %v2710
    %2771 = vmatpush.bf16.msra.mxu0 %v2706
    %2772 = vmatpush.bf16.msra.mxu0 %v2702
    %2773 = vmatpush.bf16.msra.mxu0 %v2698
    %2774 = vmatpush.bf16.msra.mxu0 %v2694
    %2775 = vmatpush.bf16.msra.mxu0 %v2690
    %2776 = vmatpush.bf16.msra.mxu0 %v2686
    %2777 = vmatpush.bf16.msra.mxu0 %v2682
    %2778 = vmatmul.bf16.gmra.mxu0 %v2524
    %v2779 = vpop.f32.mrf.mxu0
    %v2780 = vadd.f32 0.0, %v2779
    %v2781 = vpop.f32.mrf.mxu0
    %2782 = vdwg.mxu0
    %2783 = vmatpush.bf16.msra.mxu0 %v2711
    %2784 = vmatpush.bf16.msra.mxu0 %v2707
    %2785 = vmatpush.bf16.msra.mxu0 %v2703
    %2786 = vmatpush.bf16.msra.mxu0 %v2699
    %2787 = vmatpush.bf16.msra.mxu0 %v2695
    %2788 = vmatpush.bf16.msra.mxu0 %v2691
    %2789 = vmatpush.bf16.msra.mxu0 %v2687
    %2790 = vmatpush.bf16.msra.mxu0 %v2683
    %2791 = vmatmul.bf16.gmra.mxu0 %v2524
    %v2792 = vpop.f32.mrf.mxu0
    %v2793 = vadd.f32 0.0, %v2792
    %v2794 = vpop.f32.mrf.mxu0
    %2795 = vdwg.mxu0
    %v2796 = vadd.f32 %v2548, %v2754
    %v2797 = vadd.f32 %v2549, %v2767
    %v2798 = vadd.f32 %v2550, %v2780
    %v2799 = vadd.f32 %v2551, %v2793
    %v2800 = vxor.u32 %v2796, 2147483648
    %v2801 = vmul.f32 %v2800, 1.442695
    %v2802 = vpow.pop %v2801
    %v2803 = vadd.f32 %v2802, 1.0
    %v2804 = vrcp.pop %v2803
    %v2805 = vmul.f32 %v2803, %v2804
    %v2806 = vsub.f32 1.0, %v2805
    %v2807 = vmul.f32 %v2804, %v2806
    %v2808 = vadd.f32 %v2804, %v2807
    %vm2809 = vweird.f32 %v2803
    %vm2810 = vweird.f32 %v2804
    %vm2811 = vmor %vm2809, %vm2810
    %v2812 = vsel %vm2811, %v2804, %v2808
    %v2813 = vand.u32 2147483647, %v2803
    %vm2814 = vcmp.eq.f32.partialorder %v2813, 8.507059e+37
    %v2815 = vand.u32 %v2803, 2147483648
    %v2816 = vor.u32 1.1754944e-38, %v2815
    %v2817 = vsel %vm2814, %v2816, %v2812
    %v2818 = vmul.f32 1.0, %v2817
    %v2819 = vxor.u32 %v2797, 2147483648
    %v2820 = vmul.f32 %v2819, 1.442695
    %v2821 = vpow.pop %v2820
    %v2822 = vadd.f32 %v2821, 1.0
    %v2823 = vrcp.pop %v2822
    %v2824 = vmul.f32 %v2822, %v2823
    %v2825 = vsub.f32 1.0, %v2824
    %v2826 = vmul.f32 %v2823, %v2825
    %v2827 = vadd.f32 %v2823, %v2826
    %vm2828 = vweird.f32 %v2822
    %vm2829 = vweird.f32 %v2823
    %vm2830 = vmor %vm2828, %vm2829
    %v2831 = vsel %vm2830, %v2823, %v2827
    %v2832 = vand.u32 2147483647, %v2822
    %vm2833 = vcmp.eq.f32.partialorder %v2832, 8.507059e+37
    %v2834 = vand.u32 %v2822, 2147483648
    %v2835 = vor.u32 1.1754944e-38, %v2834
    %v2836 = vsel %vm2833, %v2835, %v2831
    %v2837 = vmul.f32 1.0, %v2836
    %v2838 = vtanh.pop %v2798
    %v2839 = vxor.u32 %v2799, 2147483648
    %v2840 = vmul.f32 %v2839, 1.442695
    %v2841 = vpow.pop %v2840
    %v2842 = vadd.f32 %v2841, 1.0
    %v2843 = vrcp.pop %v2842
    %v2844 = vmul.f32 %v2842, %v2843
    %v2845 = vsub.f32 1.0, %v2844
    %v2846 = vmul.f32 %v2843, %v2845
    %v2847 = vadd.f32 %v2843, %v2846
    %vm2848 = vweird.f32 %v2842
    %vm2849 = vweird.f32 %v2843
    %vm2850 = vmor %vm2848, %vm2849
    %v2851 = vsel %vm2850, %v2843, %v2847
    %v2852 = vand.u32 2147483647, %v2842
    %vm2853 = vcmp.eq.f32.partialorder %v2852, 8.507059e+37
    %v2854 = vand.u32 %v2842, 2147483648
    %v2855 = vor.u32 1.1754944e-38, %v2854
    %v2856 = vsel %vm2853, %v2855, %v2851
    %v2857 = vmul.f32 1.0, %v2856
    %v2858 = vmul.f32 %v2837, %v2206
    %v2859 = vmul.f32 %v2818, %v2838
    %v2860 = vadd.f32 %v2858, %v2859
    %v2861 = vtanh.pop %v2860
    %v2862 = vmul.f32 %v2857, %v2861
    %v2863 = vunpack.c.l.bf16 %v2546
    %v2864 = vunpack.c.h.bf16 %v2546
    %v2865 = vunpack.c.l.bf16 %v2547
    %v2866 = vunpack.c.h.bf16 %v2547
    %v2867 = vld [vmem:[#allocation12] sm:$0xff]
    %v2868 = vld [vmem:[#allocation12 + $0x8] sm:$0xff]
    %v2869 = vld [vmem:[#allocation12 + $0x10] sm:$0xff]
    %v2870 = vld [vmem:[#allocation12 + $0x18] sm:$0xff]
    %v2871 = vld [vmem:[#allocation12 + $0x20] sm:$0xff]
    %v2872 = vld [vmem:[#allocation12 + $0x28] sm:$0xff]
    %v2873 = vld [vmem:[#allocation12 + $0x30] sm:$0xff]
    %v2874 = vld [vmem:[#allocation12 + $0x38] sm:$0xff]
    %v2875 = vld [vmem:[#allocation12 + $0x40] sm:$0xff]
    %v2876 = vld [vmem:[#allocation12 + $0x48] sm:$0xff]
    %v2877 = vld [vmem:[#allocation12 + $0x50] sm:$0xff]
    %v2878 = vld [vmem:[#allocation12 + $0x58] sm:$0xff]
    %v2879 = vld [vmem:[#allocation12 + $0x60] sm:$0xff]
    %v2880 = vld [vmem:[#allocation12 + $0x68] sm:$0xff]
    %v2881 = vld [vmem:[#allocation12 + $0x70] sm:$0xff]
    %v2882 = vld [vmem:[#allocation12 + $0x78] sm:$0xff]
    %v2883 = vld [vmem:[#allocation12 + $0x80] sm:$0xff]
    %v2884 = vld [vmem:[#allocation12 + $0x88] sm:$0xff]
    %v2885 = vld [vmem:[#allocation12 + $0x90] sm:$0xff]
    %v2886 = vld [vmem:[#allocation12 + $0x98] sm:$0xff]
    %v2887 = vld [vmem:[#allocation12 + $0xa0] sm:$0xff]
    %v2888 = vld [vmem:[#allocation12 + $0xa8] sm:$0xff]
    %v2889 = vld [vmem:[#allocation12 + $0xb0] sm:$0xff]
    %v2890 = vld [vmem:[#allocation12 + $0xb8] sm:$0xff]
    %v2891 = vld [vmem:[#allocation12 + $0xc0] sm:$0xff]
    %v2892 = vld [vmem:[#allocation12 + $0xc8] sm:$0xff]
    %v2893 = vld [vmem:[#allocation12 + $0xd0] sm:$0xff]
    %v2894 = vld [vmem:[#allocation12 + $0xd8] sm:$0xff]
    %v2895 = vld [vmem:[#allocation12 + $0xe0] sm:$0xff]
    %v2896 = vld [vmem:[#allocation12 + $0xe8] sm:$0xff]
    %v2897 = vld [vmem:[#allocation12 + $0xf0] sm:$0xff]
    %v2898 = vld [vmem:[#allocation12 + $0xf8] sm:$0xff]
    %v2931 = vunpack.c.l.b16 %v2867
    %v2932 = vunpack.c.h.b16 %v2867
    %v2933 = vunpack.c.l.b16 %v2868
    %v2934 = vunpack.c.h.b16 %v2868
    %v2935 = vunpack.c.l.b16 %v2869
    %v2936 = vunpack.c.h.b16 %v2869
    %v2937 = vunpack.c.l.b16 %v2870
    %v2938 = vunpack.c.h.b16 %v2870
    %v2939 = vunpack.c.l.b16 %v2871
    %v2940 = vunpack.c.h.b16 %v2871
    %v2941 = vunpack.c.l.b16 %v2872
    %v2942 = vunpack.c.h.b16 %v2872
    %v2943 = vunpack.c.l.b16 %v2873
    %v2944 = vunpack.c.h.b16 %v2873
    %v2945 = vunpack.c.l.b16 %v2874
    %v2946 = vunpack.c.h.b16 %v2874
    %v2947 = vunpack.c.l.b16 %v2875
    %v2948 = vunpack.c.h.b16 %v2875
    %v2949 = vunpack.c.l.b16 %v2876
    %v2950 = vunpack.c.h.b16 %v2876
    %v2951 = vunpack.c.l.b16 %v2877
    %v2952 = vunpack.c.h.b16 %v2877
    %v2953 = vunpack.c.l.b16 %v2878
    %v2954 = vunpack.c.h.b16 %v2878
    %v2955 = vunpack.c.l.b16 %v2879
    %v2956 = vunpack.c.h.b16 %v2879
    %v2957 = vunpack.c.l.b16 %v2880
    %v2958 = vunpack.c.h.b16 %v2880
    %v2959 = vunpack.c.l.b16 %v2881
    %v2960 = vunpack.c.h.b16 %v2881
    %v2961 = vunpack.c.l.b16 %v2882
    %v2962 = vunpack.c.h.b16 %v2882
    %v2963 = vunpack.c.l.b16 %v2883
    %v2964 = vunpack.c.h.b16 %v2883
    %v2965 = vunpack.c.l.b16 %v2884
    %v2966 = vunpack.c.h.b16 %v2884
    %v2967 = vunpack.c.l.b16 %v2885
    %v2968 = vunpack.c.h.b16 %v2885
    %v2969 = vunpack.c.l.b16 %v2886
    %v2970 = vunpack.c.h.b16 %v2886
    %v2971 = vunpack.c.l.b16 %v2887
    %v2972 = vunpack.c.h.b16 %v2887
    %v2973 = vunpack.c.l.b16 %v2888
    %v2974 = vunpack.c.h.b16 %v2888
    %v2975 = vunpack.c.l.b16 %v2889
    %v2976 = vunpack.c.h.b16 %v2889
    %v2977 = vunpack.c.l.b16 %v2890
    %v2978 = vunpack.c.h.b16 %v2890
    %v2979 = vunpack.c.l.b16 %v2891
    %v2980 = vunpack.c.h.b16 %v2891
    %v2981 = vunpack.c.l.b16 %v2892
    %v2982 = vunpack.c.h.b16 %v2892
    %v2983 = vunpack.c.l.b16 %v2893
    %v2984 = vunpack.c.h.b16 %v2893
    %v2985 = vunpack.c.l.b16 %v2894
    %v2986 = vunpack.c.h.b16 %v2894
    %v2987 = vunpack.c.l.b16 %v2895
    %v2988 = vunpack.c.h.b16 %v2895
    %v2989 = vunpack.c.l.b16 %v2896
    %v2990 = vunpack.c.h.b16 %v2896
    %v2991 = vunpack.c.l.b16 %v2897
    %v2992 = vunpack.c.h.b16 %v2897
    %v2993 = vunpack.c.l.b16 %v2898
    %v2994 = vunpack.c.h.b16 %v2898
    %v2995 = vpack.c.b16 %v2935, %v2931
    %v2996 = vpack.c.b16 %v2936, %v2932
    %v2997 = vpack.c.b16 %v2937, %v2933
    %v2998 = vpack.c.b16 %v2938, %v2934
    %v2999 = vpack.c.b16 %v2943, %v2939
    %v3000 = vpack.c.b16 %v2944, %v2940
    %v3001 = vpack.c.b16 %v2945, %v2941
    %v3002 = vpack.c.b16 %v2946, %v2942
    %v3003 = vpack.c.b16 %v2951, %v2947
    %v3004 = vpack.c.b16 %v2952, %v2948
    %v3005 = vpack.c.b16 %v2953, %v2949
    %v3006 = vpack.c.b16 %v2954, %v2950
    %v3007 = vpack.c.b16 %v2959, %v2955
    %v3008 = vpack.c.b16 %v2960, %v2956
    %v3009 = vpack.c.b16 %v2961, %v2957
    %v3010 = vpack.c.b16 %v2962, %v2958
    %v3011 = vpack.c.b16 %v2967, %v2963
    %v3012 = vpack.c.b16 %v2968, %v2964
    %v3013 = vpack.c.b16 %v2969, %v2965
    %v3014 = vpack.c.b16 %v2970, %v2966
    %v3015 = vpack.c.b16 %v2975, %v2971
    %v3016 = vpack.c.b16 %v2976, %v2972
    %v3017 = vpack.c.b16 %v2977, %v2973
    %v3018 = vpack.c.b16 %v2978, %v2974
    %v3019 = vpack.c.b16 %v2983, %v2979
    %v3020 = vpack.c.b16 %v2984, %v2980
    %v3021 = vpack.c.b16 %v2985, %v2981
    %v3022 = vpack.c.b16 %v2986, %v2982
    %v3023 = vpack.c.b16 %v2991, %v2987
    %v3024 = vpack.c.b16 %v2992, %v2988
    %v3025 = vpack.c.b16 %v2993, %v2989
    %v3026 = vpack.c.b16 %v2994, %v2990
    %3059 = vmatpush.bf16.msra.mxu0 %v3023
    %3060 = vmatpush.bf16.msra.mxu0 %v3019
    %3061 = vmatpush.bf16.msra.mxu0 %v3015
    %3062 = vmatpush.bf16.msra.mxu0 %v3011
    %3063 = vmatpush.bf16.msra.mxu0 %v3007
    %3064 = vmatpush.bf16.msra.mxu0 %v3003
    %3065 = vmatpush.bf16.msra.mxu0 %v2999
    %3066 = vmatpush.bf16.msra.mxu0 %v2995
    %3067 = vmatmul.bf16.gmra.mxu0 %v2527
    %v3068 = vpop.f32.mrf.mxu0
    %v3069 = vadd.f32 0.0, %v3068
    %v3070 = vpop.f32.mrf.mxu0
    %3071 = vdwg.mxu0
    %3072 = vmatpush.bf16.msra.mxu0 %v3024
    %3073 = vmatpush.bf16.msra.mxu0 %v3020
    %3074 = vmatpush.bf16.msra.mxu0 %v3016
    %3075 = vmatpush.bf16.msra.mxu0 %v3012
    %3076 = vmatpush.bf16.msra.mxu0 %v3008
    %3077 = vmatpush.bf16.msra.mxu0 %v3004
    %3078 = vmatpush.bf16.msra.mxu0 %v3000
    %3079 = vmatpush.bf16.msra.mxu0 %v2996
    %3080 = vmatmul.bf16.gmra.mxu0 %v2527
    %v3081 = vpop.f32.mrf.mxu0
    %v3082 = vadd.f32 0.0, %v3081
    %v3083 = vpop.f32.mrf.mxu0
    %3084 = vdwg.mxu0
    %3085 = vmatpush.bf16.msra.mxu0 %v3025
    %3086 = vmatpush.bf16.msra.mxu0 %v3021
    %3087 = vmatpush.bf16.msra.mxu0 %v3017
    %3088 = vmatpush.bf16.msra.mxu0 %v3013
    %3089 = vmatpush.bf16.msra.mxu0 %v3009
    %3090 = vmatpush.bf16.msra.mxu0 %v3005
    %3091 = vmatpush.bf16.msra.mxu0 %v3001
    %3092 = vmatpush.bf16.msra.mxu0 %v2997
    %3093 = vmatmul.bf16.gmra.mxu0 %v2527
    %v3094 = vpop.f32.mrf.mxu0
    %v3095 = vadd.f32 0.0, %v3094
    %v3096 = vpop.f32.mrf.mxu0
    %3097 = vdwg.mxu0
    %3098 = vmatpush.bf16.msra.mxu0 %v3026
    %3099 = vmatpush.bf16.msra.mxu0 %v3022
    %3100 = vmatpush.bf16.msra.mxu0 %v3018
    %3101 = vmatpush.bf16.msra.mxu0 %v3014
    %3102 = vmatpush.bf16.msra.mxu0 %v3010
    %3103 = vmatpush.bf16.msra.mxu0 %v3006
    %3104 = vmatpush.bf16.msra.mxu0 %v3002
    %3105 = vmatpush.bf16.msra.mxu0 %v2998
    %3106 = vmatmul.bf16.gmra.mxu0 %v2527
    %v3107 = vpop.f32.mrf.mxu0
    %v3108 = vadd.f32 0.0, %v3107
    %v3109 = vpop.f32.mrf.mxu0
    %3110 = vdwg.mxu0
    %v3111 = vadd.f32 %v2863, %v3069
    %v3112 = vadd.f32 %v2864, %v3082
    %v3113 = vadd.f32 %v2865, %v3095
    %v3114 = vadd.f32 %v2866, %v3108
    %v3115 = vxor.u32 %v3111, 2147483648
    %v3116 = vmul.f32 %v3115, 1.442695
    %v3117 = vpow.pop %v3116
    %v3118 = vadd.f32 %v3117, 1.0
    %v3119 = vrcp.pop %v3118
    %v3120 = vmul.f32 %v3118, %v3119
    %v3121 = vsub.f32 1.0, %v3120
    %v3122 = vmul.f32 %v3119, %v3121
    %v3123 = vadd.f32 %v3119, %v3122
    %vm3124 = vweird.f32 %v3118
    %vm3125 = vweird.f32 %v3119
    %vm3126 = vmor %vm3124, %vm3125
    %v3127 = vsel %vm3126, %v3119, %v3123
    %v3128 = vand.u32 2147483647, %v3118
    %vm3129 = vcmp.eq.f32.partialorder %v3128, 8.507059e+37
    %v3130 = vand.u32 %v3118, 2147483648
    %v3131 = vor.u32 1.1754944e-38, %v3130
    %v3132 = vsel %vm3129, %v3131, %v3127
    %v3133 = vmul.f32 1.0, %v3132
    %v3134 = vxor.u32 %v3112, 2147483648
    %v3135 = vmul.f32 %v3134, 1.442695
    %v3136 = vpow.pop %v3135
    %v3137 = vadd.f32 %v3136, 1.0
    %v3138 = vrcp.pop %v3137
    %v3139 = vmul.f32 %v3137, %v3138
    %v3140 = vsub.f32 1.0, %v3139
    %v3141 = vmul.f32 %v3138, %v3140
    %v3142 = vadd.f32 %v3138, %v3141
    %vm3143 = vweird.f32 %v3137
    %vm3144 = vweird.f32 %v3138
    %vm3145 = vmor %vm3143, %vm3144
    %v3146 = vsel %vm3145, %v3138, %v3142
    %v3147 = vand.u32 2147483647, %v3137
    %vm3148 = vcmp.eq.f32.partialorder %v3147, 8.507059e+37
    %v3149 = vand.u32 %v3137, 2147483648
    %v3150 = vor.u32 1.1754944e-38, %v3149
    %v3151 = vsel %vm3148, %v3150, %v3146
    %v3152 = vmul.f32 1.0, %v3151
    %v3153 = vtanh.pop %v3113
    %v3154 = vxor.u32 %v3114, 2147483648
    %v3155 = vmul.f32 %v3154, 1.442695
    %v3156 = vpow.pop %v3155
    %v3157 = vadd.f32 %v3156, 1.0
    %v3158 = vrcp.pop %v3157
    %v3159 = vmul.f32 %v3157, %v3158
    %v3160 = vsub.f32 1.0, %v3159
    %v3161 = vmul.f32 %v3158, %v3160
    %v3162 = vadd.f32 %v3158, %v3161
    %vm3163 = vweird.f32 %v3157
    %vm3164 = vweird.f32 %v3158
    %vm3165 = vmor %vm3163, %vm3164
    %v3166 = vsel %vm3165, %v3158, %v3162
    %v3167 = vand.u32 2147483647, %v3157
    %vm3168 = vcmp.eq.f32.partialorder %v3167, 8.507059e+37
    %v3169 = vand.u32 %v3157, 2147483648
    %v3170 = vor.u32 1.1754944e-38, %v3169
    %v3171 = vsel %vm3168, %v3170, %v3166
    %v3172 = vmul.f32 1.0, %v3171
    %v3173 = vmul.f32 %v3152, %v2521
    %v3174 = vmul.f32 %v3133, %v3153
    %v3175 = vadd.f32 %v3173, %v3174
    %v3176 = vtanh.pop %v3175
    %v3177 = vmul.f32 %v3172, %v3176
    %v3178 = vpack.c.bf16 %v2862, %v2862
    %s3179 = scalar_lea.vmem [#allocation3], 12
    %3180 = vst [vmem:[%s3179] sm:$0xf] %v3178
    %v3181 = vpack.c.bf16 %v3177, %v3177
    %s3182 = scalar_lea.vmem [#allocation4], 16
    %3183 = vst [vmem:[%s3182] sm:$0xf] %v3181
    %v3184 = vmul.f32 %v2862, %v1214
    %3185 = vadd.xlane.f32.xlu0 %v3184
    %v3186 = vpop.xlane.xlu0 %3185
    %v3188 = vperm.slane %v3186, %v1221
    %3190 = vst.msk [vmem:[#allocation5 + $0x3] sm:$0x1] %vm1224, %v3188
    %v3191 = vmul.f32 %v3177, %v1227
    %3192 = vadd.xlane.f32.xlu0 %v3191
    %v3193 = vpop.xlane.xlu0 %3192
    %v3195 = vperm.slane %v3193, %v1221
    %3197 = vst.msk [vmem:[#allocation6 + $0x4] sm:$0x1] %vm1224, %v3195
    %v3198 = vld [vmem:[#allocation2 + $0x80] sm:$0xff]
    %v3199 = vld [vmem:[#allocation2 + $0x88] sm:$0xff]
    %v3200 = vld [vmem:[#allocation2 + $0x70] sm:$0xff]
    %v3201 = vld [vmem:[#allocation2 + $0x78] sm:$0xff]
    %v3202 = vunpack.c.l.bf16 %v3198
    %v3203 = vunpack.c.h.bf16 %v3198
    %v3204 = vunpack.c.l.bf16 %v3199
    %v3205 = vunpack.c.h.bf16 %v3199
    %v3206 = vld [vmem:[#allocation10] sm:$0xff]
    %v3207 = vld [vmem:[#allocation10 + $0x8] sm:$0xff]
    %v3208 = vld [vmem:[#allocation10 + $0x10] sm:$0xff]
    %v3209 = vld [vmem:[#allocation10 + $0x18] sm:$0xff]
    %v3210 = vld [vmem:[#allocation10 + $0x20] sm:$0xff]
    %v3211 = vld [vmem:[#allocation10 + $0x28] sm:$0xff]
    %v3212 = vld [vmem:[#allocation10 + $0x30] sm:$0xff]
    %v3213 = vld [vmem:[#allocation10 + $0x38] sm:$0xff]
    %v3214 = vld [vmem:[#allocation10 + $0x40] sm:$0xff]
    %v3215 = vld [vmem:[#allocation10 + $0x48] sm:$0xff]
    %v3216 = vld [vmem:[#allocation10 + $0x50] sm:$0xff]
    %v3217 = vld [vmem:[#allocation10 + $0x58] sm:$0xff]
    %v3218 = vld [vmem:[#allocation10 + $0x60] sm:$0xff]
    %v3219 = vld [vmem:[#allocation10 + $0x68] sm:$0xff]
    %v3220 = vld [vmem:[#allocation10 + $0x70] sm:$0xff]
    %v3221 = vld [vmem:[#allocation10 + $0x78] sm:$0xff]
    %v3222 = vld [vmem:[#allocation10 + $0x80] sm:$0xff]
    %v3223 = vld [vmem:[#allocation10 + $0x88] sm:$0xff]
    %v3224 = vld [vmem:[#allocation10 + $0x90] sm:$0xff]
    %v3225 = vld [vmem:[#allocation10 + $0x98] sm:$0xff]
    %v3226 = vld [vmem:[#allocation10 + $0xa0] sm:$0xff]
    %v3227 = vld [vmem:[#allocation10 + $0xa8] sm:$0xff]
    %v3228 = vld [vmem:[#allocation10 + $0xb0] sm:$0xff]
    %v3229 = vld [vmem:[#allocation10 + $0xb8] sm:$0xff]
    %v3230 = vld [vmem:[#allocation10 + $0xc0] sm:$0xff]
    %v3231 = vld [vmem:[#allocation10 + $0xc8] sm:$0xff]
    %v3232 = vld [vmem:[#allocation10 + $0xd0] sm:$0xff]
    %v3233 = vld [vmem:[#allocation10 + $0xd8] sm:$0xff]
    %v3234 = vld [vmem:[#allocation10 + $0xe0] sm:$0xff]
    %v3235 = vld [vmem:[#allocation10 + $0xe8] sm:$0xff]
    %v3236 = vld [vmem:[#allocation10 + $0xf0] sm:$0xff]
    %v3237 = vld [vmem:[#allocation10 + $0xf8] sm:$0xff]
    %v3270 = vunpack.c.l.b16 %v3206
    %v3271 = vunpack.c.h.b16 %v3206
    %v3272 = vunpack.c.l.b16 %v3207
    %v3273 = vunpack.c.h.b16 %v3207
    %v3274 = vunpack.c.l.b16 %v3208
    %v3275 = vunpack.c.h.b16 %v3208
    %v3276 = vunpack.c.l.b16 %v3209
    %v3277 = vunpack.c.h.b16 %v3209
    %v3278 = vunpack.c.l.b16 %v3210
    %v3279 = vunpack.c.h.b16 %v3210
    %v3280 = vunpack.c.l.b16 %v3211
    %v3281 = vunpack.c.h.b16 %v3211
    %v3282 = vunpack.c.l.b16 %v3212
    %v3283 = vunpack.c.h.b16 %v3212
    %v3284 = vunpack.c.l.b16 %v3213
    %v3285 = vunpack.c.h.b16 %v3213
    %v3286 = vunpack.c.l.b16 %v3214
    %v3287 = vunpack.c.h.b16 %v3214
    %v3288 = vunpack.c.l.b16 %v3215
    %v3289 = vunpack.c.h.b16 %v3215
    %v3290 = vunpack.c.l.b16 %v3216
    %v3291 = vunpack.c.h.b16 %v3216
    %v3292 = vunpack.c.l.b16 %v3217
    %v3293 = vunpack.c.h.b16 %v3217
    %v3294 = vunpack.c.l.b16 %v3218
    %v3295 = vunpack.c.h.b16 %v3218
    %v3296 = vunpack.c.l.b16 %v3219
    %v3297 = vunpack.c.h.b16 %v3219
    %v3298 = vunpack.c.l.b16 %v3220
    %v3299 = vunpack.c.h.b16 %v3220
    %v3300 = vunpack.c.l.b16 %v3221
    %v3301 = vunpack.c.h.b16 %v3221
    %v3302 = vunpack.c.l.b16 %v3222
    %v3303 = vunpack.c.h.b16 %v3222
    %v3304 = vunpack.c.l.b16 %v3223
    %v3305 = vunpack.c.h.b16 %v3223
    %v3306 = vunpack.c.l.b16 %v3224
    %v3307 = vunpack.c.h.b16 %v3224
    %v3308 = vunpack.c.l.b16 %v3225
    %v3309 = vunpack.c.h.b16 %v3225
    %v3310 = vunpack.c.l.b16 %v3226
    %v3311 = vunpack.c.h.b16 %v3226
    %v3312 = vunpack.c.l.b16 %v3227
    %v3313 = vunpack.c.h.b16 %v3227
    %v3314 = vunpack.c.l.b16 %v3228
    %v3315 = vunpack.c.h.b16 %v3228
    %v3316 = vunpack.c.l.b16 %v3229
    %v3317 = vunpack.c.h.b16 %v3229
    %v3318 = vunpack.c.l.b16 %v3230
    %v3319 = vunpack.c.h.b16 %v3230
    %v3320 = vunpack.c.l.b16 %v3231
    %v3321 = vunpack.c.h.b16 %v3231
    %v3322 = vunpack.c.l.b16 %v3232
    %v3323 = vunpack.c.h.b16 %v3232
    %v3324 = vunpack.c.l.b16 %v3233
    %v3325 = vunpack.c.h.b16 %v3233
    %v3326 = vunpack.c.l.b16 %v3234
    %v3327 = vunpack.c.h.b16 %v3234
    %v3328 = vunpack.c.l.b16 %v3235
    %v3329 = vunpack.c.h.b16 %v3235
    %v3330 = vunpack.c.l.b16 %v3236
    %v3331 = vunpack.c.h.b16 %v3236
    %v3332 = vunpack.c.l.b16 %v3237
    %v3333 = vunpack.c.h.b16 %v3237
    %v3334 = vpack.c.b16 %v3274, %v3270
    %v3335 = vpack.c.b16 %v3275, %v3271
    %v3336 = vpack.c.b16 %v3276, %v3272
    %v3337 = vpack.c.b16 %v3277, %v3273
    %v3338 = vpack.c.b16 %v3282, %v3278
    %v3339 = vpack.c.b16 %v3283, %v3279
    %v3340 = vpack.c.b16 %v3284, %v3280
    %v3341 = vpack.c.b16 %v3285, %v3281
    %v3342 = vpack.c.b16 %v3290, %v3286
    %v3343 = vpack.c.b16 %v3291, %v3287
    %v3344 = vpack.c.b16 %v3292, %v3288
    %v3345 = vpack.c.b16 %v3293, %v3289
    %v3346 = vpack.c.b16 %v3298, %v3294
    %v3347 = vpack.c.b16 %v3299, %v3295
    %v3348 = vpack.c.b16 %v3300, %v3296
    %v3349 = vpack.c.b16 %v3301, %v3297
    %v3350 = vpack.c.b16 %v3306, %v3302
    %v3351 = vpack.c.b16 %v3307, %v3303
    %v3352 = vpack.c.b16 %v3308, %v3304
    %v3353 = vpack.c.b16 %v3309, %v3305
    %v3354 = vpack.c.b16 %v3314, %v3310
    %v3355 = vpack.c.b16 %v3315, %v3311
    %v3356 = vpack.c.b16 %v3316, %v3312
    %v3357 = vpack.c.b16 %v3317, %v3313
    %v3358 = vpack.c.b16 %v3322, %v3318
    %v3359 = vpack.c.b16 %v3323, %v3319
    %v3360 = vpack.c.b16 %v3324, %v3320
    %v3361 = vpack.c.b16 %v3325, %v3321
    %v3362 = vpack.c.b16 %v3330, %v3326
    %v3363 = vpack.c.b16 %v3331, %v3327
    %v3364 = vpack.c.b16 %v3332, %v3328
    %v3365 = vpack.c.b16 %v3333, %v3329
    %3398 = vmatpush.bf16.msra.mxu0 %v3362
    %3399 = vmatpush.bf16.msra.mxu0 %v3358
    %3400 = vmatpush.bf16.msra.mxu0 %v3354
    %3401 = vmatpush.bf16.msra.mxu0 %v3350
    %3402 = vmatpush.bf16.msra.mxu0 %v3346
    %3403 = vmatpush.bf16.msra.mxu0 %v3342
    %3404 = vmatpush.bf16.msra.mxu0 %v3338
    %3405 = vmatpush.bf16.msra.mxu0 %v3334
    %3406 = vmatmul.bf16.gmra.mxu0 %v3178
    %v3407 = vpop.f32.mrf.mxu0
    %v3408 = vadd.f32 0.0, %v3407
    %v3409 = vpop.f32.mrf.mxu0
    %3410 = vdwg.mxu0
    %3411 = vmatpush.bf16.msra.mxu0 %v3363
    %3412 = vmatpush.bf16.msra.mxu0 %v3359
    %3413 = vmatpush.bf16.msra.mxu0 %v3355
    %3414 = vmatpush.bf16.msra.mxu0 %v3351
    %3415 = vmatpush.bf16.msra.mxu0 %v3347
    %3416 = vmatpush.bf16.msra.mxu0 %v3343
    %3417 = vmatpush.bf16.msra.mxu0 %v3339
    %3418 = vmatpush.bf16.msra.mxu0 %v3335
    %3419 = vmatmul.bf16.gmra.mxu0 %v3178
    %v3420 = vpop.f32.mrf.mxu0
    %v3421 = vadd.f32 0.0, %v3420
    %v3422 = vpop.f32.mrf.mxu0
    %3423 = vdwg.mxu0
    %3424 = vmatpush.bf16.msra.mxu0 %v3364
    %3425 = vmatpush.bf16.msra.mxu0 %v3360
    %3426 = vmatpush.bf16.msra.mxu0 %v3356
    %3427 = vmatpush.bf16.msra.mxu0 %v3352
    %3428 = vmatpush.bf16.msra.mxu0 %v3348
    %3429 = vmatpush.bf16.msra.mxu0 %v3344
    %3430 = vmatpush.bf16.msra.mxu0 %v3340
    %3431 = vmatpush.bf16.msra.mxu0 %v3336
    %3432 = vmatmul.bf16.gmra.mxu0 %v3178
    %v3433 = vpop.f32.mrf.mxu0
    %v3434 = vadd.f32 0.0, %v3433
    %v3435 = vpop.f32.mrf.mxu0
    %3436 = vdwg.mxu0
    %3437 = vmatpush.bf16.msra.mxu0 %v3365
    %3438 = vmatpush.bf16.msra.mxu0 %v3361
    %3439 = vmatpush.bf16.msra.mxu0 %v3357
    %3440 = vmatpush.bf16.msra.mxu0 %v3353
    %3441 = vmatpush.bf16.msra.mxu0 %v3349
    %3442 = vmatpush.bf16.msra.mxu0 %v3345
    %3443 = vmatpush.bf16.msra.mxu0 %v3341
    %3444 = vmatpush.bf16.msra.mxu0 %v3337
    %3445 = vmatmul.bf16.gmra.mxu0 %v3178
    %v3446 = vpop.f32.mrf.mxu0
    %v3447 = vadd.f32 0.0, %v3446
    %v3448 = vpop.f32.mrf.mxu0
    %3449 = vdwg.mxu0
    %v3450 = vadd.f32 %v3202, %v3408
    %v3451 = vadd.f32 %v3203, %v3421
    %v3452 = vadd.f32 %v3204, %v3434
    %v3453 = vadd.f32 %v3205, %v3447
    %v3454 = vxor.u32 %v3450, 2147483648
    %v3455 = vmul.f32 %v3454, 1.442695
    %v3456 = vpow.pop %v3455
    %v3457 = vadd.f32 %v3456, 1.0
    %v3458 = vrcp.pop %v3457
    %v3459 = vmul.f32 %v3457, %v3458
    %v3460 = vsub.f32 1.0, %v3459
    %v3461 = vmul.f32 %v3458, %v3460
    %v3462 = vadd.f32 %v3458, %v3461
    %vm3463 = vweird.f32 %v3457
    %vm3464 = vweird.f32 %v3458
    %vm3465 = vmor %vm3463, %vm3464
    %v3466 = vsel %vm3465, %v3458, %v3462
    %v3467 = vand.u32 2147483647, %v3457
    %vm3468 = vcmp.eq.f32.partialorder %v3467, 8.507059e+37
    %v3469 = vand.u32 %v3457, 2147483648
    %v3470 = vor.u32 1.1754944e-38, %v3469
    %v3471 = vsel %vm3468, %v3470, %v3466
    %v3472 = vmul.f32 1.0, %v3471
    %v3473 = vxor.u32 %v3451, 2147483648
    %v3474 = vmul.f32 %v3473, 1.442695
    %v3475 = vpow.pop %v3474
    %v3476 = vadd.f32 %v3475, 1.0
    %v3477 = vrcp.pop %v3476
    %v3478 = vmul.f32 %v3476, %v3477
    %v3479 = vsub.f32 1.0, %v3478
    %v3480 = vmul.f32 %v3477, %v3479
    %v3481 = vadd.f32 %v3477, %v3480
    %vm3482 = vweird.f32 %v3476
    %vm3483 = vweird.f32 %v3477
    %vm3484 = vmor %vm3482, %vm3483
    %v3485 = vsel %vm3484, %v3477, %v3481
    %v3486 = vand.u32 2147483647, %v3476
    %vm3487 = vcmp.eq.f32.partialorder %v3486, 8.507059e+37
    %v3488 = vand.u32 %v3476, 2147483648
    %v3489 = vor.u32 1.1754944e-38, %v3488
    %v3490 = vsel %vm3487, %v3489, %v3485
    %v3491 = vmul.f32 1.0, %v3490
    %v3492 = vtanh.pop %v3452
    %v3493 = vxor.u32 %v3453, 2147483648
    %v3494 = vmul.f32 %v3493, 1.442695
    %v3495 = vpow.pop %v3494
    %v3496 = vadd.f32 %v3495, 1.0
    %v3497 = vrcp.pop %v3496
    %v3498 = vmul.f32 %v3496, %v3497
    %v3499 = vsub.f32 1.0, %v3498
    %v3500 = vmul.f32 %v3497, %v3499
    %v3501 = vadd.f32 %v3497, %v3500
    %vm3502 = vweird.f32 %v3496
    %vm3503 = vweird.f32 %v3497
    %vm3504 = vmor %vm3502, %vm3503
    %v3505 = vsel %vm3504, %v3497, %v3501
    %v3506 = vand.u32 2147483647, %v3496
    %vm3507 = vcmp.eq.f32.partialorder %v3506, 8.507059e+37
    %v3508 = vand.u32 %v3496, 2147483648
    %v3509 = vor.u32 1.1754944e-38, %v3508
    %v3510 = vsel %vm3507, %v3509, %v3505
    %v3511 = vmul.f32 1.0, %v3510
    %v3512 = vmul.f32 %v3491, %v2860
    %v3513 = vmul.f32 %v3472, %v3492
    %v3514 = vadd.f32 %v3512, %v3513
    %v3515 = vtanh.pop %v3514
    %v3516 = vmul.f32 %v3511, %v3515
    %v3517 = vunpack.c.l.bf16 %v3200
    %v3518 = vunpack.c.h.bf16 %v3200
    %v3519 = vunpack.c.l.bf16 %v3201
    %v3520 = vunpack.c.h.bf16 %v3201
    %v3521 = vld [vmem:[#allocation12] sm:$0xff]
    %v3522 = vld [vmem:[#allocation12 + $0x8] sm:$0xff]
    %v3523 = vld [vmem:[#allocation12 + $0x10] sm:$0xff]
    %v3524 = vld [vmem:[#allocation12 + $0x18] sm:$0xff]
    %v3525 = vld [vmem:[#allocation12 + $0x20] sm:$0xff]
    %v3526 = vld [vmem:[#allocation12 + $0x28] sm:$0xff]
    %v3527 = vld [vmem:[#allocation12 + $0x30] sm:$0xff]
    %v3528 = vld [vmem:[#allocation12 + $0x38] sm:$0xff]
    %v3529 = vld [vmem:[#allocation12 + $0x40] sm:$0xff]
    %v3530 = vld [vmem:[#allocation12 + $0x48] sm:$0xff]
    %v3531 = vld [vmem:[#allocation12 + $0x50] sm:$0xff]
    %v3532 = vld [vmem:[#allocation12 + $0x58] sm:$0xff]
    %v3533 = vld [vmem:[#allocation12 + $0x60] sm:$0xff]
    %v3534 = vld [vmem:[#allocation12 + $0x68] sm:$0xff]
    %v3535 = vld [vmem:[#allocation12 + $0x70] sm:$0xff]
    %v3536 = vld [vmem:[#allocation12 + $0x78] sm:$0xff]
    %v3537 = vld [vmem:[#allocation12 + $0x80] sm:$0xff]
    %v3538 = vld [vmem:[#allocation12 + $0x88] sm:$0xff]
    %v3539 = vld [vmem:[#allocation12 + $0x90] sm:$0xff]
    %v3540 = vld [vmem:[#allocation12 + $0x98] sm:$0xff]
    %v3541 = vld [vmem:[#allocation12 + $0xa0] sm:$0xff]
    %v3542 = vld [vmem:[#allocation12 + $0xa8] sm:$0xff]
    %v3543 = vld [vmem:[#allocation12 + $0xb0] sm:$0xff]
    %v3544 = vld [vmem:[#allocation12 + $0xb8] sm:$0xff]
    %v3545 = vld [vmem:[#allocation12 + $0xc0] sm:$0xff]
    %v3546 = vld [vmem:[#allocation12 + $0xc8] sm:$0xff]
    %v3547 = vld [vmem:[#allocation12 + $0xd0] sm:$0xff]
    %v3548 = vld [vmem:[#allocation12 + $0xd8] sm:$0xff]
    %v3549 = vld [vmem:[#allocation12 + $0xe0] sm:$0xff]
    %v3550 = vld [vmem:[#allocation12 + $0xe8] sm:$0xff]
    %v3551 = vld [vmem:[#allocation12 + $0xf0] sm:$0xff]
    %v3552 = vld [vmem:[#allocation12 + $0xf8] sm:$0xff]
    %v3585 = vunpack.c.l.b16 %v3521
    %v3586 = vunpack.c.h.b16 %v3521
    %v3587 = vunpack.c.l.b16 %v3522
    %v3588 = vunpack.c.h.b16 %v3522
    %v3589 = vunpack.c.l.b16 %v3523
    %v3590 = vunpack.c.h.b16 %v3523
    %v3591 = vunpack.c.l.b16 %v3524
    %v3592 = vunpack.c.h.b16 %v3524
    %v3593 = vunpack.c.l.b16 %v3525
    %v3594 = vunpack.c.h.b16 %v3525
    %v3595 = vunpack.c.l.b16 %v3526
    %v3596 = vunpack.c.h.b16 %v3526
    %v3597 = vunpack.c.l.b16 %v3527
    %v3598 = vunpack.c.h.b16 %v3527
    %v3599 = vunpack.c.l.b16 %v3528
    %v3600 = vunpack.c.h.b16 %v3528
    %v3601 = vunpack.c.l.b16 %v3529
    %v3602 = vunpack.c.h.b16 %v3529
    %v3603 = vunpack.c.l.b16 %v3530
    %v3604 = vunpack.c.h.b16 %v3530
    %v3605 = vunpack.c.l.b16 %v3531
    %v3606 = vunpack.c.h.b16 %v3531
    %v3607 = vunpack.c.l.b16 %v3532
    %v3608 = vunpack.c.h.b16 %v3532
    %v3609 = vunpack.c.l.b16 %v3533
    %v3610 = vunpack.c.h.b16 %v3533
    %v3611 = vunpack.c.l.b16 %v3534
    %v3612 = vunpack.c.h.b16 %v3534
    %v3613 = vunpack.c.l.b16 %v3535
    %v3614 = vunpack.c.h.b16 %v3535
    %v3615 = vunpack.c.l.b16 %v3536
    %v3616 = vunpack.c.h.b16 %v3536
    %v3617 = vunpack.c.l.b16 %v3537
    %v3618 = vunpack.c.h.b16 %v3537
    %v3619 = vunpack.c.l.b16 %v3538
    %v3620 = vunpack.c.h.b16 %v3538
    %v3621 = vunpack.c.l.b16 %v3539
    %v3622 = vunpack.c.h.b16 %v3539
    %v3623 = vunpack.c.l.b16 %v3540
    %v3624 = vunpack.c.h.b16 %v3540
    %v3625 = vunpack.c.l.b16 %v3541
    %v3626 = vunpack.c.h.b16 %v3541
    %v3627 = vunpack.c.l.b16 %v3542
    %v3628 = vunpack.c.h.b16 %v3542
    %v3629 = vunpack.c.l.b16 %v3543
    %v3630 = vunpack.c.h.b16 %v3543
    %v3631 = vunpack.c.l.b16 %v3544
    %v3632 = vunpack.c.h.b16 %v3544
    %v3633 = vunpack.c.l.b16 %v3545
    %v3634 = vunpack.c.h.b16 %v3545
    %v3635 = vunpack.c.l.b16 %v3546
    %v3636 = vunpack.c.h.b16 %v3546
    %v3637 = vunpack.c.l.b16 %v3547
    %v3638 = vunpack.c.h.b16 %v3547
    %v3639 = vunpack.c.l.b16 %v3548
    %v3640 = vunpack.c.h.b16 %v3548
    %v3641 = vunpack.c.l.b16 %v3549
    %v3642 = vunpack.c.h.b16 %v3549
    %v3643 = vunpack.c.l.b16 %v3550
    %v3644 = vunpack.c.h.b16 %v3550
    %v3645 = vunpack.c.l.b16 %v3551
    %v3646 = vunpack.c.h.b16 %v3551
    %v3647 = vunpack.c.l.b16 %v3552
    %v3648 = vunpack.c.h.b16 %v3552
    %v3649 = vpack.c.b16 %v3589, %v3585
    %v3650 = vpack.c.b16 %v3590, %v3586
    %v3651 = vpack.c.b16 %v3591, %v3587
    %v3652 = vpack.c.b16 %v3592, %v3588
    %v3653 = vpack.c.b16 %v3597, %v3593
    %v3654 = vpack.c.b16 %v3598, %v3594
    %v3655 = vpack.c.b16 %v3599, %v3595
    %v3656 = vpack.c.b16 %v3600, %v3596
    %v3657 = vpack.c.b16 %v3605, %v3601
    %v3658 = vpack.c.b16 %v3606, %v3602
    %v3659 = vpack.c.b16 %v3607, %v3603
    %v3660 = vpack.c.b16 %v3608, %v3604
    %v3661 = vpack.c.b16 %v3613, %v3609
    %v3662 = vpack.c.b16 %v3614, %v3610
    %v3663 = vpack.c.b16 %v3615, %v3611
    %v3664 = vpack.c.b16 %v3616, %v3612
    %v3665 = vpack.c.b16 %v3621, %v3617
    %v3666 = vpack.c.b16 %v3622, %v3618
    %v3667 = vpack.c.b16 %v3623, %v3619
    %v3668 = vpack.c.b16 %v3624, %v3620
    %v3669 = vpack.c.b16 %v3629, %v3625
    %v3670 = vpack.c.b16 %v3630, %v3626
    %v3671 = vpack.c.b16 %v3631, %v3627
    %v3672 = vpack.c.b16 %v3632, %v3628
    %v3673 = vpack.c.b16 %v3637, %v3633
    %v3674 = vpack.c.b16 %v3638, %v3634
    %v3675 = vpack.c.b16 %v3639, %v3635
    %v3676 = vpack.c.b16 %v3640, %v3636
    %v3677 = vpack.c.b16 %v3645, %v3641
    %v3678 = vpack.c.b16 %v3646, %v3642
    %v3679 = vpack.c.b16 %v3647, %v3643
    %v3680 = vpack.c.b16 %v3648, %v3644
    %3713 = vmatpush.bf16.msra.mxu0 %v3677
    %3714 = vmatpush.bf16.msra.mxu0 %v3673
    %3715 = vmatpush.bf16.msra.mxu0 %v3669
    %3716 = vmatpush.bf16.msra.mxu0 %v3665
    %3717 = vmatpush.bf16.msra.mxu0 %v3661
    %3718 = vmatpush.bf16.msra.mxu0 %v3657
    %3719 = vmatpush.bf16.msra.mxu0 %v3653
    %3720 = vmatpush.bf16.msra.mxu0 %v3649
    %3721 = vmatmul.bf16.gmra.mxu0 %v3181
    %v3722 = vpop.f32.mrf.mxu0
    %v3723 = vadd.f32 0.0, %v3722
    %v3724 = vpop.f32.mrf.mxu0
    %3725 = vdwg.mxu0
    %3726 = vmatpush.bf16.msra.mxu0 %v3678
    %3727 = vmatpush.bf16.msra.mxu0 %v3674
    %3728 = vmatpush.bf16.msra.mxu0 %v3670
    %3729 = vmatpush.bf16.msra.mxu0 %v3666
    %3730 = vmatpush.bf16.msra.mxu0 %v3662
    %3731 = vmatpush.bf16.msra.mxu0 %v3658
    %3732 = vmatpush.bf16.msra.mxu0 %v3654
    %3733 = vmatpush.bf16.msra.mxu0 %v3650
    %3734 = vmatmul.bf16.gmra.mxu0 %v3181
    %v3735 = vpop.f32.mrf.mxu0
    %v3736 = vadd.f32 0.0, %v3735
    %v3737 = vpop.f32.mrf.mxu0
    %3738 = vdwg.mxu0
    %3739 = vmatpush.bf16.msra.mxu0 %v3679
    %3740 = vmatpush.bf16.msra.mxu0 %v3675
    %3741 = vmatpush.bf16.msra.mxu0 %v3671
    %3742 = vmatpush.bf16.msra.mxu0 %v3667
    %3743 = vmatpush.bf16.msra.mxu0 %v3663
    %3744 = vmatpush.bf16.msra.mxu0 %v3659
    %3745 = vmatpush.bf16.msra.mxu0 %v3655
    %3746 = vmatpush.bf16.msra.mxu0 %v3651
    %3747 = vmatmul.bf16.gmra.mxu0 %v3181
    %v3748 = vpop.f32.mrf.mxu0
    %v3749 = vadd.f32 0.0, %v3748
    %v3750 = vpop.f32.mrf.mxu0
    %3751 = vdwg.mxu0
    %3752 = vmatpush.bf16.msra.mxu0 %v3680
    %3753 = vmatpush.bf16.msra.mxu0 %v3676
    %3754 = vmatpush.bf16.msra.mxu0 %v3672
    %3755 = vmatpush.bf16.msra.mxu0 %v3668
    %3756 = vmatpush.bf16.msra.mxu0 %v3664
    %3757 = vmatpush.bf16.msra.mxu0 %v3660
    %3758 = vmatpush.bf16.msra.mxu0 %v3656
    %3759 = vmatpush.bf16.msra.mxu0 %v3652
    %3760 = vmatmul.bf16.gmra.mxu0 %v3181
    %v3761 = vpop.f32.mrf.mxu0
    %v3762 = vadd.f32 0.0, %v3761
    %v3763 = vpop.f32.mrf.mxu0
    %3764 = vdwg.mxu0
    %v3765 = vadd.f32 %v3517, %v3723
    %v3766 = vadd.f32 %v3518, %v3736
    %v3767 = vadd.f32 %v3519, %v3749
    %v3768 = vadd.f32 %v3520, %v3762
    %v3769 = vxor.u32 %v3765, 2147483648
    %v3770 = vmul.f32 %v3769, 1.442695
    %v3771 = vpow.pop %v3770
    %v3772 = vadd.f32 %v3771, 1.0
    %v3773 = vrcp.pop %v3772
    %v3774 = vmul.f32 %v3772, %v3773
    %v3775 = vsub.f32 1.0, %v3774
    %v3776 = vmul.f32 %v3773, %v3775
    %v3777 = vadd.f32 %v3773, %v3776
    %vm3778 = vweird.f32 %v3772
    %vm3779 = vweird.f32 %v3773
    %vm3780 = vmor %vm3778, %vm3779
    %v3781 = vsel %vm3780, %v3773, %v3777
    %v3782 = vand.u32 2147483647, %v3772
    %vm3783 = vcmp.eq.f32.partialorder %v3782, 8.507059e+37
    %v3784 = vand.u32 %v3772, 2147483648
    %v3785 = vor.u32 1.1754944e-38, %v3784
    %v3786 = vsel %vm3783, %v3785, %v3781
    %v3787 = vmul.f32 1.0, %v3786
    %v3788 = vxor.u32 %v3766, 2147483648
    %v3789 = vmul.f32 %v3788, 1.442695
    %v3790 = vpow.pop %v3789
    %v3791 = vadd.f32 %v3790, 1.0
    %v3792 = vrcp.pop %v3791
    %v3793 = vmul.f32 %v3791, %v3792
    %v3794 = vsub.f32 1.0, %v3793
    %v3795 = vmul.f32 %v3792, %v3794
    %v3796 = vadd.f32 %v3792, %v3795
    %vm3797 = vweird.f32 %v3791
    %vm3798 = vweird.f32 %v3792
    %vm3799 = vmor %vm3797, %vm3798
    %v3800 = vsel %vm3799, %v3792, %v3796
    %v3801 = vand.u32 2147483647, %v3791
    %vm3802 = vcmp.eq.f32.partialorder %v3801, 8.507059e+37
    %v3803 = vand.u32 %v3791, 2147483648
    %v3804 = vor.u32 1.1754944e-38, %v3803
    %v3805 = vsel %vm3802, %v3804, %v3800
    %v3806 = vmul.f32 1.0, %v3805
    %v3807 = vtanh.pop %v3767
    %v3808 = vxor.u32 %v3768, 2147483648
    %v3809 = vmul.f32 %v3808, 1.442695
    %v3810 = vpow.pop %v3809
    %v3811 = vadd.f32 %v3810, 1.0
    %v3812 = vrcp.pop %v3811
    %v3813 = vmul.f32 %v3811, %v3812
    %v3814 = vsub.f32 1.0, %v3813
    %v3815 = vmul.f32 %v3812, %v3814
    %v3816 = vadd.f32 %v3812, %v3815
    %vm3817 = vweird.f32 %v3811
    %vm3818 = vweird.f32 %v3812
    %vm3819 = vmor %vm3817, %vm3818
    %v3820 = vsel %vm3819, %v3812, %v3816
    %v3821 = vand.u32 2147483647, %v3811
    %vm3822 = vcmp.eq.f32.partialorder %v3821, 8.507059e+37
    %v3823 = vand.u32 %v3811, 2147483648
    %v3824 = vor.u32 1.1754944e-38, %v3823
    %v3825 = vsel %vm3822, %v3824, %v3820
    %v3826 = vmul.f32 1.0, %v3825
    %v3827 = vmul.f32 %v3806, %v3175
    %v3828 = vmul.f32 %v3787, %v3807
    %v3829 = vadd.f32 %v3827, %v3828
    %v3830 = vtanh.pop %v3829
    %v3831 = vmul.f32 %v3826, %v3830
    %v3832 = vpack.c.bf16 %v3516, %v3516
    %s3833 = scalar_lea.vmem [#allocation3], 16
    %3834 = vst [vmem:[%s3833] sm:$0xf] %v3832
    %v3835 = vpack.c.bf16 %v3831, %v3831
    %s3836 = scalar_lea.vmem [#allocation4], 12
    %3837 = vst [vmem:[%s3836] sm:$0xf] %v3835
    %v3838 = vmul.f32 %v3516, %v1214
    %3839 = vadd.xlane.f32.xlu0 %v3838
    %v3840 = vpop.xlane.xlu0 %3839
    %v3842 = vperm.slane %v3840, %v1221
    %3844 = vst.msk [vmem:[#allocation5 + $0x4] sm:$0x1] %vm1224, %v3842
    %v3845 = vmul.f32 %v3831, %v1227
    %3846 = vadd.xlane.f32.xlu0 %v3845
    %v3847 = vpop.xlane.xlu0 %3846
    %v3849 = vperm.slane %v3847, %v1221
    %3851 = vst.msk [vmem:[#allocation6 + $0x3] sm:$0x1] %vm1224, %v3849
    %v3852 = vld [vmem:[#allocation2 + $0xa0] sm:$0xff]
    %v3853 = vld [vmem:[#allocation2 + $0xa8] sm:$0xff]
    %v3854 = vld [vmem:[#allocation2 + $0x50] sm:$0xff]
    %v3855 = vld [vmem:[#allocation2 + $0x58] sm:$0xff]
    %v3856 = vunpack.c.l.bf16 %v3852
    %v3857 = vunpack.c.h.bf16 %v3852
    %v3858 = vunpack.c.l.bf16 %v3853
    %v3859 = vunpack.c.h.bf16 %v3853
    %v3860 = vld [vmem:[#allocation10] sm:$0xff]
    %v3861 = vld [vmem:[#allocation10 + $0x8] sm:$0xff]
    %v3862 = vld [vmem:[#allocation10 + $0x10] sm:$0xff]
    %v3863 = vld [vmem:[#allocation10 + $0x18] sm:$0xff]
    %v3864 = vld [vmem:[#allocation10 + $0x20] sm:$0xff]
    %v3865 = vld [vmem:[#allocation10 + $0x28] sm:$0xff]
    %v3866 = vld [vmem:[#allocation10 + $0x30] sm:$0xff]
    %v3867 = vld [vmem:[#allocation10 + $0x38] sm:$0xff]
    %v3868 = vld [vmem:[#allocation10 + $0x40] sm:$0xff]
    %v3869 = vld [vmem:[#allocation10 + $0x48] sm:$0xff]
    %v3870 = vld [vmem:[#allocation10 + $0x50] sm:$0xff]
    %v3871 = vld [vmem:[#allocation10 + $0x58] sm:$0xff]
    %v3872 = vld [vmem:[#allocation10 + $0x60] sm:$0xff]
    %v3873 = vld [vmem:[#allocation10 + $0x68] sm:$0xff]
    %v3874 = vld [vmem:[#allocation10 + $0x70] sm:$0xff]
    %v3875 = vld [vmem:[#allocation10 + $0x78] sm:$0xff]
    %v3876 = vld [vmem:[#allocation10 + $0x80] sm:$0xff]
    %v3877 = vld [vmem:[#allocation10 + $0x88] sm:$0xff]
    %v3878 = vld [vmem:[#allocation10 + $0x90] sm:$0xff]
    %v3879 = vld [vmem:[#allocation10 + $0x98] sm:$0xff]
    %v3880 = vld [vmem:[#allocation10 + $0xa0] sm:$0xff]
    %v3881 = vld [vmem:[#allocation10 + $0xa8] sm:$0xff]
    %v3882 = vld [vmem:[#allocation10 + $0xb0] sm:$0xff]
    %v3883 = vld [vmem:[#allocation10 + $0xb8] sm:$0xff]
    %v3884 = vld [vmem:[#allocation10 + $0xc0] sm:$0xff]
    %v3885 = vld [vmem:[#allocation10 + $0xc8] sm:$0xff]
    %v3886 = vld [vmem:[#allocation10 + $0xd0] sm:$0xff]
    %v3887 = vld [vmem:[#allocation10 + $0xd8] sm:$0xff]
    %v3888 = vld [vmem:[#allocation10 + $0xe0] sm:$0xff]
    %v3889 = vld [vmem:[#allocation10 + $0xe8] sm:$0xff]
    %v3890 = vld [vmem:[#allocation10 + $0xf0] sm:$0xff]
    %v3891 = vld [vmem:[#allocation10 + $0xf8] sm:$0xff]
    %v3924 = vunpack.c.l.b16 %v3860
    %v3925 = vunpack.c.h.b16 %v3860
    %v3926 = vunpack.c.l.b16 %v3861
    %v3927 = vunpack.c.h.b16 %v3861
    %v3928 = vunpack.c.l.b16 %v3862
    %v3929 = vunpack.c.h.b16 %v3862
    %v3930 = vunpack.c.l.b16 %v3863
    %v3931 = vunpack.c.h.b16 %v3863
    %v3932 = vunpack.c.l.b16 %v3864
    %v3933 = vunpack.c.h.b16 %v3864
    %v3934 = vunpack.c.l.b16 %v3865
    %v3935 = vunpack.c.h.b16 %v3865
    %v3936 = vunpack.c.l.b16 %v3866
    %v3937 = vunpack.c.h.b16 %v3866
    %v3938 = vunpack.c.l.b16 %v3867
    %v3939 = vunpack.c.h.b16 %v3867
    %v3940 = vunpack.c.l.b16 %v3868
    %v3941 = vunpack.c.h.b16 %v3868
    %v3942 = vunpack.c.l.b16 %v3869
    %v3943 = vunpack.c.h.b16 %v3869
    %v3944 = vunpack.c.l.b16 %v3870
    %v3945 = vunpack.c.h.b16 %v3870
    %v3946 = vunpack.c.l.b16 %v3871
    %v3947 = vunpack.c.h.b16 %v3871
    %v3948 = vunpack.c.l.b16 %v3872
    %v3949 = vunpack.c.h.b16 %v3872
    %v3950 = vunpack.c.l.b16 %v3873
    %v3951 = vunpack.c.h.b16 %v3873
    %v3952 = vunpack.c.l.b16 %v3874
    %v3953 = vunpack.c.h.b16 %v3874
    %v3954 = vunpack.c.l.b16 %v3875
    %v3955 = vunpack.c.h.b16 %v3875
    %v3956 = vunpack.c.l.b16 %v3876
    %v3957 = vunpack.c.h.b16 %v3876
    %v3958 = vunpack.c.l.b16 %v3877
    %v3959 = vunpack.c.h.b16 %v3877
    %v3960 = vunpack.c.l.b16 %v3878
    %v3961 = vunpack.c.h.b16 %v3878
    %v3962 = vunpack.c.l.b16 %v3879
    %v3963 = vunpack.c.h.b16 %v3879
    %v3964 = vunpack.c.l.b16 %v3880
    %v3965 = vunpack.c.h.b16 %v3880
    %v3966 = vunpack.c.l.b16 %v3881
    %v3967 = vunpack.c.h.b16 %v3881
    %v3968 = vunpack.c.l.b16 %v3882
    %v3969 = vunpack.c.h.b16 %v3882
    %v3970 = vunpack.c.l.b16 %v3883
    %v3971 = vunpack.c.h.b16 %v3883
    %v3972 = vunpack.c.l.b16 %v3884
    %v3973 = vunpack.c.h.b16 %v3884
    %v3974 = vunpack.c.l.b16 %v3885
    %v3975 = vunpack.c.h.b16 %v3885
    %v3976 = vunpack.c.l.b16 %v3886
    %v3977 = vunpack.c.h.b16 %v3886
    %v3978 = vunpack.c.l.b16 %v3887
    %v3979 = vunpack.c.h.b16 %v3887
    %v3980 = vunpack.c.l.b16 %v3888
    %v3981 = vunpack.c.h.b16 %v3888
    %v3982 = vunpack.c.l.b16 %v3889
    %v3983 = vunpack.c.h.b16 %v3889
    %v3984 = vunpack.c.l.b16 %v3890
    %v3985 = vunpack.c.h.b16 %v3890
    %v3986 = vunpack.c.l.b16 %v3891
    %v3987 = vunpack.c.h.b16 %v3891
    %v3988 = vpack.c.b16 %v3928, %v3924
    %v3989 = vpack.c.b16 %v3929, %v3925
    %v3990 = vpack.c.b16 %v3930, %v3926
    %v3991 = vpack.c.b16 %v3931, %v3927
    %v3992 = vpack.c.b16 %v3936, %v3932
    %v3993 = vpack.c.b16 %v3937, %v3933
    %v3994 = vpack.c.b16 %v3938, %v3934
    %v3995 = vpack.c.b16 %v3939, %v3935
    %v3996 = vpack.c.b16 %v3944, %v3940
    %v3997 = vpack.c.b16 %v3945, %v3941
    %v3998 = vpack.c.b16 %v3946, %v3942
    %v3999 = vpack.c.b16 %v3947, %v3943
    %v4000 = vpack.c.b16 %v3952, %v3948
    %v4001 = vpack.c.b16 %v3953, %v3949
    %v4002 = vpack.c.b16 %v3954, %v3950
    %v4003 = vpack.c.b16 %v3955, %v3951
    %v4004 = vpack.c.b16 %v3960, %v3956
    %v4005 = vpack.c.b16 %v3961, %v3957
    %v4006 = vpack.c.b16 %v3962, %v3958
    %v4007 = vpack.c.b16 %v3963, %v3959
    %v4008 = vpack.c.b16 %v3968, %v3964
    %v4009 = vpack.c.b16 %v3969, %v3965
    %v4010 = vpack.c.b16 %v3970, %v3966
    %v4011 = vpack.c.b16 %v3971, %v3967
    %v4012 = vpack.c.b16 %v3976, %v3972
    %v4013 = vpack.c.b16 %v3977, %v3973
    %v4014 = vpack.c.b16 %v3978, %v3974
    %v4015 = vpack.c.b16 %v3979, %v3975
    %v4016 = vpack.c.b16 %v3984, %v3980
    %v4017 = vpack.c.b16 %v3985, %v3981
    %v4018 = vpack.c.b16 %v3986, %v3982
    %v4019 = vpack.c.b16 %v3987, %v3983
    %4052 = vmatpush.bf16.msra.mxu0 %v4016
    %4053 = vmatpush.bf16.msra.mxu0 %v4012
    %4054 = vmatpush.bf16.msra.mxu0 %v4008
    %4055 = vmatpush.bf16.msra.mxu0 %v4004
    %4056 = vmatpush.bf16.msra.mxu0 %v4000
    %4057 = vmatpush.bf16.msra.mxu0 %v3996
    %4058 = vmatpush.bf16.msra.mxu0 %v3992
    %4059 = vmatpush.bf16.msra.mxu0 %v3988
    %4060 = vmatmul.bf16.gmra.mxu0 %v3832
    %v4061 = vpop.f32.mrf.mxu0
    %v4062 = vadd.f32 0.0, %v4061
    %v4063 = vpop.f32.mrf.mxu0
    %4064 = vdwg.mxu0
    %4065 = vmatpush.bf16.msra.mxu0 %v4017
    %4066 = vmatpush.bf16.msra.mxu0 %v4013
    %4067 = vmatpush.bf16.msra.mxu0 %v4009
    %4068 = vmatpush.bf16.msra.mxu0 %v4005
    %4069 = vmatpush.bf16.msra.mxu0 %v4001
    %4070 = vmatpush.bf16.msra.mxu0 %v3997
    %4071 = vmatpush.bf16.msra.mxu0 %v3993
    %4072 = vmatpush.bf16.msra.mxu0 %v3989
    %4073 = vmatmul.bf16.gmra.mxu0 %v3832
    %v4074 = vpop.f32.mrf.mxu0
    %v4075 = vadd.f32 0.0, %v4074
    %v4076 = vpop.f32.mrf.mxu0
    %4077 = vdwg.mxu0
    %4078 = vmatpush.bf16.msra.mxu0 %v4018
    %4079 = vmatpush.bf16.msra.mxu0 %v4014
    %4080 = vmatpush.bf16.msra.mxu0 %v4010
    %4081 = vmatpush.bf16.msra.mxu0 %v4006
    %4082 = vmatpush.bf16.msra.mxu0 %v4002
    %4083 = vmatpush.bf16.msra.mxu0 %v3998
    %4084 = vmatpush.bf16.msra.mxu0 %v3994
    %4085 = vmatpush.bf16.msra.mxu0 %v3990
    %4086 = vmatmul.bf16.gmra.mxu0 %v3832
    %v4087 = vpop.f32.mrf.mxu0
    %v4088 = vadd.f32 0.0, %v4087
    %v4089 = vpop.f32.mrf.mxu0
    %4090 = vdwg.mxu0
    %4091 = vmatpush.bf16.msra.mxu0 %v4019
    %4092 = vmatpush.bf16.msra.mxu0 %v4015
    %4093 = vmatpush.bf16.msra.mxu0 %v4011
    %4094 = vmatpush.bf16.msra.mxu0 %v4007
    %4095 = vmatpush.bf16.msra.mxu0 %v4003
    %4096 = vmatpush.bf16.msra.mxu0 %v3999
    %4097 = vmatpush.bf16.msra.mxu0 %v3995
    %4098 = vmatpush.bf16.msra.mxu0 %v3991
    %4099 = vmatmul.bf16.gmra.mxu0 %v3832
    %v4100 = vpop.f32.mrf.mxu0
    %v4101 = vadd.f32 0.0, %v4100
    %v4102 = vpop.f32.mrf.mxu0
    %4103 = vdwg.mxu0
    %v4104 = vadd.f32 %v3856, %v4062
    %v4105 = vadd.f32 %v3857, %v4075
    %v4106 = vadd.f32 %v3858, %v4088
    %v4107 = vadd.f32 %v3859, %v4101
    %v4108 = vxor.u32 %v4104, 2147483648
    %v4109 = vmul.f32 %v4108, 1.442695
    %v4110 = vpow.pop %v4109
    %v4111 = vadd.f32 %v4110, 1.0
    %v4112 = vrcp.pop %v4111
    %v4113 = vmul.f32 %v4111, %v4112
    %v4114 = vsub.f32 1.0, %v4113
    %v4115 = vmul.f32 %v4112, %v4114
    %v4116 = vadd.f32 %v4112, %v4115
    %vm4117 = vweird.f32 %v4111
    %vm4118 = vweird.f32 %v4112
    %vm4119 = vmor %vm4117, %vm4118
    %v4120 = vsel %vm4119, %v4112, %v4116
    %v4121 = vand.u32 2147483647, %v4111
    %vm4122 = vcmp.eq.f32.partialorder %v4121, 8.507059e+37
    %v4123 = vand.u32 %v4111, 2147483648
    %v4124 = vor.u32 1.1754944e-38, %v4123
    %v4125 = vsel %vm4122, %v4124, %v4120
    %v4126 = vmul.f32 1.0, %v4125
    %v4127 = vxor.u32 %v4105, 2147483648
    %v4128 = vmul.f32 %v4127, 1.442695
    %v4129 = vpow.pop %v4128
    %v4130 = vadd.f32 %v4129, 1.0
    %v4131 = vrcp.pop %v4130
    %v4132 = vmul.f32 %v4130, %v4131
    %v4133 = vsub.f32 1.0, %v4132
    %v4134 = vmul.f32 %v4131, %v4133
    %v4135 = vadd.f32 %v4131, %v4134
    %vm4136 = vweird.f32 %v4130
    %vm4137 = vweird.f32 %v4131
    %vm4138 = vmor %vm4136, %vm4137
    %v4139 = vsel %vm4138, %v4131, %v4135
    %v4140 = vand.u32 2147483647, %v4130
    %vm4141 = vcmp.eq.f32.partialorder %v4140, 8.507059e+37
    %v4142 = vand.u32 %v4130, 2147483648
    %v4143 = vor.u32 1.1754944e-38, %v4142
    %v4144 = vsel %vm4141, %v4143, %v4139
    %v4145 = vmul.f32 1.0, %v4144
    %v4146 = vtanh.pop %v4106
    %v4147 = vxor.u32 %v4107, 2147483648
    %v4148 = vmul.f32 %v4147, 1.442695
    %v4149 = vpow.pop %v4148
    %v4150 = vadd.f32 %v4149, 1.0
    %v4151 = vrcp.pop %v4150
    %v4152 = vmul.f32 %v4150, %v4151
    %v4153 = vsub.f32 1.0, %v4152
    %v4154 = vmul.f32 %v4151, %v4153
    %v4155 = vadd.f32 %v4151, %v4154
    %vm4156 = vweird.f32 %v4150
    %vm4157 = vweird.f32 %v4151
    %vm4158 = vmor %vm4156, %vm4157
    %v4159 = vsel %vm4158, %v4151, %v4155
    %v4160 = vand.u32 2147483647, %v4150
    %vm4161 = vcmp.eq.f32.partialorder %v4160, 8.507059e+37
    %v4162 = vand.u32 %v4150, 2147483648
    %v4163 = vor.u32 1.1754944e-38, %v4162
    %v4164 = vsel %vm4161, %v4163, %v4159
    %v4165 = vmul.f32 1.0, %v4164
    %v4166 = vmul.f32 %v4145, %v3514
    %v4167 = vmul.f32 %v4126, %v4146
    %v4168 = vadd.f32 %v4166, %v4167
    %v4169 = vtanh.pop %v4168
    %v4170 = vmul.f32 %v4165, %v4169
    %v4171 = vunpack.c.l.bf16 %v3854
    %v4172 = vunpack.c.h.bf16 %v3854
    %v4173 = vunpack.c.l.bf16 %v3855
    %v4174 = vunpack.c.h.bf16 %v3855
    %v4175 = vld [vmem:[#allocation12] sm:$0xff]
    %v4176 = vld [vmem:[#allocation12 + $0x8] sm:$0xff]
    %v4177 = vld [vmem:[#allocation12 + $0x10] sm:$0xff]
    %v4178 = vld [vmem:[#allocation12 + $0x18] sm:$0xff]
    %v4179 = vld [vmem:[#allocation12 + $0x20] sm:$0xff]
    %v4180 = vld [vmem:[#allocation12 + $0x28] sm:$0xff]
    %v4181 = vld [vmem:[#allocation12 + $0x30] sm:$0xff]
    %v4182 = vld [vmem:[#allocation12 + $0x38] sm:$0xff]
    %v4183 = vld [vmem:[#allocation12 + $0x40] sm:$0xff]
    %v4184 = vld [vmem:[#allocation12 + $0x48] sm:$0xff]
    %v4185 = vld [vmem:[#allocation12 + $0x50] sm:$0xff]
    %v4186 = vld [vmem:[#allocation12 + $0x58] sm:$0xff]
    %v4187 = vld [vmem:[#allocation12 + $0x60] sm:$0xff]
    %v4188 = vld [vmem:[#allocation12 + $0x68] sm:$0xff]
    %v4189 = vld [vmem:[#allocation12 + $0x70] sm:$0xff]
    %v4190 = vld [vmem:[#allocation12 + $0x78] sm:$0xff]
    %v4191 = vld [vmem:[#allocation12 + $0x80] sm:$0xff]
    %v4192 = vld [vmem:[#allocation12 + $0x88] sm:$0xff]
    %v4193 = vld [vmem:[#allocation12 + $0x90] sm:$0xff]
    %v4194 = vld [vmem:[#allocation12 + $0x98] sm:$0xff]
    %v4195 = vld [vmem:[#allocation12 + $0xa0] sm:$0xff]
    %v4196 = vld [vmem:[#allocation12 + $0xa8] sm:$0xff]
    %v4197 = vld [vmem:[#allocation12 + $0xb0] sm:$0xff]
    %v4198 = vld [vmem:[#allocation12 + $0xb8] sm:$0xff]
    %v4199 = vld [vmem:[#allocation12 + $0xc0] sm:$0xff]
    %v4200 = vld [vmem:[#allocation12 + $0xc8] sm:$0xff]
    %v4201 = vld [vmem:[#allocation12 + $0xd0] sm:$0xff]
    %v4202 = vld [vmem:[#allocation12 + $0xd8] sm:$0xff]
    %v4203 = vld [vmem:[#allocation12 + $0xe0] sm:$0xff]
    %v4204 = vld [vmem:[#allocation12 + $0xe8] sm:$0xff]
    %v4205 = vld [vmem:[#allocation12 + $0xf0] sm:$0xff]
    %v4206 = vld [vmem:[#allocation12 + $0xf8] sm:$0xff]
    %v4239 = vunpack.c.l.b16 %v4175
    %v4240 = vunpack.c.h.b16 %v4175
    %v4241 = vunpack.c.l.b16 %v4176
    %v4242 = vunpack.c.h.b16 %v4176
    %v4243 = vunpack.c.l.b16 %v4177
    %v4244 = vunpack.c.h.b16 %v4177
    %v4245 = vunpack.c.l.b16 %v4178
    %v4246 = vunpack.c.h.b16 %v4178
    %v4247 = vunpack.c.l.b16 %v4179
    %v4248 = vunpack.c.h.b16 %v4179
    %v4249 = vunpack.c.l.b16 %v4180
    %v4250 = vunpack.c.h.b16 %v4180
    %v4251 = vunpack.c.l.b16 %v4181
    %v4252 = vunpack.c.h.b16 %v4181
    %v4253 = vunpack.c.l.b16 %v4182
    %v4254 = vunpack.c.h.b16 %v4182
    %v4255 = vunpack.c.l.b16 %v4183
    %v4256 = vunpack.c.h.b16 %v4183
    %v4257 = vunpack.c.l.b16 %v4184
    %v4258 = vunpack.c.h.b16 %v4184
    %v4259 = vunpack.c.l.b16 %v4185
    %v4260 = vunpack.c.h.b16 %v4185
    %v4261 = vunpack.c.l.b16 %v4186
    %v4262 = vunpack.c.h.b16 %v4186
    %v4263 = vunpack.c.l.b16 %v4187
    %v4264 = vunpack.c.h.b16 %v4187
    %v4265 = vunpack.c.l.b16 %v4188
    %v4266 = vunpack.c.h.b16 %v4188
    %v4267 = vunpack.c.l.b16 %v4189
    %v4268 = vunpack.c.h.b16 %v4189
    %v4269 = vunpack.c.l.b16 %v4190
    %v4270 = vunpack.c.h.b16 %v4190
    %v4271 = vunpack.c.l.b16 %v4191
    %v4272 = vunpack.c.h.b16 %v4191
    %v4273 = vunpack.c.l.b16 %v4192
    %v4274 = vunpack.c.h.b16 %v4192
    %v4275 = vunpack.c.l.b16 %v4193
    %v4276 = vunpack.c.h.b16 %v4193
    %v4277 = vunpack.c.l.b16 %v4194
    %v4278 = vunpack.c.h.b16 %v4194
    %v4279 = vunpack.c.l.b16 %v4195
    %v4280 = vunpack.c.h.b16 %v4195
    %v4281 = vunpack.c.l.b16 %v4196
    %v4282 = vunpack.c.h.b16 %v4196
    %v4283 = vunpack.c.l.b16 %v4197
    %v4284 = vunpack.c.h.b16 %v4197
    %v4285 = vunpack.c.l.b16 %v4198
    %v4286 = vunpack.c.h.b16 %v4198
    %v4287 = vunpack.c.l.b16 %v4199
    %v4288 = vunpack.c.h.b16 %v4199
    %v4289 = vunpack.c.l.b16 %v4200
    %v4290 = vunpack.c.h.b16 %v4200
    %v4291 = vunpack.c.l.b16 %v4201
    %v4292 = vunpack.c.h.b16 %v4201
    %v4293 = vunpack.c.l.b16 %v4202
    %v4294 = vunpack.c.h.b16 %v4202
    %v4295 = vunpack.c.l.b16 %v4203
    %v4296 = vunpack.c.h.b16 %v4203
    %v4297 = vunpack.c.l.b16 %v4204
    %v4298 = vunpack.c.h.b16 %v4204
    %v4299 = vunpack.c.l.b16 %v4205
    %v4300 = vunpack.c.h.b16 %v4205
    %v4301 = vunpack.c.l.b16 %v4206
    %v4302 = vunpack.c.h.b16 %v4206
    %v4303 = vpack.c.b16 %v4243, %v4239
    %v4304 = vpack.c.b16 %v4244, %v4240
    %v4305 = vpack.c.b16 %v4245, %v4241
    %v4306 = vpack.c.b16 %v4246, %v4242
    %v4307 = vpack.c.b16 %v4251, %v4247
    %v4308 = vpack.c.b16 %v4252, %v4248
    %v4309 = vpack.c.b16 %v4253, %v4249
    %v4310 = vpack.c.b16 %v4254, %v4250
    %v4311 = vpack.c.b16 %v4259, %v4255
    %v4312 = vpack.c.b16 %v4260, %v4256
    %v4313 = vpack.c.b16 %v4261, %v4257
    %v4314 = vpack.c.b16 %v4262, %v4258
    %v4315 = vpack.c.b16 %v4267, %v4263
    %v4316 = vpack.c.b16 %v4268, %v4264
    %v4317 = vpack.c.b16 %v4269, %v4265
    %v4318 = vpack.c.b16 %v4270, %v4266
    %v4319 = vpack.c.b16 %v4275, %v4271
    %v4320 = vpack.c.b16 %v4276, %v4272
    %v4321 = vpack.c.b16 %v4277, %v4273
    %v4322 = vpack.c.b16 %v4278, %v4274
    %v4323 = vpack.c.b16 %v4283, %v4279
    %v4324 = vpack.c.b16 %v4284, %v4280
    %v4325 = vpack.c.b16 %v4285, %v4281
    %v4326 = vpack.c.b16 %v4286, %v4282
    %v4327 = vpack.c.b16 %v4291, %v4287
    %v4328 = vpack.c.b16 %v4292, %v4288
    %v4329 = vpack.c.b16 %v4293, %v4289
    %v4330 = vpack.c.b16 %v4294, %v4290
    %v4331 = vpack.c.b16 %v4299, %v4295
    %v4332 = vpack.c.b16 %v4300, %v4296
    %v4333 = vpack.c.b16 %v4301, %v4297
    %v4334 = vpack.c.b16 %v4302, %v4298
    %4367 = vmatpush.bf16.msra.mxu0 %v4331
    %4368 = vmatpush.bf16.msra.mxu0 %v4327
    %4369 = vmatpush.bf16.msra.mxu0 %v4323
    %4370 = vmatpush.bf16.msra.mxu0 %v4319
    %4371 = vmatpush.bf16.msra.mxu0 %v4315
    %4372 = vmatpush.bf16.msra.mxu0 %v4311
    %4373 = vmatpush.bf16.msra.mxu0 %v4307
    %4374 = vmatpush.bf16.msra.mxu0 %v4303
    %4375 = vmatmul.bf16.gmra.mxu0 %v3835
    %v4376 = vpop.f32.mrf.mxu0
    %v4377 = vadd.f32 0.0, %v4376
    %v4378 = vpop.f32.mrf.mxu0
    %4379 = vdwg.mxu0
    %4380 = vmatpush.bf16.msra.mxu0 %v4332
    %4381 = vmatpush.bf16.msra.mxu0 %v4328
    %4382 = vmatpush.bf16.msra.mxu0 %v4324
    %4383 = vmatpush.bf16.msra.mxu0 %v4320
    %4384 = vmatpush.bf16.msra.mxu0 %v4316
    %4385 = vmatpush.bf16.msra.mxu0 %v4312
    %4386 = vmatpush.bf16.msra.mxu0 %v4308
    %4387 = vmatpush.bf16.msra.mxu0 %v4304
    %4388 = vmatmul.bf16.gmra.mxu0 %v3835
    %v4389 = vpop.f32.mrf.mxu0
    %v4390 = vadd.f32 0.0, %v4389
    %v4391 = vpop.f32.mrf.mxu0
    %4392 = vdwg.mxu0
    %4393 = vmatpush.bf16.msra.mxu0 %v4333
    %4394 = vmatpush.bf16.msra.mxu0 %v4329
    %4395 = vmatpush.bf16.msra.mxu0 %v4325
    %4396 = vmatpush.bf16.msra.mxu0 %v4321
    %4397 = vmatpush.bf16.msra.mxu0 %v4317
    %4398 = vmatpush.bf16.msra.mxu0 %v4313
    %4399 = vmatpush.bf16.msra.mxu0 %v4309
    %4400 = vmatpush.bf16.msra.mxu0 %v4305
    %4401 = vmatmul.bf16.gmra.mxu0 %v3835
    %v4402 = vpop.f32.mrf.mxu0
    %v4403 = vadd.f32 0.0, %v4402
    %v4404 = vpop.f32.mrf.mxu0
    %4405 = vdwg.mxu0
    %4406 = vmatpush.bf16.msra.mxu0 %v4334
    %4407 = vmatpush.bf16.msra.mxu0 %v4330
    %4408 = vmatpush.bf16.msra.mxu0 %v4326
    %4409 = vmatpush.bf16.msra.mxu0 %v4322
    %4410 = vmatpush.bf16.msra.mxu0 %v4318
    %4411 = vmatpush.bf16.msra.mxu0 %v4314
    %4412 = vmatpush.bf16.msra.mxu0 %v4310
    %4413 = vmatpush.bf16.msra.mxu0 %v4306
    %4414 = vmatmul.bf16.gmra.mxu0 %v3835
    %v4415 = vpop.f32.mrf.mxu0
    %v4416 = vadd.f32 0.0, %v4415
    %v4417 = vpop.f32.mrf.mxu0
    %4418 = vdwg.mxu0
    %v4419 = vadd.f32 %v4171, %v4377
    %v4420 = vadd.f32 %v4172, %v4390
    %v4421 = vadd.f32 %v4173, %v4403
    %v4422 = vadd.f32 %v4174, %v4416
    %v4423 = vxor.u32 %v4419, 2147483648
    %v4424 = vmul.f32 %v4423, 1.442695
    %v4425 = vpow.pop %v4424
    %v4426 = vadd.f32 %v4425, 1.0
    %v4427 = vrcp.pop %v4426
    %v4428 = vmul.f32 %v4426, %v4427
    %v4429 = vsub.f32 1.0, %v4428
    %v4430 = vmul.f32 %v4427, %v4429
    %v4431 = vadd.f32 %v4427, %v4430
    %vm4432 = vweird.f32 %v4426
    %vm4433 = vweird.f32 %v4427
    %vm4434 = vmor %vm4432, %vm4433
    %v4435 = vsel %vm4434, %v4427, %v4431
    %v4436 = vand.u32 2147483647, %v4426
    %vm4437 = vcmp.eq.f32.partialorder %v4436, 8.507059e+37
    %v4438 = vand.u32 %v4426, 2147483648
    %v4439 = vor.u32 1.1754944e-38, %v4438
    %v4440 = vsel %vm4437, %v4439, %v4435
    %v4441 = vmul.f32 1.0, %v4440
    %v4442 = vxor.u32 %v4420, 2147483648
    %v4443 = vmul.f32 %v4442, 1.442695
    %v4444 = vpow.pop %v4443
    %v4445 = vadd.f32 %v4444, 1.0
    %v4446 = vrcp.pop %v4445
    %v4447 = vmul.f32 %v4445, %v4446
    %v4448 = vsub.f32 1.0, %v4447
    %v4449 = vmul.f32 %v4446, %v4448
    %v4450 = vadd.f32 %v4446, %v4449
    %vm4451 = vweird.f32 %v4445
    %vm4452 = vweird.f32 %v4446
    %vm4453 = vmor %vm4451, %vm4452
    %v4454 = vsel %vm4453, %v4446, %v4450
    %v4455 = vand.u32 2147483647, %v4445
    %vm4456 = vcmp.eq.f32.partialorder %v4455, 8.507059e+37
    %v4457 = vand.u32 %v4445, 2147483648
    %v4458 = vor.u32 1.1754944e-38, %v4457
    %v4459 = vsel %vm4456, %v4458, %v4454
    %v4460 = vmul.f32 1.0, %v4459
    %v4461 = vtanh.pop %v4421
    %v4462 = vxor.u32 %v4422, 2147483648
    %v4463 = vmul.f32 %v4462, 1.442695
    %v4464 = vpow.pop %v4463
    %v4465 = vadd.f32 %v4464, 1.0
    %v4466 = vrcp.pop %v4465
    %v4467 = vmul.f32 %v4465, %v4466
    %v4468 = vsub.f32 1.0, %v4467
    %v4469 = vmul.f32 %v4466, %v4468
    %v4470 = vadd.f32 %v4466, %v4469
    %vm4471 = vweird.f32 %v4465
    %vm4472 = vweird.f32 %v4466
    %vm4473 = vmor %vm4471, %vm4472
    %v4474 = vsel %vm4473, %v4466, %v4470
    %v4475 = vand.u32 2147483647, %v4465
    %vm4476 = vcmp.eq.f32.partialorder %v4475, 8.507059e+37
    %v4477 = vand.u32 %v4465, 2147483648
    %v4478 = vor.u32 1.1754944e-38, %v4477
    %v4479 = vsel %vm4476, %v4478, %v4474
    %v4480 = vmul.f32 1.0, %v4479
    %v4481 = vmul.f32 %v4460, %v3829
    %v4482 = vmul.f32 %v4441, %v4461
    %v4483 = vadd.f32 %v4481, %v4482
    %v4484 = vtanh.pop %v4483
    %v4485 = vmul.f32 %v4480, %v4484
    %v4486 = vpack.c.bf16 %v4170, %v4170
    %s4487 = scalar_lea.vmem [#allocation3], 20
    %4488 = vst [vmem:[%s4487] sm:$0xf] %v4486
    %v4489 = vpack.c.bf16 %v4485, %v4485
    %s4490 = scalar_lea.vmem [#allocation4], 8
    %4491 = vst [vmem:[%s4490] sm:$0xf] %v4489
    %v4492 = vmul.f32 %v4170, %v1214
    %4493 = vadd.xlane.f32.xlu0 %v4492
    %v4494 = vpop.xlane.xlu0 %4493
    %v4496 = vperm.slane %v4494, %v1221
    %4498 = vst.msk [vmem:[#allocation5 + $0x5] sm:$0x1] %vm1224, %v4496
    %v4499 = vmul.f32 %v4485, %v1227
    %4500 = vadd.xlane.f32.xlu0 %v4499
    %v4501 = vpop.xlane.xlu0 %4500
    %v4503 = vperm.slane %v4501, %v1221
    %4505 = vst.msk [vmem:[#allocation6 + $0x2] sm:$0x1] %vm1224, %v4503
    %v4506 = vld [vmem:[#allocation2 + $0xc0] sm:$0xff]
    %v4507 = vld [vmem:[#allocation2 + $0xc8] sm:$0xff]
    %v4508 = vld [vmem:[#allocation2 + $0x30] sm:$0xff]
    %v4509 = vld [vmem:[#allocation2 + $0x38] sm:$0xff]
    %v4510 = vunpack.c.l.bf16 %v4506
    %v4511 = vunpack.c.h.bf16 %v4506
    %v4512 = vunpack.c.l.bf16 %v4507
    %v4513 = vunpack.c.h.bf16 %v4507
    %v4514 = vld [vmem:[#allocation10] sm:$0xff]
    %v4515 = vld [vmem:[#allocation10 + $0x8] sm:$0xff]
    %v4516 = vld [vmem:[#allocation10 + $0x10] sm:$0xff]
    %v4517 = vld [vmem:[#allocation10 + $0x18] sm:$0xff]
    %v4518 = vld [vmem:[#allocation10 + $0x20] sm:$0xff]
    %v4519 = vld [vmem:[#allocation10 + $0x28] sm:$0xff]
    %v4520 = vld [vmem:[#allocation10 + $0x30] sm:$0xff]
    %v4521 = vld [vmem:[#allocation10 + $0x38] sm:$0xff]
    %v4522 = vld [vmem:[#allocation10 + $0x40] sm:$0xff]
    %v4523 = vld [vmem:[#allocation10 + $0x48] sm:$0xff]
    %v4524 = vld [vmem:[#allocation10 + $0x50] sm:$0xff]
    %v4525 = vld [vmem:[#allocation10 + $0x58] sm:$0xff]
    %v4526 = vld [vmem:[#allocation10 + $0x60] sm:$0xff]
    %v4527 = vld [vmem:[#allocation10 + $0x68] sm:$0xff]
    %v4528 = vld [vmem:[#allocation10 + $0x70] sm:$0xff]
    %v4529 = vld [vmem:[#allocation10 + $0x78] sm:$0xff]
    %v4530 = vld [vmem:[#allocation10 + $0x80] sm:$0xff]
    %v4531 = vld [vmem:[#allocation10 + $0x88] sm:$0xff]
    %v4532 = vld [vmem:[#allocation10 + $0x90] sm:$0xff]
    %v4533 = vld [vmem:[#allocation10 + $0x98] sm:$0xff]
    %v4534 = vld [vmem:[#allocation10 + $0xa0] sm:$0xff]
    %v4535 = vld [vmem:[#allocation10 + $0xa8] sm:$0xff]
    %v4536 = vld [vmem:[#allocation10 + $0xb0] sm:$0xff]
    %v4537 = vld [vmem:[#allocation10 + $0xb8] sm:$0xff]
    %v4538 = vld [vmem:[#allocation10 + $0xc0] sm:$0xff]
    %v4539 = vld [vmem:[#allocation10 + $0xc8] sm:$0xff]
    %v4540 = vld [vmem:[#allocation10 + $0xd0] sm:$0xff]
    %v4541 = vld [vmem:[#allocation10 + $0xd8] sm:$0xff]
    %v4542 = vld [vmem:[#allocation10 + $0xe0] sm:$0xff]
    %v4543 = vld [vmem:[#allocation10 + $0xe8] sm:$0xff]
    %v4544 = vld [vmem:[#allocation10 + $0xf0] sm:$0xff]
    %v4545 = vld [vmem:[#allocation10 + $0xf8] sm:$0xff]
    %v4578 = vunpack.c.l.b16 %v4514
    %v4579 = vunpack.c.h.b16 %v4514
    %v4580 = vunpack.c.l.b16 %v4515
    %v4581 = vunpack.c.h.b16 %v4515
    %v4582 = vunpack.c.l.b16 %v4516
    %v4583 = vunpack.c.h.b16 %v4516
    %v4584 = vunpack.c.l.b16 %v4517
    %v4585 = vunpack.c.h.b16 %v4517
    %v4586 = vunpack.c.l.b16 %v4518
    %v4587 = vunpack.c.h.b16 %v4518
    %v4588 = vunpack.c.l.b16 %v4519
    %v4589 = vunpack.c.h.b16 %v4519
    %v4590 = vunpack.c.l.b16 %v4520
    %v4591 = vunpack.c.h.b16 %v4520
    %v4592 = vunpack.c.l.b16 %v4521
    %v4593 = vunpack.c.h.b16 %v4521
    %v4594 = vunpack.c.l.b16 %v4522
    %v4595 = vunpack.c.h.b16 %v4522
    %v4596 = vunpack.c.l.b16 %v4523
    %v4597 = vunpack.c.h.b16 %v4523
    %v4598 = vunpack.c.l.b16 %v4524
    %v4599 = vunpack.c.h.b16 %v4524
    %v4600 = vunpack.c.l.b16 %v4525
    %v4601 = vunpack.c.h.b16 %v4525
    %v4602 = vunpack.c.l.b16 %v4526
    %v4603 = vunpack.c.h.b16 %v4526
    %v4604 = vunpack.c.l.b16 %v4527
    %v4605 = vunpack.c.h.b16 %v4527
    %v4606 = vunpack.c.l.b16 %v4528
    %v4607 = vunpack.c.h.b16 %v4528
    %v4608 = vunpack.c.l.b16 %v4529
    %v4609 = vunpack.c.h.b16 %v4529
    %v4610 = vunpack.c.l.b16 %v4530
    %v4611 = vunpack.c.h.b16 %v4530
    %v4612 = vunpack.c.l.b16 %v4531
    %v4613 = vunpack.c.h.b16 %v4531
    %v4614 = vunpack.c.l.b16 %v4532
    %v4615 = vunpack.c.h.b16 %v4532
    %v4616 = vunpack.c.l.b16 %v4533
    %v4617 = vunpack.c.h.b16 %v4533
    %v4618 = vunpack.c.l.b16 %v4534
    %v4619 = vunpack.c.h.b16 %v4534
    %v4620 = vunpack.c.l.b16 %v4535
    %v4621 = vunpack.c.h.b16 %v4535
    %v4622 = vunpack.c.l.b16 %v4536
    %v4623 = vunpack.c.h.b16 %v4536
    %v4624 = vunpack.c.l.b16 %v4537
    %v4625 = vunpack.c.h.b16 %v4537
    %v4626 = vunpack.c.l.b16 %v4538
    %v4627 = vunpack.c.h.b16 %v4538
    %v4628 = vunpack.c.l.b16 %v4539
    %v4629 = vunpack.c.h.b16 %v4539
    %v4630 = vunpack.c.l.b16 %v4540
    %v4631 = vunpack.c.h.b16 %v4540
    %v4632 = vunpack.c.l.b16 %v4541
    %v4633 = vunpack.c.h.b16 %v4541
    %v4634 = vunpack.c.l.b16 %v4542
    %v4635 = vunpack.c.h.b16 %v4542
    %v4636 = vunpack.c.l.b16 %v4543
    %v4637 = vunpack.c.h.b16 %v4543
    %v4638 = vunpack.c.l.b16 %v4544
    %v4639 = vunpack.c.h.b16 %v4544
    %v4640 = vunpack.c.l.b16 %v4545
    %v4641 = vunpack.c.h.b16 %v4545
    %v4642 = vpack.c.b16 %v4582, %v4578
    %v4643 = vpack.c.b16 %v4583, %v4579
    %v4644 = vpack.c.b16 %v4584, %v4580
    %v4645 = vpack.c.b16 %v4585, %v4581
    %v4646 = vpack.c.b16 %v4590, %v4586
    %v4647 = vpack.c.b16 %v4591, %v4587
    %v4648 = vpack.c.b16 %v4592, %v4588
    %v4649 = vpack.c.b16 %v4593, %v4589
    %v4650 = vpack.c.b16 %v4598, %v4594
    %v4651 = vpack.c.b16 %v4599, %v4595
    %v4652 = vpack.c.b16 %v4600, %v4596
    %v4653 = vpack.c.b16 %v4601, %v4597
    %v4654 = vpack.c.b16 %v4606, %v4602
    %v4655 = vpack.c.b16 %v4607, %v4603
    %v4656 = vpack.c.b16 %v4608, %v4604
    %v4657 = vpack.c.b16 %v4609, %v4605
    %v4658 = vpack.c.b16 %v4614, %v4610
    %v4659 = vpack.c.b16 %v4615, %v4611
    %v4660 = vpack.c.b16 %v4616, %v4612
    %v4661 = vpack.c.b16 %v4617, %v4613
    %v4662 = vpack.c.b16 %v4622, %v4618
    %v4663 = vpack.c.b16 %v4623, %v4619
    %v4664 = vpack.c.b16 %v4624, %v4620
    %v4665 = vpack.c.b16 %v4625, %v4621
    %v4666 = vpack.c.b16 %v4630, %v4626
    %v4667 = vpack.c.b16 %v4631, %v4627
    %v4668 = vpack.c.b16 %v4632, %v4628
    %v4669 = vpack.c.b16 %v4633, %v4629
    %v4670 = vpack.c.b16 %v4638, %v4634
    %v4671 = vpack.c.b16 %v4639, %v4635
    %v4672 = vpack.c.b16 %v4640, %v4636
    %v4673 = vpack.c.b16 %v4641, %v4637
    %4706 = vmatpush.bf16.msra.mxu0 %v4670
    %4707 = vmatpush.bf16.msra.mxu0 %v4666
    %4708 = vmatpush.bf16.msra.mxu0 %v4662
    %4709 = vmatpush.bf16.msra.mxu0 %v4658
    %4710 = vmatpush.bf16.msra.mxu0 %v4654
    %4711 = vmatpush.bf16.msra.mxu0 %v4650
    %4712 = vmatpush.bf16.msra.mxu0 %v4646
    %4713 = vmatpush.bf16.msra.mxu0 %v4642
    %4714 = vmatmul.bf16.gmra.mxu0 %v4486
    %v4715 = vpop.f32.mrf.mxu0
    %v4716 = vadd.f32 0.0, %v4715
    %v4717 = vpop.f32.mrf.mxu0
    %4718 = vdwg.mxu0
    %4719 = vmatpush.bf16.msra.mxu0 %v4671
    %4720 = vmatpush.bf16.msra.mxu0 %v4667
    %4721 = vmatpush.bf16.msra.mxu0 %v4663
    %4722 = vmatpush.bf16.msra.mxu0 %v4659
    %4723 = vmatpush.bf16.msra.mxu0 %v4655
    %4724 = vmatpush.bf16.msra.mxu0 %v4651
    %4725 = vmatpush.bf16.msra.mxu0 %v4647
    %4726 = vmatpush.bf16.msra.mxu0 %v4643
    %4727 = vmatmul.bf16.gmra.mxu0 %v4486
    %v4728 = vpop.f32.mrf.mxu0
    %v4729 = vadd.f32 0.0, %v4728
    %v4730 = vpop.f32.mrf.mxu0
    %4731 = vdwg.mxu0
    %4732 = vmatpush.bf16.msra.mxu0 %v4672
    %4733 = vmatpush.bf16.msra.mxu0 %v4668
    %4734 = vmatpush.bf16.msra.mxu0 %v4664
    %4735 = vmatpush.bf16.msra.mxu0 %v4660
    %4736 = vmatpush.bf16.msra.mxu0 %v4656
    %4737 = vmatpush.bf16.msra.mxu0 %v4652
    %4738 = vmatpush.bf16.msra.mxu0 %v4648
    %4739 = vmatpush.bf16.msra.mxu0 %v4644
    %4740 = vmatmul.bf16.gmra.mxu0 %v4486
    %v4741 = vpop.f32.mrf.mxu0
    %v4742 = vadd.f32 0.0, %v4741
    %v4743 = vpop.f32.mrf.mxu0
    %4744 = vdwg.mxu0
    %4745 = vmatpush.bf16.msra.mxu0 %v4673
    %4746 = vmatpush.bf16.msra.mxu0 %v4669
    %4747 = vmatpush.bf16.msra.mxu0 %v4665
    %4748 = vmatpush.bf16.msra.mxu0 %v4661
    %4749 = vmatpush.bf16.msra.mxu0 %v4657
    %4750 = vmatpush.bf16.msra.mxu0 %v4653
    %4751 = vmatpush.bf16.msra.mxu0 %v4649
    %4752 = vmatpush.bf16.msra.mxu0 %v4645
    %4753 = vmatmul.bf16.gmra.mxu0 %v4486
    %v4754 = vpop.f32.mrf.mxu0
    %v4755 = vadd.f32 0.0, %v4754
    %v4756 = vpop.f32.mrf.mxu0
    %4757 = vdwg.mxu0
    %v4758 = vadd.f32 %v4510, %v4716
    %v4759 = vadd.f32 %v4511, %v4729
    %v4760 = vadd.f32 %v4512, %v4742
    %v4761 = vadd.f32 %v4513, %v4755
    %v4762 = vxor.u32 %v4758, 2147483648
    %v4763 = vmul.f32 %v4762, 1.442695
    %v4764 = vpow.pop %v4763
    %v4765 = vadd.f32 %v4764, 1.0
    %v4766 = vrcp.pop %v4765
    %v4767 = vmul.f32 %v4765, %v4766
    %v4768 = vsub.f32 1.0, %v4767
    %v4769 = vmul.f32 %v4766, %v4768
    %v4770 = vadd.f32 %v4766, %v4769
    %vm4771 = vweird.f32 %v4765
    %vm4772 = vweird.f32 %v4766
    %vm4773 = vmor %vm4771, %vm4772
    %v4774 = vsel %vm4773, %v4766, %v4770
    %v4775 = vand.u32 2147483647, %v4765
    %vm4776 = vcmp.eq.f32.partialorder %v4775, 8.507059e+37
    %v4777 = vand.u32 %v4765, 2147483648
    %v4778 = vor.u32 1.1754944e-38, %v4777
    %v4779 = vsel %vm4776, %v4778, %v4774
    %v4780 = vmul.f32 1.0, %v4779
    %v4781 = vxor.u32 %v4759, 2147483648
    %v4782 = vmul.f32 %v4781, 1.442695
    %v4783 = vpow.pop %v4782
    %v4784 = vadd.f32 %v4783, 1.0
    %v4785 = vrcp.pop %v4784
    %v4786 = vmul.f32 %v4784, %v4785
    %v4787 = vsub.f32 1.0, %v4786
    %v4788 = vmul.f32 %v4785, %v4787
    %v4789 = vadd.f32 %v4785, %v4788
    %vm4790 = vweird.f32 %v4784
    %vm4791 = vweird.f32 %v4785
    %vm4792 = vmor %vm4790, %vm4791
    %v4793 = vsel %vm4792, %v4785, %v4789
    %v4794 = vand.u32 2147483647, %v4784
    %vm4795 = vcmp.eq.f32.partialorder %v4794, 8.507059e+37
    %v4796 = vand.u32 %v4784, 2147483648
    %v4797 = vor.u32 1.1754944e-38, %v4796
    %v4798 = vsel %vm4795, %v4797, %v4793
    %v4799 = vmul.f32 1.0, %v4798
    %v4800 = vtanh.pop %v4760
    %v4801 = vxor.u32 %v4761, 2147483648
    %v4802 = vmul.f32 %v4801, 1.442695
    %v4803 = vpow.pop %v4802
    %v4804 = vadd.f32 %v4803, 1.0
    %v4805 = vrcp.pop %v4804
    %v4806 = vmul.f32 %v4804, %v4805
    %v4807 = vsub.f32 1.0, %v4806
    %v4808 = vmul.f32 %v4805, %v4807
    %v4809 = vadd.f32 %v4805, %v4808
    %vm4810 = vweird.f32 %v4804
    %vm4811 = vweird.f32 %v4805
    %vm4812 = vmor %vm4810, %vm4811
    %v4813 = vsel %vm4812, %v4805, %v4809
    %v4814 = vand.u32 2147483647, %v4804
    %vm4815 = vcmp.eq.f32.partialorder %v4814, 8.507059e+37
    %v4816 = vand.u32 %v4804, 2147483648
    %v4817 = vor.u32 1.1754944e-38, %v4816
    %v4818 = vsel %vm4815, %v4817, %v4813
    %v4819 = vmul.f32 1.0, %v4818
    %v4820 = vmul.f32 %v4799, %v4168
    %v4821 = vmul.f32 %v4780, %v4800
    %v4822 = vadd.f32 %v4820, %v4821
    %v4823 = vtanh.pop %v4822
    %v4824 = vmul.f32 %v4819, %v4823
    %v4825 = vunpack.c.l.bf16 %v4508
    %v4826 = vunpack.c.h.bf16 %v4508
    %v4827 = vunpack.c.l.bf16 %v4509
    %v4828 = vunpack.c.h.bf16 %v4509
    %v4829 = vld [vmem:[#allocation12] sm:$0xff]
    %v4830 = vld [vmem:[#allocation12 + $0x8] sm:$0xff]
    %v4831 = vld [vmem:[#allocation12 + $0x10] sm:$0xff]
    %v4832 = vld [vmem:[#allocation12 + $0x18] sm:$0xff]
    %v4833 = vld [vmem:[#allocation12 + $0x20] sm:$0xff]
    %v4834 = vld [vmem:[#allocation12 + $0x28] sm:$0xff]
    %v4835 = vld [vmem:[#allocation12 + $0x30] sm:$0xff]
    %v4836 = vld [vmem:[#allocation12 + $0x38] sm:$0xff]
    %v4837 = vld [vmem:[#allocation12 + $0x40] sm:$0xff]
    %v4838 = vld [vmem:[#allocation12 + $0x48] sm:$0xff]
    %v4839 = vld [vmem:[#allocation12 + $0x50] sm:$0xff]
    %v4840 = vld [vmem:[#allocation12 + $0x58] sm:$0xff]
    %v4841 = vld [vmem:[#allocation12 + $0x60] sm:$0xff]
    %v4842 = vld [vmem:[#allocation12 + $0x68] sm:$0xff]
    %v4843 = vld [vmem:[#allocation12 + $0x70] sm:$0xff]
    %v4844 = vld [vmem:[#allocation12 + $0x78] sm:$0xff]
    %v4845 = vld [vmem:[#allocation12 + $0x80] sm:$0xff]
    %v4846 = vld [vmem:[#allocation12 + $0x88] sm:$0xff]
    %v4847 = vld [vmem:[#allocation12 + $0x90] sm:$0xff]
    %v4848 = vld [vmem:[#allocation12 + $0x98] sm:$0xff]
    %v4849 = vld [vmem:[#allocation12 + $0xa0] sm:$0xff]
    %v4850 = vld [vmem:[#allocation12 + $0xa8] sm:$0xff]
    %v4851 = vld [vmem:[#allocation12 + $0xb0] sm:$0xff]
    %v4852 = vld [vmem:[#allocation12 + $0xb8] sm:$0xff]
    %v4853 = vld [vmem:[#allocation12 + $0xc0] sm:$0xff]
    %v4854 = vld [vmem:[#allocation12 + $0xc8] sm:$0xff]
    %v4855 = vld [vmem:[#allocation12 + $0xd0] sm:$0xff]
    %v4856 = vld [vmem:[#allocation12 + $0xd8] sm:$0xff]
    %v4857 = vld [vmem:[#allocation12 + $0xe0] sm:$0xff]
    %v4858 = vld [vmem:[#allocation12 + $0xe8] sm:$0xff]
    %v4859 = vld [vmem:[#allocation12 + $0xf0] sm:$0xff]
    %v4860 = vld [vmem:[#allocation12 + $0xf8] sm:$0xff]
    %v4893 = vunpack.c.l.b16 %v4829
    %v4894 = vunpack.c.h.b16 %v4829
    %v4895 = vunpack.c.l.b16 %v4830
    %v4896 = vunpack.c.h.b16 %v4830
    %v4897 = vunpack.c.l.b16 %v4831
    %v4898 = vunpack.c.h.b16 %v4831
    %v4899 = vunpack.c.l.b16 %v4832
    %v4900 = vunpack.c.h.b16 %v4832
    %v4901 = vunpack.c.l.b16 %v4833
    %v4902 = vunpack.c.h.b16 %v4833
    %v4903 = vunpack.c.l.b16 %v4834
    %v4904 = vunpack.c.h.b16 %v4834
    %v4905 = vunpack.c.l.b16 %v4835
    %v4906 = vunpack.c.h.b16 %v4835
    %v4907 = vunpack.c.l.b16 %v4836
    %v4908 = vunpack.c.h.b16 %v4836
    %v4909 = vunpack.c.l.b16 %v4837
    %v4910 = vunpack.c.h.b16 %v4837
    %v4911 = vunpack.c.l.b16 %v4838
    %v4912 = vunpack.c.h.b16 %v4838
    %v4913 = vunpack.c.l.b16 %v4839
    %v4914 = vunpack.c.h.b16 %v4839
    %v4915 = vunpack.c.l.b16 %v4840
    %v4916 = vunpack.c.h.b16 %v4840
    %v4917 = vunpack.c.l.b16 %v4841
    %v4918 = vunpack.c.h.b16 %v4841
    %v4919 = vunpack.c.l.b16 %v4842
    %v4920 = vunpack.c.h.b16 %v4842
    %v4921 = vunpack.c.l.b16 %v4843
    %v4922 = vunpack.c.h.b16 %v4843
    %v4923 = vunpack.c.l.b16 %v4844
    %v4924 = vunpack.c.h.b16 %v4844
    %v4925 = vunpack.c.l.b16 %v4845
    %v4926 = vunpack.c.h.b16 %v4845
    %v4927 = vunpack.c.l.b16 %v4846
    %v4928 = vunpack.c.h.b16 %v4846
    %v4929 = vunpack.c.l.b16 %v4847
    %v4930 = vunpack.c.h.b16 %v4847
    %v4931 = vunpack.c.l.b16 %v4848
    %v4932 = vunpack.c.h.b16 %v4848
    %v4933 = vunpack.c.l.b16 %v4849
    %v4934 = vunpack.c.h.b16 %v4849
    %v4935 = vunpack.c.l.b16 %v4850
    %v4936 = vunpack.c.h.b16 %v4850
    %v4937 = vunpack.c.l.b16 %v4851
    %v4938 = vunpack.c.h.b16 %v4851
    %v4939 = vunpack.c.l.b16 %v4852
    %v4940 = vunpack.c.h.b16 %v4852
    %v4941 = vunpack.c.l.b16 %v4853
    %v4942 = vunpack.c.h.b16 %v4853
    %v4943 = vunpack.c.l.b16 %v4854
    %v4944 = vunpack.c.h.b16 %v4854
    %v4945 = vunpack.c.l.b16 %v4855
    %v4946 = vunpack.c.h.b16 %v4855
    %v4947 = vunpack.c.l.b16 %v4856
    %v4948 = vunpack.c.h.b16 %v4856
    %v4949 = vunpack.c.l.b16 %v4857
    %v4950 = vunpack.c.h.b16 %v4857
    %v4951 = vunpack.c.l.b16 %v4858
    %v4952 = vunpack.c.h.b16 %v4858
    %v4953 = vunpack.c.l.b16 %v4859
    %v4954 = vunpack.c.h.b16 %v4859
    %v4955 = vunpack.c.l.b16 %v4860
    %v4956 = vunpack.c.h.b16 %v4860
    %v4957 = vpack.c.b16 %v4897, %v4893
    %v4958 = vpack.c.b16 %v4898, %v4894
    %v4959 = vpack.c.b16 %v4899, %v4895
    %v4960 = vpack.c.b16 %v4900, %v4896
    %v4961 = vpack.c.b16 %v4905, %v4901
    %v4962 = vpack.c.b16 %v4906, %v4902
    %v4963 = vpack.c.b16 %v4907, %v4903
    %v4964 = vpack.c.b16 %v4908, %v4904
    %v4965 = vpack.c.b16 %v4913, %v4909
    %v4966 = vpack.c.b16 %v4914, %v4910
    %v4967 = vpack.c.b16 %v4915, %v4911
    %v4968 = vpack.c.b16 %v4916, %v4912
    %v4969 = vpack.c.b16 %v4921, %v4917
    %v4970 = vpack.c.b16 %v4922, %v4918
    %v4971 = vpack.c.b16 %v4923, %v4919
    %v4972 = vpack.c.b16 %v4924, %v4920
    %v4973 = vpack.c.b16 %v4929, %v4925
    %v4974 = vpack.c.b16 %v4930, %v4926
    %v4975 = vpack.c.b16 %v4931, %v4927
    %v4976 = vpack.c.b16 %v4932, %v4928
    %v4977 = vpack.c.b16 %v4937, %v4933
    %v4978 = vpack.c.b16 %v4938, %v4934
    %v4979 = vpack.c.b16 %v4939, %v4935
    %v4980 = vpack.c.b16 %v4940, %v4936
    %v4981 = vpack.c.b16 %v4945, %v4941
    %v4982 = vpack.c.b16 %v4946, %v4942
    %v4983 = vpack.c.b16 %v4947, %v4943
    %v4984 = vpack.c.b16 %v4948, %v4944
    %v4985 = vpack.c.b16 %v4953, %v4949
    %v4986 = vpack.c.b16 %v4954, %v4950
    %v4987 = vpack.c.b16 %v4955, %v4951
    %v4988 = vpack.c.b16 %v4956, %v4952
    %5021 = vmatpush.bf16.msra.mxu0 %v4985
    %5022 = vmatpush.bf16.msra.mxu0 %v4981
    %5023 = vmatpush.bf16.msra.mxu0 %v4977
    %5024 = vmatpush.bf16.msra.mxu0 %v4973
    %5025 = vmatpush.bf16.msra.mxu0 %v4969
    %5026 = vmatpush.bf16.msra.mxu0 %v4965
    %5027 = vmatpush.bf16.msra.mxu0 %v4961
    %5028 = vmatpush.bf16.msra.mxu0 %v4957
    %5029 = vmatmul.bf16.gmra.mxu0 %v4489
    %v5030 = vpop.f32.mrf.mxu0
    %v5031 = vadd.f32 0.0, %v5030
    %v5032 = vpop.f32.mrf.mxu0
    %5033 = vdwg.mxu0
    %5034 = vmatpush.bf16.msra.mxu0 %v4986
    %5035 = vmatpush.bf16.msra.mxu0 %v4982
    %5036 = vmatpush.bf16.msra.mxu0 %v4978
    %5037 = vmatpush.bf16.msra.mxu0 %v4974
    %5038 = vmatpush.bf16.msra.mxu0 %v4970
    %5039 = vmatpush.bf16.msra.mxu0 %v4966
    %5040 = vmatpush.bf16.msra.mxu0 %v4962
    %5041 = vmatpush.bf16.msra.mxu0 %v4958
    %5042 = vmatmul.bf16.gmra.mxu0 %v4489
    %v5043 = vpop.f32.mrf.mxu0
    %v5044 = vadd.f32 0.0, %v5043
    %v5045 = vpop.f32.mrf.mxu0
    %5046 = vdwg.mxu0
    %5047 = vmatpush.bf16.msra.mxu0 %v4987
    %5048 = vmatpush.bf16.msra.mxu0 %v4983
    %5049 = vmatpush.bf16.msra.mxu0 %v4979
    %5050 = vmatpush.bf16.msra.mxu0 %v4975
    %5051 = vmatpush.bf16.msra.mxu0 %v4971
    %5052 = vmatpush.bf16.msra.mxu0 %v4967
    %5053 = vmatpush.bf16.msra.mxu0 %v4963
    %5054 = vmatpush.bf16.msra.mxu0 %v4959
    %5055 = vmatmul.bf16.gmra.mxu0 %v4489
    %v5056 = vpop.f32.mrf.mxu0
    %v5057 = vadd.f32 0.0, %v5056
    %v5058 = vpop.f32.mrf.mxu0
    %5059 = vdwg.mxu0
    %5060 = vmatpush.bf16.msra.mxu0 %v4988
    %5061 = vmatpush.bf16.msra.mxu0 %v4984
    %5062 = vmatpush.bf16.msra.mxu0 %v4980
    %5063 = vmatpush.bf16.msra.mxu0 %v4976
    %5064 = vmatpush.bf16.msra.mxu0 %v4972
    %5065 = vmatpush.bf16.msra.mxu0 %v4968
    %5066 = vmatpush.bf16.msra.mxu0 %v4964
    %5067 = vmatpush.bf16.msra.mxu0 %v4960
    %5068 = vmatmul.bf16.gmra.mxu0 %v4489
    %v5069 = vpop.f32.mrf.mxu0
    %v5070 = vadd.f32 0.0, %v5069
    %v5071 = vpop.f32.mrf.mxu0
    %5072 = vdwg.mxu0
    %v5073 = vadd.f32 %v4825, %v5031
    %v5074 = vadd.f32 %v4826, %v5044
    %v5075 = vadd.f32 %v4827, %v5057
    %v5076 = vadd.f32 %v4828, %v5070
    %v5077 = vxor.u32 %v5073, 2147483648
    %v5078 = vmul.f32 %v5077, 1.442695
    %v5079 = vpow.pop %v5078
    %v5080 = vadd.f32 %v5079, 1.0
    %v5081 = vrcp.pop %v5080
    %v5082 = vmul.f32 %v5080, %v5081
    %v5083 = vsub.f32 1.0, %v5082
    %v5084 = vmul.f32 %v5081, %v5083
    %v5085 = vadd.f32 %v5081, %v5084
    %vm5086 = vweird.f32 %v5080
    %vm5087 = vweird.f32 %v5081
    %vm5088 = vmor %vm5086, %vm5087
    %v5089 = vsel %vm5088, %v5081, %v5085
    %v5090 = vand.u32 2147483647, %v5080
    %vm5091 = vcmp.eq.f32.partialorder %v5090, 8.507059e+37
    %v5092 = vand.u32 %v5080, 2147483648
    %v5093 = vor.u32 1.1754944e-38, %v5092
    %v5094 = vsel %vm5091, %v5093, %v5089
    %v5095 = vmul.f32 1.0, %v5094
    %v5096 = vxor.u32 %v5074, 2147483648
    %v5097 = vmul.f32 %v5096, 1.442695
    %v5098 = vpow.pop %v5097
    %v5099 = vadd.f32 %v5098, 1.0
    %v5100 = vrcp.pop %v5099
    %v5101 = vmul.f32 %v5099, %v5100
    %v5102 = vsub.f32 1.0, %v5101
    %v5103 = vmul.f32 %v5100, %v5102
    %v5104 = vadd.f32 %v5100, %v5103
    %vm5105 = vweird.f32 %v5099
    %vm5106 = vweird.f32 %v5100
    %vm5107 = vmor %vm5105, %vm5106
    %v5108 = vsel %vm5107, %v5100, %v5104
    %v5109 = vand.u32 2147483647, %v5099
    %vm5110 = vcmp.eq.f32.partialorder %v5109, 8.507059e+37
    %v5111 = vand.u32 %v5099, 2147483648
    %v5112 = vor.u32 1.1754944e-38, %v5111
    %v5113 = vsel %vm5110, %v5112, %v5108
    %v5114 = vmul.f32 1.0, %v5113
    %v5115 = vtanh.pop %v5075
    %v5116 = vxor.u32 %v5076, 2147483648
    %v5117 = vmul.f32 %v5116, 1.442695
    %v5118 = vpow.pop %v5117
    %v5119 = vadd.f32 %v5118, 1.0
    %v5120 = vrcp.pop %v5119
    %v5121 = vmul.f32 %v5119, %v5120
    %v5122 = vsub.f32 1.0, %v5121
    %v5123 = vmul.f32 %v5120, %v5122
    %v5124 = vadd.f32 %v5120, %v5123
    %vm5125 = vweird.f32 %v5119
    %vm5126 = vweird.f32 %v5120
    %vm5127 = vmor %vm5125, %vm5126
    %v5128 = vsel %vm5127, %v5120, %v5124
    %v5129 = vand.u32 2147483647, %v5119
    %vm5130 = vcmp.eq.f32.partialorder %v5129, 8.507059e+37
    %v5131 = vand.u32 %v5119, 2147483648
    %v5132 = vor.u32 1.1754944e-38, %v5131
    %v5133 = vsel %vm5130, %v5132, %v5128
    %v5134 = vmul.f32 1.0, %v5133
    %v5135 = vmul.f32 %v5114, %v4483
    %v5136 = vmul.f32 %v5095, %v5115
    %v5137 = vadd.f32 %v5135, %v5136
    %v5138 = vtanh.pop %v5137
    %v5139 = vmul.f32 %v5134, %v5138
    %v5140 = vpack.c.bf16 %v4824, %v4824
    %s5141 = scalar_lea.vmem [#allocation3], 24
    %5142 = vst [vmem:[%s5141] sm:$0xf] %v5140
    %v5143 = vpack.c.bf16 %v5139, %v5139
    %s5144 = scalar_lea.vmem [#allocation4], 4
    %5145 = vst [vmem:[%s5144] sm:$0xf] %v5143
    %v5146 = vmul.f32 %v4824, %v1214
    %5147 = vadd.xlane.f32.xlu0 %v5146
    %v5148 = vpop.xlane.xlu0 %5147
    %v5150 = vperm.slane %v5148, %v1221
    %5152 = vst.msk [vmem:[#allocation5 + $0x6] sm:$0x1] %vm1224, %v5150
    %v5153 = vmul.f32 %v5139, %v1227
    %5154 = vadd.xlane.f32.xlu0 %v5153
    %v5155 = vpop.xlane.xlu0 %5154
    %v5157 = vperm.slane %v5155, %v1221
    %5159 = vst.msk [vmem:[#allocation6 + $0x1] sm:$0x1] %vm1224, %v5157
    %v5160 = vld [vmem:[#allocation2 + $0xe0] sm:$0xff]
    %v5161 = vld [vmem:[#allocation2 + $0xe8] sm:$0xff]
    %v5162 = vld [vmem:[#allocation2 + $0x10] sm:$0xff]
    %v5163 = vld [vmem:[#allocation2 + $0x18] sm:$0xff]
    %v5164 = vunpack.c.l.bf16 %v5160
    %v5165 = vunpack.c.h.bf16 %v5160
    %v5166 = vunpack.c.l.bf16 %v5161
    %v5167 = vunpack.c.h.bf16 %v5161
    %v5168 = vld [vmem:[#allocation10] sm:$0xff]
    %v5169 = vld [vmem:[#allocation10 + $0x8] sm:$0xff]
    %v5170 = vld [vmem:[#allocation10 + $0x10] sm:$0xff]
    %v5171 = vld [vmem:[#allocation10 + $0x18] sm:$0xff]
    %v5172 = vld [vmem:[#allocation10 + $0x20] sm:$0xff]
    %v5173 = vld [vmem:[#allocation10 + $0x28] sm:$0xff]
    %v5174 = vld [vmem:[#allocation10 + $0x30] sm:$0xff]
    %v5175 = vld [vmem:[#allocation10 + $0x38] sm:$0xff]
    %v5176 = vld [vmem:[#allocation10 + $0x40] sm:$0xff]
    %v5177 = vld [vmem:[#allocation10 + $0x48] sm:$0xff]
    %v5178 = vld [vmem:[#allocation10 + $0x50] sm:$0xff]
    %v5179 = vld [vmem:[#allocation10 + $0x58] sm:$0xff]
    %v5180 = vld [vmem:[#allocation10 + $0x60] sm:$0xff]
    %v5181 = vld [vmem:[#allocation10 + $0x68] sm:$0xff]
    %v5182 = vld [vmem:[#allocation10 + $0x70] sm:$0xff]
    %v5183 = vld [vmem:[#allocation10 + $0x78] sm:$0xff]
    %v5184 = vld [vmem:[#allocation10 + $0x80] sm:$0xff]
    %v5185 = vld [vmem:[#allocation10 + $0x88] sm:$0xff]
    %v5186 = vld [vmem:[#allocation10 + $0x90] sm:$0xff]
    %v5187 = vld [vmem:[#allocation10 + $0x98] sm:$0xff]
    %v5188 = vld [vmem:[#allocation10 + $0xa0] sm:$0xff]
    %v5189 = vld [vmem:[#allocation10 + $0xa8] sm:$0xff]
    %v5190 = vld [vmem:[#allocation10 + $0xb0] sm:$0xff]
    %v5191 = vld [vmem:[#allocation10 + $0xb8] sm:$0xff]
    %v5192 = vld [vmem:[#allocation10 + $0xc0] sm:$0xff]
    %v5193 = vld [vmem:[#allocation10 + $0xc8] sm:$0xff]
    %v5194 = vld [vmem:[#allocation10 + $0xd0] sm:$0xff]
    %v5195 = vld [vmem:[#allocation10 + $0xd8] sm:$0xff]
    %v5196 = vld [vmem:[#allocation10 + $0xe0] sm:$0xff]
    %v5197 = vld [vmem:[#allocation10 + $0xe8] sm:$0xff]
    %v5198 = vld [vmem:[#allocation10 + $0xf0] sm:$0xff]
    %v5199 = vld [vmem:[#allocation10 + $0xf8] sm:$0xff]
    %v5232 = vunpack.c.l.b16 %v5168
    %v5233 = vunpack.c.h.b16 %v5168
    %v5234 = vunpack.c.l.b16 %v5169
    %v5235 = vunpack.c.h.b16 %v5169
    %v5236 = vunpack.c.l.b16 %v5170
    %v5237 = vunpack.c.h.b16 %v5170
    %v5238 = vunpack.c.l.b16 %v5171
    %v5239 = vunpack.c.h.b16 %v5171
    %v5240 = vunpack.c.l.b16 %v5172
    %v5241 = vunpack.c.h.b16 %v5172
    %v5242 = vunpack.c.l.b16 %v5173
    %v5243 = vunpack.c.h.b16 %v5173
    %v5244 = vunpack.c.l.b16 %v5174
    %v5245 = vunpack.c.h.b16 %v5174
    %v5246 = vunpack.c.l.b16 %v5175
    %v5247 = vunpack.c.h.b16 %v5175
    %v5248 = vunpack.c.l.b16 %v5176
    %v5249 = vunpack.c.h.b16 %v5176
    %v5250 = vunpack.c.l.b16 %v5177
    %v5251 = vunpack.c.h.b16 %v5177
    %v5252 = vunpack.c.l.b16 %v5178
    %v5253 = vunpack.c.h.b16 %v5178
    %v5254 = vunpack.c.l.b16 %v5179
    %v5255 = vunpack.c.h.b16 %v5179
    %v5256 = vunpack.c.l.b16 %v5180
    %v5257 = vunpack.c.h.b16 %v5180
    %v5258 = vunpack.c.l.b16 %v5181
    %v5259 = vunpack.c.h.b16 %v5181
    %v5260 = vunpack.c.l.b16 %v5182
    %v5261 = vunpack.c.h.b16 %v5182
    %v5262 = vunpack.c.l.b16 %v5183
    %v5263 = vunpack.c.h.b16 %v5183
    %v5264 = vunpack.c.l.b16 %v5184
    %v5265 = vunpack.c.h.b16 %v5184
    %v5266 = vunpack.c.l.b16 %v5185
    %v5267 = vunpack.c.h.b16 %v5185
    %v5268 = vunpack.c.l.b16 %v5186
    %v5269 = vunpack.c.h.b16 %v5186
    %v5270 = vunpack.c.l.b16 %v5187
    %v5271 = vunpack.c.h.b16 %v5187
    %v5272 = vunpack.c.l.b16 %v5188
    %v5273 = vunpack.c.h.b16 %v5188
    %v5274 = vunpack.c.l.b16 %v5189
    %v5275 = vunpack.c.h.b16 %v5189
    %v5276 = vunpack.c.l.b16 %v5190
    %v5277 = vunpack.c.h.b16 %v5190
    %v5278 = vunpack.c.l.b16 %v5191
    %v5279 = vunpack.c.h.b16 %v5191
    %v5280 = vunpack.c.l.b16 %v5192
    %v5281 = vunpack.c.h.b16 %v5192
    %v5282 = vunpack.c.l.b16 %v5193
    %v5283 = vunpack.c.h.b16 %v5193
    %v5284 = vunpack.c.l.b16 %v5194
    %v5285 = vunpack.c.h.b16 %v5194
    %v5286 = vunpack.c.l.b16 %v5195
    %v5287 = vunpack.c.h.b16 %v5195
    %v5288 = vunpack.c.l.b16 %v5196
    %v5289 = vunpack.c.h.b16 %v5196
    %v5290 = vunpack.c.l.b16 %v5197
    %v5291 = vunpack.c.h.b16 %v5197
    %v5292 = vunpack.c.l.b16 %v5198
    %v5293 = vunpack.c.h.b16 %v5198
    %v5294 = vunpack.c.l.b16 %v5199
    %v5295 = vunpack.c.h.b16 %v5199
    %v5296 = vpack.c.b16 %v5236, %v5232
    %v5297 = vpack.c.b16 %v5237, %v5233
    %v5298 = vpack.c.b16 %v5238, %v5234
    %v5299 = vpack.c.b16 %v5239, %v5235
    %v5300 = vpack.c.b16 %v5244, %v5240
    %v5301 = vpack.c.b16 %v5245, %v5241
    %v5302 = vpack.c.b16 %v5246, %v5242
    %v5303 = vpack.c.b16 %v5247, %v5243
    %v5304 = vpack.c.b16 %v5252, %v5248
    %v5305 = vpack.c.b16 %v5253, %v5249
    %v5306 = vpack.c.b16 %v5254, %v5250
    %v5307 = vpack.c.b16 %v5255, %v5251
    %v5308 = vpack.c.b16 %v5260, %v5256
    %v5309 = vpack.c.b16 %v5261, %v5257
    %v5310 = vpack.c.b16 %v5262, %v5258
    %v5311 = vpack.c.b16 %v5263, %v5259
    %v5312 = vpack.c.b16 %v5268, %v5264
    %v5313 = vpack.c.b16 %v5269, %v5265
    %v5314 = vpack.c.b16 %v5270, %v5266
    %v5315 = vpack.c.b16 %v5271, %v5267
    %v5316 = vpack.c.b16 %v5276, %v5272
    %v5317 = vpack.c.b16 %v5277, %v5273
    %v5318 = vpack.c.b16 %v5278, %v5274
    %v5319 = vpack.c.b16 %v5279, %v5275
    %v5320 = vpack.c.b16 %v5284, %v5280
    %v5321 = vpack.c.b16 %v5285, %v5281
    %v5322 = vpack.c.b16 %v5286, %v5282
    %v5323 = vpack.c.b16 %v5287, %v5283
    %v5324 = vpack.c.b16 %v5292, %v5288
    %v5325 = vpack.c.b16 %v5293, %v5289
    %v5326 = vpack.c.b16 %v5294, %v5290
    %v5327 = vpack.c.b16 %v5295, %v5291
    %5360 = vmatpush.bf16.msra.mxu0 %v5324
    %5361 = vmatpush.bf16.msra.mxu0 %v5320
    %5362 = vmatpush.bf16.msra.mxu0 %v5316
    %5363 = vmatpush.bf16.msra.mxu0 %v5312
    %5364 = vmatpush.bf16.msra.mxu0 %v5308
    %5365 = vmatpush.bf16.msra.mxu0 %v5304
    %5366 = vmatpush.bf16.msra.mxu0 %v5300
    %5367 = vmatpush.bf16.msra.mxu0 %v5296
    %5368 = vmatmul.bf16.gmra.mxu0 %v5140
    %v5369 = vpop.f32.mrf.mxu0
    %v5370 = vadd.f32 0.0, %v5369
    %v5371 = vpop.f32.mrf.mxu0
    %5372 = vdwg.mxu0
    %5373 = vmatpush.bf16.msra.mxu0 %v5325
    %5374 = vmatpush.bf16.msra.mxu0 %v5321
    %5375 = vmatpush.bf16.msra.mxu0 %v5317
    %5376 = vmatpush.bf16.msra.mxu0 %v5313
    %5377 = vmatpush.bf16.msra.mxu0 %v5309
    %5378 = vmatpush.bf16.msra.mxu0 %v5305
    %5379 = vmatpush.bf16.msra.mxu0 %v5301
    %5380 = vmatpush.bf16.msra.mxu0 %v5297
    %5381 = vmatmul.bf16.gmra.mxu0 %v5140
    %v5382 = vpop.f32.mrf.mxu0
    %v5383 = vadd.f32 0.0, %v5382
    %v5384 = vpop.f32.mrf.mxu0
    %5385 = vdwg.mxu0
    %5386 = vmatpush.bf16.msra.mxu0 %v5326
    %5387 = vmatpush.bf16.msra.mxu0 %v5322
    %5388 = vmatpush.bf16.msra.mxu0 %v5318
    %5389 = vmatpush.bf16.msra.mxu0 %v5314
    %5390 = vmatpush.bf16.msra.mxu0 %v5310
    %5391 = vmatpush.bf16.msra.mxu0 %v5306
    %5392 = vmatpush.bf16.msra.mxu0 %v5302
    %5393 = vmatpush.bf16.msra.mxu0 %v5298
    %5394 = vmatmul.bf16.gmra.mxu0 %v5140
    %v5395 = vpop.f32.mrf.mxu0
    %v5396 = vadd.f32 0.0, %v5395
    %v5397 = vpop.f32.mrf.mxu0
    %5398 = vdwg.mxu0
    %5399 = vmatpush.bf16.msra.mxu0 %v5327
    %5400 = vmatpush.bf16.msra.mxu0 %v5323
    %5401 = vmatpush.bf16.msra.mxu0 %v5319
    %5402 = vmatpush.bf16.msra.mxu0 %v5315
    %5403 = vmatpush.bf16.msra.mxu0 %v5311
    %5404 = vmatpush.bf16.msra.mxu0 %v5307
    %5405 = vmatpush.bf16.msra.mxu0 %v5303
    %5406 = vmatpush.bf16.msra.mxu0 %v5299
    %5407 = vmatmul.bf16.gmra.mxu0 %v5140
    %v5408 = vpop.f32.mrf.mxu0
    %v5409 = vadd.f32 0.0, %v5408
    %v5410 = vpop.f32.mrf.mxu0
    %5411 = vdwg.mxu0
    %v5412 = vadd.f32 %v5164, %v5370
    %v5413 = vadd.f32 %v5165, %v5383
    %v5414 = vadd.f32 %v5166, %v5396
    %v5415 = vadd.f32 %v5167, %v5409
    %v5416 = vxor.u32 %v5412, 2147483648
    %v5417 = vmul.f32 %v5416, 1.442695
    %v5418 = vpow.pop %v5417
    %v5419 = vadd.f32 %v5418, 1.0
    %v5420 = vrcp.pop %v5419
    %v5421 = vmul.f32 %v5419, %v5420
    %v5422 = vsub.f32 1.0, %v5421
    %v5423 = vmul.f32 %v5420, %v5422
    %v5424 = vadd.f32 %v5420, %v5423
    %vm5425 = vweird.f32 %v5419
    %vm5426 = vweird.f32 %v5420
    %vm5427 = vmor %vm5425, %vm5426
    %v5428 = vsel %vm5427, %v5420, %v5424
    %v5429 = vand.u32 2147483647, %v5419
    %vm5430 = vcmp.eq.f32.partialorder %v5429, 8.507059e+37
    %v5431 = vand.u32 %v5419, 2147483648
    %v5432 = vor.u32 1.1754944e-38, %v5431
    %v5433 = vsel %vm5430, %v5432, %v5428
    %v5434 = vmul.f32 1.0, %v5433
    %v5435 = vxor.u32 %v5413, 2147483648
    %v5436 = vmul.f32 %v5435, 1.442695
    %v5437 = vpow.pop %v5436
    %v5438 = vadd.f32 %v5437, 1.0
    %v5439 = vrcp.pop %v5438
    %v5440 = vmul.f32 %v5438, %v5439
    %v5441 = vsub.f32 1.0, %v5440
    %v5442 = vmul.f32 %v5439, %v5441
    %v5443 = vadd.f32 %v5439, %v5442
    %vm5444 = vweird.f32 %v5438
    %vm5445 = vweird.f32 %v5439
    %vm5446 = vmor %vm5444, %vm5445
    %v5447 = vsel %vm5446, %v5439, %v5443
    %v5448 = vand.u32 2147483647, %v5438
    %vm5449 = vcmp.eq.f32.partialorder %v5448, 8.507059e+37
    %v5450 = vand.u32 %v5438, 2147483648
    %v5451 = vor.u32 1.1754944e-38, %v5450
    %v5452 = vsel %vm5449, %v5451, %v5447
    %v5453 = vmul.f32 1.0, %v5452
    %v5454 = vtanh.pop %v5414
    %v5455 = vxor.u32 %v5415, 2147483648
    %v5456 = vmul.f32 %v5455, 1.442695
    %v5457 = vpow.pop %v5456
    %v5458 = vadd.f32 %v5457, 1.0
    %v5459 = vrcp.pop %v5458
    %v5460 = vmul.f32 %v5458, %v5459
    %v5461 = vsub.f32 1.0, %v5460
    %v5462 = vmul.f32 %v5459, %v5461
    %v5463 = vadd.f32 %v5459, %v5462
    %vm5464 = vweird.f32 %v5458
    %vm5465 = vweird.f32 %v5459
    %vm5466 = vmor %vm5464, %vm5465
    %v5467 = vsel %vm5466, %v5459, %v5463
    %v5468 = vand.u32 2147483647, %v5458
    %vm5469 = vcmp.eq.f32.partialorder %v5468, 8.507059e+37
    %v5470 = vand.u32 %v5458, 2147483648
    %v5471 = vor.u32 1.1754944e-38, %v5470
    %v5472 = vsel %vm5469, %v5471, %v5467
    %v5473 = vmul.f32 1.0, %v5472
    %v5474 = vmul.f32 %v5453, %v4822
    %v5475 = vmul.f32 %v5434, %v5454
    %v5476 = vadd.f32 %v5474, %v5475
    %v5477 = vtanh.pop %v5476
    %v5478 = vmul.f32 %v5473, %v5477
    %v5479 = vunpack.c.l.bf16 %v5162
    %v5480 = vunpack.c.h.bf16 %v5162
    %v5481 = vunpack.c.l.bf16 %v5163
    %v5482 = vunpack.c.h.bf16 %v5163
    %v5483 = vld [vmem:[#allocation12] sm:$0xff]
    %v5484 = vld [vmem:[#allocation12 + $0x8] sm:$0xff]
    %v5485 = vld [vmem:[#allocation12 + $0x10] sm:$0xff]
    %v5486 = vld [vmem:[#allocation12 + $0x18] sm:$0xff]
    %v5487 = vld [vmem:[#allocation12 + $0x20] sm:$0xff]
    %v5488 = vld [vmem:[#allocation12 + $0x28] sm:$0xff]
    %v5489 = vld [vmem:[#allocation12 + $0x30] sm:$0xff]
    %v5490 = vld [vmem:[#allocation12 + $0x38] sm:$0xff]
    %v5491 = vld [vmem:[#allocation12 + $0x40] sm:$0xff]
    %v5492 = vld [vmem:[#allocation12 + $0x48] sm:$0xff]
    %v5493 = vld [vmem:[#allocation12 + $0x50] sm:$0xff]
    %v5494 = vld [vmem:[#allocation12 + $0x58] sm:$0xff]
    %v5495 = vld [vmem:[#allocation12 + $0x60] sm:$0xff]
    %v5496 = vld [vmem:[#allocation12 + $0x68] sm:$0xff]
    %v5497 = vld [vmem:[#allocation12 + $0x70] sm:$0xff]
    %v5498 = vld [vmem:[#allocation12 + $0x78] sm:$0xff]
    %v5499 = vld [vmem:[#allocation12 + $0x80] sm:$0xff]
    %v5500 = vld [vmem:[#allocation12 + $0x88] sm:$0xff]
    %v5501 = vld [vmem:[#allocation12 + $0x90] sm:$0xff]
    %v5502 = vld [vmem:[#allocation12 + $0x98] sm:$0xff]
    %v5503 = vld [vmem:[#allocation12 + $0xa0] sm:$0xff]
    %v5504 = vld [vmem:[#allocation12 + $0xa8] sm:$0xff]
    %v5505 = vld [vmem:[#allocation12 + $0xb0] sm:$0xff]
    %v5506 = vld [vmem:[#allocation12 + $0xb8] sm:$0xff]
    %v5507 = vld [vmem:[#allocation12 + $0xc0] sm:$0xff]
    %v5508 = vld [vmem:[#allocation12 + $0xc8] sm:$0xff]
    %v5509 = vld [vmem:[#allocation12 + $0xd0] sm:$0xff]
    %v5510 = vld [vmem:[#allocation12 + $0xd8] sm:$0xff]
    %v5511 = vld [vmem:[#allocation12 + $0xe0] sm:$0xff]
    %v5512 = vld [vmem:[#allocation12 + $0xe8] sm:$0xff]
    %v5513 = vld [vmem:[#allocation12 + $0xf0] sm:$0xff]
    %v5514 = vld [vmem:[#allocation12 + $0xf8] sm:$0xff]
    %v5547 = vunpack.c.l.b16 %v5483
    %v5548 = vunpack.c.h.b16 %v5483
    %v5549 = vunpack.c.l.b16 %v5484
    %v5550 = vunpack.c.h.b16 %v5484
    %v5551 = vunpack.c.l.b16 %v5485
    %v5552 = vunpack.c.h.b16 %v5485
    %v5553 = vunpack.c.l.b16 %v5486
    %v5554 = vunpack.c.h.b16 %v5486
    %v5555 = vunpack.c.l.b16 %v5487
    %v5556 = vunpack.c.h.b16 %v5487
    %v5557 = vunpack.c.l.b16 %v5488
    %v5558 = vunpack.c.h.b16 %v5488
    %v5559 = vunpack.c.l.b16 %v5489
    %v5560 = vunpack.c.h.b16 %v5489
    %v5561 = vunpack.c.l.b16 %v5490
    %v5562 = vunpack.c.h.b16 %v5490
    %v5563 = vunpack.c.l.b16 %v5491
    %v5564 = vunpack.c.h.b16 %v5491
    %v5565 = vunpack.c.l.b16 %v5492
    %v5566 = vunpack.c.h.b16 %v5492
    %v5567 = vunpack.c.l.b16 %v5493
    %v5568 = vunpack.c.h.b16 %v5493
    %v5569 = vunpack.c.l.b16 %v5494
    %v5570 = vunpack.c.h.b16 %v5494
    %v5571 = vunpack.c.l.b16 %v5495
    %v5572 = vunpack.c.h.b16 %v5495
    %v5573 = vunpack.c.l.b16 %v5496
    %v5574 = vunpack.c.h.b16 %v5496
    %v5575 = vunpack.c.l.b16 %v5497
    %v5576 = vunpack.c.h.b16 %v5497
    %v5577 = vunpack.c.l.b16 %v5498
    %v5578 = vunpack.c.h.b16 %v5498
    %v5579 = vunpack.c.l.b16 %v5499
    %v5580 = vunpack.c.h.b16 %v5499
    %v5581 = vunpack.c.l.b16 %v5500
    %v5582 = vunpack.c.h.b16 %v5500
    %v5583 = vunpack.c.l.b16 %v5501
    %v5584 = vunpack.c.h.b16 %v5501
    %v5585 = vunpack.c.l.b16 %v5502
    %v5586 = vunpack.c.h.b16 %v5502
    %v5587 = vunpack.c.l.b16 %v5503
    %v5588 = vunpack.c.h.b16 %v5503
    %v5589 = vunpack.c.l.b16 %v5504
    %v5590 = vunpack.c.h.b16 %v5504
    %v5591 = vunpack.c.l.b16 %v5505
    %v5592 = vunpack.c.h.b16 %v5505
    %v5593 = vunpack.c.l.b16 %v5506
    %v5594 = vunpack.c.h.b16 %v5506
    %v5595 = vunpack.c.l.b16 %v5507
    %v5596 = vunpack.c.h.b16 %v5507
    %v5597 = vunpack.c.l.b16 %v5508
    %v5598 = vunpack.c.h.b16 %v5508
    %v5599 = vunpack.c.l.b16 %v5509
    %v5600 = vunpack.c.h.b16 %v5509
    %v5601 = vunpack.c.l.b16 %v5510
    %v5602 = vunpack.c.h.b16 %v5510
    %v5603 = vunpack.c.l.b16 %v5511
    %v5604 = vunpack.c.h.b16 %v5511
    %v5605 = vunpack.c.l.b16 %v5512
    %v5606 = vunpack.c.h.b16 %v5512
    %v5607 = vunpack.c.l.b16 %v5513
    %v5608 = vunpack.c.h.b16 %v5513
    %v5609 = vunpack.c.l.b16 %v5514
    %v5610 = vunpack.c.h.b16 %v5514
    %v5611 = vpack.c.b16 %v5551, %v5547
    %v5612 = vpack.c.b16 %v5552, %v5548
    %v5613 = vpack.c.b16 %v5553, %v5549
    %v5614 = vpack.c.b16 %v5554, %v5550
    %v5615 = vpack.c.b16 %v5559, %v5555
    %v5616 = vpack.c.b16 %v5560, %v5556
    %v5617 = vpack.c.b16 %v5561, %v5557
    %v5618 = vpack.c.b16 %v5562, %v5558
    %v5619 = vpack.c.b16 %v5567, %v5563
    %v5620 = vpack.c.b16 %v5568, %v5564
    %v5621 = vpack.c.b16 %v5569, %v5565
    %v5622 = vpack.c.b16 %v5570, %v5566
    %v5623 = vpack.c.b16 %v5575, %v5571
    %v5624 = vpack.c.b16 %v5576, %v5572
    %v5625 = vpack.c.b16 %v5577, %v5573
    %v5626 = vpack.c.b16 %v5578, %v5574
    %v5627 = vpack.c.b16 %v5583, %v5579
    %v5628 = vpack.c.b16 %v5584, %v5580
    %v5629 = vpack.c.b16 %v5585, %v5581
    %v5630 = vpack.c.b16 %v5586, %v5582
    %v5631 = vpack.c.b16 %v5591, %v5587
    %v5632 = vpack.c.b16 %v5592, %v5588
    %v5633 = vpack.c.b16 %v5593, %v5589
    %v5634 = vpack.c.b16 %v5594, %v5590
    %v5635 = vpack.c.b16 %v5599, %v5595
    %v5636 = vpack.c.b16 %v5600, %v5596
    %v5637 = vpack.c.b16 %v5601, %v5597
    %v5638 = vpack.c.b16 %v5602, %v5598
    %v5639 = vpack.c.b16 %v5607, %v5603
    %v5640 = vpack.c.b16 %v5608, %v5604
    %v5641 = vpack.c.b16 %v5609, %v5605
    %v5642 = vpack.c.b16 %v5610, %v5606
    %5675 = vmatpush.bf16.msra.mxu0 %v5639
    %5676 = vmatpush.bf16.msra.mxu0 %v5635
    %5677 = vmatpush.bf16.msra.mxu0 %v5631
    %5678 = vmatpush.bf16.msra.mxu0 %v5627
    %5679 = vmatpush.bf16.msra.mxu0 %v5623
    %5680 = vmatpush.bf16.msra.mxu0 %v5619
    %5681 = vmatpush.bf16.msra.mxu0 %v5615
    %5682 = vmatpush.bf16.msra.mxu0 %v5611
    %5683 = vmatmul.bf16.gmra.mxu0 %v5143
    %v5684 = vpop.f32.mrf.mxu0
    %v5685 = vadd.f32 0.0, %v5684
    %v5686 = vpop.f32.mrf.mxu0
    %5687 = vdwg.mxu0
    %5688 = vmatpush.bf16.msra.mxu0 %v5640
    %5689 = vmatpush.bf16.msra.mxu0 %v5636
    %5690 = vmatpush.bf16.msra.mxu0 %v5632
    %5691 = vmatpush.bf16.msra.mxu0 %v5628
    %5692 = vmatpush.bf16.msra.mxu0 %v5624
    %5693 = vmatpush.bf16.msra.mxu0 %v5620
    %5694 = vmatpush.bf16.msra.mxu0 %v5616
    %5695 = vmatpush.bf16.msra.mxu0 %v5612
    %5696 = vmatmul.bf16.gmra.mxu0 %v5143
    %v5697 = vpop.f32.mrf.mxu0
    %v5698 = vadd.f32 0.0, %v5697
    %v5699 = vpop.f32.mrf.mxu0
    %5700 = vdwg.mxu0
    %5701 = vmatpush.bf16.msra.mxu0 %v5641
    %5702 = vmatpush.bf16.msra.mxu0 %v5637
    %5703 = vmatpush.bf16.msra.mxu0 %v5633
    %5704 = vmatpush.bf16.msra.mxu0 %v5629
    %5705 = vmatpush.bf16.msra.mxu0 %v5625
    %5706 = vmatpush.bf16.msra.mxu0 %v5621
    %5707 = vmatpush.bf16.msra.mxu0 %v5617
    %5708 = vmatpush.bf16.msra.mxu0 %v5613
    %5709 = vmatmul.bf16.gmra.mxu0 %v5143
    %v5710 = vpop.f32.mrf.mxu0
    %v5711 = vadd.f32 0.0, %v5710
    %v5712 = vpop.f32.mrf.mxu0
    %5713 = vdwg.mxu0
    %5714 = vmatpush.bf16.msra.mxu0 %v5642
    %5715 = vmatpush.bf16.msra.mxu0 %v5638
    %5716 = vmatpush.bf16.msra.mxu0 %v5634
    %5717 = vmatpush.bf16.msra.mxu0 %v5630
    %5718 = vmatpush.bf16.msra.mxu0 %v5626
    %5719 = vmatpush.bf16.msra.mxu0 %v5622
    %5720 = vmatpush.bf16.msra.mxu0 %v5618
    %5721 = vmatpush.bf16.msra.mxu0 %v5614
    %5722 = vmatmul.bf16.gmra.mxu0 %v5143
    %v5723 = vpop.f32.mrf.mxu0
    %v5724 = vadd.f32 0.0, %v5723
    %v5725 = vpop.f32.mrf.mxu0
    %5726 = vdwg.mxu0
    %v5727 = vadd.f32 %v5479, %v5685
    %v5728 = vadd.f32 %v5480, %v5698
    %v5729 = vadd.f32 %v5481, %v5711
    %v5730 = vadd.f32 %v5482, %v5724
    %v5731 = vxor.u32 %v5727, 2147483648
    %v5732 = vmul.f32 %v5731, 1.442695
    %v5733 = vpow.pop %v5732
    %v5734 = vadd.f32 %v5733, 1.0
    %v5735 = vrcp.pop %v5734
    %v5736 = vmul.f32 %v5734, %v5735
    %v5737 = vsub.f32 1.0, %v5736
    %v5738 = vmul.f32 %v5735, %v5737
    %v5739 = vadd.f32 %v5735, %v5738
    %vm5740 = vweird.f32 %v5734
    %vm5741 = vweird.f32 %v5735
    %vm5742 = vmor %vm5740, %vm5741
    %v5743 = vsel %vm5742, %v5735, %v5739
    %v5744 = vand.u32 2147483647, %v5734
    %vm5745 = vcmp.eq.f32.partialorder %v5744, 8.507059e+37
    %v5746 = vand.u32 %v5734, 2147483648
    %v5747 = vor.u32 1.1754944e-38, %v5746
    %v5748 = vsel %vm5745, %v5747, %v5743
    %v5749 = vmul.f32 1.0, %v5748
    %v5750 = vxor.u32 %v5728, 2147483648
    %v5751 = vmul.f32 %v5750, 1.442695
    %v5752 = vpow.pop %v5751
    %v5753 = vadd.f32 %v5752, 1.0
    %v5754 = vrcp.pop %v5753
    %v5755 = vmul.f32 %v5753, %v5754
    %v5756 = vsub.f32 1.0, %v5755
    %v5757 = vmul.f32 %v5754, %v5756
    %v5758 = vadd.f32 %v5754, %v5757
    %vm5759 = vweird.f32 %v5753
    %vm5760 = vweird.f32 %v5754
    %vm5761 = vmor %vm5759, %vm5760
    %v5762 = vsel %vm5761, %v5754, %v5758
    %v5763 = vand.u32 2147483647, %v5753
    %vm5764 = vcmp.eq.f32.partialorder %v5763, 8.507059e+37
    %v5765 = vand.u32 %v5753, 2147483648
    %v5766 = vor.u32 1.1754944e-38, %v5765
    %v5767 = vsel %vm5764, %v5766, %v5762
    %v5768 = vmul.f32 1.0, %v5767
    %v5769 = vtanh.pop %v5729
    %v5770 = vxor.u32 %v5730, 2147483648
    %v5771 = vmul.f32 %v5770, 1.442695
    %v5772 = vpow.pop %v5771
    %v5773 = vadd.f32 %v5772, 1.0
    %v5774 = vrcp.pop %v5773
    %v5775 = vmul.f32 %v5773, %v5774
    %v5776 = vsub.f32 1.0, %v5775
    %v5777 = vmul.f32 %v5774, %v5776
    %v5778 = vadd.f32 %v5774, %v5777
    %vm5779 = vweird.f32 %v5773
    %vm5780 = vweird.f32 %v5774
    %vm5781 = vmor %vm5779, %vm5780
    %v5782 = vsel %vm5781, %v5774, %v5778
    %v5783 = vand.u32 2147483647, %v5773
    %vm5784 = vcmp.eq.f32.partialorder %v5783, 8.507059e+37
    %v5785 = vand.u32 %v5773, 2147483648
    %v5786 = vor.u32 1.1754944e-38, %v5785
    %v5787 = vsel %vm5784, %v5786, %v5782
    %v5788 = vmul.f32 1.0, %v5787
    %v5789 = vmul.f32 %v5768, %v5137
    %v5790 = vmul.f32 %v5749, %v5769
    %v5791 = vadd.f32 %v5789, %v5790
    %v5792 = vtanh.pop %v5791
    %v5793 = vmul.f32 %v5788, %v5792
    %v5794 = vpack.c.bf16 %v5478, %v5478
    %s5795 = scalar_lea.vmem [#allocation3], 28
    %5796 = vst [vmem:[%s5795] sm:$0xf] %v5794
    %v5797 = vpack.c.bf16 %v5793, %v5793
    %5798 = vst [vmem:[#allocation4] sm:$0xf] %v5797
    %v5799 = vmul.f32 %v5478, %v1214
    %5800 = vadd.xlane.f32.xlu0 %v5799
    %v5801 = vpop.xlane.xlu0 %5800
    %v5803 = vperm.slane %v5801, %v1221
    %5805 = vst.msk [vmem:[#allocation5 + $0x7] sm:$0x1] %vm1224, %v5803
    %v5806 = vmul.f32 %v5793, %v1227
    %5807 = vadd.xlane.f32.xlu0 %v5806
    %v5808 = vpop.xlane.xlu0 %5807
    %v5810 = vperm.slane %v5808, %v1221
    %5812 = vst.msk [vmem:[#allocation6] sm:$0x1] %vm1224, %v5810
    %v5813 = vld [vmem:[#allocation5] sm:$0xff]
    %v5814 = vld [vmem:[#allocation6] sm:$0xff]
    %v5815 = vadd.f32 %v5813, %v5814
    %v5816 = vtanh.pop %v5815
    %v5817 = vld [vmem:[%s1] sm:$0x1]
    %v5818 = vlaneseq
    %v5819 = vshrl.u32 %v5818, 7
    %v5820 = vperm.slane %v5817, 0
    %vm5821 = vcmp.lt.s32.totalorder %v5819, %v5820
    %v5822 = vsel %vm5821, 1, 0
    %v5823 = vcvt.s32.f32 %v5822
    %vm5824 = vcmask 64512
    %v5825 = vsel %vm5824, %v5816, -inf
    %v5826 = vrot.slane %v5825, 4
    %v5827 = vmax.f32 %v5825, %v5826
    %v5828 = vrot.slane %v5827, 2
    %v5829 = vmax.f32 %v5827, %v5828
    %v5830 = vrot.slane %v5829, 1
    %v5831 = vmax.f32 %v5829, %v5830
    %v5832 = vsub.f32 %v5816, %v5831
    %v5833 = vmul.f32 %v5832, 1.442695
    %v5834 = vpow.pop %v5833
    %v5835 = vmul.f32 %v5834, %v5823
    %v5836 = vsel %vm5824, %v5835, 0.0
    %v5837 = vrot.slane %v5836, 4
    %v5838 = vadd.f32 %v5836, %v5837
    %v5839 = vrot.slane %v5838, 2
    %v5840 = vadd.f32 %v5838, %v5839
    %v5841 = vrot.slane %v5840, 1
    %v5842 = vadd.f32 %v5840, %v5841
    %v5843 = vrcp.pop %v5842
    %v5844 = vmul.f32 %v5835, %v5843
    %5845 = vxpose.xlu0.b32.start [1/16] %v5844, 128
    %5846 = vxpose.xlu0.b32.cont [2/16] 0.0, 128
    %5847 = vxpose.xlu0.b32.cont [3/16] 0.0, 128
    %5848 = vxpose.xlu0.b32.cont [4/16] 0.0, 128
    %5849 = vxpose.xlu0.b32.cont [5/16] 0.0, 128
    %5850 = vxpose.xlu0.b32.cont [6/16] 0.0, 128
    %5851 = vxpose.xlu0.b32.cont [7/16] 0.0, 128
    %5852 = vxpose.xlu0.b32.cont [8/16] 0.0, 128
    %5853 = vxpose.xlu0.b32.cont [9/16] 0.0, 128
    %5854 = vxpose.xlu0.b32.cont [10/16] 0.0, 128
    %5855 = vxpose.xlu0.b32.cont [11/16] 0.0, 128
    %5856 = vxpose.xlu0.b32.cont [12/16] 0.0, 128
    %5857 = vxpose.xlu0.b32.cont [13/16] 0.0, 128
    %5858 = vxpose.xlu0.b32.cont [14/16] 0.0, 128
    %5859 = vxpose.xlu0.b32.cont [15/16] 0.0, 128
    %5860 = vxpose.xlu0.b32.end [16/16] 0.0, 128
    %v5861 = vpop.trf.xlu0
    %v5862 = vpop.trf.xlu0
    %v5863 = vpop.trf.xlu0
    %v5864 = vpop.trf.xlu0
    %v5865 = vpop.trf.xlu0
    %v5866 = vpop.trf.xlu0
    %v5867 = vpop.trf.xlu0
    %v5868 = vpop.trf.xlu0
    %v5869 = vpop.trf.xlu0
    %v5870 = vpop.trf.xlu0
    %v5871 = vpop.trf.xlu0
    %v5872 = vpop.trf.xlu0
    %v5873 = vpop.trf.xlu0
    %v5874 = vpop.trf.xlu0
    %v5875 = vpop.trf.xlu0
    %v5876 = vpop.trf.xlu0
    %v5877 = vsel %vm5824, %v5861, 0.0
    %5878 = vst [vmem:[#allocation17] sm:$0xff] %v5877
    %v5879 = vperm.slane %v5844, 0
    %v5880 = vlaneseq
    %v5881 = vshrl.u32 %v5880, 7
    %5883 = vset.pattern.permute.xlu0 %v5881
    %5884 = vperm.xlu0 %5883, %v5879
    %v5885 = vpop.permute.xlu0 %5884
    %v5886 = vperm.slane %v5844, 1
    %v5887 = vlaneseq
    %v5888 = vshrl.u32 %v5887, 7
    %5890 = vset.pattern.permute.xlu0 %v5888
    %5891 = vperm.xlu0 %5890, %v5886
    %v5892 = vpop.permute.xlu0 %5891
    %v5893 = vperm.slane %v5844, 2
    %v5894 = vlaneseq
    %v5895 = vshrl.u32 %v5894, 7
    %5897 = vset.pattern.permute.xlu0 %v5895
    %5898 = vperm.xlu0 %5897, %v5893
    %v5899 = vpop.permute.xlu0 %5898
    %v5900 = vperm.slane %v5844, 3
    %v5901 = vlaneseq
    %v5902 = vshrl.u32 %v5901, 7
    %5904 = vset.pattern.permute.xlu0 %v5902
    %5905 = vperm.xlu0 %5904, %v5900
    %v5906 = vpop.permute.xlu0 %5905
    %v5907 = vperm.slane %v5844, 4
    %v5908 = vlaneseq
    %v5909 = vshrl.u32 %v5908, 7
    %5911 = vset.pattern.permute.xlu0 %v5909
    %5912 = vperm.xlu0 %5911, %v5907
    %v5913 = vpop.permute.xlu0 %5912
    %v5914 = vperm.slane %v5844, 5
    %v5915 = vlaneseq
    %v5916 = vshrl.u32 %v5915, 7
    %5918 = vset.pattern.permute.xlu0 %v5916
    %5919 = vperm.xlu0 %5918, %v5914
    %v5920 = vpop.permute.xlu0 %5919
    %v5921 = vperm.slane %v5844, 6
    %v5922 = vlaneseq
    %v5923 = vshrl.u32 %v5922, 7
    %5925 = vset.pattern.permute.xlu0 %v5923
    %5926 = vperm.xlu0 %5925, %v5921
    %v5927 = vpop.permute.xlu0 %5926
    %v5928 = vperm.slane %v5844, 7
    %v5929 = vlaneseq
    %v5930 = vshrl.u32 %v5929, 7
    %5932 = vset.pattern.permute.xlu0 %v5930
    %5933 = vperm.xlu0 %5932, %v5928
    %v5934 = vpop.permute.xlu0 %5933
    %v5935 = vld [vmem:[#allocation3] sm:$0xf]
    %v5936 = vld [vmem:[#allocation3 + $0x4] sm:$0xf]
    %v5937 = vld [vmem:[#allocation3 + $0x8] sm:$0xf]
    %v5938 = vld [vmem:[#allocation3 + $0xc] sm:$0xf]
    %v5939 = vld [vmem:[#allocation3 + $0x10] sm:$0xf]
    %v5940 = vld [vmem:[#allocation3 + $0x14] sm:$0xf]
    %v5941 = vld [vmem:[#allocation3 + $0x18] sm:$0xf]
    %v5942 = vld [vmem:[#allocation3 + $0x1c] sm:$0xf]
    %v5943 = vunpack.c.l.bf16 %v5935
    %v5944 = vunpack.c.l.bf16 %v5936
    %v5945 = vunpack.c.l.bf16 %v5937
    %v5946 = vunpack.c.l.bf16 %v5938
    %v5947 = vunpack.c.l.bf16 %v5939
    %v5948 = vunpack.c.l.bf16 %v5940
    %v5949 = vunpack.c.l.bf16 %v5941
    %v5950 = vunpack.c.l.bf16 %v5942
    %v5951 = vmul.f32 %v5943, %v5885
    %v5952 = vmul.f32 %v5944, %v5892
    %v5953 = vmul.f32 %v5945, %v5899
    %v5954 = vmul.f32 %v5946, %v5906
    %v5955 = vmul.f32 %v5947, %v5913
    %v5956 = vmul.f32 %v5948, %v5920
    %v5957 = vmul.f32 %v5949, %v5927
    %v5958 = vmul.f32 %v5950, %v5934
    %v5959 = vadd.f32 %v5951, %v5952
    %v5960 = vadd.f32 %v5959, %v5953
    %v5961 = vadd.f32 %v5960, %v5954
    %v5962 = vadd.f32 %v5961, %v5955
    %v5963 = vadd.f32 %v5962, %v5956
    %v5964 = vadd.f32 %v5963, %v5957
    %v5965 = vadd.f32 %v5964, %v5958
    %v5966 = vld [vmem:[#allocation4] sm:$0xf]
    %v5967 = vld [vmem:[#allocation4 + $0x4] sm:$0xf]
    %v5968 = vld [vmem:[#allocation4 + $0x8] sm:$0xf]
    %v5969 = vld [vmem:[#allocation4 + $0xc] sm:$0xf]
    %v5970 = vld [vmem:[#allocation4 + $0x10] sm:$0xf]
    %v5971 = vld [vmem:[#allocation4 + $0x14] sm:$0xf]
    %v5972 = vld [vmem:[#allocation4 + $0x18] sm:$0xf]
    %v5973 = vld [vmem:[#allocation4 + $0x1c] sm:$0xf]
    %v5974 = vunpack.c.l.bf16 %v5966
    %v5975 = vunpack.c.l.bf16 %v5967
    %v5976 = vunpack.c.l.bf16 %v5968
    %v5977 = vunpack.c.l.bf16 %v5969
    %v5978 = vunpack.c.l.bf16 %v5970
    %v5979 = vunpack.c.l.bf16 %v5971
    %v5980 = vunpack.c.l.bf16 %v5972
    %v5981 = vunpack.c.l.bf16 %v5973
    %v5982 = vmul.f32 %v5974, %v5885
    %v5983 = vmul.f32 %v5975, %v5892
    %v5984 = vmul.f32 %v5976, %v5899
    %v5985 = vmul.f32 %v5977, %v5906
    %v5986 = vmul.f32 %v5978, %v5913
    %v5987 = vmul.f32 %v5979, %v5920
    %v5988 = vmul.f32 %v5980, %v5927
    %v5989 = vmul.f32 %v5981, %v5934
    %v5990 = vadd.f32 %v5982, %v5983
    %v5991 = vadd.f32 %v5990, %v5984
    %v5992 = vadd.f32 %v5991, %v5985
    %v5993 = vadd.f32 %v5992, %v5986
    %v5994 = vadd.f32 %v5993, %v5987
    %v5995 = vadd.f32 %v5994, %v5988
    %v5996 = vadd.f32 %v5995, %v5989
    %v5997 = vpack.c.bf16 %v5965, %v5965
    %v5998 = vld [vmem:[#allocation13] sm:$0xf]
    %v5999 = vld [vmem:[#allocation13 + $0x4] sm:$0xf]
    %v6000 = vld [vmem:[#allocation13 + $0x8] sm:$0xf]
    %v6001 = vld [vmem:[#allocation13 + $0xc] sm:$0xf]
    %v6002 = vld [vmem:[#allocation13 + $0x10] sm:$0xf]
    %v6003 = vld [vmem:[#allocation13 + $0x14] sm:$0xf]
    %v6004 = vld [vmem:[#allocation13 + $0x18] sm:$0xf]
    %v6005 = vld [vmem:[#allocation13 + $0x1c] sm:$0xf]
    %v6006 = vld [vmem:[#allocation13 + $0x20] sm:$0xf]
    %v6007 = vld [vmem:[#allocation13 + $0x24] sm:$0xf]
    %v6008 = vld [vmem:[#allocation13 + $0x28] sm:$0xf]
    %v6009 = vld [vmem:[#allocation13 + $0x2c] sm:$0xf]
    %v6010 = vld [vmem:[#allocation13 + $0x30] sm:$0xf]
    %v6011 = vld [vmem:[#allocation13 + $0x34] sm:$0xf]
    %v6012 = vld [vmem:[#allocation13 + $0x38] sm:$0xf]
    %v6013 = vld [vmem:[#allocation13 + $0x3c] sm:$0xf]
    %v6014 = vpack.c.bf16 %v5996, %v5996
    %v6015 = vld [vmem:[#allocation15] sm:$0xf]
    %v6016 = vld [vmem:[#allocation15 + $0x4] sm:$0xf]
    %v6017 = vld [vmem:[#allocation15 + $0x8] sm:$0xf]
    %v6018 = vld [vmem:[#allocation15 + $0xc] sm:$0xf]
    %v6019 = vld [vmem:[#allocation15 + $0x10] sm:$0xf]
    %v6020 = vld [vmem:[#allocation15 + $0x14] sm:$0xf]
    %v6021 = vld [vmem:[#allocation15 + $0x18] sm:$0xf]
    %v6022 = vld [vmem:[#allocation15 + $0x1c] sm:$0xf]
    %v6023 = vld [vmem:[#allocation15 + $0x20] sm:$0xf]
    %v6024 = vld [vmem:[#allocation15 + $0x24] sm:$0xf]
    %v6025 = vld [vmem:[#allocation15 + $0x28] sm:$0xf]
    %v6026 = vld [vmem:[#allocation15 + $0x2c] sm:$0xf]
    %v6027 = vld [vmem:[#allocation15 + $0x30] sm:$0xf]
    %v6028 = vld [vmem:[#allocation15 + $0x34] sm:$0xf]
    %v6029 = vld [vmem:[#allocation15 + $0x38] sm:$0xf]
    %v6030 = vld [vmem:[#allocation15 + $0x3c] sm:$0xf]
    %v6047 = vunpack.c.l.b16 %v6015
    %v6048 = vunpack.c.l.b16 %v6016
    %v6049 = vunpack.c.l.b16 %v6017
    %v6050 = vunpack.c.l.b16 %v6018
    %v6051 = vunpack.c.l.b16 %v6019
    %v6052 = vunpack.c.l.b16 %v6020
    %v6053 = vunpack.c.l.b16 %v6021
    %v6054 = vunpack.c.l.b16 %v6022
    %v6055 = vunpack.c.l.b16 %v6023
    %v6056 = vunpack.c.l.b16 %v6024
    %v6057 = vunpack.c.l.b16 %v6025
    %v6058 = vunpack.c.l.b16 %v6026
    %v6059 = vunpack.c.l.b16 %v6027
    %v6060 = vunpack.c.l.b16 %v6028
    %v6061 = vunpack.c.l.b16 %v6029
    %v6062 = vunpack.c.l.b16 %v6030
    %v6063 = vpack.c.b16 %v6048, %v6047
    %v6064 = vpack.c.b16 %v6050, %v6049
    %v6065 = vpack.c.b16 %v6052, %v6051
    %v6066 = vpack.c.b16 %v6054, %v6053
    %v6067 = vpack.c.b16 %v6056, %v6055
    %v6068 = vpack.c.b16 %v6058, %v6057
    %v6069 = vpack.c.b16 %v6060, %v6059
    %v6070 = vpack.c.b16 %v6062, %v6061
    %6079 = vmatpush.bf16.msra.mxu0 %v6070
    %6080 = vmatpush.bf16.msra.mxu0 %v6069
    %6081 = vmatpush.bf16.msra.mxu0 %v6068
    %6082 = vmatpush.bf16.msra.mxu0 %v6067
    %6083 = vmatpush.bf16.msra.mxu0 %v6066
    %6084 = vmatpush.bf16.msra.mxu0 %v6065
    %6085 = vmatpush.bf16.msra.mxu0 %v6064
    %6086 = vmatpush.bf16.msra.mxu0 %v6063
    %6087 = vmatmul.bf16.gmra.mxu0 %v6014
    %v6088 = vpop.f32.mrf.mxu0
    %v6089 = vadd.f32 0.0, %v6088
    %v6090 = vpop.f32.mrf.mxu0
    %6091 = vdwg.mxu0
    %v6108 = vunpack.c.l.b16 %v5998
    %v6109 = vunpack.c.l.b16 %v5999
    %v6110 = vunpack.c.l.b16 %v6000
    %v6111 = vunpack.c.l.b16 %v6001
    %v6112 = vunpack.c.l.b16 %v6002
    %v6113 = vunpack.c.l.b16 %v6003
    %v6114 = vunpack.c.l.b16 %v6004
    %v6115 = vunpack.c.l.b16 %v6005
    %v6116 = vunpack.c.l.b16 %v6006
    %v6117 = vunpack.c.l.b16 %v6007
    %v6118 = vunpack.c.l.b16 %v6008
    %v6119 = vunpack.c.l.b16 %v6009
    %v6120 = vunpack.c.l.b16 %v6010
    %v6121 = vunpack.c.l.b16 %v6011
    %v6122 = vunpack.c.l.b16 %v6012
    %v6123 = vunpack.c.l.b16 %v6013
    %v6124 = vpack.c.b16 %v6109, %v6108
    %v6125 = vpack.c.b16 %v6111, %v6110
    %v6126 = vpack.c.b16 %v6113, %v6112
    %v6127 = vpack.c.b16 %v6115, %v6114
    %v6128 = vpack.c.b16 %v6117, %v6116
    %v6129 = vpack.c.b16 %v6119, %v6118
    %v6130 = vpack.c.b16 %v6121, %v6120
    %v6131 = vpack.c.b16 %v6123, %v6122
    %6140 = vmatpush.bf16.msra.mxu0 %v6131
    %6141 = vmatpush.bf16.msra.mxu0 %v6130
    %6142 = vmatpush.bf16.msra.mxu0 %v6129
    %6143 = vmatpush.bf16.msra.mxu0 %v6128
    %6144 = vmatpush.bf16.msra.mxu0 %v6127
    %6145 = vmatpush.bf16.msra.mxu0 %v6126
    %6146 = vmatpush.bf16.msra.mxu0 %v6125
    %6147 = vmatpush.bf16.msra.mxu0 %v6124
    %6148 = vmatmul.bf16.gmra.mxu0 %v5997
    %v6149 = vpop.f32.mrf.mxu0
    %v6150 = vadd.f32 %v6089, %v6149
    %v6151 = vpop.f32.mrf.mxu0
    %6152 = vdwg.mxu0
    %v6153 = vld [vmem:[%s10] sm:$0x1]
    %v6155 = vperm.slane %v6153, 0
    %v6157 = vadd.f32 %v6150, %v6155
    %6158 = vst [vmem:[#allocation16] sm:$0xff] %v6157
    // Predicated region
    $region66: #{tpu_custom_call.1} parent=1 // pred_check
      _
    $region67: #{tpu_custom_call.1} parent=1 // pred_check_branch
      %6160 = sbr.rel (0) target = $region69
    $region68: #{tpu_custom_call.1} parent=1 // pred_region
      %6162 = vsyncadd [#allocation9], 0
      %s6164 = sshll.u32 [#allocation16], 4
      %s6165 = int_to_ptr.vmem [resolvable:$true] %s6164
      %s6166 = sshll.u32 %s11, 4
      %s6167 = int_to_ptr.hbm [resolvable:$true] %s6166
      %6169 = dma.vmem_to_hbm [thread:$0]  %s6165, 128, %s6167, [#allocation9]
    $region69: #{tpu_custom_call.1} parent=1 // pred_fallthru
      _
    // Predicated region
    $region70: #{tpu_custom_call.1} parent=1 // pred_check
      _
    $region71: #{tpu_custom_call.1} parent=1 // pred_check_branch
      %6171 = sbr.rel (0) target = $region73
    $region72: #{tpu_custom_call.1} parent=1 // pred_region
      %6173 = vsyncadd [#allocation18], 0
      %s6175 = sshll.u32 [#allocation17], 4
      %s6176 = int_to_ptr.vmem [resolvable:$true] %s6175
      %s6177 = sshll.u32 %s12, 4
      %s6178 = int_to_ptr.hbm [resolvable:$true] %s6177
      %6180 = dma.vmem_to_hbm [thread:$0]  %s6176, 128, %s6178, [#allocation18]
    $region73: #{tpu_custom_call.1} parent=1 // pred_fallthru
      _
    // Predicated region
    $region74: #{tpu_custom_call.1} parent=1 // pred_check
      _
    $region75: #{tpu_custom_call.1} parent=1 // pred_check_branch
      %6182 = sbr.rel (0) target = $region77
    $region76: #{tpu_custom_call.1} parent=1 // pred_region
      %6184 = dma.done [#allocation9], 128
    $region77: #{tpu_custom_call.1} parent=1 // pred_fallthru
      _
    // Predicated region
    $region78: #{tpu_custom_call.1} parent=1 // pred_check
      _
    $region79: #{tpu_custom_call.1} parent=1 // pred_check_branch
      %6186 = sbr.rel (0) target = $region81
    $region80: #{tpu_custom_call.1} parent=1 // pred_region
      %6188 = dma.done [#allocation18], 128
    $region81: #{tpu_custom_call.1} parent=1 // pred_fallthru
      _
    %6189 = vsyncpa [#allocation8], 1
    %6190 = vsyncpa [#allocation11], 1
    %6191 = vsyncpa [#allocation14], 1
    %6192 = vsyncpa [#allocation9], 1
    %6193 = vsyncpa [#allocation18], 1

</llo_original>
